<compile_context>
chip_gen: v7x
topology: tpu7x:2x2x1
jax: 0.10.0
libtpu: 0.0.40
codegen_flags: <defaults>
</compile_context>

<pallas_src>
import math
import jax
import jax.numpy as jnp
from jax.experimental import pallas as pl
from jax.experimental.pallas import tpu as pltpu

PAD = 0

# ---- synthetic config (small, TPU-friendly) ----
VOCAB = 50        # config.vocab_size
H = 128           # config.dim_hidden  (multiple of 128 -> lane-dense)
NH = 4            # attention heads
DH = H // NH      # 32
FF = 256          # intermediate size
N_LAYERS = 2      # config.num_hidden_layers_decoder
B = 2             # batch
S = 8             # tgt sequence length
T = 16            # encoder output length
MAX_POS = 64
EPS = 1e-12
NEG_BIG = -1e9

assert H % NH == 0 and S <= MAX_POS


# --------------------------- in-kernel helpers -------------------------------

def _ln(x, g, b):
    """LayerNorm over the last axis (f32). g, b are (1, H), broadcast over rows."""
    m = jnp.mean(x, axis=-1, keepdims=True)
    v = jnp.mean(jnp.square(x - m), axis=-1, keepdims=True)
    return (x - m) * jax.lax.rsqrt(v + EPS) * g + b


def _softmax(s):
    """Row softmax with the divide moved to the EUP (approx reciprocal)."""
    m = jnp.max(s, axis=-1, keepdims=True)
    e = jnp.exp(s - m)
    return e * pl.reciprocal(jnp.sum(e, axis=-1, keepdims=True), approx=True)


def _mha(q, k, v, w_o, kbias):
    """Multi-head attention.

    q     : (B, S, NH, DH) f32  (1/sqrt(DH) pre-folded into the Q projection)
    k, v  : (B, n_kv, NH, DH) f32
    w_o   : (H, H) bf16 output projection
    kbias : (B, S, n_kv) additive key-pad bias (already in final shape) or None

    Scores/contexts use single-batch-dim 3-D einsums per head (the Mosaic-supported
    batched-matmul pattern); the per-head contexts are recombined along lanes once and
    the output projection is applied as a SINGLE K=128 matmul (no K=32 accumulates).
    Returns (B*S, H) f32 (output projection applied, bias NOT added).
    """
    ctxs = []
    for hh in range(NH):
        qh = q[:, :, hh, :].astype(jnp.bfloat16)          # (B, S, DH)
        kh = k[:, :, hh, :].astype(jnp.bfloat16)          # (B, n_kv, DH)
        vh = v[:, :, hh, :].astype(jnp.bfloat16)
        s = jnp.einsum('bqd,bkd->bqk', qh, kh, preferred_element_type=jnp.float32)
        if kbias is not None:
            s = s + kbias                                  # no re-broadcast: full shape
        p = _softmax(s).astype(jnp.bfloat16)
        ctxs.append(jnp.einsum('bqk,bkd->bqd', p, vh, preferred_element_type=jnp.float32))
    # recombine heads along lanes -> one lane-dense (B*S, 128) tensor
    ctx = jnp.concatenate(ctxs, axis=-1).reshape(B * S, H).astype(jnp.bfloat16)
    return jnp.dot(ctx, w_o, preferred_element_type=jnp.float32)   # single K=128 matmul


# --------------------------- fused Pallas kernel -----------------------------

def fused_decoder_kernel(x_ref, enc_ref, kbias_ref, npad_ref, emb_g_ref, emb_b_ref,
                         w_ckv_ref, b_ckv_ref,
                         w_qkv_ref, b_qkv_ref, w_so_ref, b_so_ref, ln1g_ref, ln1b_ref,
                         w_cq_ref, b_cq_ref, w_co_ref, b_co_ref, ln2g_ref, ln2b_ref,
                         w_f1_ref, b_f1_ref, w_f2_ref, b_f2_ref, ln3g_ref, ln3b_ref,
                         out_ref, embs_ref):
    # hoisted once (reused by every head / layer; no repeated broadcast_in_dim)
    npad = jnp.broadcast_to(npad_ref[...], (B * S, H))     # (B*S, H) non-pad mask
    kbias = kbias_ref[...]                                 # (B, S, S) additive key bias
    enc_bf = enc_ref[...]                                  # (B*T, H) already bf16

    # ---- BertEmbeddings LayerNorm (dropout is a no-op in eval) ----
    h = _ln(x_ref[...], emb_g_ref[...], emb_b_ref[...])
    embs_ref[...] = h                                      # embs = embedding output stand-in

    # ---- cross-attn K/V for ALL layers in one matmul (enc is layer-invariant) ----
    # (B*T, H) @ (H, N_LAYERS*2H): N = 512 keeps the MXU fully fed.
    kv_cross = jnp.dot(enc_bf, w_ckv_ref[...],
                       preferred_element_type=jnp.float32) + b_ckv_ref[...]

    for li in range(N_LAYERS):                             # unrolled; weights stay in VMEM
        # ---- masked self-attention (fused QKV, N=384) ----
        qkv = jnp.dot(h.astype(jnp.bfloat16), w_qkv_ref[li],
                      preferred_element_type=jnp.float32) + b_qkv_ref[li]
        qkv4 = qkv.reshape(B, S, 3 * NH, DH)               # ONE reshape of the full tensor
        attn = _mha(qkv4[:, :, 0 * NH:1 * NH],
                    qkv4[:, :, 1 * NH:2 * NH],
                    qkv4[:, :, 2 * NH:3 * NH],
                    w_so_ref[li], kbias) + b_so_ref[li]
        h1 = _ln(attn + h, ln1g_ref[li], ln1b_ref[li]) * npad

        # ---- cross-attention to enc_output (all positions visible -> no bias) ----
        qc = jnp.dot(h1.astype(jnp.bfloat16), w_cq_ref[li],
                     preferred_element_type=jnp.float32) + b_cq_ref[li]
        qc4 = qc.reshape(B, S, NH, DH)
        kv4 = kv_cross[:, li * 2 * H:(li + 1) * 2 * H].reshape(B, T, 2 * NH, DH)  # 256-aligned slice
        cross = _mha(qc4, kv4[:, :, :NH], kv4[:, :, NH:],
                     w_co_ref[li], None) + b_co_ref[li]
        h2 = _ln(cross + h1, ln2g_ref[li], ln2b_ref[li]) * npad

        # ---- feed-forward ----
        ff = jax.nn.gelu(jnp.dot(h2.astype(jnp.bfloat16), w_f1_ref[li],
                                 preferred_element_type=jnp.float32) + b_f1_ref[li])
        ff = jnp.dot(ff.astype(jnp.bfloat16), w_f2_ref[li],
                     preferred_element_type=jnp.float32) + b_f2_ref[li]
        h = _ln(ff + h2, ln3g_ref[li], ln3b_ref[li]) * npad

    out_ref[...] = h


_WEIGHT_ORDER = [
    "w_qkv", "b_qkv", "w_so", "b_so", "ln1_g", "ln1_b",
    "w_cq", "b_cq", "w_co", "b_co", "ln2_g", "ln2_b",
    "w_f1", "b_f1", "w_f2", "b_f2", "ln3_g", "ln3_b",
]


# --------------------------- parameter init / prep ---------------------------

def init_params(key):
    def dense(k, shape):
        return jax.random.normal(k, shape, jnp.float32) * 0.02

    keys = jax.random.split(key, 4 + N_LAYERS)
    params = {
        "word_emb": dense(keys[0], (VOCAB, H)),
        "pos_emb": dense(keys[1], (MAX_POS, H)),
        "emb_ln_g": jnp.ones((H,), jnp.float32),
        "emb_ln_b": jnp.zeros((H,), jnp.float32),
        # self.linear (dim_hidden -> vocab) exists in __init__ but is unused in forward.
        "out_linear_w": dense(keys[2], (H, VOCAB)),
        "out_linear_b": jnp.zeros((1, VOCAB), jnp.float32),
        "layers": [],
    }
    for li in range(N_LAYERS):
        lk = jax.random.split(keys[4 + li], 8)
        params["layers"].append({
            "w_qkv": dense(lk[0], (H, 3 * H)), "b_qkv": jnp.zeros((1, 3 * H), jnp.float32),
            "w_so": dense(lk[1], (H, H)),      "b_so": jnp.zeros((1, H), jnp.float32),
            "ln1_g": jnp.ones((1, H), jnp.float32), "ln1_b": jnp.zeros((1, H), jnp.float32),
            "w_cq": dense(lk[2], (H, H)),      "b_cq": jnp.zeros((1, H), jnp.float32),
            "w_ckv": dense(lk[3], (H, 2 * H)), "b_ckv": jnp.zeros((1, 2 * H), jnp.float32),
            "w_co": dense(lk[4], (H, H)),      "b_co": jnp.zeros((1, H), jnp.float32),
            "ln2_g": jnp.ones((1, H), jnp.float32), "ln2_b": jnp.zeros((1, H), jnp.float32),
            "w_f1": dense(lk[5], (H, FF)),     "b_f1": jnp.zeros((1, FF), jnp.float32),
            "w_f2": dense(lk[6], (FF, H)),     "b_f2": jnp.zeros((1, H), jnp.float32),
            "ln3_g": jnp.ones((1, H), jnp.float32), "ln3_b": jnp.zeros((1, H), jnp.float32),
        })
    return params


def prep_kernel_params(params):
    """Stack per-layer weights on a leading (N_LAYERS,...) axis, fold 1/sqrt(DH) into the
    Q projections, stack the layer-invariant cross-KV weights along columns (so the
    enc K/V projection can be hoisted out of the layer loop as one N=N_LAYERS*2H matmul),
    and cast matmul weights to bf16 (biases / LayerNorm params stay f32)."""
    scale = 1.0 / math.sqrt(DH)

    def stack(name):
        return jnp.stack([lp[name] for lp in params["layers"]], axis=0)

    w_qkv = stack("w_qkv").at[:, :, :H].multiply(scale)     # scale folded into Wq
    b_qkv = stack("b_qkv").at[:, :, :H].multiply(scale)     # ... and its bias
    w_cq = stack("w_cq") * scale
    b_cq = stack("b_cq") * scale
    # layer-stacked cross K/V projection: (H, N_LAYERS*2H), per-layer blocks 256-aligned
    w_ckv_all = jnp.concatenate([lp["w_ckv"] for lp in params["layers"]], axis=1)
    b_ckv_all = jnp.concatenate([lp["b_ckv"] for lp in params["layers"]], axis=1)

    bf = lambda x: x.astype(jnp.bfloat16)
    return {
        "w_qkv": bf(w_qkv), "b_qkv": b_qkv,
        "w_so": bf(stack("w_so")), "b_so": stack("b_so"),
        "ln1_g": stack("ln1_g"), "ln1_b": stack("ln1_b"),
        "w_cq": bf(w_cq), "b_cq": b_cq,
        "w_co": bf(stack("w_co")), "b_co": stack("b_co"),
        "ln2_g": stack("ln2_g"), "ln2_b": stack("ln2_b"),
        "w_f1": bf(stack("w_f1")), "b_f1": stack("b_f1"),
        "w_f2": bf(stack("w_f2")), "b_f2": stack("b_f2"),
        "ln3_g": stack("ln3_g"), "ln3_b": stack("ln3_b"),
        "w_ckv_all": bf(w_ckv_all), "b_ckv_all": b_ckv_all,
    }


# --------------------------- forward (glue + one pallas_call) ----------------

def bert_decoder_forward(params, tgt_seq, enc_output):
    """Mirrors BertDecoder.forward for decoding_type='NARFormer', enhance_input=0,
    pos_attention=False, FCNet/BCNet=False, signals/category/tags=None."""
    kp = prep_kernel_params(params)

    # get_non_pad_mask / get_attn_key_pad_mask -> additive key bias built in FINAL shape
    # (all-visible enc-attend mask is identically zero and dropped entirely).
    npad2 = (tgt_seq != PAD).astype(jnp.float32).reshape(B * S, 1)
    key_bias = jnp.where(tgt_seq == PAD, NEG_BIG, 0.0).astype(jnp.float32)
    key_bias = jnp.broadcast_to(key_bias[:, None, :], (B, S, S))          # (B, S, S)

    # BertEmbeddings gather (word + position); LayerNorm happens inside the kernel.
    hidden_raw = (params["word_emb"][tgt_seq] + params["pos_emb"][:S][None, :, :])
    hidden_raw = hidden_raw.reshape(B * S, H)
    # enc_output pre-cast to bf16 in the wrapper (halves DMA bytes, no in-kernel pack).
    enc_bf = enc_output.astype(jnp.bfloat16).reshape(B * T, H)

    weights = [kp[n] for n in _WEIGHT_ORDER]
    n_inputs = 8 + len(weights)
    vmem = pl.BlockSpec(memory_space=pltpu.MemorySpace.VMEM)   # whole-array, resident

    # Single-TC, no grid: at B*S=16 splitting across v7x's two TensorCores is pure
    # overhead; at realistic batch add a leading row-tile grid axis marked "parallel".
    hid_flat, embs_flat = pl.pallas_call(
        fused_decoder_kernel,
        out_shape=(jax.ShapeDtypeStruct((B * S, H), jnp.float32),
                   jax.ShapeDtypeStruct((B * S, H), jnp.float32)),
        in_specs=[vmem] * n_inputs,
        out_specs=[vmem, vmem],
    )(hidden_raw, enc_bf, key_bias, npad2,
      params["emb_ln_g"].reshape(1, H), params["emb_ln_b"].reshape(1, H),
      kp["w_ckv_all"], kp["b_ckv_all"],
      *weights)

    hidden = hid_flat.reshape(B, S, H)
    embs = embs_flat.reshape(B, S, H)
    res = [hidden]            # res = [res[-1]]
    return (res, embs)        # outputs = (res, embs)


# ------------------------------- main -----------------------------------------

if __name__ == "__main__":
    key = jax.random.PRNGKey(0)
    k_param, k_seq, k_enc = jax.random.split(key, 3)

    params = init_params(k_param)

    # tgt_seq: int tokens in [1, VOCAB); trailing PADs in batch element 1
    tgt_seq = jax.random.randint(k_seq, (B, S), 1, VOCAB, dtype=jnp.int32)
    tgt_seq = tgt_seq.at[1, 5:].set(PAD)

    # enc_output: (B, T, H) float32
    enc_output = jax.random.normal(k_enc, (B, T, H), jnp.float32)

    fwd = jax.jit(bert_decoder_forward)
    res, embs = fwd(params, tgt_seq, enc_output)
    jax.block_until_ready(res[0])
    jax.block_until_ready(embs)

    assert res[0].shape == (B, S, H) and embs.shape == (B, S, H)
    assert bool(jnp.all(jnp.isfinite(res[0]))) and bool(jnp.all(jnp.isfinite(embs)))
    print("KERNEL_OK")
</pallas_src>

<mosaic_0001>
module attributes {stable_mosaic.version = 11 : i64} {
  func.func @fused_decoder_kernel(%arg0: memref<16x128xf32, #tpu.memory_space<vmem>>, %arg1: memref<32x128xbf16, #tpu.memory_space<vmem>>, %arg2: memref<2x8x8xf32, #tpu.memory_space<vmem>>, %arg3: memref<16x1xf32, #tpu.memory_space<vmem>>, %arg4: memref<1x128xf32, #tpu.memory_space<vmem>>, %arg5: memref<1x128xf32, #tpu.memory_space<vmem>>, %arg6: memref<128x512xbf16, #tpu.memory_space<vmem>>, %arg7: memref<1x512xf32, #tpu.memory_space<vmem>>, %arg8: memref<2x128x384xbf16, #tpu.memory_space<vmem>>, %arg9: memref<2x1x384xf32, #tpu.memory_space<vmem>>, %arg10: memref<2x128x128xbf16, #tpu.memory_space<vmem>>, %arg11: memref<2x1x128xf32, #tpu.memory_space<vmem>>, %arg12: memref<2x1x128xf32, #tpu.memory_space<vmem>>, %arg13: memref<2x1x128xf32, #tpu.memory_space<vmem>>, %arg14: memref<2x128x128xbf16, #tpu.memory_space<vmem>>, %arg15: memref<2x1x128xf32, #tpu.memory_space<vmem>>, %arg16: memref<2x128x128xbf16, #tpu.memory_space<vmem>>, %arg17: memref<2x1x128xf32, #tpu.memory_space<vmem>>, %arg18: memref<2x1x128xf32, #tpu.memory_space<vmem>>, %arg19: memref<2x1x128xf32, #tpu.memory_space<vmem>>, %arg20: memref<2x128x256xbf16, #tpu.memory_space<vmem>>, %arg21: memref<2x1x256xf32, #tpu.memory_space<vmem>>, %arg22: memref<2x256x128xbf16, #tpu.memory_space<vmem>>, %arg23: memref<2x1x128xf32, #tpu.memory_space<vmem>>, %arg24: memref<2x1x128xf32, #tpu.memory_space<vmem>>, %arg25: memref<2x1x128xf32, #tpu.memory_space<vmem>>, %arg26: memref<16x128xf32, #tpu.memory_space<vmem>>, %arg27: memref<16x128xf32, #tpu.memory_space<vmem>>) attributes {dimension_semantics = [], scalar_prefetch = 0 : i64, scratch_operands = 0 : i64, tpu.core_type = #tpu.core_type<tc>} {
    %c0 = arith.constant 0 : index
    %c0_0 = arith.constant 0 : index
    %0 = vector.load %arg3[%c0, %c0_0] : memref<16x1xf32, #tpu.memory_space<vmem>>, vector<16x1xf32>
    %1 = vector.shape_cast %0 : vector<16x1xf32> to vector<16x1xf32>
    %2 = vector.broadcast %1 : vector<16x1xf32> to vector<16x128xf32>
    %c0_1 = arith.constant 0 : index
    %c0_2 = arith.constant 0 : index
    %c0_3 = arith.constant 0 : index
    %3 = vector.load %arg2[%c0_1, %c0_2, %c0_3] : memref<2x8x8xf32, #tpu.memory_space<vmem>>, vector<2x8x8xf32>
    %c0_4 = arith.constant 0 : index
    %c0_5 = arith.constant 0 : index
    %4 = vector.load %arg1[%c0_4, %c0_5] : memref<32x128xbf16, #tpu.memory_space<vmem>>, vector<32x128xbf16>
    %c0_6 = arith.constant 0 : index
    %c0_7 = arith.constant 0 : index
    %5 = vector.load %arg0[%c0_6, %c0_7] : memref<16x128xf32, #tpu.memory_space<vmem>>, vector<16x128xf32>
    %c0_8 = arith.constant 0 : index
    %c0_9 = arith.constant 0 : index
    %6 = vector.load %arg4[%c0_8, %c0_9] : memref<1x128xf32, #tpu.memory_space<vmem>>, vector<1x128xf32>
    %c0_10 = arith.constant 0 : index
    %c0_11 = arith.constant 0 : index
    %7 = vector.load %arg5[%c0_10, %c0_11] : memref<1x128xf32, #tpu.memory_space<vmem>>, vector<1x128xf32>
    %cst = arith.constant dense<0.000000e+00> : vector<16xf32>
    %8 = vector.multi_reduction <add>, %5, %cst [1] : vector<16x128xf32> to vector<16xf32>
    %9 = vector.shape_cast %8 : vector<16xf32> to vector<16x1xf32>
    %cst_12 = arith.constant 1.280000e+02 : f32
    %10 = vector.broadcast %cst_12 : f32 to vector<16x1xf32>
    %11 = arith.divf %9, %10 : vector<16x1xf32>
    %12 = vector.broadcast %11 : vector<16x1xf32> to vector<16x128xf32>
    %13 = arith.subf %5, %12 : vector<16x128xf32>
    %14 = arith.mulf %13, %13 : vector<16x128xf32>
    %cst_13 = arith.constant dense<0.000000e+00> : vector<16xf32>
    %15 = vector.multi_reduction <add>, %14, %cst_13 [1] : vector<16x128xf32> to vector<16xf32>
    %16 = vector.shape_cast %15 : vector<16xf32> to vector<16x1xf32>
    %cst_14 = arith.constant 1.280000e+02 : f32
    %17 = vector.broadcast %cst_14 : f32 to vector<16x1xf32>
    %18 = arith.divf %16, %17 : vector<16x1xf32>
    %19 = vector.broadcast %11 : vector<16x1xf32> to vector<16x128xf32>
    %20 = arith.subf %5, %19 : vector<16x128xf32>
    %cst_15 = arith.constant 9.99999996E-13 : f32
    %21 = vector.broadcast %cst_15 : f32 to vector<16x1xf32>
    %22 = arith.addf %18, %21 : vector<16x1xf32>
    %23 = math.rsqrt %22 : vector<16x1xf32>
    %24 = vector.broadcast %23 : vector<16x1xf32> to vector<16x128xf32>
    %25 = arith.mulf %20, %24 : vector<16x128xf32>
    %26 = vector.broadcast %6 : vector<1x128xf32> to vector<16x128xf32>
    %27 = arith.mulf %25, %26 : vector<16x128xf32>
    %28 = vector.broadcast %7 : vector<1x128xf32> to vector<16x128xf32>
    %29 = arith.addf %27, %28 : vector<16x128xf32>
    %c0_16 = arith.constant 0 : index
    %c0_17 = arith.constant 0 : index
    %30 = vector.load %arg27[%c0_16, %c0_17] : memref<16x128xf32, #tpu.memory_space<vmem>>, vector<16x128xf32>
    tpu.vector_store %arg27[%c0_16, %c0_17], %29 {strides = array<i32>} : memref<16x128xf32, #tpu.memory_space<vmem>>, vector<16x128xf32>,
    %c0_18 = arith.constant 0 : index
    %c0_19 = arith.constant 0 : index
    %31 = vector.load %arg6[%c0_18, %c0_19] : memref<128x512xbf16, #tpu.memory_space<vmem>>, vector<128x512xbf16>
    %cst_20 = arith.constant dense<0.000000e+00> : vector<32x512xf32>
    %32 = tpu.matmul %4, %31, %cst_20 {dimension_numbers = #tpu.dot_dimension_numbers<[1], [0], [0], [1], [0, 0, 1, 1], [], []>} : vector<32x128xbf16>, vector<128x512xbf16>, vector<32x512xf32> -> vector<32x512xf32>
    %c0_21 = arith.constant 0 : index
    %c0_22 = arith.constant 0 : index
    %33 = vector.load %arg7[%c0_21, %c0_22] : memref<1x512xf32, #tpu.memory_space<vmem>>, vector<1x512xf32>
    %34 = vector.broadcast %33 : vector<1x512xf32> to vector<32x512xf32>
    %35 = arith.addf %32, %34 : vector<32x512xf32>
    %36 = arith.truncf %29 : vector<16x128xf32> to vector<16x128xbf16>
    %c0_23 = arith.constant 0 : index
    %c0_24 = arith.constant 0 : index
    %c0_25 = arith.constant 0 : index
    %37 = vector.load %arg8[%c0_23, %c0_24, %c0_25] : memref<2x128x384xbf16, #tpu.memory_space<vmem>>, vector<1x128x384xbf16>
    %38 = vector.shape_cast %37 : vector<1x128x384xbf16> to vector<128x384xbf16>
    %cst_26 = arith.constant dense<0.000000e+00> : vector<16x384xf32>
    %39 = tpu.matmul %36, %38, %cst_26 {dimension_numbers = #tpu.dot_dimension_numbers<[1], [0], [0], [1], [0, 0, 1, 1], [], []>} : vector<16x128xbf16>, vector<128x384xbf16>, vector<16x384xf32> -> vector<16x384xf32>
    %c0_27 = arith.constant 0 : index
    %c0_28 = arith.constant 0 : index
    %c0_29 = arith.constant 0 : index
    %40 = vector.load %arg9[%c0_27, %c0_28, %c0_29] : memref<2x1x384xf32, #tpu.memory_space<vmem>>, vector<1x1x384xf32>
    %41 = vector.shape_cast %40 : vector<1x1x384xf32> to vector<1x384xf32>
    %42 = vector.broadcast %41 : vector<1x384xf32> to vector<16x384xf32>
    %43 = arith.addf %39, %42 : vector<16x384xf32>
    %44 = vector.shape_cast %43 : vector<16x384xf32> to vector<2x8x12x32xf32>
    %45 = vector.extract_strided_slice %44 {offsets = [0, 0, 0, 0], sizes = [2, 8, 4, 32], strides = [1, 1, 1, 1]} : vector<2x8x12x32xf32> to vector<2x8x4x32xf32>
    %46 = vector.extract_strided_slice %44 {offsets = [0, 0, 4, 0], sizes = [2, 8, 4, 32], strides = [1, 1, 1, 1]} : vector<2x8x12x32xf32> to vector<2x8x4x32xf32>
    %47 = vector.extract_strided_slice %44 {offsets = [0, 0, 8, 0], sizes = [2, 8, 4, 32], strides = [1, 1, 1, 1]} : vector<2x8x12x32xf32> to vector<2x8x4x32xf32>
    %c0_30 = arith.constant 0 : index
    %c0_31 = arith.constant 0 : index
    %c0_32 = arith.constant 0 : index
    %48 = vector.load %arg10[%c0_30, %c0_31, %c0_32] : memref<2x128x128xbf16, #tpu.memory_space<vmem>>, vector<1x128x128xbf16>
    %49 = vector.shape_cast %48 : vector<1x128x128xbf16> to vector<128x128xbf16>
    %50 = vector.extract_strided_slice %45 {offsets = [0, 0, 0, 0], sizes = [2, 8, 1, 32], strides = [1, 1, 1, 1]} : vector<2x8x4x32xf32> to vector<2x8x1x32xf32>
    %51 = vector.shape_cast %50 : vector<2x8x1x32xf32> to vector<2x8x32xf32>
    %52 = arith.truncf %51 : vector<2x8x32xf32> to vector<2x8x32xbf16>
    %53 = vector.extract_strided_slice %46 {offsets = [0, 0, 0, 0], sizes = [2, 8, 1, 32], strides = [1, 1, 1, 1]} : vector<2x8x4x32xf32> to vector<2x8x1x32xf32>
    %54 = vector.shape_cast %53 : vector<2x8x1x32xf32> to vector<2x8x32xf32>
    %55 = arith.truncf %54 : vector<2x8x32xf32> to vector<2x8x32xbf16>
    %56 = vector.extract_strided_slice %47 {offsets = [0, 0, 0, 0], sizes = [2, 8, 1, 32], strides = [1, 1, 1, 1]} : vector<2x8x4x32xf32> to vector<2x8x1x32xf32>
    %57 = vector.shape_cast %56 : vector<2x8x1x32xf32> to vector<2x8x32xf32>
    %58 = arith.truncf %57 : vector<2x8x32xf32> to vector<2x8x32xbf16>
    "tpu.trace_start"() <{level = 10 : i32, message = "bqd,bkd->bqk"}> : () -> ()
    %cst_33 = arith.constant dense<0.000000e+00> : vector<2x8x8xf32>
    %59 = tpu.matmul %52, %55, %cst_33 {dimension_numbers = #tpu.dot_dimension_numbers<[2], [2], [1], [1], [0, 0, 0, 1, 1, 1], [0], [0]>} : vector<2x8x32xbf16>, vector<2x8x32xbf16>, vector<2x8x8xf32> -> vector<2x8x8xf32>
    "tpu.trace_stop"() : () -> ()
    %60 = arith.addf %59, %3 : vector<2x8x8xf32>
    %cst_34 = arith.constant dense<0xFF800000> : vector<2x8xf32>
    %61 = vector.multi_reduction <maximumf>, %60, %cst_34 [2] : vector<2x8x8xf32> to vector<2x8xf32>
    %62 = vector.shape_cast %61 : vector<2x8xf32> to vector<2x8x1xf32>
    %63 = vector.broadcast %62 : vector<2x8x1xf32> to vector<2x8x8xf32>
    %64 = arith.subf %60, %63 : vector<2x8x8xf32>
    %65 = math.exp %64 : vector<2x8x8xf32>
    %cst_35 = arith.constant dense<0.000000e+00> : vector<2x8xf32>
    %66 = vector.multi_reduction <add>, %65, %cst_35 [2] : vector<2x8x8xf32> to vector<2x8xf32>
    %67 = vector.shape_cast %66 : vector<2x8xf32> to vector<2x8x1xf32>
    %68 = tpu.reciprocal %67 {approx = true} : vector<2x8x1xf32> -> vector<2x8x1xf32>
    %69 = vector.broadcast %68 : vector<2x8x1xf32> to vector<2x8x8xf32>
    %70 = arith.mulf %65, %69 : vector<2x8x8xf32>
    %71 = arith.truncf %70 : vector<2x8x8xf32> to vector<2x8x8xbf16>
    "tpu.trace_start"() <{level = 10 : i32, message = "bqk,bkd->bqd"}> : () -> ()
    %cst_36 = arith.constant dense<0.000000e+00> : vector<2x8x32xf32>
    %72 = tpu.matmul %71, %58, %cst_36 {dimension_numbers = #tpu.dot_dimension_numbers<[2], [1], [1], [2], [0, 0, 0, 1, 1, 2], [0], [0]>} : vector<2x8x8xbf16>, vector<2x8x32xbf16>, vector<2x8x32xf32> -> vector<2x8x32xf32>
    "tpu.trace_stop"() : () -> ()
    %73 = vector.extract_strided_slice %45 {offsets = [0, 0, 1, 0], sizes = [2, 8, 1, 32], strides = [1, 1, 1, 1]} : vector<2x8x4x32xf32> to vector<2x8x1x32xf32>
    %74 = vector.shape_cast %73 : vector<2x8x1x32xf32> to vector<2x8x32xf32>
    %75 = arith.truncf %74 : vector<2x8x32xf32> to vector<2x8x32xbf16>
    %76 = vector.extract_strided_slice %46 {offsets = [0, 0, 1, 0], sizes = [2, 8, 1, 32], strides = [1, 1, 1, 1]} : vector<2x8x4x32xf32> to vector<2x8x1x32xf32>
    %77 = vector.shape_cast %76 : vector<2x8x1x32xf32> to vector<2x8x32xf32>
    %78 = arith.truncf %77 : vector<2x8x32xf32> to vector<2x8x32xbf16>
    %79 = vector.extract_strided_slice %47 {offsets = [0, 0, 1, 0], sizes = [2, 8, 1, 32], strides = [1, 1, 1, 1]} : vector<2x8x4x32xf32> to vector<2x8x1x32xf32>
    %80 = vector.shape_cast %79 : vector<2x8x1x32xf32> to vector<2x8x32xf32>
    %81 = arith.truncf %80 : vector<2x8x32xf32> to vector<2x8x32xbf16>
    "tpu.trace_start"() <{level = 10 : i32, message = "bqd,bkd->bqk"}> : () -> ()
    %cst_37 = arith.constant dense<0.000000e+00> : vector<2x8x8xf32>
    %82 = tpu.matmul %75, %78, %cst_37 {dimension_numbers = #tpu.dot_dimension_numbers<[2], [2], [1], [1], [0, 0, 0, 1, 1, 1], [0], [0]>} : vector<2x8x32xbf16>, vector<2x8x32xbf16>, vector<2x8x8xf32> -> vector<2x8x8xf32>
    "tpu.trace_stop"() : () -> ()
    %83 = arith.addf %82, %3 : vector<2x8x8xf32>
    %cst_38 = arith.constant dense<0xFF800000> : vector<2x8xf32>
    %84 = vector.multi_reduction <maximumf>, %83, %cst_38 [2] : vector<2x8x8xf32> to vector<2x8xf32>
    %85 = vector.shape_cast %84 : vector<2x8xf32> to vector<2x8x1xf32>
    %86 = vector.broadcast %85 : vector<2x8x1xf32> to vector<2x8x8xf32>
    %87 = arith.subf %83, %86 : vector<2x8x8xf32>
    %88 = math.exp %87 : vector<2x8x8xf32>
    %cst_39 = arith.constant dense<0.000000e+00> : vector<2x8xf32>
    %89 = vector.multi_reduction <add>, %88, %cst_39 [2] : vector<2x8x8xf32> to vector<2x8xf32>
    %90 = vector.shape_cast %89 : vector<2x8xf32> to vector<2x8x1xf32>
    %91 = tpu.reciprocal %90 {approx = true} : vector<2x8x1xf32> -> vector<2x8x1xf32>
    %92 = vector.broadcast %91 : vector<2x8x1xf32> to vector<2x8x8xf32>
    %93 = arith.mulf %88, %92 : vector<2x8x8xf32>
    %94 = arith.truncf %93 : vector<2x8x8xf32> to vector<2x8x8xbf16>
    "tpu.trace_start"() <{level = 10 : i32, message = "bqk,bkd->bqd"}> : () -> ()
    %cst_40 = arith.constant dense<0.000000e+00> : vector<2x8x32xf32>
    %95 = tpu.matmul %94, %81, %cst_40 {dimension_numbers = #tpu.dot_dimension_numbers<[2], [1], [1], [2], [0, 0, 0, 1, 1, 2], [0], [0]>} : vector<2x8x8xbf16>, vector<2x8x32xbf16>, vector<2x8x32xf32> -> vector<2x8x32xf32>
    "tpu.trace_stop"() : () -> ()
    %96 = vector.extract_strided_slice %45 {offsets = [0, 0, 2, 0], sizes = [2, 8, 1, 32], strides = [1, 1, 1, 1]} : vector<2x8x4x32xf32> to vector<2x8x1x32xf32>
    %97 = vector.shape_cast %96 : vector<2x8x1x32xf32> to vector<2x8x32xf32>
    %98 = arith.truncf %97 : vector<2x8x32xf32> to vector<2x8x32xbf16>
    %99 = vector.extract_strided_slice %46 {offsets = [0, 0, 2, 0], sizes = [2, 8, 1, 32], strides = [1, 1, 1, 1]} : vector<2x8x4x32xf32> to vector<2x8x1x32xf32>
    %100 = vector.shape_cast %99 : vector<2x8x1x32xf32> to vector<2x8x32xf32>
    %101 = arith.truncf %100 : vector<2x8x32xf32> to vector<2x8x32xbf16>
    %102 = vector.extract_strided_slice %47 {offsets = [0, 0, 2, 0], sizes = [2, 8, 1, 32], strides = [1, 1, 1, 1]} : vector<2x8x4x32xf32> to vector<2x8x1x32xf32>
    %103 = vector.shape_cast %102 : vector<2x8x1x32xf32> to vector<2x8x32xf32>
    %104 = arith.truncf %103 : vector<2x8x32xf32> to vector<2x8x32xbf16>
    "tpu.trace_start"() <{level = 10 : i32, message = "bqd,bkd->bqk"}> : () -> ()
    %cst_41 = arith.constant dense<0.000000e+00> : vector<2x8x8xf32>
    %105 = tpu.matmul %98, %101, %cst_41 {dimension_numbers = #tpu.dot_dimension_numbers<[2], [2], [1], [1], [0, 0, 0, 1, 1, 1], [0], [0]>} : vector<2x8x32xbf16>, vector<2x8x32xbf16>, vector<2x8x8xf32> -> vector<2x8x8xf32>
    "tpu.trace_stop"() : () -> ()
    %106 = arith.addf %105, %3 : vector<2x8x8xf32>
    %cst_42 = arith.constant dense<0xFF800000> : vector<2x8xf32>
    %107 = vector.multi_reduction <maximumf>, %106, %cst_42 [2] : vector<2x8x8xf32> to vector<2x8xf32>
    %108 = vector.shape_cast %107 : vector<2x8xf32> to vector<2x8x1xf32>
    %109 = vector.broadcast %108 : vector<2x8x1xf32> to vector<2x8x8xf32>
    %110 = arith.subf %106, %109 : vector<2x8x8xf32>
    %111 = math.exp %110 : vector<2x8x8xf32>
    %cst_43 = arith.constant dense<0.000000e+00> : vector<2x8xf32>
    %112 = vector.multi_reduction <add>, %111, %cst_43 [2] : vector<2x8x8xf32> to vector<2x8xf32>
    %113 = vector.shape_cast %112 : vector<2x8xf32> to vector<2x8x1xf32>
    %114 = tpu.reciprocal %113 {approx = true} : vector<2x8x1xf32> -> vector<2x8x1xf32>
    %115 = vector.broadcast %114 : vector<2x8x1xf32> to vector<2x8x8xf32>
    %116 = arith.mulf %111, %115 : vector<2x8x8xf32>
    %117 = arith.truncf %116 : vector<2x8x8xf32> to vector<2x8x8xbf16>
    "tpu.trace_start"() <{level = 10 : i32, message = "bqk,bkd->bqd"}> : () -> ()
    %cst_44 = arith.constant dense<0.000000e+00> : vector<2x8x32xf32>
    %118 = tpu.matmul %117, %104, %cst_44 {dimension_numbers = #tpu.dot_dimension_numbers<[2], [1], [1], [2], [0, 0, 0, 1, 1, 2], [0], [0]>} : vector<2x8x8xbf16>, vector<2x8x32xbf16>, vector<2x8x32xf32> -> vector<2x8x32xf32>
    "tpu.trace_stop"() : () -> ()
    %119 = vector.extract_strided_slice %45 {offsets = [0, 0, 3, 0], sizes = [2, 8, 1, 32], strides = [1, 1, 1, 1]} : vector<2x8x4x32xf32> to vector<2x8x1x32xf32>
    %120 = vector.shape_cast %119 : vector<2x8x1x32xf32> to vector<2x8x32xf32>
    %121 = arith.truncf %120 : vector<2x8x32xf32> to vector<2x8x32xbf16>
    %122 = vector.extract_strided_slice %46 {offsets = [0, 0, 3, 0], sizes = [2, 8, 1, 32], strides = [1, 1, 1, 1]} : vector<2x8x4x32xf32> to vector<2x8x1x32xf32>
    %123 = vector.shape_cast %122 : vector<2x8x1x32xf32> to vector<2x8x32xf32>
    %124 = arith.truncf %123 : vector<2x8x32xf32> to vector<2x8x32xbf16>
    %125 = vector.extract_strided_slice %47 {offsets = [0, 0, 3, 0], sizes = [2, 8, 1, 32], strides = [1, 1, 1, 1]} : vector<2x8x4x32xf32> to vector<2x8x1x32xf32>
    %126 = vector.shape_cast %125 : vector<2x8x1x32xf32> to vector<2x8x32xf32>
    %127 = arith.truncf %126 : vector<2x8x32xf32> to vector<2x8x32xbf16>
    "tpu.trace_start"() <{level = 10 : i32, message = "bqd,bkd->bqk"}> : () -> ()
    %cst_45 = arith.constant dense<0.000000e+00> : vector<2x8x8xf32>
    %128 = tpu.matmul %121, %124, %cst_45 {dimension_numbers = #tpu.dot_dimension_numbers<[2], [2], [1], [1], [0, 0, 0, 1, 1, 1], [0], [0]>} : vector<2x8x32xbf16>, vector<2x8x32xbf16>, vector<2x8x8xf32> -> vector<2x8x8xf32>
    "tpu.trace_stop"() : () -> ()
    %129 = arith.addf %128, %3 : vector<2x8x8xf32>
    %cst_46 = arith.constant dense<0xFF800000> : vector<2x8xf32>
    %130 = vector.multi_reduction <maximumf>, %129, %cst_46 [2] : vector<2x8x8xf32> to vector<2x8xf32>
    %131 = vector.shape_cast %130 : vector<2x8xf32> to vector<2x8x1xf32>
    %132 = vector.broadcast %131 : vector<2x8x1xf32> to vector<2x8x8xf32>
    %133 = arith.subf %129, %132 : vector<2x8x8xf32>
    %134 = math.exp %133 : vector<2x8x8xf32>
    %cst_47 = arith.constant dense<0.000000e+00> : vector<2x8xf32>
    %135 = vector.multi_reduction <add>, %134, %cst_47 [2] : vector<2x8x8xf32> to vector<2x8xf32>
    %136 = vector.shape_cast %135 : vector<2x8xf32> to vector<2x8x1xf32>
    %137 = tpu.reciprocal %136 {approx = true} : vector<2x8x1xf32> -> vector<2x8x1xf32>
    %138 = vector.broadcast %137 : vector<2x8x1xf32> to vector<2x8x8xf32>
    %139 = arith.mulf %134, %138 : vector<2x8x8xf32>
    %140 = arith.truncf %139 : vector<2x8x8xf32> to vector<2x8x8xbf16>
    "tpu.trace_start"() <{level = 10 : i32, message = "bqk,bkd->bqd"}> : () -> ()
    %cst_48 = arith.constant dense<0.000000e+00> : vector<2x8x32xf32>
    %141 = tpu.matmul %140, %127, %cst_48 {dimension_numbers = #tpu.dot_dimension_numbers<[2], [1], [1], [2], [0, 0, 0, 1, 1, 2], [0], [0]>} : vector<2x8x8xbf16>, vector<2x8x32xbf16>, vector<2x8x32xf32> -> vector<2x8x32xf32>
    "tpu.trace_stop"() : () -> ()
    %142 = tpu.concatenate %72, %95, %118, %141 in 2 : vector<2x8x32xf32>, vector<2x8x32xf32>, vector<2x8x32xf32>, vector<2x8x32xf32> -> vector<2x8x128xf32>
    %143 = vector.shape_cast %142 : vector<2x8x128xf32> to vector<16x128xf32>
    %144 = arith.truncf %143 : vector<16x128xf32> to vector<16x128xbf16>
    %cst_49 = arith.constant dense<0.000000e+00> : vector<16x128xf32>
    %145 = tpu.matmul %144, %49, %cst_49 {dimension_numbers = #tpu.dot_dimension_numbers<[1], [0], [0], [1], [0, 0, 1, 1], [], []>} : vector<16x128xbf16>, vector<128x128xbf16>, vector<16x128xf32> -> vector<16x128xf32>
    %c0_50 = arith.constant 0 : index
    %c0_51 = arith.constant 0 : index
    %c0_52 = arith.constant 0 : index
    %146 = vector.load %arg11[%c0_50, %c0_51, %c0_52] : memref<2x1x128xf32, #tpu.memory_space<vmem>>, vector<1x1x128xf32>
    %147 = vector.shape_cast %146 : vector<1x1x128xf32> to vector<1x128xf32>
    %148 = vector.broadcast %147 : vector<1x128xf32> to vector<16x128xf32>
    %149 = arith.addf %145, %148 : vector<16x128xf32>
    %150 = arith.addf %149, %29 : vector<16x128xf32>
    %c0_53 = arith.constant 0 : index
    %c0_54 = arith.constant 0 : index
    %c0_55 = arith.constant 0 : index
    %151 = vector.load %arg12[%c0_53, %c0_54, %c0_55] : memref<2x1x128xf32, #tpu.memory_space<vmem>>, vector<1x1x128xf32>
    %152 = vector.shape_cast %151 : vector<1x1x128xf32> to vector<1x128xf32>
    %c0_56 = arith.constant 0 : index
    %c0_57 = arith.constant 0 : index
    %c0_58 = arith.constant 0 : index
    %153 = vector.load %arg13[%c0_56, %c0_57, %c0_58] : memref<2x1x128xf32, #tpu.memory_space<vmem>>, vector<1x1x128xf32>
    %154 = vector.shape_cast %153 : vector<1x1x128xf32> to vector<1x128xf32>
    %cst_59 = arith.constant dense<0.000000e+00> : vector<16xf32>
    %155 = vector.multi_reduction <add>, %150, %cst_59 [1] : vector<16x128xf32> to vector<16xf32>
    %156 = vector.shape_cast %155 : vector<16xf32> to vector<16x1xf32>
    %cst_60 = arith.constant 1.280000e+02 : f32
    %157 = vector.broadcast %cst_60 : f32 to vector<16x1xf32>
    %158 = arith.divf %156, %157 : vector<16x1xf32>
    %159 = vector.broadcast %158 : vector<16x1xf32> to vector<16x128xf32>
    %160 = arith.subf %150, %159 : vector<16x128xf32>
    %161 = arith.mulf %160, %160 : vector<16x128xf32>
    %cst_61 = arith.constant dense<0.000000e+00> : vector<16xf32>
    %162 = vector.multi_reduction <add>, %161, %cst_61 [1] : vector<16x128xf32> to vector<16xf32>
    %163 = vector.shape_cast %162 : vector<16xf32> to vector<16x1xf32>
    %cst_62 = arith.constant 1.280000e+02 : f32
    %164 = vector.broadcast %cst_62 : f32 to vector<16x1xf32>
    %165 = arith.divf %163, %164 : vector<16x1xf32>
    %166 = vector.broadcast %158 : vector<16x1xf32> to vector<16x128xf32>
    %167 = arith.subf %150, %166 : vector<16x128xf32>
    %cst_63 = arith.constant 9.99999996E-13 : f32
    %168 = vector.broadcast %cst_63 : f32 to vector<16x1xf32>
    %169 = arith.addf %165, %168 : vector<16x1xf32>
    %170 = math.rsqrt %169 : vector<16x1xf32>
    %171 = vector.broadcast %170 : vector<16x1xf32> to vector<16x128xf32>
    %172 = arith.mulf %167, %171 : vector<16x128xf32>
    %173 = vector.broadcast %152 : vector<1x128xf32> to vector<16x128xf32>
    %174 = arith.mulf %172, %173 : vector<16x128xf32>
    %175 = vector.broadcast %154 : vector<1x128xf32> to vector<16x128xf32>
    %176 = arith.addf %174, %175 : vector<16x128xf32>
    %177 = arith.mulf %176, %2 : vector<16x128xf32>
    %178 = arith.truncf %177 : vector<16x128xf32> to vector<16x128xbf16>
    %c0_64 = arith.constant 0 : index
    %c0_65 = arith.constant 0 : index
    %c0_66 = arith.constant 0 : index
    %179 = vector.load %arg14[%c0_64, %c0_65, %c0_66] : memref<2x128x128xbf16, #tpu.memory_space<vmem>>, vector<1x128x128xbf16>
    %180 = vector.shape_cast %179 : vector<1x128x128xbf16> to vector<128x128xbf16>
    %cst_67 = arith.constant dense<0.000000e+00> : vector<16x128xf32>
    %181 = tpu.matmul %178, %180, %cst_67 {dimension_numbers = #tpu.dot_dimension_numbers<[1], [0], [0], [1], [0, 0, 1, 1], [], []>} : vector<16x128xbf16>, vector<128x128xbf16>, vector<16x128xf32> -> vector<16x128xf32>
    %c0_68 = arith.constant 0 : index
    %c0_69 = arith.constant 0 : index
    %c0_70 = arith.constant 0 : index
    %182 = vector.load %arg15[%c0_68, %c0_69, %c0_70] : memref<2x1x128xf32, #tpu.memory_space<vmem>>, vector<1x1x128xf32>
    %183 = vector.shape_cast %182 : vector<1x1x128xf32> to vector<1x128xf32>
    %184 = vector.broadcast %183 : vector<1x128xf32> to vector<16x128xf32>
    %185 = arith.addf %181, %184 : vector<16x128xf32>
    %186 = vector.shape_cast %185 : vector<16x128xf32> to vector<2x8x4x32xf32>
    %187 = vector.extract_strided_slice %35 {offsets = [0, 0], sizes = [32, 256], strides = [1, 1]} : vector<32x512xf32> to vector<32x256xf32>
    %188 = vector.shape_cast %187 : vector<32x256xf32> to vector<2x16x8x32xf32>
    %189 = vector.extract_strided_slice %188 {offsets = [0, 0, 0, 0], sizes = [2, 16, 4, 32], strides = [1, 1, 1, 1]} : vector<2x16x8x32xf32> to vector<2x16x4x32xf32>
    %190 = vector.extract_strided_slice %188 {offsets = [0, 0, 4, 0], sizes = [2, 16, 4, 32], strides = [1, 1, 1, 1]} : vector<2x16x8x32xf32> to vector<2x16x4x32xf32>
    %c0_71 = arith.constant 0 : index
    %c0_72 = arith.constant 0 : index
    %c0_73 = arith.constant 0 : index
    %191 = vector.load %arg16[%c0_71, %c0_72, %c0_73] : memref<2x128x128xbf16, #tpu.memory_space<vmem>>, vector<1x128x128xbf16>
    %192 = vector.shape_cast %191 : vector<1x128x128xbf16> to vector<128x128xbf16>
    %193 = vector.extract_strided_slice %186 {offsets = [0, 0, 0, 0], sizes = [2, 8, 1, 32], strides = [1, 1, 1, 1]} : vector<2x8x4x32xf32> to vector<2x8x1x32xf32>
    %194 = vector.shape_cast %193 : vector<2x8x1x32xf32> to vector<2x8x32xf32>
    %195 = arith.truncf %194 : vector<2x8x32xf32> to vector<2x8x32xbf16>
    %196 = vector.extract_strided_slice %189 {offsets = [0, 0, 0, 0], sizes = [2, 16, 1, 32], strides = [1, 1, 1, 1]} : vector<2x16x4x32xf32> to vector<2x16x1x32xf32>
    %197 = vector.shape_cast %196 : vector<2x16x1x32xf32> to vector<2x16x32xf32>
    %198 = arith.truncf %197 : vector<2x16x32xf32> to vector<2x16x32xbf16>
    %199 = vector.extract_strided_slice %190 {offsets = [0, 0, 0, 0], sizes = [2, 16, 1, 32], strides = [1, 1, 1, 1]} : vector<2x16x4x32xf32> to vector<2x16x1x32xf32>
    %200 = vector.shape_cast %199 : vector<2x16x1x32xf32> to vector<2x16x32xf32>
    %201 = arith.truncf %200 : vector<2x16x32xf32> to vector<2x16x32xbf16>
    "tpu.trace_start"() <{level = 10 : i32, message = "bqd,bkd->bqk"}> : () -> ()
    %cst_74 = arith.constant dense<0.000000e+00> : vector<2x8x16xf32>
    %202 = tpu.matmul %195, %198, %cst_74 {dimension_numbers = #tpu.dot_dimension_numbers<[2], [2], [1], [1], [0, 0, 0, 1, 1, 1], [0], [0]>} : vector<2x8x32xbf16>, vector<2x16x32xbf16>, vector<2x8x16xf32> -> vector<2x8x16xf32>
    "tpu.trace_stop"() : () -> ()
    %cst_75 = arith.constant dense<0xFF800000> : vector<2x8xf32>
    %203 = vector.multi_reduction <maximumf>, %202, %cst_75 [2] : vector<2x8x16xf32> to vector<2x8xf32>
    %204 = vector.shape_cast %203 : vector<2x8xf32> to vector<2x8x1xf32>
    %205 = vector.broadcast %204 : vector<2x8x1xf32> to vector<2x8x16xf32>
    %206 = arith.subf %202, %205 : vector<2x8x16xf32>
    %207 = math.exp %206 : vector<2x8x16xf32>
    %cst_76 = arith.constant dense<0.000000e+00> : vector<2x8xf32>
    %208 = vector.multi_reduction <add>, %207, %cst_76 [2] : vector<2x8x16xf32> to vector<2x8xf32>
    %209 = vector.shape_cast %208 : vector<2x8xf32> to vector<2x8x1xf32>
    %210 = tpu.reciprocal %209 {approx = true} : vector<2x8x1xf32> -> vector<2x8x1xf32>
    %211 = vector.broadcast %210 : vector<2x8x1xf32> to vector<2x8x16xf32>
    %212 = arith.mulf %207, %211 : vector<2x8x16xf32>
    %213 = arith.truncf %212 : vector<2x8x16xf32> to vector<2x8x16xbf16>
    "tpu.trace_start"() <{level = 10 : i32, message = "bqk,bkd->bqd"}> : () -> ()
    %cst_77 = arith.constant dense<0.000000e+00> : vector<2x8x32xf32>
    %214 = tpu.matmul %213, %201, %cst_77 {dimension_numbers = #tpu.dot_dimension_numbers<[2], [1], [1], [2], [0, 0, 0, 1, 1, 2], [0], [0]>} : vector<2x8x16xbf16>, vector<2x16x32xbf16>, vector<2x8x32xf32> -> vector<2x8x32xf32>
    "tpu.trace_stop"() : () -> ()
    %215 = vector.extract_strided_slice %186 {offsets = [0, 0, 1, 0], sizes = [2, 8, 1, 32], strides = [1, 1, 1, 1]} : vector<2x8x4x32xf32> to vector<2x8x1x32xf32>
    %216 = vector.shape_cast %215 : vector<2x8x1x32xf32> to vector<2x8x32xf32>
    %217 = arith.truncf %216 : vector<2x8x32xf32> to vector<2x8x32xbf16>
    %218 = vector.extract_strided_slice %189 {offsets = [0, 0, 1, 0], sizes = [2, 16, 1, 32], strides = [1, 1, 1, 1]} : vector<2x16x4x32xf32> to vector<2x16x1x32xf32>
    %219 = vector.shape_cast %218 : vector<2x16x1x32xf32> to vector<2x16x32xf32>
    %220 = arith.truncf %219 : vector<2x16x32xf32> to vector<2x16x32xbf16>
    %221 = vector.extract_strided_slice %190 {offsets = [0, 0, 1, 0], sizes = [2, 16, 1, 32], strides = [1, 1, 1, 1]} : vector<2x16x4x32xf32> to vector<2x16x1x32xf32>
    %222 = vector.shape_cast %221 : vector<2x16x1x32xf32> to vector<2x16x32xf32>
    %223 = arith.truncf %222 : vector<2x16x32xf32> to vector<2x16x32xbf16>
    "tpu.trace_start"() <{level = 10 : i32, message = "bqd,bkd->bqk"}> : () -> ()
    %cst_78 = arith.constant dense<0.000000e+00> : vector<2x8x16xf32>
    %224 = tpu.matmul %217, %220, %cst_78 {dimension_numbers = #tpu.dot_dimension_numbers<[2], [2], [1], [1], [0, 0, 0, 1, 1, 1], [0], [0]>} : vector<2x8x32xbf16>, vector<2x16x32xbf16>, vector<2x8x16xf32> -> vector<2x8x16xf32>
    "tpu.trace_stop"() : () -> ()
    %cst_79 = arith.constant dense<0xFF800000> : vector<2x8xf32>
    %225 = vector.multi_reduction <maximumf>, %224, %cst_79 [2] : vector<2x8x16xf32> to vector<2x8xf32>
    %226 = vector.shape_cast %225 : vector<2x8xf32> to vector<2x8x1xf32>
    %227 = vector.broadcast %226 : vector<2x8x1xf32> to vector<2x8x16xf32>
    %228 = arith.subf %224, %227 : vector<2x8x16xf32>
    %229 = math.exp %228 : vector<2x8x16xf32>
    %cst_80 = arith.constant dense<0.000000e+00> : vector<2x8xf32>
    %230 = vector.multi_reduction <add>, %229, %cst_80 [2] : vector<2x8x16xf32> to vector<2x8xf32>
    %231 = vector.shape_cast %230 : vector<2x8xf32> to vector<2x8x1xf32>
    %232 = tpu.reciprocal %231 {approx = true} : vector<2x8x1xf32> -> vector<2x8x1xf32>
    %233 = vector.broadcast %232 : vector<2x8x1xf32> to vector<2x8x16xf32>
    %234 = arith.mulf %229, %233 : vector<2x8x16xf32>
    %235 = arith.truncf %234 : vector<2x8x16xf32> to vector<2x8x16xbf16>
    "tpu.trace_start"() <{level = 10 : i32, message = "bqk,bkd->bqd"}> : () -> ()
    %cst_81 = arith.constant dense<0.000000e+00> : vector<2x8x32xf32>
    %236 = tpu.matmul %235, %223, %cst_81 {dimension_numbers = #tpu.dot_dimension_numbers<[2], [1], [1], [2], [0, 0, 0, 1, 1, 2], [0], [0]>} : vector<2x8x16xbf16>, vector<2x16x32xbf16>, vector<2x8x32xf32> -> vector<2x8x32xf32>
    "tpu.trace_stop"() : () -> ()
    %237 = vector.extract_strided_slice %186 {offsets = [0, 0, 2, 0], sizes = [2, 8, 1, 32], strides = [1, 1, 1, 1]} : vector<2x8x4x32xf32> to vector<2x8x1x32xf32>
    %238 = vector.shape_cast %237 : vector<2x8x1x32xf32> to vector<2x8x32xf32>
    %239 = arith.truncf %238 : vector<2x8x32xf32> to vector<2x8x32xbf16>
    %240 = vector.extract_strided_slice %189 {offsets = [0, 0, 2, 0], sizes = [2, 16, 1, 32], strides = [1, 1, 1, 1]} : vector<2x16x4x32xf32> to vector<2x16x1x32xf32>
    %241 = vector.shape_cast %240 : vector<2x16x1x32xf32> to vector<2x16x32xf32>
    %242 = arith.truncf %241 : vector<2x16x32xf32> to vector<2x16x32xbf16>
    %243 = vector.extract_strided_slice %190 {offsets = [0, 0, 2, 0], sizes = [2, 16, 1, 32], strides = [1, 1, 1, 1]} : vector<2x16x4x32xf32> to vector<2x16x1x32xf32>
    %244 = vector.shape_cast %243 : vector<2x16x1x32xf32> to vector<2x16x32xf32>
    %245 = arith.truncf %244 : vector<2x16x32xf32> to vector<2x16x32xbf16>
    "tpu.trace_start"() <{level = 10 : i32, message = "bqd,bkd->bqk"}> : () -> ()
    %cst_82 = arith.constant dense<0.000000e+00> : vector<2x8x16xf32>
    %246 = tpu.matmul %239, %242, %cst_82 {dimension_numbers = #tpu.dot_dimension_numbers<[2], [2], [1], [1], [0, 0, 0, 1, 1, 1], [0], [0]>} : vector<2x8x32xbf16>, vector<2x16x32xbf16>, vector<2x8x16xf32> -> vector<2x8x16xf32>
    "tpu.trace_stop"() : () -> ()
    %cst_83 = arith.constant dense<0xFF800000> : vector<2x8xf32>
    %247 = vector.multi_reduction <maximumf>, %246, %cst_83 [2] : vector<2x8x16xf32> to vector<2x8xf32>
    %248 = vector.shape_cast %247 : vector<2x8xf32> to vector<2x8x1xf32>
    %249 = vector.broadcast %248 : vector<2x8x1xf32> to vector<2x8x16xf32>
    %250 = arith.subf %246, %249 : vector<2x8x16xf32>
    %251 = math.exp %250 : vector<2x8x16xf32>
    %cst_84 = arith.constant dense<0.000000e+00> : vector<2x8xf32>
    %252 = vector.multi_reduction <add>, %251, %cst_84 [2] : vector<2x8x16xf32> to vector<2x8xf32>
    %253 = vector.shape_cast %252 : vector<2x8xf32> to vector<2x8x1xf32>
    %254 = tpu.reciprocal %253 {approx = true} : vector<2x8x1xf32> -> vector<2x8x1xf32>
    %255 = vector.broadcast %254 : vector<2x8x1xf32> to vector<2x8x16xf32>
    %256 = arith.mulf %251, %255 : vector<2x8x16xf32>
    %257 = arith.truncf %256 : vector<2x8x16xf32> to vector<2x8x16xbf16>
    "tpu.trace_start"() <{level = 10 : i32, message = "bqk,bkd->bqd"}> : () -> ()
    %cst_85 = arith.constant dense<0.000000e+00> : vector<2x8x32xf32>
    %258 = tpu.matmul %257, %245, %cst_85 {dimension_numbers = #tpu.dot_dimension_numbers<[2], [1], [1], [2], [0, 0, 0, 1, 1, 2], [0], [0]>} : vector<2x8x16xbf16>, vector<2x16x32xbf16>, vector<2x8x32xf32> -> vector<2x8x32xf32>
    "tpu.trace_stop"() : () -> ()
    %259 = vector.extract_strided_slice %186 {offsets = [0, 0, 3, 0], sizes = [2, 8, 1, 32], strides = [1, 1, 1, 1]} : vector<2x8x4x32xf32> to vector<2x8x1x32xf32>
    %260 = vector.shape_cast %259 : vector<2x8x1x32xf32> to vector<2x8x32xf32>
    %261 = arith.truncf %260 : vector<2x8x32xf32> to vector<2x8x32xbf16>
    %262 = vector.extract_strided_slice %189 {offsets = [0, 0, 3, 0], sizes = [2, 16, 1, 32], strides = [1, 1, 1, 1]} : vector<2x16x4x32xf32> to vector<2x16x1x32xf32>
    %263 = vector.shape_cast %262 : vector<2x16x1x32xf32> to vector<2x16x32xf32>
    %264 = arith.truncf %263 : vector<2x16x32xf32> to vector<2x16x32xbf16>
    %265 = vector.extract_strided_slice %190 {offsets = [0, 0, 3, 0], sizes = [2, 16, 1, 32], strides = [1, 1, 1, 1]} : vector<2x16x4x32xf32> to vector<2x16x1x32xf32>
    %266 = vector.shape_cast %265 : vector<2x16x1x32xf32> to vector<2x16x32xf32>
    %267 = arith.truncf %266 : vector<2x16x32xf32> to vector<2x16x32xbf16>
    "tpu.trace_start"() <{level = 10 : i32, message = "bqd,bkd->bqk"}> : () -> ()
    %cst_86 = arith.constant dense<0.000000e+00> : vector<2x8x16xf32>
    %268 = tpu.matmul %261, %264, %cst_86 {dimension_numbers = #tpu.dot_dimension_numbers<[2], [2], [1], [1], [0, 0, 0, 1, 1, 1], [0], [0]>} : vector<2x8x32xbf16>, vector<2x16x32xbf16>, vector<2x8x16xf32> -> vector<2x8x16xf32>
    "tpu.trace_stop"() : () -> ()
    %cst_87 = arith.constant dense<0xFF800000> : vector<2x8xf32>
    %269 = vector.multi_reduction <maximumf>, %268, %cst_87 [2] : vector<2x8x16xf32> to vector<2x8xf32>
    %270 = vector.shape_cast %269 : vector<2x8xf32> to vector<2x8x1xf32>
    %271 = vector.broadcast %270 : vector<2x8x1xf32> to vector<2x8x16xf32>
    %272 = arith.subf %268, %271 : vector<2x8x16xf32>
    %273 = math.exp %272 : vector<2x8x16xf32>
    %cst_88 = arith.constant dense<0.000000e+00> : vector<2x8xf32>
    %274 = vector.multi_reduction <add>, %273, %cst_88 [2] : vector<2x8x16xf32> to vector<2x8xf32>
    %275 = vector.shape_cast %274 : vector<2x8xf32> to vector<2x8x1xf32>
    %276 = tpu.reciprocal %275 {approx = true} : vector<2x8x1xf32> -> vector<2x8x1xf32>
    %277 = vector.broadcast %276 : vector<2x8x1xf32> to vector<2x8x16xf32>
    %278 = arith.mulf %273, %277 : vector<2x8x16xf32>
    %279 = arith.truncf %278 : vector<2x8x16xf32> to vector<2x8x16xbf16>
    "tpu.trace_start"() <{level = 10 : i32, message = "bqk,bkd->bqd"}> : () -> ()
    %cst_89 = arith.constant dense<0.000000e+00> : vector<2x8x32xf32>
    %280 = tpu.matmul %279, %267, %cst_89 {dimension_numbers = #tpu.dot_dimension_numbers<[2], [1], [1], [2], [0, 0, 0, 1, 1, 2], [0], [0]>} : vector<2x8x16xbf16>, vector<2x16x32xbf16>, vector<2x8x32xf32> -> vector<2x8x32xf32>
    "tpu.trace_stop"() : () -> ()
    %281 = tpu.concatenate %214, %236, %258, %280 in 2 : vector<2x8x32xf32>, vector<2x8x32xf32>, vector<2x8x32xf32>, vector<2x8x32xf32> -> vector<2x8x128xf32>
    %282 = vector.shape_cast %281 : vector<2x8x128xf32> to vector<16x128xf32>
    %283 = arith.truncf %282 : vector<16x128xf32> to vector<16x128xbf16>
    %cst_90 = arith.constant dense<0.000000e+00> : vector<16x128xf32>
    %284 = tpu.matmul %283, %192, %cst_90 {dimension_numbers = #tpu.dot_dimension_numbers<[1], [0], [0], [1], [0, 0, 1, 1], [], []>} : vector<16x128xbf16>, vector<128x128xbf16>, vector<16x128xf32> -> vector<16x128xf32>
    %c0_91 = arith.constant 0 : index
    %c0_92 = arith.constant 0 : index
    %c0_93 = arith.constant 0 : index
    %285 = vector.load %arg17[%c0_91, %c0_92, %c0_93] : memref<2x1x128xf32, #tpu.memory_space<vmem>>, vector<1x1x128xf32>
    %286 = vector.shape_cast %285 : vector<1x1x128xf32> to vector<1x128xf32>
    %287 = vector.broadcast %286 : vector<1x128xf32> to vector<16x128xf32>
    %288 = arith.addf %284, %287 : vector<16x128xf32>
    %289 = arith.addf %288, %177 : vector<16x128xf32>
    %c0_94 = arith.constant 0 : index
    %c0_95 = arith.constant 0 : index
    %c0_96 = arith.constant 0 : index
    %290 = vector.load %arg18[%c0_94, %c0_95, %c0_96] : memref<2x1x128xf32, #tpu.memory_space<vmem>>, vector<1x1x128xf32>
    %291 = vector.shape_cast %290 : vector<1x1x128xf32> to vector<1x128xf32>
    %c0_97 = arith.constant 0 : index
    %c0_98 = arith.constant 0 : index
    %c0_99 = arith.constant 0 : index
    %292 = vector.load %arg19[%c0_97, %c0_98, %c0_99] : memref<2x1x128xf32, #tpu.memory_space<vmem>>, vector<1x1x128xf32>
    %293 = vector.shape_cast %292 : vector<1x1x128xf32> to vector<1x128xf32>
    %cst_100 = arith.constant dense<0.000000e+00> : vector<16xf32>
    %294 = vector.multi_reduction <add>, %289, %cst_100 [1] : vector<16x128xf32> to vector<16xf32>
    %295 = vector.shape_cast %294 : vector<16xf32> to vector<16x1xf32>
    %cst_101 = arith.constant 1.280000e+02 : f32
    %296 = vector.broadcast %cst_101 : f32 to vector<16x1xf32>
    %297 = arith.divf %295, %296 : vector<16x1xf32>
    %298 = vector.broadcast %297 : vector<16x1xf32> to vector<16x128xf32>
    %299 = arith.subf %289, %298 : vector<16x128xf32>
    %300 = arith.mulf %299, %299 : vector<16x128xf32>
    %cst_102 = arith.constant dense<0.000000e+00> : vector<16xf32>
    %301 = vector.multi_reduction <add>, %300, %cst_102 [1] : vector<16x128xf32> to vector<16xf32>
    %302 = vector.shape_cast %301 : vector<16xf32> to vector<16x1xf32>
    %cst_103 = arith.constant 1.280000e+02 : f32
    %303 = vector.broadcast %cst_103 : f32 to vector<16x1xf32>
    %304 = arith.divf %302, %303 : vector<16x1xf32>
    %305 = vector.broadcast %297 : vector<16x1xf32> to vector<16x128xf32>
    %306 = arith.subf %289, %305 : vector<16x128xf32>
    %cst_104 = arith.constant 9.99999996E-13 : f32
    %307 = vector.broadcast %cst_104 : f32 to vector<16x1xf32>
    %308 = arith.addf %304, %307 : vector<16x1xf32>
    %309 = math.rsqrt %308 : vector<16x1xf32>
    %310 = vector.broadcast %309 : vector<16x1xf32> to vector<16x128xf32>
    %311 = arith.mulf %306, %310 : vector<16x128xf32>
    %312 = vector.broadcast %291 : vector<1x128xf32> to vector<16x128xf32>
    %313 = arith.mulf %311, %312 : vector<16x128xf32>
    %314 = vector.broadcast %293 : vector<1x128xf32> to vector<16x128xf32>
    %315 = arith.addf %313, %314 : vector<16x128xf32>
    %316 = arith.mulf %315, %2 : vector<16x128xf32>
    %317 = arith.truncf %316 : vector<16x128xf32> to vector<16x128xbf16>
    %c0_105 = arith.constant 0 : index
    %c0_106 = arith.constant 0 : index
    %c0_107 = arith.constant 0 : index
    %318 = vector.load %arg20[%c0_105, %c0_106, %c0_107] : memref<2x128x256xbf16, #tpu.memory_space<vmem>>, vector<1x128x256xbf16>
    %319 = vector.shape_cast %318 : vector<1x128x256xbf16> to vector<128x256xbf16>
    %cst_108 = arith.constant dense<0.000000e+00> : vector<16x256xf32>
    %320 = tpu.matmul %317, %319, %cst_108 {dimension_numbers = #tpu.dot_dimension_numbers<[1], [0], [0], [1], [0, 0, 1, 1], [], []>} : vector<16x128xbf16>, vector<128x256xbf16>, vector<16x256xf32> -> vector<16x256xf32>
    %c0_109 = arith.constant 0 : index
    %c0_110 = arith.constant 0 : index
    %c0_111 = arith.constant 0 : index
    %321 = vector.load %arg21[%c0_109, %c0_110, %c0_111] : memref<2x1x256xf32, #tpu.memory_space<vmem>>, vector<1x1x256xf32>
    %322 = vector.shape_cast %321 : vector<1x1x256xf32> to vector<1x256xf32>
    %323 = vector.broadcast %322 : vector<1x256xf32> to vector<16x256xf32>
    %324 = arith.addf %320, %323 : vector<16x256xf32>
    %325 = arith.mulf %324, %324 : vector<16x256xf32>
    %326 = arith.mulf %324, %325 : vector<16x256xf32>
    %cst_112 = arith.constant 4.471500e-02 : f32
    %327 = vector.broadcast %cst_112 : f32 to vector<16x256xf32>
    %328 = arith.mulf %327, %326 : vector<16x256xf32>
    %329 = arith.addf %324, %328 : vector<16x256xf32>
    %cst_113 = arith.constant 0.797884583 : f32
    %330 = vector.broadcast %cst_113 : f32 to vector<16x256xf32>
    %331 = arith.mulf %330, %329 : vector<16x256xf32>
    %332 = math.tanh %331 : vector<16x256xf32>
    %cst_114 = arith.constant 1.000000e+00 : f32
    %333 = vector.broadcast %cst_114 : f32 to vector<16x256xf32>
    %334 = arith.addf %333, %332 : vector<16x256xf32>
    %cst_115 = arith.constant 5.000000e-01 : f32
    %335 = vector.broadcast %cst_115 : f32 to vector<16x256xf32>
    %336 = arith.mulf %335, %334 : vector<16x256xf32>
    %337 = arith.mulf %324, %336 : vector<16x256xf32>
    %338 = arith.truncf %337 : vector<16x256xf32> to vector<16x256xbf16>
    %c0_116 = arith.constant 0 : index
    %c0_117 = arith.constant 0 : index
    %c0_118 = arith.constant 0 : index
    %339 = vector.load %arg22[%c0_116, %c0_117, %c0_118] : memref<2x256x128xbf16, #tpu.memory_space<vmem>>, vector<1x256x128xbf16>
    %340 = vector.shape_cast %339 : vector<1x256x128xbf16> to vector<256x128xbf16>
    %cst_119 = arith.constant dense<0.000000e+00> : vector<16x128xf32>
    %341 = tpu.matmul %338, %340, %cst_119 {dimension_numbers = #tpu.dot_dimension_numbers<[1], [0], [0], [1], [0, 0, 1, 1], [], []>} : vector<16x256xbf16>, vector<256x128xbf16>, vector<16x128xf32> -> vector<16x128xf32>
    %c0_120 = arith.constant 0 : index
    %c0_121 = arith.constant 0 : index
    %c0_122 = arith.constant 0 : index
    %342 = vector.load %arg23[%c0_120, %c0_121, %c0_122] : memref<2x1x128xf32, #tpu.memory_space<vmem>>, vector<1x1x128xf32>
    %343 = vector.shape_cast %342 : vector<1x1x128xf32> to vector<1x128xf32>
    %344 = vector.broadcast %343 : vector<1x128xf32> to vector<16x128xf32>
    %345 = arith.addf %341, %344 : vector<16x128xf32>
    %346 = arith.addf %345, %316 : vector<16x128xf32>
    %c0_123 = arith.constant 0 : index
    %c0_124 = arith.constant 0 : index
    %c0_125 = arith.constant 0 : index
    %347 = vector.load %arg24[%c0_123, %c0_124, %c0_125] : memref<2x1x128xf32, #tpu.memory_space<vmem>>, vector<1x1x128xf32>
    %348 = vector.shape_cast %347 : vector<1x1x128xf32> to vector<1x128xf32>
    %c0_126 = arith.constant 0 : index
    %c0_127 = arith.constant 0 : index
    %c0_128 = arith.constant 0 : index
    %349 = vector.load %arg25[%c0_126, %c0_127, %c0_128] : memref<2x1x128xf32, #tpu.memory_space<vmem>>, vector<1x1x128xf32>
    %350 = vector.shape_cast %349 : vector<1x1x128xf32> to vector<1x128xf32>
    %cst_129 = arith.constant dense<0.000000e+00> : vector<16xf32>
    %351 = vector.multi_reduction <add>, %346, %cst_129 [1] : vector<16x128xf32> to vector<16xf32>
    %352 = vector.shape_cast %351 : vector<16xf32> to vector<16x1xf32>
    %cst_130 = arith.constant 1.280000e+02 : f32
    %353 = vector.broadcast %cst_130 : f32 to vector<16x1xf32>
    %354 = arith.divf %352, %353 : vector<16x1xf32>
    %355 = vector.broadcast %354 : vector<16x1xf32> to vector<16x128xf32>
    %356 = arith.subf %346, %355 : vector<16x128xf32>
    %357 = arith.mulf %356, %356 : vector<16x128xf32>
    %cst_131 = arith.constant dense<0.000000e+00> : vector<16xf32>
    %358 = vector.multi_reduction <add>, %357, %cst_131 [1] : vector<16x128xf32> to vector<16xf32>
    %359 = vector.shape_cast %358 : vector<16xf32> to vector<16x1xf32>
    %cst_132 = arith.constant 1.280000e+02 : f32
    %360 = vector.broadcast %cst_132 : f32 to vector<16x1xf32>
    %361 = arith.divf %359, %360 : vector<16x1xf32>
    %362 = vector.broadcast %354 : vector<16x1xf32> to vector<16x128xf32>
    %363 = arith.subf %346, %362 : vector<16x128xf32>
    %cst_133 = arith.constant 9.99999996E-13 : f32
    %364 = vector.broadcast %cst_133 : f32 to vector<16x1xf32>
    %365 = arith.addf %361, %364 : vector<16x1xf32>
    %366 = math.rsqrt %365 : vector<16x1xf32>
    %367 = vector.broadcast %366 : vector<16x1xf32> to vector<16x128xf32>
    %368 = arith.mulf %363, %367 : vector<16x128xf32>
    %369 = vector.broadcast %348 : vector<1x128xf32> to vector<16x128xf32>
    %370 = arith.mulf %368, %369 : vector<16x128xf32>
    %371 = vector.broadcast %350 : vector<1x128xf32> to vector<16x128xf32>
    %372 = arith.addf %370, %371 : vector<16x128xf32>
    %373 = arith.mulf %372, %2 : vector<16x128xf32>
    %374 = arith.truncf %373 : vector<16x128xf32> to vector<16x128xbf16>
    %c1 = arith.constant 1 : index
    %c0_134 = arith.constant 0 : index
    %c0_135 = arith.constant 0 : index
    %375 = vector.load %arg8[%c1, %c0_134, %c0_135] : memref<2x128x384xbf16, #tpu.memory_space<vmem>>, vector<1x128x384xbf16>
    %376 = vector.shape_cast %375 : vector<1x128x384xbf16> to vector<128x384xbf16>
    %cst_136 = arith.constant dense<0.000000e+00> : vector<16x384xf32>
    %377 = tpu.matmul %374, %376, %cst_136 {dimension_numbers = #tpu.dot_dimension_numbers<[1], [0], [0], [1], [0, 0, 1, 1], [], []>} : vector<16x128xbf16>, vector<128x384xbf16>, vector<16x384xf32> -> vector<16x384xf32>
    %c1_137 = arith.constant 1 : index
    %c0_138 = arith.constant 0 : index
    %c0_139 = arith.constant 0 : index
    %378 = vector.load %arg9[%c1_137, %c0_138, %c0_139] : memref<2x1x384xf32, #tpu.memory_space<vmem>>, vector<1x1x384xf32>
    %379 = vector.shape_cast %378 : vector<1x1x384xf32> to vector<1x384xf32>
    %380 = vector.broadcast %379 : vector<1x384xf32> to vector<16x384xf32>
    %381 = arith.addf %377, %380 : vector<16x384xf32>
    %382 = vector.shape_cast %381 : vector<16x384xf32> to vector<2x8x12x32xf32>
    %383 = vector.extract_strided_slice %382 {offsets = [0, 0, 0, 0], sizes = [2, 8, 4, 32], strides = [1, 1, 1, 1]} : vector<2x8x12x32xf32> to vector<2x8x4x32xf32>
    %384 = vector.extract_strided_slice %382 {offsets = [0, 0, 4, 0], sizes = [2, 8, 4, 32], strides = [1, 1, 1, 1]} : vector<2x8x12x32xf32> to vector<2x8x4x32xf32>
    %385 = vector.extract_strided_slice %382 {offsets = [0, 0, 8, 0], sizes = [2, 8, 4, 32], strides = [1, 1, 1, 1]} : vector<2x8x12x32xf32> to vector<2x8x4x32xf32>
    %c1_140 = arith.constant 1 : index
    %c0_141 = arith.constant 0 : index
    %c0_142 = arith.constant 0 : index
    %386 = vector.load %arg10[%c1_140, %c0_141, %c0_142] : memref<2x128x128xbf16, #tpu.memory_space<vmem>>, vector<1x128x128xbf16>
    %387 = vector.shape_cast %386 : vector<1x128x128xbf16> to vector<128x128xbf16>
    %388 = vector.extract_strided_slice %383 {offsets = [0, 0, 0, 0], sizes = [2, 8, 1, 32], strides = [1, 1, 1, 1]} : vector<2x8x4x32xf32> to vector<2x8x1x32xf32>
    %389 = vector.shape_cast %388 : vector<2x8x1x32xf32> to vector<2x8x32xf32>
    %390 = arith.truncf %389 : vector<2x8x32xf32> to vector<2x8x32xbf16>
    %391 = vector.extract_strided_slice %384 {offsets = [0, 0, 0, 0], sizes = [2, 8, 1, 32], strides = [1, 1, 1, 1]} : vector<2x8x4x32xf32> to vector<2x8x1x32xf32>
    %392 = vector.shape_cast %391 : vector<2x8x1x32xf32> to vector<2x8x32xf32>
    %393 = arith.truncf %392 : vector<2x8x32xf32> to vector<2x8x32xbf16>
    %394 = vector.extract_strided_slice %385 {offsets = [0, 0, 0, 0], sizes = [2, 8, 1, 32], strides = [1, 1, 1, 1]} : vector<2x8x4x32xf32> to vector<2x8x1x32xf32>
    %395 = vector.shape_cast %394 : vector<2x8x1x32xf32> to vector<2x8x32xf32>
    %396 = arith.truncf %395 : vector<2x8x32xf32> to vector<2x8x32xbf16>
    "tpu.trace_start"() <{level = 10 : i32, message = "bqd,bkd->bqk"}> : () -> ()
    %cst_143 = arith.constant dense<0.000000e+00> : vector<2x8x8xf32>
    %397 = tpu.matmul %390, %393, %cst_143 {dimension_numbers = #tpu.dot_dimension_numbers<[2], [2], [1], [1], [0, 0, 0, 1, 1, 1], [0], [0]>} : vector<2x8x32xbf16>, vector<2x8x32xbf16>, vector<2x8x8xf32> -> vector<2x8x8xf32>
    "tpu.trace_stop"() : () -> ()
    %398 = arith.addf %397, %3 : vector<2x8x8xf32>
    %cst_144 = arith.constant dense<0xFF800000> : vector<2x8xf32>
    %399 = vector.multi_reduction <maximumf>, %398, %cst_144 [2] : vector<2x8x8xf32> to vector<2x8xf32>
    %400 = vector.shape_cast %399 : vector<2x8xf32> to vector<2x8x1xf32>
    %401 = vector.broadcast %400 : vector<2x8x1xf32> to vector<2x8x8xf32>
    %402 = arith.subf %398, %401 : vector<2x8x8xf32>
    %403 = math.exp %402 : vector<2x8x8xf32>
    %cst_145 = arith.constant dense<0.000000e+00> : vector<2x8xf32>
    %404 = vector.multi_reduction <add>, %403, %cst_145 [2] : vector<2x8x8xf32> to vector<2x8xf32>
    %405 = vector.shape_cast %404 : vector<2x8xf32> to vector<2x8x1xf32>
    %406 = tpu.reciprocal %405 {approx = true} : vector<2x8x1xf32> -> vector<2x8x1xf32>
    %407 = vector.broadcast %406 : vector<2x8x1xf32> to vector<2x8x8xf32>
    %408 = arith.mulf %403, %407 : vector<2x8x8xf32>
    %409 = arith.truncf %408 : vector<2x8x8xf32> to vector<2x8x8xbf16>
    "tpu.trace_start"() <{level = 10 : i32, message = "bqk,bkd->bqd"}> : () -> ()
    %cst_146 = arith.constant dense<0.000000e+00> : vector<2x8x32xf32>
    %410 = tpu.matmul %409, %396, %cst_146 {dimension_numbers = #tpu.dot_dimension_numbers<[2], [1], [1], [2], [0, 0, 0, 1, 1, 2], [0], [0]>} : vector<2x8x8xbf16>, vector<2x8x32xbf16>, vector<2x8x32xf32> -> vector<2x8x32xf32>
    "tpu.trace_stop"() : () -> ()
    %411 = vector.extract_strided_slice %383 {offsets = [0, 0, 1, 0], sizes = [2, 8, 1, 32], strides = [1, 1, 1, 1]} : vector<2x8x4x32xf32> to vector<2x8x1x32xf32>
    %412 = vector.shape_cast %411 : vector<2x8x1x32xf32> to vector<2x8x32xf32>
    %413 = arith.truncf %412 : vector<2x8x32xf32> to vector<2x8x32xbf16>
    %414 = vector.extract_strided_slice %384 {offsets = [0, 0, 1, 0], sizes = [2, 8, 1, 32], strides = [1, 1, 1, 1]} : vector<2x8x4x32xf32> to vector<2x8x1x32xf32>
    %415 = vector.shape_cast %414 : vector<2x8x1x32xf32> to vector<2x8x32xf32>
    %416 = arith.truncf %415 : vector<2x8x32xf32> to vector<2x8x32xbf16>
    %417 = vector.extract_strided_slice %385 {offsets = [0, 0, 1, 0], sizes = [2, 8, 1, 32], strides = [1, 1, 1, 1]} : vector<2x8x4x32xf32> to vector<2x8x1x32xf32>
    %418 = vector.shape_cast %417 : vector<2x8x1x32xf32> to vector<2x8x32xf32>
    %419 = arith.truncf %418 : vector<2x8x32xf32> to vector<2x8x32xbf16>
    "tpu.trace_start"() <{level = 10 : i32, message = "bqd,bkd->bqk"}> : () -> ()
    %cst_147 = arith.constant dense<0.000000e+00> : vector<2x8x8xf32>
    %420 = tpu.matmul %413, %416, %cst_147 {dimension_numbers = #tpu.dot_dimension_numbers<[2], [2], [1], [1], [0, 0, 0, 1, 1, 1], [0], [0]>} : vector<2x8x32xbf16>, vector<2x8x32xbf16>, vector<2x8x8xf32> -> vector<2x8x8xf32>
    "tpu.trace_stop"() : () -> ()
    %421 = arith.addf %420, %3 : vector<2x8x8xf32>
    %cst_148 = arith.constant dense<0xFF800000> : vector<2x8xf32>
    %422 = vector.multi_reduction <maximumf>, %421, %cst_148 [2] : vector<2x8x8xf32> to vector<2x8xf32>
    %423 = vector.shape_cast %422 : vector<2x8xf32> to vector<2x8x1xf32>
    %424 = vector.broadcast %423 : vector<2x8x1xf32> to vector<2x8x8xf32>
    %425 = arith.subf %421, %424 : vector<2x8x8xf32>
    %426 = math.exp %425 : vector<2x8x8xf32>
    %cst_149 = arith.constant dense<0.000000e+00> : vector<2x8xf32>
    %427 = vector.multi_reduction <add>, %426, %cst_149 [2] : vector<2x8x8xf32> to vector<2x8xf32>
    %428 = vector.shape_cast %427 : vector<2x8xf32> to vector<2x8x1xf32>
    %429 = tpu.reciprocal %428 {approx = true} : vector<2x8x1xf32> -> vector<2x8x1xf32>
    %430 = vector.broadcast %429 : vector<2x8x1xf32> to vector<2x8x8xf32>
    %431 = arith.mulf %426, %430 : vector<2x8x8xf32>
    %432 = arith.truncf %431 : vector<2x8x8xf32> to vector<2x8x8xbf16>
    "tpu.trace_start"() <{level = 10 : i32, message = "bqk,bkd->bqd"}> : () -> ()
    %cst_150 = arith.constant dense<0.000000e+00> : vector<2x8x32xf32>
    %433 = tpu.matmul %432, %419, %cst_150 {dimension_numbers = #tpu.dot_dimension_numbers<[2], [1], [1], [2], [0, 0, 0, 1, 1, 2], [0], [0]>} : vector<2x8x8xbf16>, vector<2x8x32xbf16>, vector<2x8x32xf32> -> vector<2x8x32xf32>
    "tpu.trace_stop"() : () -> ()
    %434 = vector.extract_strided_slice %383 {offsets = [0, 0, 2, 0], sizes = [2, 8, 1, 32], strides = [1, 1, 1, 1]} : vector<2x8x4x32xf32> to vector<2x8x1x32xf32>
    %435 = vector.shape_cast %434 : vector<2x8x1x32xf32> to vector<2x8x32xf32>
    %436 = arith.truncf %435 : vector<2x8x32xf32> to vector<2x8x32xbf16>
    %437 = vector.extract_strided_slice %384 {offsets = [0, 0, 2, 0], sizes = [2, 8, 1, 32], strides = [1, 1, 1, 1]} : vector<2x8x4x32xf32> to vector<2x8x1x32xf32>
    %438 = vector.shape_cast %437 : vector<2x8x1x32xf32> to vector<2x8x32xf32>
    %439 = arith.truncf %438 : vector<2x8x32xf32> to vector<2x8x32xbf16>
    %440 = vector.extract_strided_slice %385 {offsets = [0, 0, 2, 0], sizes = [2, 8, 1, 32], strides = [1, 1, 1, 1]} : vector<2x8x4x32xf32> to vector<2x8x1x32xf32>
    %441 = vector.shape_cast %440 : vector<2x8x1x32xf32> to vector<2x8x32xf32>
    %442 = arith.truncf %441 : vector<2x8x32xf32> to vector<2x8x32xbf16>
    "tpu.trace_start"() <{level = 10 : i32, message = "bqd,bkd->bqk"}> : () -> ()
    %cst_151 = arith.constant dense<0.000000e+00> : vector<2x8x8xf32>
    %443 = tpu.matmul %436, %439, %cst_151 {dimension_numbers = #tpu.dot_dimension_numbers<[2], [2], [1], [1], [0, 0, 0, 1, 1, 1], [0], [0]>} : vector<2x8x32xbf16>, vector<2x8x32xbf16>, vector<2x8x8xf32> -> vector<2x8x8xf32>
    "tpu.trace_stop"() : () -> ()
    %444 = arith.addf %443, %3 : vector<2x8x8xf32>
    %cst_152 = arith.constant dense<0xFF800000> : vector<2x8xf32>
    %445 = vector.multi_reduction <maximumf>, %444, %cst_152 [2] : vector<2x8x8xf32> to vector<2x8xf32>
    %446 = vector.shape_cast %445 : vector<2x8xf32> to vector<2x8x1xf32>
    %447 = vector.broadcast %446 : vector<2x8x1xf32> to vector<2x8x8xf32>
    %448 = arith.subf %444, %447 : vector<2x8x8xf32>
    %449 = math.exp %448 : vector<2x8x8xf32>
    %cst_153 = arith.constant dense<0.000000e+00> : vector<2x8xf32>
    %450 = vector.multi_reduction <add>, %449, %cst_153 [2] : vector<2x8x8xf32> to vector<2x8xf32>
    %451 = vector.shape_cast %450 : vector<2x8xf32> to vector<2x8x1xf32>
    %452 = tpu.reciprocal %451 {approx = true} : vector<2x8x1xf32> -> vector<2x8x1xf32>
    %453 = vector.broadcast %452 : vector<2x8x1xf32> to vector<2x8x8xf32>
    %454 = arith.mulf %449, %453 : vector<2x8x8xf32>
    %455 = arith.truncf %454 : vector<2x8x8xf32> to vector<2x8x8xbf16>
    "tpu.trace_start"() <{level = 10 : i32, message = "bqk,bkd->bqd"}> : () -> ()
    %cst_154 = arith.constant dense<0.000000e+00> : vector<2x8x32xf32>
    %456 = tpu.matmul %455, %442, %cst_154 {dimension_numbers = #tpu.dot_dimension_numbers<[2], [1], [1], [2], [0, 0, 0, 1, 1, 2], [0], [0]>} : vector<2x8x8xbf16>, vector<2x8x32xbf16>, vector<2x8x32xf32> -> vector<2x8x32xf32>
    "tpu.trace_stop"() : () -> ()
    %457 = vector.extract_strided_slice %383 {offsets = [0, 0, 3, 0], sizes = [2, 8, 1, 32], strides = [1, 1, 1, 1]} : vector<2x8x4x32xf32> to vector<2x8x1x32xf32>
    %458 = vector.shape_cast %457 : vector<2x8x1x32xf32> to vector<2x8x32xf32>
    %459 = arith.truncf %458 : vector<2x8x32xf32> to vector<2x8x32xbf16>
    %460 = vector.extract_strided_slice %384 {offsets = [0, 0, 3, 0], sizes = [2, 8, 1, 32], strides = [1, 1, 1, 1]} : vector<2x8x4x32xf32> to vector<2x8x1x32xf32>
    %461 = vector.shape_cast %460 : vector<2x8x1x32xf32> to vector<2x8x32xf32>
    %462 = arith.truncf %461 : vector<2x8x32xf32> to vector<2x8x32xbf16>
    %463 = vector.extract_strided_slice %385 {offsets = [0, 0, 3, 0], sizes = [2, 8, 1, 32], strides = [1, 1, 1, 1]} : vector<2x8x4x32xf32> to vector<2x8x1x32xf32>
    %464 = vector.shape_cast %463 : vector<2x8x1x32xf32> to vector<2x8x32xf32>
    %465 = arith.truncf %464 : vector<2x8x32xf32> to vector<2x8x32xbf16>
    "tpu.trace_start"() <{level = 10 : i32, message = "bqd,bkd->bqk"}> : () -> ()
    %cst_155 = arith.constant dense<0.000000e+00> : vector<2x8x8xf32>
    %466 = tpu.matmul %459, %462, %cst_155 {dimension_numbers = #tpu.dot_dimension_numbers<[2], [2], [1], [1], [0, 0, 0, 1, 1, 1], [0], [0]>} : vector<2x8x32xbf16>, vector<2x8x32xbf16>, vector<2x8x8xf32> -> vector<2x8x8xf32>
    "tpu.trace_stop"() : () -> ()
    %467 = arith.addf %466, %3 : vector<2x8x8xf32>
    %cst_156 = arith.constant dense<0xFF800000> : vector<2x8xf32>
    %468 = vector.multi_reduction <maximumf>, %467, %cst_156 [2] : vector<2x8x8xf32> to vector<2x8xf32>
    %469 = vector.shape_cast %468 : vector<2x8xf32> to vector<2x8x1xf32>
    %470 = vector.broadcast %469 : vector<2x8x1xf32> to vector<2x8x8xf32>
    %471 = arith.subf %467, %470 : vector<2x8x8xf32>
    %472 = math.exp %471 : vector<2x8x8xf32>
    %cst_157 = arith.constant dense<0.000000e+00> : vector<2x8xf32>
    %473 = vector.multi_reduction <add>, %472, %cst_157 [2] : vector<2x8x8xf32> to vector<2x8xf32>
    %474 = vector.shape_cast %473 : vector<2x8xf32> to vector<2x8x1xf32>
    %475 = tpu.reciprocal %474 {approx = true} : vector<2x8x1xf32> -> vector<2x8x1xf32>
    %476 = vector.broadcast %475 : vector<2x8x1xf32> to vector<2x8x8xf32>
    %477 = arith.mulf %472, %476 : vector<2x8x8xf32>
    %478 = arith.truncf %477 : vector<2x8x8xf32> to vector<2x8x8xbf16>
    "tpu.trace_start"() <{level = 10 : i32, message = "bqk,bkd->bqd"}> : () -> ()
    %cst_158 = arith.constant dense<0.000000e+00> : vector<2x8x32xf32>
    %479 = tpu.matmul %478, %465, %cst_158 {dimension_numbers = #tpu.dot_dimension_numbers<[2], [1], [1], [2], [0, 0, 0, 1, 1, 2], [0], [0]>} : vector<2x8x8xbf16>, vector<2x8x32xbf16>, vector<2x8x32xf32> -> vector<2x8x32xf32>
    "tpu.trace_stop"() : () -> ()
    %480 = tpu.concatenate %410, %433, %456, %479 in 2 : vector<2x8x32xf32>, vector<2x8x32xf32>, vector<2x8x32xf32>, vector<2x8x32xf32> -> vector<2x8x128xf32>
    %481 = vector.shape_cast %480 : vector<2x8x128xf32> to vector<16x128xf32>
    %482 = arith.truncf %481 : vector<16x128xf32> to vector<16x128xbf16>
    %cst_159 = arith.constant dense<0.000000e+00> : vector<16x128xf32>
    %483 = tpu.matmul %482, %387, %cst_159 {dimension_numbers = #tpu.dot_dimension_numbers<[1], [0], [0], [1], [0, 0, 1, 1], [], []>} : vector<16x128xbf16>, vector<128x128xbf16>, vector<16x128xf32> -> vector<16x128xf32>
    %c1_160 = arith.constant 1 : index
    %c0_161 = arith.constant 0 : index
    %c0_162 = arith.constant 0 : index
    %484 = vector.load %arg11[%c1_160, %c0_161, %c0_162] : memref<2x1x128xf32, #tpu.memory_space<vmem>>, vector<1x1x128xf32>
    %485 = vector.shape_cast %484 : vector<1x1x128xf32> to vector<1x128xf32>
    %486 = vector.broadcast %485 : vector<1x128xf32> to vector<16x128xf32>
    %487 = arith.addf %483, %486 : vector<16x128xf32>
    %488 = arith.addf %487, %373 : vector<16x128xf32>
    %c1_163 = arith.constant 1 : index
    %c0_164 = arith.constant 0 : index
    %c0_165 = arith.constant 0 : index
    %489 = vector.load %arg12[%c1_163, %c0_164, %c0_165] : memref<2x1x128xf32, #tpu.memory_space<vmem>>, vector<1x1x128xf32>
    %490 = vector.shape_cast %489 : vector<1x1x128xf32> to vector<1x128xf32>
    %c1_166 = arith.constant 1 : index
    %c0_167 = arith.constant 0 : index
    %c0_168 = arith.constant 0 : index
    %491 = vector.load %arg13[%c1_166, %c0_167, %c0_168] : memref<2x1x128xf32, #tpu.memory_space<vmem>>, vector<1x1x128xf32>
    %492 = vector.shape_cast %491 : vector<1x1x128xf32> to vector<1x128xf32>
    %cst_169 = arith.constant dense<0.000000e+00> : vector<16xf32>
    %493 = vector.multi_reduction <add>, %488, %cst_169 [1] : vector<16x128xf32> to vector<16xf32>
    %494 = vector.shape_cast %493 : vector<16xf32> to vector<16x1xf32>
    %cst_170 = arith.constant 1.280000e+02 : f32
    %495 = vector.broadcast %cst_170 : f32 to vector<16x1xf32>
    %496 = arith.divf %494, %495 : vector<16x1xf32>
    %497 = vector.broadcast %496 : vector<16x1xf32> to vector<16x128xf32>
    %498 = arith.subf %488, %497 : vector<16x128xf32>
    %499 = arith.mulf %498, %498 : vector<16x128xf32>
    %cst_171 = arith.constant dense<0.000000e+00> : vector<16xf32>
    %500 = vector.multi_reduction <add>, %499, %cst_171 [1] : vector<16x128xf32> to vector<16xf32>
    %501 = vector.shape_cast %500 : vector<16xf32> to vector<16x1xf32>
    %cst_172 = arith.constant 1.280000e+02 : f32
    %502 = vector.broadcast %cst_172 : f32 to vector<16x1xf32>
    %503 = arith.divf %501, %502 : vector<16x1xf32>
    %504 = vector.broadcast %496 : vector<16x1xf32> to vector<16x128xf32>
    %505 = arith.subf %488, %504 : vector<16x128xf32>
    %cst_173 = arith.constant 9.99999996E-13 : f32
    %506 = vector.broadcast %cst_173 : f32 to vector<16x1xf32>
    %507 = arith.addf %503, %506 : vector<16x1xf32>
    %508 = math.rsqrt %507 : vector<16x1xf32>
    %509 = vector.broadcast %508 : vector<16x1xf32> to vector<16x128xf32>
    %510 = arith.mulf %505, %509 : vector<16x128xf32>
    %511 = vector.broadcast %490 : vector<1x128xf32> to vector<16x128xf32>
    %512 = arith.mulf %510, %511 : vector<16x128xf32>
    %513 = vector.broadcast %492 : vector<1x128xf32> to vector<16x128xf32>
    %514 = arith.addf %512, %513 : vector<16x128xf32>
    %515 = arith.mulf %514, %2 : vector<16x128xf32>
    %516 = arith.truncf %515 : vector<16x128xf32> to vector<16x128xbf16>
    %c1_174 = arith.constant 1 : index
    %c0_175 = arith.constant 0 : index
    %c0_176 = arith.constant 0 : index
    %517 = vector.load %arg14[%c1_174, %c0_175, %c0_176] : memref<2x128x128xbf16, #tpu.memory_space<vmem>>, vector<1x128x128xbf16>
    %518 = vector.shape_cast %517 : vector<1x128x128xbf16> to vector<128x128xbf16>
    %cst_177 = arith.constant dense<0.000000e+00> : vector<16x128xf32>
    %519 = tpu.matmul %516, %518, %cst_177 {dimension_numbers = #tpu.dot_dimension_numbers<[1], [0], [0], [1], [0, 0, 1, 1], [], []>} : vector<16x128xbf16>, vector<128x128xbf16>, vector<16x128xf32> -> vector<16x128xf32>
    %c1_178 = arith.constant 1 : index
    %c0_179 = arith.constant 0 : index
    %c0_180 = arith.constant 0 : index
    %520 = vector.load %arg15[%c1_178, %c0_179, %c0_180] : memref<2x1x128xf32, #tpu.memory_space<vmem>>, vector<1x1x128xf32>
    %521 = vector.shape_cast %520 : vector<1x1x128xf32> to vector<1x128xf32>
    %522 = vector.broadcast %521 : vector<1x128xf32> to vector<16x128xf32>
    %523 = arith.addf %519, %522 : vector<16x128xf32>
    %524 = vector.shape_cast %523 : vector<16x128xf32> to vector<2x8x4x32xf32>
    %525 = vector.extract_strided_slice %35 {offsets = [0, 256], sizes = [32, 256], strides = [1, 1]} : vector<32x512xf32> to vector<32x256xf32>
    %526 = vector.shape_cast %525 : vector<32x256xf32> to vector<2x16x8x32xf32>
    %527 = vector.extract_strided_slice %526 {offsets = [0, 0, 0, 0], sizes = [2, 16, 4, 32], strides = [1, 1, 1, 1]} : vector<2x16x8x32xf32> to vector<2x16x4x32xf32>
    %528 = vector.extract_strided_slice %526 {offsets = [0, 0, 4, 0], sizes = [2, 16, 4, 32], strides = [1, 1, 1, 1]} : vector<2x16x8x32xf32> to vector<2x16x4x32xf32>
    %c1_181 = arith.constant 1 : index
    %c0_182 = arith.constant 0 : index
    %c0_183 = arith.constant 0 : index
    %529 = vector.load %arg16[%c1_181, %c0_182, %c0_183] : memref<2x128x128xbf16, #tpu.memory_space<vmem>>, vector<1x128x128xbf16>
    %530 = vector.shape_cast %529 : vector<1x128x128xbf16> to vector<128x128xbf16>
    %531 = vector.extract_strided_slice %524 {offsets = [0, 0, 0, 0], sizes = [2, 8, 1, 32], strides = [1, 1, 1, 1]} : vector<2x8x4x32xf32> to vector<2x8x1x32xf32>
    %532 = vector.shape_cast %531 : vector<2x8x1x32xf32> to vector<2x8x32xf32>
    %533 = arith.truncf %532 : vector<2x8x32xf32> to vector<2x8x32xbf16>
    %534 = vector.extract_strided_slice %527 {offsets = [0, 0, 0, 0], sizes = [2, 16, 1, 32], strides = [1, 1, 1, 1]} : vector<2x16x4x32xf32> to vector<2x16x1x32xf32>
    %535 = vector.shape_cast %534 : vector<2x16x1x32xf32> to vector<2x16x32xf32>
    %536 = arith.truncf %535 : vector<2x16x32xf32> to vector<2x16x32xbf16>
    %537 = vector.extract_strided_slice %528 {offsets = [0, 0, 0, 0], sizes = [2, 16, 1, 32], strides = [1, 1, 1, 1]} : vector<2x16x4x32xf32> to vector<2x16x1x32xf32>
    %538 = vector.shape_cast %537 : vector<2x16x1x32xf32> to vector<2x16x32xf32>
    %539 = arith.truncf %538 : vector<2x16x32xf32> to vector<2x16x32xbf16>
    "tpu.trace_start"() <{level = 10 : i32, message = "bqd,bkd->bqk"}> : () -> ()
    %cst_184 = arith.constant dense<0.000000e+00> : vector<2x8x16xf32>
    %540 = tpu.matmul %533, %536, %cst_184 {dimension_numbers = #tpu.dot_dimension_numbers<[2], [2], [1], [1], [0, 0, 0, 1, 1, 1], [0], [0]>} : vector<2x8x32xbf16>, vector<2x16x32xbf16>, vector<2x8x16xf32> -> vector<2x8x16xf32>
    "tpu.trace_stop"() : () -> ()
    %cst_185 = arith.constant dense<0xFF800000> : vector<2x8xf32>
    %541 = vector.multi_reduction <maximumf>, %540, %cst_185 [2] : vector<2x8x16xf32> to vector<2x8xf32>
    %542 = vector.shape_cast %541 : vector<2x8xf32> to vector<2x8x1xf32>
    %543 = vector.broadcast %542 : vector<2x8x1xf32> to vector<2x8x16xf32>
    %544 = arith.subf %540, %543 : vector<2x8x16xf32>
    %545 = math.exp %544 : vector<2x8x16xf32>
    %cst_186 = arith.constant dense<0.000000e+00> : vector<2x8xf32>
    %546 = vector.multi_reduction <add>, %545, %cst_186 [2] : vector<2x8x16xf32> to vector<2x8xf32>
    %547 = vector.shape_cast %546 : vector<2x8xf32> to vector<2x8x1xf32>
    %548 = tpu.reciprocal %547 {approx = true} : vector<2x8x1xf32> -> vector<2x8x1xf32>
    %549 = vector.broadcast %548 : vector<2x8x1xf32> to vector<2x8x16xf32>
    %550 = arith.mulf %545, %549 : vector<2x8x16xf32>
    %551 = arith.truncf %550 : vector<2x8x16xf32> to vector<2x8x16xbf16>
    "tpu.trace_start"() <{level = 10 : i32, message = "bqk,bkd->bqd"}> : () -> ()
    %cst_187 = arith.constant dense<0.000000e+00> : vector<2x8x32xf32>
    %552 = tpu.matmul %551, %539, %cst_187 {dimension_numbers = #tpu.dot_dimension_numbers<[2], [1], [1], [2], [0, 0, 0, 1, 1, 2], [0], [0]>} : vector<2x8x16xbf16>, vector<2x16x32xbf16>, vector<2x8x32xf32> -> vector<2x8x32xf32>
    "tpu.trace_stop"() : () -> ()
    %553 = vector.extract_strided_slice %524 {offsets = [0, 0, 1, 0], sizes = [2, 8, 1, 32], strides = [1, 1, 1, 1]} : vector<2x8x4x32xf32> to vector<2x8x1x32xf32>
    %554 = vector.shape_cast %553 : vector<2x8x1x32xf32> to vector<2x8x32xf32>
    %555 = arith.truncf %554 : vector<2x8x32xf32> to vector<2x8x32xbf16>
    %556 = vector.extract_strided_slice %527 {offsets = [0, 0, 1, 0], sizes = [2, 16, 1, 32], strides = [1, 1, 1, 1]} : vector<2x16x4x32xf32> to vector<2x16x1x32xf32>
    %557 = vector.shape_cast %556 : vector<2x16x1x32xf32> to vector<2x16x32xf32>
    %558 = arith.truncf %557 : vector<2x16x32xf32> to vector<2x16x32xbf16>
    %559 = vector.extract_strided_slice %528 {offsets = [0, 0, 1, 0], sizes = [2, 16, 1, 32], strides = [1, 1, 1, 1]} : vector<2x16x4x32xf32> to vector<2x16x1x32xf32>
    %560 = vector.shape_cast %559 : vector<2x16x1x32xf32> to vector<2x16x32xf32>
    %561 = arith.truncf %560 : vector<2x16x32xf32> to vector<2x16x32xbf16>
    "tpu.trace_start"() <{level = 10 : i32, message = "bqd,bkd->bqk"}> : () -> ()
    %cst_188 = arith.constant dense<0.000000e+00> : vector<2x8x16xf32>
    %562 = tpu.matmul %555, %558, %cst_188 {dimension_numbers = #tpu.dot_dimension_numbers<[2], [2], [1], [1], [0, 0, 0, 1, 1, 1], [0], [0]>} : vector<2x8x32xbf16>, vector<2x16x32xbf16>, vector<2x8x16xf32> -> vector<2x8x16xf32>
    "tpu.trace_stop"() : () -> ()
    %cst_189 = arith.constant dense<0xFF800000> : vector<2x8xf32>
    %563 = vector.multi_reduction <maximumf>, %562, %cst_189 [2] : vector<2x8x16xf32> to vector<2x8xf32>
    %564 = vector.shape_cast %563 : vector<2x8xf32> to vector<2x8x1xf32>
    %565 = vector.broadcast %564 : vector<2x8x1xf32> to vector<2x8x16xf32>
    %566 = arith.subf %562, %565 : vector<2x8x16xf32>
    %567 = math.exp %566 : vector<2x8x16xf32>
    %cst_190 = arith.constant dense<0.000000e+00> : vector<2x8xf32>
    %568 = vector.multi_reduction <add>, %567, %cst_190 [2] : vector<2x8x16xf32> to vector<2x8xf32>
    %569 = vector.shape_cast %568 : vector<2x8xf32> to vector<2x8x1xf32>
    %570 = tpu.reciprocal %569 {approx = true} : vector<2x8x1xf32> -> vector<2x8x1xf32>
    %571 = vector.broadcast %570 : vector<2x8x1xf32> to vector<2x8x16xf32>
    %572 = arith.mulf %567, %571 : vector<2x8x16xf32>
    %573 = arith.truncf %572 : vector<2x8x16xf32> to vector<2x8x16xbf16>
    "tpu.trace_start"() <{level = 10 : i32, message = "bqk,bkd->bqd"}> : () -> ()
    %cst_191 = arith.constant dense<0.000000e+00> : vector<2x8x32xf32>
    %574 = tpu.matmul %573, %561, %cst_191 {dimension_numbers = #tpu.dot_dimension_numbers<[2], [1], [1], [2], [0, 0, 0, 1, 1, 2], [0], [0]>} : vector<2x8x16xbf16>, vector<2x16x32xbf16>, vector<2x8x32xf32> -> vector<2x8x32xf32>
    "tpu.trace_stop"() : () -> ()
    %575 = vector.extract_strided_slice %524 {offsets = [0, 0, 2, 0], sizes = [2, 8, 1, 32], strides = [1, 1, 1, 1]} : vector<2x8x4x32xf32> to vector<2x8x1x32xf32>
    %576 = vector.shape_cast %575 : vector<2x8x1x32xf32> to vector<2x8x32xf32>
    %577 = arith.truncf %576 : vector<2x8x32xf32> to vector<2x8x32xbf16>
    %578 = vector.extract_strided_slice %527 {offsets = [0, 0, 2, 0], sizes = [2, 16, 1, 32], strides = [1, 1, 1, 1]} : vector<2x16x4x32xf32> to vector<2x16x1x32xf32>
    %579 = vector.shape_cast %578 : vector<2x16x1x32xf32> to vector<2x16x32xf32>
    %580 = arith.truncf %579 : vector<2x16x32xf32> to vector<2x16x32xbf16>
    %581 = vector.extract_strided_slice %528 {offsets = [0, 0, 2, 0], sizes = [2, 16, 1, 32], strides = [1, 1, 1, 1]} : vector<2x16x4x32xf32> to vector<2x16x1x32xf32>
    %582 = vector.shape_cast %581 : vector<2x16x1x32xf32> to vector<2x16x32xf32>
    %583 = arith.truncf %582 : vector<2x16x32xf32> to vector<2x16x32xbf16>
    "tpu.trace_start"() <{level = 10 : i32, message = "bqd,bkd->bqk"}> : () -> ()
    %cst_192 = arith.constant dense<0.000000e+00> : vector<2x8x16xf32>
    %584 = tpu.matmul %577, %580, %cst_192 {dimension_numbers = #tpu.dot_dimension_numbers<[2], [2], [1], [1], [0, 0, 0, 1, 1, 1], [0], [0]>} : vector<2x8x32xbf16>, vector<2x16x32xbf16>, vector<2x8x16xf32> -> vector<2x8x16xf32>
    "tpu.trace_stop"() : () -> ()
    %cst_193 = arith.constant dense<0xFF800000> : vector<2x8xf32>
    %585 = vector.multi_reduction <maximumf>, %584, %cst_193 [2] : vector<2x8x16xf32> to vector<2x8xf32>
    %586 = vector.shape_cast %585 : vector<2x8xf32> to vector<2x8x1xf32>
    %587 = vector.broadcast %586 : vector<2x8x1xf32> to vector<2x8x16xf32>
    %588 = arith.subf %584, %587 : vector<2x8x16xf32>
    %589 = math.exp %588 : vector<2x8x16xf32>
    %cst_194 = arith.constant dense<0.000000e+00> : vector<2x8xf32>
    %590 = vector.multi_reduction <add>, %589, %cst_194 [2] : vector<2x8x16xf32> to vector<2x8xf32>
    %591 = vector.shape_cast %590 : vector<2x8xf32> to vector<2x8x1xf32>
    %592 = tpu.reciprocal %591 {approx = true} : vector<2x8x1xf32> -> vector<2x8x1xf32>
    %593 = vector.broadcast %592 : vector<2x8x1xf32> to vector<2x8x16xf32>
    %594 = arith.mulf %589, %593 : vector<2x8x16xf32>
    %595 = arith.truncf %594 : vector<2x8x16xf32> to vector<2x8x16xbf16>
    "tpu.trace_start"() <{level = 10 : i32, message = "bqk,bkd->bqd"}> : () -> ()
    %cst_195 = arith.constant dense<0.000000e+00> : vector<2x8x32xf32>
    %596 = tpu.matmul %595, %583, %cst_195 {dimension_numbers = #tpu.dot_dimension_numbers<[2], [1], [1], [2], [0, 0, 0, 1, 1, 2], [0], [0]>} : vector<2x8x16xbf16>, vector<2x16x32xbf16>, vector<2x8x32xf32> -> vector<2x8x32xf32>
    "tpu.trace_stop"() : () -> ()
    %597 = vector.extract_strided_slice %524 {offsets = [0, 0, 3, 0], sizes = [2, 8, 1, 32], strides = [1, 1, 1, 1]} : vector<2x8x4x32xf32> to vector<2x8x1x32xf32>
    %598 = vector.shape_cast %597 : vector<2x8x1x32xf32> to vector<2x8x32xf32>
    %599 = arith.truncf %598 : vector<2x8x32xf32> to vector<2x8x32xbf16>
    %600 = vector.extract_strided_slice %527 {offsets = [0, 0, 3, 0], sizes = [2, 16, 1, 32], strides = [1, 1, 1, 1]} : vector<2x16x4x32xf32> to vector<2x16x1x32xf32>
    %601 = vector.shape_cast %600 : vector<2x16x1x32xf32> to vector<2x16x32xf32>
    %602 = arith.truncf %601 : vector<2x16x32xf32> to vector<2x16x32xbf16>
    %603 = vector.extract_strided_slice %528 {offsets = [0, 0, 3, 0], sizes = [2, 16, 1, 32], strides = [1, 1, 1, 1]} : vector<2x16x4x32xf32> to vector<2x16x1x32xf32>
    %604 = vector.shape_cast %603 : vector<2x16x1x32xf32> to vector<2x16x32xf32>
    %605 = arith.truncf %604 : vector<2x16x32xf32> to vector<2x16x32xbf16>
    "tpu.trace_start"() <{level = 10 : i32, message = "bqd,bkd->bqk"}> : () -> ()
    %cst_196 = arith.constant dense<0.000000e+00> : vector<2x8x16xf32>
    %606 = tpu.matmul %599, %602, %cst_196 {dimension_numbers = #tpu.dot_dimension_numbers<[2], [2], [1], [1], [0, 0, 0, 1, 1, 1], [0], [0]>} : vector<2x8x32xbf16>, vector<2x16x32xbf16>, vector<2x8x16xf32> -> vector<2x8x16xf32>
    "tpu.trace_stop"() : () -> ()
    %cst_197 = arith.constant dense<0xFF800000> : vector<2x8xf32>
    %607 = vector.multi_reduction <maximumf>, %606, %cst_197 [2] : vector<2x8x16xf32> to vector<2x8xf32>
    %608 = vector.shape_cast %607 : vector<2x8xf32> to vector<2x8x1xf32>
    %609 = vector.broadcast %608 : vector<2x8x1xf32> to vector<2x8x16xf32>
    %610 = arith.subf %606, %609 : vector<2x8x16xf32>
    %611 = math.exp %610 : vector<2x8x16xf32>
    %cst_198 = arith.constant dense<0.000000e+00> : vector<2x8xf32>
    %612 = vector.multi_reduction <add>, %611, %cst_198 [2] : vector<2x8x16xf32> to vector<2x8xf32>
    %613 = vector.shape_cast %612 : vector<2x8xf32> to vector<2x8x1xf32>
    %614 = tpu.reciprocal %613 {approx = true} : vector<2x8x1xf32> -> vector<2x8x1xf32>
    %615 = vector.broadcast %614 : vector<2x8x1xf32> to vector<2x8x16xf32>
    %616 = arith.mulf %611, %615 : vector<2x8x16xf32>
    %617 = arith.truncf %616 : vector<2x8x16xf32> to vector<2x8x16xbf16>
    "tpu.trace_start"() <{level = 10 : i32, message = "bqk,bkd->bqd"}> : () -> ()
    %cst_199 = arith.constant dense<0.000000e+00> : vector<2x8x32xf32>
    %618 = tpu.matmul %617, %605, %cst_199 {dimension_numbers = #tpu.dot_dimension_numbers<[2], [1], [1], [2], [0, 0, 0, 1, 1, 2], [0], [0]>} : vector<2x8x16xbf16>, vector<2x16x32xbf16>, vector<2x8x32xf32> -> vector<2x8x32xf32>
    "tpu.trace_stop"() : () -> ()
    %619 = tpu.concatenate %552, %574, %596, %618 in 2 : vector<2x8x32xf32>, vector<2x8x32xf32>, vector<2x8x32xf32>, vector<2x8x32xf32> -> vector<2x8x128xf32>
    %620 = vector.shape_cast %619 : vector<2x8x128xf32> to vector<16x128xf32>
    %621 = arith.truncf %620 : vector<16x128xf32> to vector<16x128xbf16>
    %cst_200 = arith.constant dense<0.000000e+00> : vector<16x128xf32>
    %622 = tpu.matmul %621, %530, %cst_200 {dimension_numbers = #tpu.dot_dimension_numbers<[1], [0], [0], [1], [0, 0, 1, 1], [], []>} : vector<16x128xbf16>, vector<128x128xbf16>, vector<16x128xf32> -> vector<16x128xf32>
    %c1_201 = arith.constant 1 : index
    %c0_202 = arith.constant 0 : index
    %c0_203 = arith.constant 0 : index
    %623 = vector.load %arg17[%c1_201, %c0_202, %c0_203] : memref<2x1x128xf32, #tpu.memory_space<vmem>>, vector<1x1x128xf32>
    %624 = vector.shape_cast %623 : vector<1x1x128xf32> to vector<1x128xf32>
    %625 = vector.broadcast %624 : vector<1x128xf32> to vector<16x128xf32>
    %626 = arith.addf %622, %625 : vector<16x128xf32>
    %627 = arith.addf %626, %515 : vector<16x128xf32>
    %c1_204 = arith.constant 1 : index
    %c0_205 = arith.constant 0 : index
    %c0_206 = arith.constant 0 : index
    %628 = vector.load %arg18[%c1_204, %c0_205, %c0_206] : memref<2x1x128xf32, #tpu.memory_space<vmem>>, vector<1x1x128xf32>
    %629 = vector.shape_cast %628 : vector<1x1x128xf32> to vector<1x128xf32>
    %c1_207 = arith.constant 1 : index
    %c0_208 = arith.constant 0 : index
    %c0_209 = arith.constant 0 : index
    %630 = vector.load %arg19[%c1_207, %c0_208, %c0_209] : memref<2x1x128xf32, #tpu.memory_space<vmem>>, vector<1x1x128xf32>
    %631 = vector.shape_cast %630 : vector<1x1x128xf32> to vector<1x128xf32>
    %cst_210 = arith.constant dense<0.000000e+00> : vector<16xf32>
    %632 = vector.multi_reduction <add>, %627, %cst_210 [1] : vector<16x128xf32> to vector<16xf32>
    %633 = vector.shape_cast %632 : vector<16xf32> to vector<16x1xf32>
    %cst_211 = arith.constant 1.280000e+02 : f32
    %634 = vector.broadcast %cst_211 : f32 to vector<16x1xf32>
    %635 = arith.divf %633, %634 : vector<16x1xf32>
    %636 = vector.broadcast %635 : vector<16x1xf32> to vector<16x128xf32>
    %637 = arith.subf %627, %636 : vector<16x128xf32>
    %638 = arith.mulf %637, %637 : vector<16x128xf32>
    %cst_212 = arith.constant dense<0.000000e+00> : vector<16xf32>
    %639 = vector.multi_reduction <add>, %638, %cst_212 [1] : vector<16x128xf32> to vector<16xf32>
    %640 = vector.shape_cast %639 : vector<16xf32> to vector<16x1xf32>
    %cst_213 = arith.constant 1.280000e+02 : f32
    %641 = vector.broadcast %cst_213 : f32 to vector<16x1xf32>
    %642 = arith.divf %640, %641 : vector<16x1xf32>
    %643 = vector.broadcast %635 : vector<16x1xf32> to vector<16x128xf32>
    %644 = arith.subf %627, %643 : vector<16x128xf32>
    %cst_214 = arith.constant 9.99999996E-13 : f32
    %645 = vector.broadcast %cst_214 : f32 to vector<16x1xf32>
    %646 = arith.addf %642, %645 : vector<16x1xf32>
    %647 = math.rsqrt %646 : vector<16x1xf32>
    %648 = vector.broadcast %647 : vector<16x1xf32> to vector<16x128xf32>
    %649 = arith.mulf %644, %648 : vector<16x128xf32>
    %650 = vector.broadcast %629 : vector<1x128xf32> to vector<16x128xf32>
    %651 = arith.mulf %649, %650 : vector<16x128xf32>
    %652 = vector.broadcast %631 : vector<1x128xf32> to vector<16x128xf32>
    %653 = arith.addf %651, %652 : vector<16x128xf32>
    %654 = arith.mulf %653, %2 : vector<16x128xf32>
    %655 = arith.truncf %654 : vector<16x128xf32> to vector<16x128xbf16>
    %c1_215 = arith.constant 1 : index
    %c0_216 = arith.constant 0 : index
    %c0_217 = arith.constant 0 : index
    %656 = vector.load %arg20[%c1_215, %c0_216, %c0_217] : memref<2x128x256xbf16, #tpu.memory_space<vmem>>, vector<1x128x256xbf16>
    %657 = vector.shape_cast %656 : vector<1x128x256xbf16> to vector<128x256xbf16>
    %cst_218 = arith.constant dense<0.000000e+00> : vector<16x256xf32>
    %658 = tpu.matmul %655, %657, %cst_218 {dimension_numbers = #tpu.dot_dimension_numbers<[1], [0], [0], [1], [0, 0, 1, 1], [], []>} : vector<16x128xbf16>, vector<128x256xbf16>, vector<16x256xf32> -> vector<16x256xf32>
    %c1_219 = arith.constant 1 : index
    %c0_220 = arith.constant 0 : index
    %c0_221 = arith.constant 0 : index
    %659 = vector.load %arg21[%c1_219, %c0_220, %c0_221] : memref<2x1x256xf32, #tpu.memory_space<vmem>>, vector<1x1x256xf32>
    %660 = vector.shape_cast %659 : vector<1x1x256xf32> to vector<1x256xf32>
    %661 = vector.broadcast %660 : vector<1x256xf32> to vector<16x256xf32>
    %662 = arith.addf %658, %661 : vector<16x256xf32>
    %663 = arith.mulf %662, %662 : vector<16x256xf32>
    %664 = arith.mulf %662, %663 : vector<16x256xf32>
    %cst_222 = arith.constant 4.471500e-02 : f32
    %665 = vector.broadcast %cst_222 : f32 to vector<16x256xf32>
    %666 = arith.mulf %665, %664 : vector<16x256xf32>
    %667 = arith.addf %662, %666 : vector<16x256xf32>
    %cst_223 = arith.constant 0.797884583 : f32
    %668 = vector.broadcast %cst_223 : f32 to vector<16x256xf32>
    %669 = arith.mulf %668, %667 : vector<16x256xf32>
    %670 = math.tanh %669 : vector<16x256xf32>
    %cst_224 = arith.constant 1.000000e+00 : f32
    %671 = vector.broadcast %cst_224 : f32 to vector<16x256xf32>
    %672 = arith.addf %671, %670 : vector<16x256xf32>
    %cst_225 = arith.constant 5.000000e-01 : f32
    %673 = vector.broadcast %cst_225 : f32 to vector<16x256xf32>
    %674 = arith.mulf %673, %672 : vector<16x256xf32>
    %675 = arith.mulf %662, %674 : vector<16x256xf32>
    %676 = arith.truncf %675 : vector<16x256xf32> to vector<16x256xbf16>
    %c1_226 = arith.constant 1 : index
    %c0_227 = arith.constant 0 : index
    %c0_228 = arith.constant 0 : index
    %677 = vector.load %arg22[%c1_226, %c0_227, %c0_228] : memref<2x256x128xbf16, #tpu.memory_space<vmem>>, vector<1x256x128xbf16>
    %678 = vector.shape_cast %677 : vector<1x256x128xbf16> to vector<256x128xbf16>
    %cst_229 = arith.constant dense<0.000000e+00> : vector<16x128xf32>
    %679 = tpu.matmul %676, %678, %cst_229 {dimension_numbers = #tpu.dot_dimension_numbers<[1], [0], [0], [1], [0, 0, 1, 1], [], []>} : vector<16x256xbf16>, vector<256x128xbf16>, vector<16x128xf32> -> vector<16x128xf32>
    %c1_230 = arith.constant 1 : index
    %c0_231 = arith.constant 0 : index
    %c0_232 = arith.constant 0 : index
    %680 = vector.load %arg23[%c1_230, %c0_231, %c0_232] : memref<2x1x128xf32, #tpu.memory_space<vmem>>, vector<1x1x128xf32>
    %681 = vector.shape_cast %680 : vector<1x1x128xf32> to vector<1x128xf32>
    %682 = vector.broadcast %681 : vector<1x128xf32> to vector<16x128xf32>
    %683 = arith.addf %679, %682 : vector<16x128xf32>
    %684 = arith.addf %683, %654 : vector<16x128xf32>
    %c1_233 = arith.constant 1 : index
    %c0_234 = arith.constant 0 : index
    %c0_235 = arith.constant 0 : index
    %685 = vector.load %arg24[%c1_233, %c0_234, %c0_235] : memref<2x1x128xf32, #tpu.memory_space<vmem>>, vector<1x1x128xf32>
    %686 = vector.shape_cast %685 : vector<1x1x128xf32> to vector<1x128xf32>
    %c1_236 = arith.constant 1 : index
    %c0_237 = arith.constant 0 : index
    %c0_238 = arith.constant 0 : index
    %687 = vector.load %arg25[%c1_236, %c0_237, %c0_238] : memref<2x1x128xf32, #tpu.memory_space<vmem>>, vector<1x1x128xf32>
    %688 = vector.shape_cast %687 : vector<1x1x128xf32> to vector<1x128xf32>
    %cst_239 = arith.constant dense<0.000000e+00> : vector<16xf32>
    %689 = vector.multi_reduction <add>, %684, %cst_239 [1] : vector<16x128xf32> to vector<16xf32>
    %690 = vector.shape_cast %689 : vector<16xf32> to vector<16x1xf32>
    %cst_240 = arith.constant 1.280000e+02 : f32
    %691 = vector.broadcast %cst_240 : f32 to vector<16x1xf32>
    %692 = arith.divf %690, %691 : vector<16x1xf32>
    %693 = vector.broadcast %692 : vector<16x1xf32> to vector<16x128xf32>
    %694 = arith.subf %684, %693 : vector<16x128xf32>
    %695 = arith.mulf %694, %694 : vector<16x128xf32>
    %cst_241 = arith.constant dense<0.000000e+00> : vector<16xf32>
    %696 = vector.multi_reduction <add>, %695, %cst_241 [1] : vector<16x128xf32> to vector<16xf32>
    %697 = vector.shape_cast %696 : vector<16xf32> to vector<16x1xf32>
    %cst_242 = arith.constant 1.280000e+02 : f32
    %698 = vector.broadcast %cst_242 : f32 to vector<16x1xf32>
    %699 = arith.divf %697, %698 : vector<16x1xf32>
    %700 = vector.broadcast %692 : vector<16x1xf32> to vector<16x128xf32>
    %701 = arith.subf %684, %700 : vector<16x128xf32>
    %cst_243 = arith.constant 9.99999996E-13 : f32
    %702 = vector.broadcast %cst_243 : f32 to vector<16x1xf32>
    %703 = arith.addf %699, %702 : vector<16x1xf32>
    %704 = math.rsqrt %703 : vector<16x1xf32>
    %705 = vector.broadcast %704 : vector<16x1xf32> to vector<16x128xf32>
    %706 = arith.mulf %701, %705 : vector<16x128xf32>
    %707 = vector.broadcast %686 : vector<1x128xf32> to vector<16x128xf32>
    %708 = arith.mulf %706, %707 : vector<16x128xf32>
    %709 = vector.broadcast %688 : vector<1x128xf32> to vector<16x128xf32>
    %710 = arith.addf %708, %709 : vector<16x128xf32>
    %711 = arith.mulf %710, %2 : vector<16x128xf32>
    %c0_244 = arith.constant 0 : index
    %c0_245 = arith.constant 0 : index
    %712 = vector.load %arg26[%c0_244, %c0_245] : memref<16x128xf32, #tpu.memory_space<vmem>>, vector<16x128xf32>
    tpu.vector_store %arg26[%c0_244, %c0_245], %711 {strides = array<i32>} : memref<16x128xf32, #tpu.memory_space<vmem>>, vector<16x128xf32>,
    return
  }
}

</mosaic_0001>

<llo_original>
// kernel: bert_decoder_forward.1
$region0: #{bert_decoder_forward.1}
  #allocation0 [shape = 'u32[]', space=smem, size = 0x4, offset = 0x4, fixed_abs, tag = 'smem constant byte address 0x4 - core index']
  #allocation1 [shape = 'u32[144,128]{1,0:T(1,128)}', space=vmem, size = 0x12000, scoped, tag = 'internal scratch']
  %s0 = inlined_call_operand.vmem [shape: f32[16,128], index: 0, kind: input, shape index: {}]
  %s1 = inlined_call_operand.vmem [shape: bf16[32,128], index: 1, kind: input, shape index: {}]
  %s2 = inlined_call_operand.vmem [shape: f32[2,8,8], index: 2, kind: input, shape index: {}]
  %s3 = inlined_call_operand.vmem [shape: f32[16,1], index: 3, kind: input, shape index: {}]
  %s4 = inlined_call_operand.vmem [shape: f32[1,128], index: 4, kind: input, shape index: {}]
  %s5 = inlined_call_operand.vmem [shape: f32[1,128], index: 5, kind: input, shape index: {}]
  %s6 = inlined_call_operand.vmem [shape: bf16[128,512], index: 6, kind: input, shape index: {}]
  %s7 = inlined_call_operand.vmem [shape: f32[1,512], index: 7, kind: input, shape index: {}]
  %s8 = inlined_call_operand.vmem [shape: bf16[2,128,384], index: 8, kind: input, shape index: {}]
  %s9 = inlined_call_operand.vmem [shape: f32[2,1,384], index: 9, kind: input, shape index: {}]
  %s10 = inlined_call_operand.vmem [shape: bf16[2,128,128], index: 10, kind: input, shape index: {}]
  %s11 = inlined_call_operand.vmem [shape: f32[2,1,128], index: 11, kind: input, shape index: {}]
  %s12 = inlined_call_operand.vmem [shape: f32[2,1,128], index: 12, kind: input, shape index: {}]
  %s13 = inlined_call_operand.vmem [shape: f32[2,1,128], index: 13, kind: input, shape index: {}]
  %s14 = inlined_call_operand.vmem [shape: bf16[2,128,128], index: 14, kind: input, shape index: {}]
  %s15 = inlined_call_operand.vmem [shape: f32[2,1,128], index: 15, kind: input, shape index: {}]
  %s16 = inlined_call_operand.vmem [shape: bf16[2,128,128], index: 16, kind: input, shape index: {}]
  %s17 = inlined_call_operand.vmem [shape: f32[2,1,128], index: 17, kind: input, shape index: {}]
  %s18 = inlined_call_operand.vmem [shape: f32[2,1,128], index: 18, kind: input, shape index: {}]
  %s19 = inlined_call_operand.vmem [shape: f32[2,1,128], index: 19, kind: input, shape index: {}]
  %s20 = inlined_call_operand.vmem [shape: bf16[2,128,256], index: 20, kind: input, shape index: {}]
  %s21 = inlined_call_operand.vmem [shape: f32[2,1,256], index: 21, kind: input, shape index: {}]
  %s22 = inlined_call_operand.vmem [shape: bf16[2,256,128], index: 22, kind: input, shape index: {}]
  %s23 = inlined_call_operand.vmem [shape: f32[2,1,128], index: 23, kind: input, shape index: {}]
  %s24 = inlined_call_operand.vmem [shape: f32[2,1,128], index: 24, kind: input, shape index: {}]
  %s25 = inlined_call_operand.vmem [shape: f32[2,1,128], index: 25, kind: input, shape index: {}]
  %s26 = inlined_call_operand.hbm [shape: f32[16,128], index: 26, kind: output, shape index: {0}]
  %s27 = inlined_call_operand.hbm [shape: f32[16,128], index: 27, kind: output, shape index: {1}]
  %28 = xla_tuple %s26, %s27
  %s29 = sld [smem:[#allocation0]]
  $region122: #{bert_decoder_forward.1} parent=0
    _
  %s31 = ssub.s32 1, %s29
  %s32 = scalar_select 0, %s31, %s29
  $region1: #{bert_decoder_forward.1} parent=0
    #allocation2 [shape = 'u8[8192]{0}', space=vmem, size = 0x2000, scoped, tag = 'output window, operand 0, single buffered']
    #allocation3 [shape = 's32[1]{0}', space=sflag, size = 0x4, scoped, tag = 'scoped memory for bert_decoder_forward.1']
    #allocation4 [shape = 'u8[8192]{0}', space=vmem, size = 0x2000, scoped, tag = 'output window, operand 1, single buffered']
    #allocation5 [shape = 's32[1]{0}', space=sflag, size = 0x4, scoped, tag = 'scoped memory for bert_decoder_forward.1']
    %33 = vsyncpa [#allocation3], 0
    %34 = vsyncpa [#allocation5], 0
    // Predicated region
    $region2: #{bert_decoder_forward.1} parent=1 // pred_check
      _
    $region3: #{bert_decoder_forward.1} parent=1 // pred_check_branch
      %36 = sbr.rel (0) target = $region5
    $region4: #{bert_decoder_forward.1} parent=1 // pred_region
      _
    $region5: #{bert_decoder_forward.1} parent=1 // pred_fallthru
      _
    // Predicated region
    $region6: #{bert_decoder_forward.1} parent=1 // pred_check
      _
    $region7: #{bert_decoder_forward.1} parent=1 // pred_check_branch
      %38 = sbr.rel (0) target = $region9
    $region8: #{bert_decoder_forward.1} parent=1 // pred_region
      _
    $region9: #{bert_decoder_forward.1} parent=1 // pred_fallthru
      _
    // Predicated region
    $region10: #{bert_decoder_forward.1} parent=1 // pred_check
      _
    $region11: #{bert_decoder_forward.1} parent=1 // pred_check_branch
      %40 = sbr.rel (0) target = $region13
    $region12: #{bert_decoder_forward.1} parent=1 // pred_region
      _
    $region13: #{bert_decoder_forward.1} parent=1 // pred_fallthru
      _
    // Predicated region
    $region14: #{bert_decoder_forward.1} parent=1 // pred_check
      _
    $region15: #{bert_decoder_forward.1} parent=1 // pred_check_branch
      %42 = sbr.rel (0) target = $region17
    $region16: #{bert_decoder_forward.1} parent=1 // pred_region
      _
    $region17: #{bert_decoder_forward.1} parent=1 // pred_fallthru
      _
    // Predicated region
    $region18: #{bert_decoder_forward.1} parent=1 // pred_check
      _
    $region19: #{bert_decoder_forward.1} parent=1 // pred_check_branch
      %44 = sbr.rel (0) target = $region21
    $region20: #{bert_decoder_forward.1} parent=1 // pred_region
      _
    $region21: #{bert_decoder_forward.1} parent=1 // pred_fallthru
      _
    // Predicated region
    $region22: #{bert_decoder_forward.1} parent=1 // pred_check
      _
    $region23: #{bert_decoder_forward.1} parent=1 // pred_check_branch
      %46 = sbr.rel (0) target = $region25
    $region24: #{bert_decoder_forward.1} parent=1 // pred_region
      _
    $region25: #{bert_decoder_forward.1} parent=1 // pred_fallthru
      _
    // Predicated region
    $region26: #{bert_decoder_forward.1} parent=1 // pred_check
      _
    $region27: #{bert_decoder_forward.1} parent=1 // pred_check_branch
      %48 = sbr.rel (0) target = $region29
    $region28: #{bert_decoder_forward.1} parent=1 // pred_region
      _
    $region29: #{bert_decoder_forward.1} parent=1 // pred_fallthru
      _
    // Predicated region
    $region30: #{bert_decoder_forward.1} parent=1 // pred_check
      _
    $region31: #{bert_decoder_forward.1} parent=1 // pred_check_branch
      %50 = sbr.rel (0) target = $region33
    $region32: #{bert_decoder_forward.1} parent=1 // pred_region
      _
    $region33: #{bert_decoder_forward.1} parent=1 // pred_fallthru
      _
    // Predicated region
    $region34: #{bert_decoder_forward.1} parent=1 // pred_check
      _
    $region35: #{bert_decoder_forward.1} parent=1 // pred_check_branch
      %52 = sbr.rel (0) target = $region37
    $region36: #{bert_decoder_forward.1} parent=1 // pred_region
      _
    $region37: #{bert_decoder_forward.1} parent=1 // pred_fallthru
      _
    // Predicated region
    $region38: #{bert_decoder_forward.1} parent=1 // pred_check
      _
    $region39: #{bert_decoder_forward.1} parent=1 // pred_check_branch
      %54 = sbr.rel (0) target = $region41
    $region40: #{bert_decoder_forward.1} parent=1 // pred_region
      _
    $region41: #{bert_decoder_forward.1} parent=1 // pred_fallthru
      _
    // Predicated region
    $region42: #{bert_decoder_forward.1} parent=1 // pred_check
      _
    $region43: #{bert_decoder_forward.1} parent=1 // pred_check_branch
      %56 = sbr.rel (0) target = $region45
    $region44: #{bert_decoder_forward.1} parent=1 // pred_region
      _
    $region45: #{bert_decoder_forward.1} parent=1 // pred_fallthru
      _
    // Predicated region
    $region46: #{bert_decoder_forward.1} parent=1 // pred_check
      _
    $region47: #{bert_decoder_forward.1} parent=1 // pred_check_branch
      %58 = sbr.rel (0) target = $region49
    $region48: #{bert_decoder_forward.1} parent=1 // pred_region
      _
    $region49: #{bert_decoder_forward.1} parent=1 // pred_fallthru
      _
    // Predicated region
    $region50: #{bert_decoder_forward.1} parent=1 // pred_check
      _
    $region51: #{bert_decoder_forward.1} parent=1 // pred_check_branch
      %60 = sbr.rel (0) target = $region53
    $region52: #{bert_decoder_forward.1} parent=1 // pred_region
      _
    $region53: #{bert_decoder_forward.1} parent=1 // pred_fallthru
      _
    // Predicated region
    $region54: #{bert_decoder_forward.1} parent=1 // pred_check
      _
    $region55: #{bert_decoder_forward.1} parent=1 // pred_check_branch
      %62 = sbr.rel (0) target = $region57
    $region56: #{bert_decoder_forward.1} parent=1 // pred_region
      _
    $region57: #{bert_decoder_forward.1} parent=1 // pred_fallthru
      _
    // Predicated region
    $region58: #{bert_decoder_forward.1} parent=1 // pred_check
      _
    $region59: #{bert_decoder_forward.1} parent=1 // pred_check_branch
      %64 = sbr.rel (0) target = $region61
    $region60: #{bert_decoder_forward.1} parent=1 // pred_region
      _
    $region61: #{bert_decoder_forward.1} parent=1 // pred_fallthru
      _
    // Predicated region
    $region62: #{bert_decoder_forward.1} parent=1 // pred_check
      _
    $region63: #{bert_decoder_forward.1} parent=1 // pred_check_branch
      %66 = sbr.rel (0) target = $region65
    $region64: #{bert_decoder_forward.1} parent=1 // pred_region
      _
    $region65: #{bert_decoder_forward.1} parent=1 // pred_fallthru
      _
    // Predicated region
    $region66: #{bert_decoder_forward.1} parent=1 // pred_check
      _
    $region67: #{bert_decoder_forward.1} parent=1 // pred_check_branch
      %68 = sbr.rel (0) target = $region69
    $region68: #{bert_decoder_forward.1} parent=1 // pred_region
      _
    $region69: #{bert_decoder_forward.1} parent=1 // pred_fallthru
      _
    // Predicated region
    $region70: #{bert_decoder_forward.1} parent=1 // pred_check
      _
    $region71: #{bert_decoder_forward.1} parent=1 // pred_check_branch
      %70 = sbr.rel (0) target = $region73
    $region72: #{bert_decoder_forward.1} parent=1 // pred_region
      _
    $region73: #{bert_decoder_forward.1} parent=1 // pred_fallthru
      _
    // Predicated region
    $region74: #{bert_decoder_forward.1} parent=1 // pred_check
      _
    $region75: #{bert_decoder_forward.1} parent=1 // pred_check_branch
      %72 = sbr.rel (0) target = $region77
    $region76: #{bert_decoder_forward.1} parent=1 // pred_region
      _
    $region77: #{bert_decoder_forward.1} parent=1 // pred_fallthru
      _
    // Predicated region
    $region78: #{bert_decoder_forward.1} parent=1 // pred_check
      _
    $region79: #{bert_decoder_forward.1} parent=1 // pred_check_branch
      %74 = sbr.rel (0) target = $region81
    $region80: #{bert_decoder_forward.1} parent=1 // pred_region
      _
    $region81: #{bert_decoder_forward.1} parent=1 // pred_fallthru
      _
    // Predicated region
    $region82: #{bert_decoder_forward.1} parent=1 // pred_check
      _
    $region83: #{bert_decoder_forward.1} parent=1 // pred_check_branch
      %76 = sbr.rel (0) target = $region85
    $region84: #{bert_decoder_forward.1} parent=1 // pred_region
      _
    $region85: #{bert_decoder_forward.1} parent=1 // pred_fallthru
      _
    // Predicated region
    $region86: #{bert_decoder_forward.1} parent=1 // pred_check
      _
    $region87: #{bert_decoder_forward.1} parent=1 // pred_check_branch
      %78 = sbr.rel (0) target = $region89
    $region88: #{bert_decoder_forward.1} parent=1 // pred_region
      _
    $region89: #{bert_decoder_forward.1} parent=1 // pred_fallthru
      _
    // Predicated region
    $region90: #{bert_decoder_forward.1} parent=1 // pred_check
      _
    $region91: #{bert_decoder_forward.1} parent=1 // pred_check_branch
      %80 = sbr.rel (0) target = $region93
    $region92: #{bert_decoder_forward.1} parent=1 // pred_region
      _
    $region93: #{bert_decoder_forward.1} parent=1 // pred_fallthru
      _
    // Predicated region
    $region94: #{bert_decoder_forward.1} parent=1 // pred_check
      _
    $region95: #{bert_decoder_forward.1} parent=1 // pred_check_branch
      %82 = sbr.rel (0) target = $region97
    $region96: #{bert_decoder_forward.1} parent=1 // pred_region
      _
    $region97: #{bert_decoder_forward.1} parent=1 // pred_fallthru
      _
    // Predicated region
    $region98: #{bert_decoder_forward.1} parent=1 // pred_check
      _
    $region99: #{bert_decoder_forward.1} parent=1 // pred_check_branch
      %84 = sbr.rel (0) target = $region101
    $region100: #{bert_decoder_forward.1} parent=1 // pred_region
      _
    $region101: #{bert_decoder_forward.1} parent=1 // pred_fallthru
      _
    // Predicated region
    $region102: #{bert_decoder_forward.1} parent=1 // pred_check
      _
    $region103: #{bert_decoder_forward.1} parent=1 // pred_check_branch
      %86 = sbr.rel (0) target = $region105
    $region104: #{bert_decoder_forward.1} parent=1 // pred_region
      _
    $region105: #{bert_decoder_forward.1} parent=1 // pred_fallthru
      _
    %v88 = vld [vmem:[%s3] sm:$0xff]
    %v89 = vld [vmem:[%s3 + $0x8] sm:$0xff]
    %91 = vset.pattern.permute.xlu0 0
    %92 = vperm.xlu0 %91, %v88
    %v93 = vpop.permute.xlu0 %92
    %96 = vset.pattern.permute.xlu0 0
    %97 = vperm.xlu0 %96, %v89
    %v98 = vpop.permute.xlu0 %97
    %v100 = vld [vmem:[%s2] sm:$0xff]
    %v101 = vld [vmem:[%s2 + $0x8] sm:$0xff]
    %v102 = vld [vmem:[%s1] sm:$0xf]
    %v103 = vld [vmem:[%s1 + $0x4] sm:$0xf]
    %v104 = vld [vmem:[%s1 + $0x8] sm:$0xf]
    %v105 = vld [vmem:[%s1 + $0xc] sm:$0xf]
    %v106 = vld [vmem:[%s0] sm:$0xff]
    %v107 = vld [vmem:[%s0 + $0x8] sm:$0xff]
    %v108 = vld [vmem:[%s4] sm:$0x1]
    %v109 = vld [vmem:[%s5] sm:$0x1]
    %110 = vadd.xlane.f32.xlu0 %v106
    %v111 = vpop.xlane.xlu0 %110
    %112 = vadd.xlane.f32.xlu0 %v107
    %v113 = vpop.xlane.xlu0 %112
    %v114 = vrcp.pop 128.0
    %v115 = vmul.f32 %v111, %v114
    %v116 = vmul.f32 %v113, %v114
    %v117 = vsub.f32 %v106, %v115
    %v118 = vsub.f32 %v107, %v116
    %v119 = vmul.f32 %v117, %v117
    %v120 = vmul.f32 %v118, %v118
    %121 = vadd.xlane.f32.xlu0 %v119
    %v122 = vpop.xlane.xlu0 %121
    %123 = vadd.xlane.f32.xlu0 %v120
    %v124 = vpop.xlane.xlu0 %123
    %v125 = vmul.f32 %v122, %v114
    %v126 = vmul.f32 %v124, %v114
    %v127 = vadd.f32 %v125, 1e-12
    %v128 = vadd.f32 %v126, 1e-12
    %v129 = vrsqrt.pop %v127
    %v130 = vrsqrt.pop %v128
    %v131 = vmul.f32 %v117, %v129
    %v132 = vmul.f32 %v118, %v130
    %v134 = vlaneseq
    %v135 = vshrl.u32 %v134, 7
    %v136 = vsub.s32 0, %v135
    %v137 = vrot.slane %v108, %v136
    %v139 = vmul.f32 %v131, %v137
    %v140 = vmul.f32 %v132, %v137
    %v142 = vlaneseq
    %v143 = vshrl.u32 %v142, 7
    %v144 = vsub.s32 0, %v143
    %v145 = vrot.slane %v109, %v144
    %v147 = vadd.f32 %v139, %v145
    %v148 = vadd.f32 %v140, %v145
    %149 = vst [vmem:[#allocation4] sm:$0xff] %v147
    %150 = vst [vmem:[#allocation4 + $0x8] sm:$0xff] %v148
    %v151 = vld [vmem:[%s6] sm:$0xff]
    %v152 = vld [vmem:[%s6 + $0x8] sm:$0xff]
    %v153 = vld [vmem:[%s6 + $0x10] sm:$0xff]
    %v154 = vld [vmem:[%s6 + $0x18] sm:$0xff]
    %v155 = vld [vmem:[%s6 + $0x20] sm:$0xff]
    %v156 = vld [vmem:[%s6 + $0x28] sm:$0xff]
    %v157 = vld [vmem:[%s6 + $0x30] sm:$0xff]
    %v158 = vld [vmem:[%s6 + $0x38] sm:$0xff]
    %v159 = vld [vmem:[%s6 + $0x40] sm:$0xff]
    %v160 = vld [vmem:[%s6 + $0x48] sm:$0xff]
    %v161 = vld [vmem:[%s6 + $0x50] sm:$0xff]
    %v162 = vld [vmem:[%s6 + $0x58] sm:$0xff]
    %v163 = vld [vmem:[%s6 + $0x60] sm:$0xff]
    %v164 = vld [vmem:[%s6 + $0x68] sm:$0xff]
    %v165 = vld [vmem:[%s6 + $0x70] sm:$0xff]
    %v166 = vld [vmem:[%s6 + $0x78] sm:$0xff]
    %v167 = vld [vmem:[%s6 + $0x80] sm:$0xff]
    %v168 = vld [vmem:[%s6 + $0x88] sm:$0xff]
    %v169 = vld [vmem:[%s6 + $0x90] sm:$0xff]
    %v170 = vld [vmem:[%s6 + $0x98] sm:$0xff]
    %v171 = vld [vmem:[%s6 + $0xa0] sm:$0xff]
    %v172 = vld [vmem:[%s6 + $0xa8] sm:$0xff]
    %v173 = vld [vmem:[%s6 + $0xb0] sm:$0xff]
    %v174 = vld [vmem:[%s6 + $0xb8] sm:$0xff]
    %v175 = vld [vmem:[%s6 + $0xc0] sm:$0xff]
    %v176 = vld [vmem:[%s6 + $0xc8] sm:$0xff]
    %v177 = vld [vmem:[%s6 + $0xd0] sm:$0xff]
    %v178 = vld [vmem:[%s6 + $0xd8] sm:$0xff]
    %v179 = vld [vmem:[%s6 + $0xe0] sm:$0xff]
    %v180 = vld [vmem:[%s6 + $0xe8] sm:$0xff]
    %v181 = vld [vmem:[%s6 + $0xf0] sm:$0xff]
    %v182 = vld [vmem:[%s6 + $0xf8] sm:$0xff]
    %v183 = vld [vmem:[%s7] sm:$0xf]
    %v185 = vlaneseq
    %v186 = vshrl.u32 %v185, 7
    %v187 = vsub.s32 0, %v186
    %v188 = vrot.slane %v183, %v187
    %v189 = vlaneseq
    %v190 = vshrl.u32 %v189, 7
    %v191 = vsub.s32 1, %v190
    %v192 = vrot.slane %v183, %v191
    %v193 = vlaneseq
    %v194 = vshrl.u32 %v193, 7
    %v195 = vsub.s32 2, %v194
    %v196 = vrot.slane %v183, %v195
    %v197 = vlaneseq
    %v198 = vshrl.u32 %v197, 7
    %v199 = vsub.s32 3, %v198
    %v200 = vrot.slane %v183, %v199
    %v209 = vunpack.c.l.b16 %v102
    %v210 = vunpack.c.l.b16 %v103
    %v211 = vunpack.c.l.b16 %v104
    %v212 = vunpack.c.l.b16 %v105
    %v213 = vpack.c.b16 %v210, %v209
    %v214 = vpack.c.b16 %v212, %v211
    %v249 = vunpack.c.l.b16 %v151
    %v250 = vunpack.c.h.b16 %v151
    %v251 = vunpack.c.l.b16 %v152
    %v252 = vunpack.c.h.b16 %v152
    %v253 = vunpack.c.l.b16 %v153
    %v254 = vunpack.c.h.b16 %v153
    %v255 = vunpack.c.l.b16 %v154
    %v256 = vunpack.c.h.b16 %v154
    %v257 = vunpack.c.l.b16 %v155
    %v258 = vunpack.c.h.b16 %v155
    %v259 = vunpack.c.l.b16 %v156
    %v260 = vunpack.c.h.b16 %v156
    %v261 = vunpack.c.l.b16 %v157
    %v262 = vunpack.c.h.b16 %v157
    %v263 = vunpack.c.l.b16 %v158
    %v264 = vunpack.c.h.b16 %v158
    %v265 = vunpack.c.l.b16 %v159
    %v266 = vunpack.c.h.b16 %v159
    %v267 = vunpack.c.l.b16 %v160
    %v268 = vunpack.c.h.b16 %v160
    %v269 = vunpack.c.l.b16 %v161
    %v270 = vunpack.c.h.b16 %v161
    %v271 = vunpack.c.l.b16 %v162
    %v272 = vunpack.c.h.b16 %v162
    %v273 = vunpack.c.l.b16 %v163
    %v274 = vunpack.c.h.b16 %v163
    %v275 = vunpack.c.l.b16 %v164
    %v276 = vunpack.c.h.b16 %v164
    %v277 = vunpack.c.l.b16 %v165
    %v278 = vunpack.c.h.b16 %v165
    %v279 = vunpack.c.l.b16 %v166
    %v280 = vunpack.c.h.b16 %v166
    %v281 = vunpack.c.l.b16 %v167
    %v282 = vunpack.c.h.b16 %v167
    %v283 = vunpack.c.l.b16 %v168
    %v284 = vunpack.c.h.b16 %v168
    %v285 = vunpack.c.l.b16 %v169
    %v286 = vunpack.c.h.b16 %v169
    %v287 = vunpack.c.l.b16 %v170
    %v288 = vunpack.c.h.b16 %v170
    %v289 = vunpack.c.l.b16 %v171
    %v290 = vunpack.c.h.b16 %v171
    %v291 = vunpack.c.l.b16 %v172
    %v292 = vunpack.c.h.b16 %v172
    %v293 = vunpack.c.l.b16 %v173
    %v294 = vunpack.c.h.b16 %v173
    %v295 = vunpack.c.l.b16 %v174
    %v296 = vunpack.c.h.b16 %v174
    %v297 = vunpack.c.l.b16 %v175
    %v298 = vunpack.c.h.b16 %v175
    %v299 = vunpack.c.l.b16 %v176
    %v300 = vunpack.c.h.b16 %v176
    %v301 = vunpack.c.l.b16 %v177
    %v302 = vunpack.c.h.b16 %v177
    %v303 = vunpack.c.l.b16 %v178
    %v304 = vunpack.c.h.b16 %v178
    %v305 = vunpack.c.l.b16 %v179
    %v306 = vunpack.c.h.b16 %v179
    %v307 = vunpack.c.l.b16 %v180
    %v308 = vunpack.c.h.b16 %v180
    %v309 = vunpack.c.l.b16 %v181
    %v310 = vunpack.c.h.b16 %v181
    %v311 = vunpack.c.l.b16 %v182
    %v312 = vunpack.c.h.b16 %v182
    %v313 = vpack.c.b16 %v253, %v249
    %v314 = vpack.c.b16 %v254, %v250
    %v315 = vpack.c.b16 %v255, %v251
    %v316 = vpack.c.b16 %v256, %v252
    %v317 = vpack.c.b16 %v261, %v257
    %v318 = vpack.c.b16 %v262, %v258
    %v319 = vpack.c.b16 %v263, %v259
    %v320 = vpack.c.b16 %v264, %v260
    %v321 = vpack.c.b16 %v269, %v265
    %v322 = vpack.c.b16 %v270, %v266
    %v323 = vpack.c.b16 %v271, %v267
    %v324 = vpack.c.b16 %v272, %v268
    %v325 = vpack.c.b16 %v277, %v273
    %v326 = vpack.c.b16 %v278, %v274
    %v327 = vpack.c.b16 %v279, %v275
    %v328 = vpack.c.b16 %v280, %v276
    %v329 = vpack.c.b16 %v285, %v281
    %v330 = vpack.c.b16 %v286, %v282
    %v331 = vpack.c.b16 %v287, %v283
    %v332 = vpack.c.b16 %v288, %v284
    %v333 = vpack.c.b16 %v293, %v289
    %v334 = vpack.c.b16 %v294, %v290
    %v335 = vpack.c.b16 %v295, %v291
    %v336 = vpack.c.b16 %v296, %v292
    %v337 = vpack.c.b16 %v301, %v297
    %v338 = vpack.c.b16 %v302, %v298
    %v339 = vpack.c.b16 %v303, %v299
    %v340 = vpack.c.b16 %v304, %v300
    %v341 = vpack.c.b16 %v309, %v305
    %v342 = vpack.c.b16 %v310, %v306
    %v343 = vpack.c.b16 %v311, %v307
    %v344 = vpack.c.b16 %v312, %v308
    %377 = vmatprep.subr.bf16.mxu0 %v314
    %378 = vmatpush1.bf16.msra.mxu0 %v313
    %379 = vmatprep.subr.bf16.mxu0 %v318
    %380 = vmatpush1.bf16.msra.mxu0 %v317
    %381 = vmatprep.subr.bf16.mxu0 %v322
    %382 = vmatpush1.bf16.msra.mxu0 %v321
    %383 = vmatprep.subr.bf16.mxu0 %v326
    %384 = vmatpush1.bf16.msra.mxu0 %v325
    %385 = vmatprep.subr.bf16.mxu0 %v330
    %386 = vmatpush1.bf16.msra.mxu0 %v329
    %387 = vmatprep.subr.bf16.mxu0 %v334
    %388 = vmatpush1.bf16.msra.mxu0 %v333
    %389 = vmatprep.subr.bf16.mxu0 %v338
    %390 = vmatpush1.bf16.msra.mxu0 %v337
    %391 = vmatprep.subr.bf16.mxu0 %v342
    %392 = vmatpush1.bf16.msra.mxu0 %v341
    %393 = vmatprep.subr.bf16.mxu0 0
    %394 = vmatpush1.bf16.msra.mxu0 0
    %395 = vmatprep.subr.bf16.mxu0 0
    %396 = vmatpush1.bf16.msra.mxu0 0
    %397 = vmatprep.subr.bf16.mxu0 0
    %398 = vmatpush1.bf16.msra.mxu0 0
    %399 = vmatprep.subr.bf16.mxu0 0
    %400 = vmatpush1.bf16.msra.mxu0 0
    %401 = vmatprep.subr.bf16.mxu0 0
    %402 = vmatpush1.bf16.msra.mxu0 0
    %403 = vmatprep.subr.bf16.mxu0 0
    %404 = vmatpush1.bf16.msra.mxu0 0
    %405 = vmatprep.subr.bf16.mxu0 0
    %406 = vmatpush1.bf16.msra.mxu0 0
    %407 = vmatprep.subr.bf16.mxu0 0
    %408 = vmatpush1.bf16.msra.mxu0 0
    %409 = vmatprep.mubr.bf16.mxu0 0
    %410 = vmatmul.mubr.bf16.gmra.mrb[0].mxu0 %v213
    %v411 = vpop.f32.mrb[0].mxu0
    %v412 = vadd.f32 %v188, %v411
    %v413 = vpop.f32.mrb[0].mxu0
    %v414 = vadd.f32 %v192, %v413
    %v415 = vpop.f32.mrb[0].mxu0
    %v416 = vadd.f32 %v188, %v415
    %v417 = vpop.f32.mrb[0].mxu0
    %v418 = vadd.f32 %v192, %v417
    %419 = vmatprep.mubr.bf16.mxu0 0
    %420 = vmatmul.mubr.bf16.gmra.mrb[0].mxu0 %v214
    %v421 = vpop.f32.mrb[0].mxu0
    %v422 = vadd.f32 %v188, %v421
    %v423 = vpop.f32.mrb[0].mxu0
    %v424 = vadd.f32 %v192, %v423
    %v425 = vpop.f32.mrb[0].mxu0
    %v426 = vadd.f32 %v188, %v425
    %v427 = vpop.f32.mrb[0].mxu0
    %v428 = vadd.f32 %v192, %v427
    %429 = vdwg.mxu0
    %430 = vmatprep.subr.bf16.mxu0 %v316
    %431 = vmatpush1.bf16.msra.mxu0 %v315
    %432 = vmatprep.subr.bf16.mxu0 %v320
    %433 = vmatpush1.bf16.msra.mxu0 %v319
    %434 = vmatprep.subr.bf16.mxu0 %v324
    %435 = vmatpush1.bf16.msra.mxu0 %v323
    %436 = vmatprep.subr.bf16.mxu0 %v328
    %437 = vmatpush1.bf16.msra.mxu0 %v327
    %438 = vmatprep.subr.bf16.mxu0 %v332
    %439 = vmatpush1.bf16.msra.mxu0 %v331
    %440 = vmatprep.subr.bf16.mxu0 %v336
    %441 = vmatpush1.bf16.msra.mxu0 %v335
    %442 = vmatprep.subr.bf16.mxu0 %v340
    %443 = vmatpush1.bf16.msra.mxu0 %v339
    %444 = vmatprep.subr.bf16.mxu0 %v344
    %445 = vmatpush1.bf16.msra.mxu0 %v343
    %446 = vmatprep.subr.bf16.mxu0 0
    %447 = vmatpush1.bf16.msra.mxu0 0
    %448 = vmatprep.subr.bf16.mxu0 0
    %449 = vmatpush1.bf16.msra.mxu0 0
    %450 = vmatprep.subr.bf16.mxu0 0
    %451 = vmatpush1.bf16.msra.mxu0 0
    %452 = vmatprep.subr.bf16.mxu0 0
    %453 = vmatpush1.bf16.msra.mxu0 0
    %454 = vmatprep.subr.bf16.mxu0 0
    %455 = vmatpush1.bf16.msra.mxu0 0
    %456 = vmatprep.subr.bf16.mxu0 0
    %457 = vmatpush1.bf16.msra.mxu0 0
    %458 = vmatprep.subr.bf16.mxu0 0
    %459 = vmatpush1.bf16.msra.mxu0 0
    %460 = vmatprep.subr.bf16.mxu0 0
    %461 = vmatpush1.bf16.msra.mxu0 0
    %462 = vmatprep.mubr.bf16.mxu0 0
    %463 = vmatmul.mubr.bf16.gmra.mrb[0].mxu0 %v213
    %v464 = vpop.f32.mrb[0].mxu0
    %v465 = vadd.f32 %v196, %v464
    %v466 = vpop.f32.mrb[0].mxu0
    %v467 = vadd.f32 %v200, %v466
    %v468 = vpop.f32.mrb[0].mxu0
    %v469 = vadd.f32 %v196, %v468
    %v470 = vpop.f32.mrb[0].mxu0
    %v471 = vadd.f32 %v200, %v470
    %472 = vmatprep.mubr.bf16.mxu0 0
    %473 = vmatmul.mubr.bf16.gmra.mrb[0].mxu0 %v214
    %v474 = vpop.f32.mrb[0].mxu0
    %v475 = vadd.f32 %v196, %v474
    %v476 = vpop.f32.mrb[0].mxu0
    %v477 = vadd.f32 %v200, %v476
    %v478 = vpop.f32.mrb[0].mxu0
    %v479 = vadd.f32 %v196, %v478
    %v480 = vpop.f32.mrb[0].mxu0
    %v481 = vadd.f32 %v200, %v480
    %482 = vdwg.mxu0
    %v483 = vpack.c.bf16 %v148, %v147
    %v484 = vld [vmem:[%s8] sm:$0xff]
    %v485 = vld [vmem:[%s8 + $0x8] sm:$0xf]
    %v486 = vld [vmem:[%s8 + $0xc] sm:$0xff]
    %v487 = vld [vmem:[%s8 + $0x14] sm:$0xf]
    %v488 = vld [vmem:[%s8 + $0x18] sm:$0xff]
    %v489 = vld [vmem:[%s8 + $0x20] sm:$0xf]
    %v490 = vld [vmem:[%s8 + $0x24] sm:$0xff]
    %v491 = vld [vmem:[%s8 + $0x2c] sm:$0xf]
    %v492 = vld [vmem:[%s8 + $0x30] sm:$0xff]
    %v493 = vld [vmem:[%s8 + $0x38] sm:$0xf]
    %v494 = vld [vmem:[%s8 + $0x3c] sm:$0xff]
    %v495 = vld [vmem:[%s8 + $0x44] sm:$0xf]
    %v496 = vld [vmem:[%s8 + $0x48] sm:$0xff]
    %v497 = vld [vmem:[%s8 + $0x50] sm:$0xf]
    %v498 = vld [vmem:[%s8 + $0x54] sm:$0xff]
    %v499 = vld [vmem:[%s8 + $0x5c] sm:$0xf]
    %v500 = vld [vmem:[%s8 + $0x60] sm:$0xff]
    %v501 = vld [vmem:[%s8 + $0x68] sm:$0xf]
    %v502 = vld [vmem:[%s8 + $0x6c] sm:$0xff]
    %v503 = vld [vmem:[%s8 + $0x74] sm:$0xf]
    %v504 = vld [vmem:[%s8 + $0x78] sm:$0xff]
    %v505 = vld [vmem:[%s8 + $0x80] sm:$0xf]
    %v506 = vld [vmem:[%s8 + $0x84] sm:$0xff]
    %v507 = vld [vmem:[%s8 + $0x8c] sm:$0xf]
    %v508 = vld [vmem:[%s8 + $0x90] sm:$0xff]
    %v509 = vld [vmem:[%s8 + $0x98] sm:$0xf]
    %v510 = vld [vmem:[%s8 + $0x9c] sm:$0xff]
    %v511 = vld [vmem:[%s8 + $0xa4] sm:$0xf]
    %v512 = vld [vmem:[%s8 + $0xa8] sm:$0xff]
    %v513 = vld [vmem:[%s8 + $0xb0] sm:$0xf]
    %v514 = vld [vmem:[%s8 + $0xb4] sm:$0xff]
    %v515 = vld [vmem:[%s8 + $0xbc] sm:$0xf]
    %v516 = vld [vmem:[%s9] sm:$0x7]
    %v518 = vlaneseq
    %v519 = vshrl.u32 %v518, 7
    %v520 = vsub.s32 0, %v519
    %v521 = vrot.slane %v516, %v520
    %v522 = vlaneseq
    %v523 = vshrl.u32 %v522, 7
    %v524 = vsub.s32 1, %v523
    %v525 = vrot.slane %v516, %v524
    %v526 = vlaneseq
    %v527 = vshrl.u32 %v526, 7
    %v528 = vsub.s32 2, %v527
    %v529 = vrot.slane %v516, %v528
    %v565 = vunpack.c.l.b16 %v484
    %v566 = vunpack.c.h.b16 %v484
    %v567 = vunpack.c.l.b16 %v485
    %v568 = vunpack.c.l.b16 %v486
    %v569 = vunpack.c.h.b16 %v486
    %v570 = vunpack.c.l.b16 %v487
    %v571 = vunpack.c.l.b16 %v488
    %v572 = vunpack.c.h.b16 %v488
    %v573 = vunpack.c.l.b16 %v489
    %v574 = vunpack.c.l.b16 %v490
    %v575 = vunpack.c.h.b16 %v490
    %v576 = vunpack.c.l.b16 %v491
    %v577 = vunpack.c.l.b16 %v492
    %v578 = vunpack.c.h.b16 %v492
    %v579 = vunpack.c.l.b16 %v493
    %v580 = vunpack.c.l.b16 %v494
    %v581 = vunpack.c.h.b16 %v494
    %v582 = vunpack.c.l.b16 %v495
    %v583 = vunpack.c.l.b16 %v496
    %v584 = vunpack.c.h.b16 %v496
    %v585 = vunpack.c.l.b16 %v497
    %v586 = vunpack.c.l.b16 %v498
    %v587 = vunpack.c.h.b16 %v498
    %v588 = vunpack.c.l.b16 %v499
    %v589 = vunpack.c.l.b16 %v500
    %v590 = vunpack.c.h.b16 %v500
    %v591 = vunpack.c.l.b16 %v501
    %v592 = vunpack.c.l.b16 %v502
    %v593 = vunpack.c.h.b16 %v502
    %v594 = vunpack.c.l.b16 %v503
    %v595 = vunpack.c.l.b16 %v504
    %v596 = vunpack.c.h.b16 %v504
    %v597 = vunpack.c.l.b16 %v505
    %v598 = vunpack.c.l.b16 %v506
    %v599 = vunpack.c.h.b16 %v506
    %v600 = vunpack.c.l.b16 %v507
    %v601 = vunpack.c.l.b16 %v508
    %v602 = vunpack.c.h.b16 %v508
    %v603 = vunpack.c.l.b16 %v509
    %v604 = vunpack.c.l.b16 %v510
    %v605 = vunpack.c.h.b16 %v510
    %v606 = vunpack.c.l.b16 %v511
    %v607 = vunpack.c.l.b16 %v512
    %v608 = vunpack.c.h.b16 %v512
    %v609 = vunpack.c.l.b16 %v513
    %v610 = vunpack.c.l.b16 %v514
    %v611 = vunpack.c.h.b16 %v514
    %v612 = vunpack.c.l.b16 %v515
    %v613 = vpack.c.b16 %v568, %v565
    %v614 = vpack.c.b16 %v569, %v566
    %v615 = vpack.c.b16 %v570, %v567
    %v616 = vpack.c.b16 %v574, %v571
    %v617 = vpack.c.b16 %v575, %v572
    %v618 = vpack.c.b16 %v576, %v573
    %v619 = vpack.c.b16 %v580, %v577
    %v620 = vpack.c.b16 %v581, %v578
    %v621 = vpack.c.b16 %v582, %v579
    %v622 = vpack.c.b16 %v586, %v583
    %v623 = vpack.c.b16 %v587, %v584
    %v624 = vpack.c.b16 %v588, %v585
    %v625 = vpack.c.b16 %v592, %v589
    %v626 = vpack.c.b16 %v593, %v590
    %v627 = vpack.c.b16 %v594, %v591
    %v628 = vpack.c.b16 %v598, %v595
    %v629 = vpack.c.b16 %v599, %v596
    %v630 = vpack.c.b16 %v600, %v597
    %v631 = vpack.c.b16 %v604, %v601
    %v632 = vpack.c.b16 %v605, %v602
    %v633 = vpack.c.b16 %v606, %v603
    %v634 = vpack.c.b16 %v610, %v607
    %v635 = vpack.c.b16 %v611, %v608
    %v636 = vpack.c.b16 %v612, %v609
    %661 = vmatprep.subr.bf16.mxu0 %v614
    %662 = vmatpush1.bf16.msra.mxu0 %v613
    %663 = vmatprep.subr.bf16.mxu0 %v617
    %664 = vmatpush1.bf16.msra.mxu0 %v616
    %665 = vmatprep.subr.bf16.mxu0 %v620
    %666 = vmatpush1.bf16.msra.mxu0 %v619
    %667 = vmatprep.subr.bf16.mxu0 %v623
    %668 = vmatpush1.bf16.msra.mxu0 %v622
    %669 = vmatprep.subr.bf16.mxu0 %v626
    %670 = vmatpush1.bf16.msra.mxu0 %v625
    %671 = vmatprep.subr.bf16.mxu0 %v629
    %672 = vmatpush1.bf16.msra.mxu0 %v628
    %673 = vmatprep.subr.bf16.mxu0 %v632
    %674 = vmatpush1.bf16.msra.mxu0 %v631
    %675 = vmatprep.subr.bf16.mxu0 %v635
    %676 = vmatpush1.bf16.msra.mxu0 %v634
    %677 = vmatprep.subr.bf16.mxu0 0
    %678 = vmatpush1.bf16.msra.mxu0 0
    %679 = vmatprep.subr.bf16.mxu0 0
    %680 = vmatpush1.bf16.msra.mxu0 0
    %681 = vmatprep.subr.bf16.mxu0 0
    %682 = vmatpush1.bf16.msra.mxu0 0
    %683 = vmatprep.subr.bf16.mxu0 0
    %684 = vmatpush1.bf16.msra.mxu0 0
    %685 = vmatprep.subr.bf16.mxu0 0
    %686 = vmatpush1.bf16.msra.mxu0 0
    %687 = vmatprep.subr.bf16.mxu0 0
    %688 = vmatpush1.bf16.msra.mxu0 0
    %689 = vmatprep.subr.bf16.mxu0 0
    %690 = vmatpush1.bf16.msra.mxu0 0
    %691 = vmatprep.subr.bf16.mxu0 0
    %692 = vmatpush1.bf16.msra.mxu0 0
    %693 = vmatprep.mubr.bf16.mxu0 0
    %694 = vmatmul.mubr.bf16.gmra.mrb[0].mxu0 %v483
    %v695 = vpop.f32.mrb[0].mxu0
    %v696 = vadd.f32 %v521, %v695
    %v697 = vpop.f32.mrb[0].mxu0
    %v698 = vadd.f32 %v525, %v697
    %v699 = vpop.f32.mrb[0].mxu0
    %v700 = vadd.f32 %v521, %v699
    %v701 = vpop.f32.mrb[0].mxu0
    %v702 = vadd.f32 %v525, %v701
    %703 = vdwg.mxu0
    %704 = vmatprep.subr.bf16.mxu0 0
    %705 = vmatpush1.bf16.msra.mxu0 %v615
    %706 = vmatprep.subr.bf16.mxu0 0
    %707 = vmatpush1.bf16.msra.mxu0 %v618
    %708 = vmatprep.subr.bf16.mxu0 0
    %709 = vmatpush1.bf16.msra.mxu0 %v621
    %710 = vmatprep.subr.bf16.mxu0 0
    %711 = vmatpush1.bf16.msra.mxu0 %v624
    %712 = vmatprep.subr.bf16.mxu0 0
    %713 = vmatpush1.bf16.msra.mxu0 %v627
    %714 = vmatprep.subr.bf16.mxu0 0
    %715 = vmatpush1.bf16.msra.mxu0 %v630
    %716 = vmatprep.subr.bf16.mxu0 0
    %717 = vmatpush1.bf16.msra.mxu0 %v633
    %718 = vmatprep.subr.bf16.mxu0 0
    %719 = vmatpush1.bf16.msra.mxu0 %v636
    %720 = vmatprep.subr.bf16.mxu0 0
    %721 = vmatpush1.bf16.msra.mxu0 0
    %722 = vmatprep.subr.bf16.mxu0 0
    %723 = vmatpush1.bf16.msra.mxu0 0
    %724 = vmatprep.subr.bf16.mxu0 0
    %725 = vmatpush1.bf16.msra.mxu0 0
    %726 = vmatprep.subr.bf16.mxu0 0
    %727 = vmatpush1.bf16.msra.mxu0 0
    %728 = vmatprep.subr.bf16.mxu0 0
    %729 = vmatpush1.bf16.msra.mxu0 0
    %730 = vmatprep.subr.bf16.mxu0 0
    %731 = vmatpush1.bf16.msra.mxu0 0
    %732 = vmatprep.subr.bf16.mxu0 0
    %733 = vmatpush1.bf16.msra.mxu0 0
    %734 = vmatprep.subr.bf16.mxu0 0
    %735 = vmatpush1.bf16.msra.mxu0 0
    %736 = vmatprep.mubr.bf16.mxu0 0
    %737 = vmatmul.mubr.bf16.gmra.mrb[0].mxu0 %v483
    %v738 = vpop.f32.mrb[0].mxu0
    %v739 = vadd.f32 %v529, %v738
    %v740 = vpop.f32.mrb[0].mxu0
    %v741 = vpop.f32.mrb[0].mxu0
    %v742 = vadd.f32 %v529, %v741
    %v743 = vpop.f32.mrb[0].mxu0
    %744 = vdwg.mxu0
    %747 = vrot.lane.b32.xlu0 %v696, 96
    %v748 = vpop.permute.xlu0 %747
    %749 = vrot.lane.b32.xlu0 %v700, 96
    %v750 = vpop.permute.xlu0 %749
    %753 = vrot.lane.b32.xlu0 %v696, 64
    %v754 = vpop.permute.xlu0 %753
    %755 = vrot.lane.b32.xlu0 %v700, 64
    %v756 = vpop.permute.xlu0 %755
    %759 = vrot.lane.b32.xlu0 %v696, 32
    %v760 = vpop.permute.xlu0 %759
    %761 = vrot.lane.b32.xlu0 %v700, 32
    %v762 = vpop.permute.xlu0 %761
    %767 = vrot.lane.b32.xlu0 %v698, 96
    %v768 = vpop.permute.xlu0 %767
    %769 = vrot.lane.b32.xlu0 %v702, 96
    %v770 = vpop.permute.xlu0 %769
    %773 = vrot.lane.b32.xlu0 %v698, 64
    %v774 = vpop.permute.xlu0 %773
    %775 = vrot.lane.b32.xlu0 %v702, 64
    %v776 = vpop.permute.xlu0 %775
    %779 = vrot.lane.b32.xlu0 %v698, 32
    %v780 = vpop.permute.xlu0 %779
    %781 = vrot.lane.b32.xlu0 %v702, 32
    %v782 = vpop.permute.xlu0 %781
    %787 = vrot.lane.b32.xlu0 %v739, 96
    %v788 = vpop.permute.xlu0 %787
    %789 = vrot.lane.b32.xlu0 %v742, 96
    %v790 = vpop.permute.xlu0 %789
    %793 = vrot.lane.b32.xlu0 %v739, 64
    %v794 = vpop.permute.xlu0 %793
    %795 = vrot.lane.b32.xlu0 %v742, 64
    %v796 = vpop.permute.xlu0 %795
    %799 = vrot.lane.b32.xlu0 %v739, 32
    %v800 = vpop.permute.xlu0 %799
    %801 = vrot.lane.b32.xlu0 %v742, 32
    %v802 = vpop.permute.xlu0 %801
    %v805 = vcombine.low %v696, %v754
    %v806 = vcombine.high %v696, %v754
    %v808 = vunpack.c.l.s4 1983009808
    %v809 = vunpack.c.0.s8 %v808
    %v810 = vlaneseq
    %v811 = vshrl.u32 %v810, 7
    %v812 = vsub.s32 %v809, %v811
    %v813 = vrot.slane %v805, %v812
    %v815 = vunpack.c.l.s4 1983009808
    %v816 = vunpack.c.0.s8 %v815
    %v817 = vlaneseq
    %v818 = vshrl.u32 %v817, 7
    %v819 = vsub.s32 %v816, %v818
    %v820 = vrot.slane %v806, %v819
    %v821 = vcombine.low %v748, %v760
    %v822 = vcombine.high %v748, %v760
    %v824 = vunpack.c.l.s4 1983009808
    %v825 = vunpack.c.0.s8 %v824
    %v826 = vlaneseq
    %v827 = vshrl.u32 %v826, 7
    %v828 = vsub.s32 %v825, %v827
    %v829 = vrot.slane %v821, %v828
    %v831 = vunpack.c.l.s4 1983009808
    %v832 = vunpack.c.0.s8 %v831
    %v833 = vlaneseq
    %v834 = vshrl.u32 %v833, 7
    %v835 = vsub.s32 %v832, %v834
    %v836 = vrot.slane %v822, %v835
    %v837 = vcombine.low %v698, %v774
    %v838 = vcombine.high %v698, %v774
    %v840 = vunpack.c.l.s4 1983009808
    %v841 = vunpack.c.0.s8 %v840
    %v842 = vlaneseq
    %v843 = vshrl.u32 %v842, 7
    %v844 = vsub.s32 %v841, %v843
    %v845 = vrot.slane %v837, %v844
    %v847 = vunpack.c.l.s4 1983009808
    %v848 = vunpack.c.0.s8 %v847
    %v849 = vlaneseq
    %v850 = vshrl.u32 %v849, 7
    %v851 = vsub.s32 %v848, %v850
    %v852 = vrot.slane %v838, %v851
    %v853 = vcombine.low %v768, %v780
    %v854 = vcombine.high %v768, %v780
    %v856 = vunpack.c.l.s4 1983009808
    %v857 = vunpack.c.0.s8 %v856
    %v858 = vlaneseq
    %v859 = vshrl.u32 %v858, 7
    %v860 = vsub.s32 %v857, %v859
    %v861 = vrot.slane %v853, %v860
    %v863 = vunpack.c.l.s4 1983009808
    %v864 = vunpack.c.0.s8 %v863
    %v865 = vlaneseq
    %v866 = vshrl.u32 %v865, 7
    %v867 = vsub.s32 %v864, %v866
    %v868 = vrot.slane %v854, %v867
    %v869 = vcombine.low %v813, %v829
    %v870 = vcombine.high %v813, %v829
    %v872 = vunpack.c.l.s4 1934713408
    %v873 = vunpack.c.0.s8 %v872
    %v874 = vlaneseq
    %v875 = vshrl.u32 %v874, 7
    %v876 = vsub.s32 %v873, %v875
    %v877 = vrot.slane %v869, %v876
    %v879 = vunpack.c.l.s4 1934713408
    %v880 = vunpack.c.0.s8 %v879
    %v881 = vlaneseq
    %v882 = vshrl.u32 %v881, 7
    %v883 = vsub.s32 %v880, %v882
    %v884 = vrot.slane %v870, %v883
    %v885 = vcombine.low %v820, %v836
    %v886 = vcombine.high %v820, %v836
    %v888 = vunpack.c.l.s4 1934713408
    %v889 = vunpack.c.0.s8 %v888
    %v890 = vlaneseq
    %v891 = vshrl.u32 %v890, 7
    %v892 = vsub.s32 %v889, %v891
    %v893 = vrot.slane %v885, %v892
    %v895 = vunpack.c.l.s4 1934713408
    %v896 = vunpack.c.0.s8 %v895
    %v897 = vlaneseq
    %v898 = vshrl.u32 %v897, 7
    %v899 = vsub.s32 %v896, %v898
    %v900 = vrot.slane %v886, %v899
    %v901 = vcombine.low %v845, %v861
    %v902 = vcombine.high %v845, %v861
    %v904 = vunpack.c.l.s4 1934713408
    %v905 = vunpack.c.0.s8 %v904
    %v906 = vlaneseq
    %v907 = vshrl.u32 %v906, 7
    %v908 = vsub.s32 %v905, %v907
    %v909 = vrot.slane %v901, %v908
    %v911 = vunpack.c.l.s4 1934713408
    %v912 = vunpack.c.0.s8 %v911
    %v913 = vlaneseq
    %v914 = vshrl.u32 %v913, 7
    %v915 = vsub.s32 %v912, %v914
    %v916 = vrot.slane %v902, %v915
    %v917 = vcombine.low %v852, %v868
    %v918 = vcombine.high %v852, %v868
    %v920 = vunpack.c.l.s4 1934713408
    %v921 = vunpack.c.0.s8 %v920
    %v922 = vlaneseq
    %v923 = vshrl.u32 %v922, 7
    %v924 = vsub.s32 %v921, %v923
    %v925 = vrot.slane %v917, %v924
    %v927 = vunpack.c.l.s4 1934713408
    %v928 = vunpack.c.0.s8 %v927
    %v929 = vlaneseq
    %v930 = vshrl.u32 %v929, 7
    %v931 = vsub.s32 %v928, %v930
    %v932 = vrot.slane %v918, %v931
    %v933 = vcombine.low %v877, %v909
    %v934 = vcombine.high %v877, %v909
    %v935 = vcombine.low %v884, %v916
    %v936 = vcombine.high %v884, %v916
    %v937 = vcombine.low %v893, %v925
    %v938 = vcombine.high %v893, %v925
    %v939 = vcombine.low %v900, %v932
    %v940 = vcombine.high %v900, %v932
    %v941 = vcombine.low %v739, %v794
    %v942 = vcombine.high %v739, %v794
    %v944 = vunpack.c.l.s4 1983009808
    %v945 = vunpack.c.0.s8 %v944
    %v946 = vlaneseq
    %v947 = vshrl.u32 %v946, 7
    %v948 = vsub.s32 %v945, %v947
    %v949 = vrot.slane %v941, %v948
    %v951 = vunpack.c.l.s4 1983009808
    %v952 = vunpack.c.0.s8 %v951
    %v953 = vlaneseq
    %v954 = vshrl.u32 %v953, 7
    %v955 = vsub.s32 %v952, %v954
    %v956 = vrot.slane %v942, %v955
    %v957 = vcombine.low %v788, %v800
    %v958 = vcombine.high %v788, %v800
    %v960 = vunpack.c.l.s4 1983009808
    %v961 = vunpack.c.0.s8 %v960
    %v962 = vlaneseq
    %v963 = vshrl.u32 %v962, 7
    %v964 = vsub.s32 %v961, %v963
    %v965 = vrot.slane %v957, %v964
    %v967 = vunpack.c.l.s4 1983009808
    %v968 = vunpack.c.0.s8 %v967
    %v969 = vlaneseq
    %v970 = vshrl.u32 %v969, 7
    %v971 = vsub.s32 %v968, %v970
    %v972 = vrot.slane %v958, %v971
    %v973 = vcombine.low %v949, %v965
    %v974 = vcombine.high %v949, %v965
    %v976 = vunpack.c.l.s4 1934713408
    %v977 = vunpack.c.0.s8 %v976
    %v978 = vlaneseq
    %v979 = vshrl.u32 %v978, 7
    %v980 = vsub.s32 %v977, %v979
    %v981 = vrot.slane %v973, %v980
    %v983 = vunpack.c.l.s4 1934713408
    %v984 = vunpack.c.0.s8 %v983
    %v985 = vlaneseq
    %v986 = vshrl.u32 %v985, 7
    %v987 = vsub.s32 %v984, %v986
    %v988 = vrot.slane %v974, %v987
    %v989 = vcombine.low %v956, %v972
    %v990 = vcombine.high %v956, %v972
    %v992 = vunpack.c.l.s4 1934713408
    %v993 = vunpack.c.0.s8 %v992
    %v994 = vlaneseq
    %v995 = vshrl.u32 %v994, 7
    %v996 = vsub.s32 %v993, %v995
    %v997 = vrot.slane %v989, %v996
    %v999 = vunpack.c.l.s4 1934713408
    %v1000 = vunpack.c.0.s8 %v999
    %v1001 = vlaneseq
    %v1002 = vshrl.u32 %v1001, 7
    %v1003 = vsub.s32 %v1000, %v1002
    %v1004 = vrot.slane %v990, %v1003
    %v1005 = vcombine.high %v981, 0.0
    %v1006 = vcombine.high %v988, 0.0
    %v1007 = vcombine.high %v997, 0.0
    %v1008 = vcombine.high %v1004, 0.0
    %v1009 = vcombine.low %v700, %v756
    %v1010 = vcombine.high %v700, %v756
    %v1012 = vunpack.c.l.s4 1983009808
    %v1013 = vunpack.c.0.s8 %v1012
    %v1014 = vlaneseq
    %v1015 = vshrl.u32 %v1014, 7
    %v1016 = vsub.s32 %v1013, %v1015
    %v1017 = vrot.slane %v1009, %v1016
    %v1019 = vunpack.c.l.s4 1983009808
    %v1020 = vunpack.c.0.s8 %v1019
    %v1021 = vlaneseq
    %v1022 = vshrl.u32 %v1021, 7
    %v1023 = vsub.s32 %v1020, %v1022
    %v1024 = vrot.slane %v1010, %v1023
    %v1025 = vcombine.low %v750, %v762
    %v1026 = vcombine.high %v750, %v762
    %v1028 = vunpack.c.l.s4 1983009808
    %v1029 = vunpack.c.0.s8 %v1028
    %v1030 = vlaneseq
    %v1031 = vshrl.u32 %v1030, 7
    %v1032 = vsub.s32 %v1029, %v1031
    %v1033 = vrot.slane %v1025, %v1032
    %v1035 = vunpack.c.l.s4 1983009808
    %v1036 = vunpack.c.0.s8 %v1035
    %v1037 = vlaneseq
    %v1038 = vshrl.u32 %v1037, 7
    %v1039 = vsub.s32 %v1036, %v1038
    %v1040 = vrot.slane %v1026, %v1039
    %v1041 = vcombine.low %v702, %v776
    %v1042 = vcombine.high %v702, %v776
    %v1044 = vunpack.c.l.s4 1983009808
    %v1045 = vunpack.c.0.s8 %v1044
    %v1046 = vlaneseq
    %v1047 = vshrl.u32 %v1046, 7
    %v1048 = vsub.s32 %v1045, %v1047
    %v1049 = vrot.slane %v1041, %v1048
    %v1051 = vunpack.c.l.s4 1983009808
    %v1052 = vunpack.c.0.s8 %v1051
    %v1053 = vlaneseq
    %v1054 = vshrl.u32 %v1053, 7
    %v1055 = vsub.s32 %v1052, %v1054
    %v1056 = vrot.slane %v1042, %v1055
    %v1057 = vcombine.low %v770, %v782
    %v1058 = vcombine.high %v770, %v782
    %v1060 = vunpack.c.l.s4 1983009808
    %v1061 = vunpack.c.0.s8 %v1060
    %v1062 = vlaneseq
    %v1063 = vshrl.u32 %v1062, 7
    %v1064 = vsub.s32 %v1061, %v1063
    %v1065 = vrot.slane %v1057, %v1064
    %v1067 = vunpack.c.l.s4 1983009808
    %v1068 = vunpack.c.0.s8 %v1067
    %v1069 = vlaneseq
    %v1070 = vshrl.u32 %v1069, 7
    %v1071 = vsub.s32 %v1068, %v1070
    %v1072 = vrot.slane %v1058, %v1071
    %v1073 = vcombine.low %v1017, %v1033
    %v1074 = vcombine.high %v1017, %v1033
    %v1076 = vunpack.c.l.s4 1934713408
    %v1077 = vunpack.c.0.s8 %v1076
    %v1078 = vlaneseq
    %v1079 = vshrl.u32 %v1078, 7
    %v1080 = vsub.s32 %v1077, %v1079
    %v1081 = vrot.slane %v1073, %v1080
    %v1083 = vunpack.c.l.s4 1934713408
    %v1084 = vunpack.c.0.s8 %v1083
    %v1085 = vlaneseq
    %v1086 = vshrl.u32 %v1085, 7
    %v1087 = vsub.s32 %v1084, %v1086
    %v1088 = vrot.slane %v1074, %v1087
    %v1089 = vcombine.low %v1024, %v1040
    %v1090 = vcombine.high %v1024, %v1040
    %v1092 = vunpack.c.l.s4 1934713408
    %v1093 = vunpack.c.0.s8 %v1092
    %v1094 = vlaneseq
    %v1095 = vshrl.u32 %v1094, 7
    %v1096 = vsub.s32 %v1093, %v1095
    %v1097 = vrot.slane %v1089, %v1096
    %v1099 = vunpack.c.l.s4 1934713408
    %v1100 = vunpack.c.0.s8 %v1099
    %v1101 = vlaneseq
    %v1102 = vshrl.u32 %v1101, 7
    %v1103 = vsub.s32 %v1100, %v1102
    %v1104 = vrot.slane %v1090, %v1103
    %v1105 = vcombine.low %v1049, %v1065
    %v1106 = vcombine.high %v1049, %v1065
    %v1108 = vunpack.c.l.s4 1934713408
    %v1109 = vunpack.c.0.s8 %v1108
    %v1110 = vlaneseq
    %v1111 = vshrl.u32 %v1110, 7
    %v1112 = vsub.s32 %v1109, %v1111
    %v1113 = vrot.slane %v1105, %v1112
    %v1115 = vunpack.c.l.s4 1934713408
    %v1116 = vunpack.c.0.s8 %v1115
    %v1117 = vlaneseq
    %v1118 = vshrl.u32 %v1117, 7
    %v1119 = vsub.s32 %v1116, %v1118
    %v1120 = vrot.slane %v1106, %v1119
    %v1121 = vcombine.low %v1056, %v1072
    %v1122 = vcombine.high %v1056, %v1072
    %v1124 = vunpack.c.l.s4 1934713408
    %v1125 = vunpack.c.0.s8 %v1124
    %v1126 = vlaneseq
    %v1127 = vshrl.u32 %v1126, 7
    %v1128 = vsub.s32 %v1125, %v1127
    %v1129 = vrot.slane %v1121, %v1128
    %v1131 = vunpack.c.l.s4 1934713408
    %v1132 = vunpack.c.0.s8 %v1131
    %v1133 = vlaneseq
    %v1134 = vshrl.u32 %v1133, 7
    %v1135 = vsub.s32 %v1132, %v1134
    %v1136 = vrot.slane %v1122, %v1135
    %v1137 = vcombine.low %v1081, %v1113
    %v1138 = vcombine.high %v1081, %v1113
    %v1139 = vcombine.low %v1088, %v1120
    %v1140 = vcombine.high %v1088, %v1120
    %v1141 = vcombine.low %v1097, %v1129
    %v1142 = vcombine.high %v1097, %v1129
    %v1143 = vcombine.low %v1104, %v1136
    %v1144 = vcombine.high %v1104, %v1136
    %v1145 = vcombine.low %v742, %v796
    %v1146 = vcombine.high %v742, %v796
    %v1148 = vunpack.c.l.s4 1983009808
    %v1149 = vunpack.c.0.s8 %v1148
    %v1150 = vlaneseq
    %v1151 = vshrl.u32 %v1150, 7
    %v1152 = vsub.s32 %v1149, %v1151
    %v1153 = vrot.slane %v1145, %v1152
    %v1155 = vunpack.c.l.s4 1983009808
    %v1156 = vunpack.c.0.s8 %v1155
    %v1157 = vlaneseq
    %v1158 = vshrl.u32 %v1157, 7
    %v1159 = vsub.s32 %v1156, %v1158
    %v1160 = vrot.slane %v1146, %v1159
    %v1161 = vcombine.low %v790, %v802
    %v1162 = vcombine.high %v790, %v802
    %v1164 = vunpack.c.l.s4 1983009808
    %v1165 = vunpack.c.0.s8 %v1164
    %v1166 = vlaneseq
    %v1167 = vshrl.u32 %v1166, 7
    %v1168 = vsub.s32 %v1165, %v1167
    %v1169 = vrot.slane %v1161, %v1168
    %v1171 = vunpack.c.l.s4 1983009808
    %v1172 = vunpack.c.0.s8 %v1171
    %v1173 = vlaneseq
    %v1174 = vshrl.u32 %v1173, 7
    %v1175 = vsub.s32 %v1172, %v1174
    %v1176 = vrot.slane %v1162, %v1175
    %v1177 = vcombine.low %v1153, %v1169
    %v1178 = vcombine.high %v1153, %v1169
    %v1180 = vunpack.c.l.s4 1934713408
    %v1181 = vunpack.c.0.s8 %v1180
    %v1182 = vlaneseq
    %v1183 = vshrl.u32 %v1182, 7
    %v1184 = vsub.s32 %v1181, %v1183
    %v1185 = vrot.slane %v1177, %v1184
    %v1187 = vunpack.c.l.s4 1934713408
    %v1188 = vunpack.c.0.s8 %v1187
    %v1189 = vlaneseq
    %v1190 = vshrl.u32 %v1189, 7
    %v1191 = vsub.s32 %v1188, %v1190
    %v1192 = vrot.slane %v1178, %v1191
    %v1193 = vcombine.low %v1160, %v1176
    %v1194 = vcombine.high %v1160, %v1176
    %v1196 = vunpack.c.l.s4 1934713408
    %v1197 = vunpack.c.0.s8 %v1196
    %v1198 = vlaneseq
    %v1199 = vshrl.u32 %v1198, 7
    %v1200 = vsub.s32 %v1197, %v1199
    %v1201 = vrot.slane %v1193, %v1200
    %v1203 = vunpack.c.l.s4 1934713408
    %v1204 = vunpack.c.0.s8 %v1203
    %v1205 = vlaneseq
    %v1206 = vshrl.u32 %v1205, 7
    %v1207 = vsub.s32 %v1204, %v1206
    %v1208 = vrot.slane %v1194, %v1207
    %v1209 = vcombine.high %v1185, 0.0
    %v1210 = vcombine.high %v1192, 0.0
    %v1211 = vcombine.high %v1201, 0.0
    %v1212 = vcombine.high %v1208, 0.0
    %v1213 = vld [vmem:[%s10] sm:$0xf]
    %v1214 = vld [vmem:[%s10 + $0x4] sm:$0xf]
    %v1215 = vld [vmem:[%s10 + $0x8] sm:$0xf]
    %v1216 = vld [vmem:[%s10 + $0xc] sm:$0xf]
    %v1217 = vld [vmem:[%s10 + $0x10] sm:$0xf]
    %v1218 = vld [vmem:[%s10 + $0x14] sm:$0xf]
    %v1219 = vld [vmem:[%s10 + $0x18] sm:$0xf]
    %v1220 = vld [vmem:[%s10 + $0x1c] sm:$0xf]
    %v1221 = vld [vmem:[%s10 + $0x20] sm:$0xf]
    %v1222 = vld [vmem:[%s10 + $0x24] sm:$0xf]
    %v1223 = vld [vmem:[%s10 + $0x28] sm:$0xf]
    %v1224 = vld [vmem:[%s10 + $0x2c] sm:$0xf]
    %v1225 = vld [vmem:[%s10 + $0x30] sm:$0xf]
    %v1226 = vld [vmem:[%s10 + $0x34] sm:$0xf]
    %v1227 = vld [vmem:[%s10 + $0x38] sm:$0xf]
    %v1228 = vld [vmem:[%s10 + $0x3c] sm:$0xf]
    %v1229 = vpack.c.bf16 %v933, %v933
    %v1230 = vpack.c.bf16 %v934, %v934
    %v1231 = vpack.c.bf16 %v935, %v935
    %v1232 = vpack.c.bf16 %v936, %v936
    %v1233 = vpack.c.bf16 %v937, %v937
    %v1234 = vpack.c.bf16 %v938, %v938
    %v1235 = vpack.c.bf16 %v939, %v939
    %v1236 = vpack.c.bf16 %v940, %v940
    %v1237 = vpack.c.bf16 %v1137, %v1137
    %v1238 = vpack.c.bf16 %v1138, %v1138
    %v1239 = vpack.c.bf16 %v1139, %v1139
    %v1240 = vpack.c.bf16 %v1140, %v1140
    %v1241 = vpack.c.bf16 %v1141, %v1141
    %v1242 = vpack.c.bf16 %v1142, %v1142
    %v1243 = vpack.c.bf16 %v1143, %v1143
    %v1244 = vpack.c.bf16 %v1144, %v1144
    %v1245 = vpack.c.bf16 %v981, %v981
    %v1246 = vpack.c.bf16 %v1005, %v1005
    %v1247 = vpack.c.bf16 %v988, %v988
    %v1248 = vpack.c.bf16 %v1006, %v1006
    %v1249 = vpack.c.bf16 %v997, %v997
    %v1250 = vpack.c.bf16 %v1007, %v1007
    %v1251 = vpack.c.bf16 %v1004, %v1004
    %v1252 = vpack.c.bf16 %v1008, %v1008
    %v1253 = vpack.c.bf16 %v1185, %v1185
    %v1254 = vpack.c.bf16 %v1209, %v1209
    %v1255 = vpack.c.bf16 %v1192, %v1192
    %v1256 = vpack.c.bf16 %v1210, %v1210
    %v1257 = vpack.c.bf16 %v1201, %v1201
    %v1258 = vpack.c.bf16 %v1211, %v1211
    %v1259 = vpack.c.bf16 %v1208, %v1208
    %v1260 = vpack.c.bf16 %v1212, %v1212
    %v1269 = vunpack.c.l.b16 %v1229
    %v1270 = vunpack.c.l.b16 %v1230
    %v1271 = vunpack.c.l.b16 %v1231
    %v1272 = vunpack.c.l.b16 %v1232
    %v1273 = vunpack.c.l.b16 %v1233
    %v1274 = vunpack.c.l.b16 %v1234
    %v1275 = vunpack.c.l.b16 %v1235
    %v1276 = vunpack.c.l.b16 %v1236
    %v1277 = vrot.slane %v1270, 7
    %vm1278 = vcmask 1041409
    %v1279 = vsel %vm1278, %v1277, %v1269
    %v1280 = vrot.slane %v1271, 6
    %vm1281 = vcmask 1042434
    %v1282 = vsel %vm1281, %v1280, %v1279
    %v1283 = vrot.slane %v1272, 5
    %vm1284 = vcmask 1043459
    %v1285 = vsel %vm1284, %v1283, %v1282
    %v1286 = vrot.slane %v1273, 4
    %vm1287 = vcmask 1044484
    %v1288 = vsel %vm1287, %v1286, %v1285
    %v1289 = vrot.slane %v1274, 3
    %vm1290 = vcmask 1045509
    %v1291 = vsel %vm1290, %v1289, %v1288
    %v1292 = vrot.slane %v1275, 2
    %vm1293 = vcmask 1046534
    %v1294 = vsel %vm1293, %v1292, %v1291
    %v1295 = vrot.slane %v1276, 1
    %vm1296 = vcmask 1047559
    %v1297 = vsel %vm1296, %v1295, %v1294
    %v1298 = vpack.c.b16 %v1297, %v1297
    %v1299 = vrot.slane %v1269, 4
    %v1300 = vrot.slane %v1270, 3
    %v1301 = vsel %vm1278, %v1300, %v1299
    %v1302 = vrot.slane %v1271, 2
    %v1303 = vsel %vm1281, %v1302, %v1301
    %v1304 = vrot.slane %v1272, 1
    %v1305 = vsel %vm1284, %v1304, %v1303
    %v1306 = vsel %vm1287, %v1273, %v1305
    %v1307 = vrot.slane %v1274, 7
    %v1308 = vsel %vm1290, %v1307, %v1306
    %v1309 = vrot.slane %v1275, 6
    %v1310 = vsel %vm1293, %v1309, %v1308
    %v1311 = vrot.slane %v1276, 5
    %v1312 = vsel %vm1296, %v1311, %v1310
    %v1313 = vpack.c.b16 %v1312, %v1312
    %vm1314 = vcmask 261120
    %v1316 = vsel %vm1314, %v1298, 0
    %v1319 = vsel %vm1314, %v1313, 0
    %1321 = vmatprep.subr.bf16.mxu0 0
    %1322 = vmatpush1.bf16.xpose.msra.mxu0 %v1319
    %1323 = vmatprep.subr.bf16.mxu0 0
    %1324 = vmatpush1.bf16.xpose.msra.mxu0 0
    %1325 = vmatprep.subr.bf16.mxu0 0
    %1326 = vmatpush1.bf16.xpose.msra.mxu0 0
    %1327 = vmatprep.subr.bf16.mxu0 0
    %1328 = vmatpush1.bf16.xpose.msra.mxu0 0
    %1329 = vmatprep.subr.bf16.mxu0 0
    %1330 = vmatpush1.bf16.xpose.msra.mxu0 0
    %1331 = vmatprep.subr.bf16.mxu0 0
    %1332 = vmatpush1.bf16.xpose.msra.mxu0 0
    %1333 = vmatprep.subr.bf16.mxu0 0
    %1334 = vmatpush1.bf16.xpose.msra.mxu0 0
    %1335 = vmatprep.subr.bf16.mxu0 0
    %1336 = vmatpush1.bf16.xpose.msra.mxu0 0
    %1337 = vmatprep.subr.bf16.mxu0 0
    %1338 = vmatpush1.bf16.xpose.msra.mxu0 0
    %1339 = vmatprep.subr.bf16.mxu0 0
    %1340 = vmatpush1.bf16.xpose.msra.mxu0 0
    %1341 = vmatprep.subr.bf16.mxu0 0
    %1342 = vmatpush1.bf16.xpose.msra.mxu0 0
    %1343 = vmatprep.subr.bf16.mxu0 0
    %1344 = vmatpush1.bf16.xpose.msra.mxu0 0
    %1345 = vmatprep.subr.bf16.mxu0 0
    %1346 = vmatpush1.bf16.xpose.msra.mxu0 0
    %1347 = vmatprep.subr.bf16.mxu0 0
    %1348 = vmatpush1.bf16.xpose.msra.mxu0 0
    %1349 = vmatprep.subr.bf16.mxu0 0
    %1350 = vmatpush1.bf16.xpose.msra.mxu0 0
    %1351 = vmatprep.subr.bf16.mxu0 0
    %1352 = vmatpush1.bf16.xpose.msra.mxu0 0
    %1353 = vmatprep.mubr.bf16.mxu0 0
    %1354 = vmatmul.mubr.bf16.gmra.mrb[0].mxu0 %v1316
    %v1355 = vpop.f32.mrb[0].mxu0
    %v1356 = vadd.f32 %v100, %v1355
    %v1357 = vpop.f32.mrb[0].mxu0
    %v1358 = vpop.f32.mrb[0].mxu0
    %v1359 = vpop.f32.mrb[0].mxu0
    %1360 = vdwg.mxu0
    %v1369 = vunpack.c.l.b16 %v1237
    %v1370 = vunpack.c.l.b16 %v1238
    %v1371 = vunpack.c.l.b16 %v1239
    %v1372 = vunpack.c.l.b16 %v1240
    %v1373 = vunpack.c.l.b16 %v1241
    %v1374 = vunpack.c.l.b16 %v1242
    %v1375 = vunpack.c.l.b16 %v1243
    %v1376 = vunpack.c.l.b16 %v1244
    %v1377 = vrot.slane %v1370, 7
    %v1378 = vsel %vm1278, %v1377, %v1369
    %v1379 = vrot.slane %v1371, 6
    %v1380 = vsel %vm1281, %v1379, %v1378
    %v1381 = vrot.slane %v1372, 5
    %v1382 = vsel %vm1284, %v1381, %v1380
    %v1383 = vrot.slane %v1373, 4
    %v1384 = vsel %vm1287, %v1383, %v1382
    %v1385 = vrot.slane %v1374, 3
    %v1386 = vsel %vm1290, %v1385, %v1384
    %v1387 = vrot.slane %v1375, 2
    %v1388 = vsel %vm1293, %v1387, %v1386
    %v1389 = vrot.slane %v1376, 1
    %v1390 = vsel %vm1296, %v1389, %v1388
    %v1391 = vpack.c.b16 %v1390, %v1390
    %v1392 = vrot.slane %v1369, 4
    %v1393 = vrot.slane %v1370, 3
    %v1394 = vsel %vm1278, %v1393, %v1392
    %v1395 = vrot.slane %v1371, 2
    %v1396 = vsel %vm1281, %v1395, %v1394
    %v1397 = vrot.slane %v1372, 1
    %v1398 = vsel %vm1284, %v1397, %v1396
    %v1399 = vsel %vm1287, %v1373, %v1398
    %v1400 = vrot.slane %v1374, 7
    %v1401 = vsel %vm1290, %v1400, %v1399
    %v1402 = vrot.slane %v1375, 6
    %v1403 = vsel %vm1293, %v1402, %v1401
    %v1404 = vrot.slane %v1376, 5
    %v1405 = vsel %vm1296, %v1404, %v1403
    %v1406 = vpack.c.b16 %v1405, %v1405
    %v1408 = vsel %vm1314, %v1391, 0
    %v1411 = vsel %vm1314, %v1406, 0
    %1413 = vmatprep.subr.bf16.mxu0 0
    %1414 = vmatpush1.bf16.xpose.msra.mxu0 %v1411
    %1415 = vmatprep.subr.bf16.mxu0 0
    %1416 = vmatpush1.bf16.xpose.msra.mxu0 0
    %1417 = vmatprep.subr.bf16.mxu0 0
    %1418 = vmatpush1.bf16.xpose.msra.mxu0 0
    %1419 = vmatprep.subr.bf16.mxu0 0
    %1420 = vmatpush1.bf16.xpose.msra.mxu0 0
    %1421 = vmatprep.subr.bf16.mxu0 0
    %1422 = vmatpush1.bf16.xpose.msra.mxu0 0
    %1423 = vmatprep.subr.bf16.mxu0 0
    %1424 = vmatpush1.bf16.xpose.msra.mxu0 0
    %1425 = vmatprep.subr.bf16.mxu0 0
    %1426 = vmatpush1.bf16.xpose.msra.mxu0 0
    %1427 = vmatprep.subr.bf16.mxu0 0
    %1428 = vmatpush1.bf16.xpose.msra.mxu0 0
    %1429 = vmatprep.subr.bf16.mxu0 0
    %1430 = vmatpush1.bf16.xpose.msra.mxu0 0
    %1431 = vmatprep.subr.bf16.mxu0 0
    %1432 = vmatpush1.bf16.xpose.msra.mxu0 0
    %1433 = vmatprep.subr.bf16.mxu0 0
    %1434 = vmatpush1.bf16.xpose.msra.mxu0 0
    %1435 = vmatprep.subr.bf16.mxu0 0
    %1436 = vmatpush1.bf16.xpose.msra.mxu0 0
    %1437 = vmatprep.subr.bf16.mxu0 0
    %1438 = vmatpush1.bf16.xpose.msra.mxu0 0
    %1439 = vmatprep.subr.bf16.mxu0 0
    %1440 = vmatpush1.bf16.xpose.msra.mxu0 0
    %1441 = vmatprep.subr.bf16.mxu0 0
    %1442 = vmatpush1.bf16.xpose.msra.mxu0 0
    %1443 = vmatprep.subr.bf16.mxu0 0
    %1444 = vmatpush1.bf16.xpose.msra.mxu0 0
    %1445 = vmatprep.mubr.bf16.mxu0 0
    %1446 = vmatmul.mubr.bf16.gmra.mrb[0].mxu0 %v1408
    %v1447 = vpop.f32.mrb[0].mxu0
    %v1448 = vadd.f32 %v101, %v1447
    %v1449 = vpop.f32.mrb[0].mxu0
    %v1450 = vpop.f32.mrb[0].mxu0
    %v1451 = vpop.f32.mrb[0].mxu0
    %1452 = vdwg.mxu0
    %vm1453 = vcmask 64512
    %v1454 = vsel %vm1453, %v1356, -inf
    %1455 = vmax.xlane.f32.xlu0 %v1454
    %v1456 = vpop.xlane.xlu0 %1455
    %v1457 = vsel %vm1453, %v1448, -inf
    %1458 = vmax.xlane.f32.xlu0 %v1457
    %v1459 = vpop.xlane.xlu0 %1458
    %v1460 = vsub.f32 %v1356, %v1456
    %v1461 = vsub.f32 %v1448, %v1459
    %v1462 = vmul.f32 %v1460, 1.442695
    %v1463 = vpow.pop %v1462
    %v1464 = vmul.f32 %v1461, 1.442695
    %v1465 = vpow.pop %v1464
    %v1466 = vsel %vm1453, %v1463, 0.0
    %1467 = vadd.xlane.f32.xlu0 %v1466
    %v1468 = vpop.xlane.xlu0 %1467
    %v1469 = vsel %vm1453, %v1465, 0.0
    %1470 = vadd.xlane.f32.xlu0 %v1469
    %v1471 = vpop.xlane.xlu0 %1470
    %v1472 = vrcp.pop %v1468
    %v1473 = vrcp.pop %v1471
    %v1474 = vmul.f32 %v1463, %v1472
    %v1475 = vmul.f32 %v1465, %v1473
    %v1476 = vpack.c.bf16 %v1474, %v1474
    %v1477 = vpack.c.bf16 %v1475, %v1475
    %v1486 = vunpack.c.l.b16 %v1245
    %v1487 = vunpack.c.l.b16 %v1246
    %v1488 = vunpack.c.l.b16 %v1247
    %v1489 = vunpack.c.l.b16 %v1248
    %v1490 = vunpack.c.l.b16 %v1249
    %v1491 = vunpack.c.l.b16 %v1250
    %v1492 = vunpack.c.l.b16 %v1251
    %v1493 = vunpack.c.l.b16 %v1252
    %v1494 = vrot.slane %v1487, 7
    %v1495 = vsel %vm1278, %v1494, %v1486
    %v1496 = vrot.slane %v1488, 6
    %v1497 = vsel %vm1281, %v1496, %v1495
    %v1498 = vrot.slane %v1489, 5
    %v1499 = vsel %vm1284, %v1498, %v1497
    %v1500 = vrot.slane %v1490, 4
    %v1501 = vsel %vm1287, %v1500, %v1499
    %v1502 = vrot.slane %v1491, 3
    %v1503 = vsel %vm1290, %v1502, %v1501
    %v1504 = vrot.slane %v1492, 2
    %v1505 = vsel %vm1293, %v1504, %v1503
    %v1506 = vrot.slane %v1493, 1
    %v1507 = vsel %vm1296, %v1506, %v1505
    %v1508 = vpack.c.b16 %v1507, %v1507
    %v1510 = vsel %vm1453, %v1476, 0
    %vm1512 = vcmask 1043456
    %v1514 = vsel %vm1512, %v1508, 0
    %1516 = vmatprep.subr.bf16.mxu0 0
    %1517 = vmatpush1.bf16.msra.mxu0 %v1514
    %1518 = vmatprep.subr.bf16.mxu0 0
    %1519 = vmatpush1.bf16.msra.mxu0 0
    %1520 = vmatprep.subr.bf16.mxu0 0
    %1521 = vmatpush1.bf16.msra.mxu0 0
    %1522 = vmatprep.subr.bf16.mxu0 0
    %1523 = vmatpush1.bf16.msra.mxu0 0
    %1524 = vmatprep.subr.bf16.mxu0 0
    %1525 = vmatpush1.bf16.msra.mxu0 0
    %1526 = vmatprep.subr.bf16.mxu0 0
    %1527 = vmatpush1.bf16.msra.mxu0 0
    %1528 = vmatprep.subr.bf16.mxu0 0
    %1529 = vmatpush1.bf16.msra.mxu0 0
    %1530 = vmatprep.subr.bf16.mxu0 0
    %1531 = vmatpush1.bf16.msra.mxu0 0
    %1532 = vmatprep.subr.bf16.mxu0 0
    %1533 = vmatpush1.bf16.msra.mxu0 0
    %1534 = vmatprep.subr.bf16.mxu0 0
    %1535 = vmatpush1.bf16.msra.mxu0 0
    %1536 = vmatprep.subr.bf16.mxu0 0
    %1537 = vmatpush1.bf16.msra.mxu0 0
    %1538 = vmatprep.subr.bf16.mxu0 0
    %1539 = vmatpush1.bf16.msra.mxu0 0
    %1540 = vmatprep.subr.bf16.mxu0 0
    %1541 = vmatpush1.bf16.msra.mxu0 0
    %1542 = vmatprep.subr.bf16.mxu0 0
    %1543 = vmatpush1.bf16.msra.mxu0 0
    %1544 = vmatprep.subr.bf16.mxu0 0
    %1545 = vmatpush1.bf16.msra.mxu0 0
    %1546 = vmatprep.subr.bf16.mxu0 0
    %1547 = vmatpush1.bf16.msra.mxu0 0
    %1548 = vmatprep.mubr.bf16.mxu0 0
    %1549 = vmatmul.mubr.bf16.gmra.mrb[0].mxu0 %v1510
    %v1550 = vpop.f32.mrb[0].mxu0
    %v1551 = vadd.f32 0.0, %v1550
    %v1552 = vpop.f32.mrb[0].mxu0
    %v1553 = vpop.f32.mrb[0].mxu0
    %v1554 = vpop.f32.mrb[0].mxu0
    %1555 = vdwg.mxu0
    %v1564 = vunpack.c.l.b16 %v1253
    %v1565 = vunpack.c.l.b16 %v1254
    %v1566 = vunpack.c.l.b16 %v1255
    %v1567 = vunpack.c.l.b16 %v1256
    %v1568 = vunpack.c.l.b16 %v1257
    %v1569 = vunpack.c.l.b16 %v1258
    %v1570 = vunpack.c.l.b16 %v1259
    %v1571 = vunpack.c.l.b16 %v1260
    %v1572 = vrot.slane %v1565, 7
    %v1573 = vsel %vm1278, %v1572, %v1564
    %v1574 = vrot.slane %v1566, 6
    %v1575 = vsel %vm1281, %v1574, %v1573
    %v1576 = vrot.slane %v1567, 5
    %v1577 = vsel %vm1284, %v1576, %v1575
    %v1578 = vrot.slane %v1568, 4
    %v1579 = vsel %vm1287, %v1578, %v1577
    %v1580 = vrot.slane %v1569, 3
    %v1581 = vsel %vm1290, %v1580, %v1579
    %v1582 = vrot.slane %v1570, 2
    %v1583 = vsel %vm1293, %v1582, %v1581
    %v1584 = vrot.slane %v1571, 1
    %v1585 = vsel %vm1296, %v1584, %v1583
    %v1586 = vpack.c.b16 %v1585, %v1585
    %v1588 = vsel %vm1453, %v1477, 0
    %v1591 = vsel %vm1512, %v1586, 0
    %1593 = vmatprep.subr.bf16.mxu0 0
    %1594 = vmatpush1.bf16.msra.mxu0 %v1591
    %1595 = vmatprep.subr.bf16.mxu0 0
    %1596 = vmatpush1.bf16.msra.mxu0 0
    %1597 = vmatprep.subr.bf16.mxu0 0
    %1598 = vmatpush1.bf16.msra.mxu0 0
    %1599 = vmatprep.subr.bf16.mxu0 0
    %1600 = vmatpush1.bf16.msra.mxu0 0
    %1601 = vmatprep.subr.bf16.mxu0 0
    %1602 = vmatpush1.bf16.msra.mxu0 0
    %1603 = vmatprep.subr.bf16.mxu0 0
    %1604 = vmatpush1.bf16.msra.mxu0 0
    %1605 = vmatprep.subr.bf16.mxu0 0
    %1606 = vmatpush1.bf16.msra.mxu0 0
    %1607 = vmatprep.subr.bf16.mxu0 0
    %1608 = vmatpush1.bf16.msra.mxu0 0
    %1609 = vmatprep.subr.bf16.mxu0 0
    %1610 = vmatpush1.bf16.msra.mxu0 0
    %1611 = vmatprep.subr.bf16.mxu0 0
    %1612 = vmatpush1.bf16.msra.mxu0 0
    %1613 = vmatprep.subr.bf16.mxu0 0
    %1614 = vmatpush1.bf16.msra.mxu0 0
    %1615 = vmatprep.subr.bf16.mxu0 0
    %1616 = vmatpush1.bf16.msra.mxu0 0
    %1617 = vmatprep.subr.bf16.mxu0 0
    %1618 = vmatpush1.bf16.msra.mxu0 0
    %1619 = vmatprep.subr.bf16.mxu0 0
    %1620 = vmatpush1.bf16.msra.mxu0 0
    %1621 = vmatprep.subr.bf16.mxu0 0
    %1622 = vmatpush1.bf16.msra.mxu0 0
    %1623 = vmatprep.subr.bf16.mxu0 0
    %1624 = vmatpush1.bf16.msra.mxu0 0
    %1625 = vmatprep.mubr.bf16.mxu0 0
    %1626 = vmatmul.mubr.bf16.gmra.mrb[0].mxu0 %v1588
    %v1627 = vpop.f32.mrb[0].mxu0
    %v1628 = vadd.f32 0.0, %v1627
    %v1629 = vpop.f32.mrb[0].mxu0
    %v1630 = vpop.f32.mrb[0].mxu0
    %v1631 = vpop.f32.mrb[0].mxu0
    %1632 = vdwg.mxu0
    %v1633 = vrot.slane %v1269, 1
    %v1634 = vsel %vm1278, %v1270, %v1633
    %v1635 = vrot.slane %v1271, 7
    %v1636 = vsel %vm1281, %v1635, %v1634
    %v1637 = vrot.slane %v1272, 6
    %v1638 = vsel %vm1284, %v1637, %v1636
    %v1639 = vrot.slane %v1273, 5
    %v1640 = vsel %vm1287, %v1639, %v1638
    %v1641 = vrot.slane %v1274, 4
    %v1642 = vsel %vm1290, %v1641, %v1640
    %v1643 = vrot.slane %v1275, 3
    %v1644 = vsel %vm1293, %v1643, %v1642
    %v1645 = vrot.slane %v1276, 2
    %v1646 = vsel %vm1296, %v1645, %v1644
    %v1647 = vpack.c.b16 %v1646, %v1646
    %v1648 = vrot.slane %v1269, 5
    %v1649 = vrot.slane %v1270, 4
    %v1650 = vsel %vm1278, %v1649, %v1648
    %v1651 = vrot.slane %v1271, 3
    %v1652 = vsel %vm1281, %v1651, %v1650
    %v1653 = vrot.slane %v1272, 2
    %v1654 = vsel %vm1284, %v1653, %v1652
    %v1655 = vrot.slane %v1273, 1
    %v1656 = vsel %vm1287, %v1655, %v1654
    %v1657 = vsel %vm1290, %v1274, %v1656
    %v1658 = vrot.slane %v1275, 7
    %v1659 = vsel %vm1293, %v1658, %v1657
    %v1660 = vrot.slane %v1276, 6
    %v1661 = vsel %vm1296, %v1660, %v1659
    %v1662 = vpack.c.b16 %v1661, %v1661
    %v1664 = vsel %vm1314, %v1647, 0
    %v1667 = vsel %vm1314, %v1662, 0
    %1669 = vmatprep.subr.bf16.mxu0 0
    %1670 = vmatpush1.bf16.xpose.msra.mxu0 %v1667
    %1671 = vmatprep.subr.bf16.mxu0 0
    %1672 = vmatpush1.bf16.xpose.msra.mxu0 0
    %1673 = vmatprep.subr.bf16.mxu0 0
    %1674 = vmatpush1.bf16.xpose.msra.mxu0 0
    %1675 = vmatprep.subr.bf16.mxu0 0
    %1676 = vmatpush1.bf16.xpose.msra.mxu0 0
    %1677 = vmatprep.subr.bf16.mxu0 0
    %1678 = vmatpush1.bf16.xpose.msra.mxu0 0
    %1679 = vmatprep.subr.bf16.mxu0 0
    %1680 = vmatpush1.bf16.xpose.msra.mxu0 0
    %1681 = vmatprep.subr.bf16.mxu0 0
    %1682 = vmatpush1.bf16.xpose.msra.mxu0 0
    %1683 = vmatprep.subr.bf16.mxu0 0
    %1684 = vmatpush1.bf16.xpose.msra.mxu0 0
    %1685 = vmatprep.subr.bf16.mxu0 0
    %1686 = vmatpush1.bf16.xpose.msra.mxu0 0
    %1687 = vmatprep.subr.bf16.mxu0 0
    %1688 = vmatpush1.bf16.xpose.msra.mxu0 0
    %1689 = vmatprep.subr.bf16.mxu0 0
    %1690 = vmatpush1.bf16.xpose.msra.mxu0 0
    %1691 = vmatprep.subr.bf16.mxu0 0
    %1692 = vmatpush1.bf16.xpose.msra.mxu0 0
    %1693 = vmatprep.subr.bf16.mxu0 0
    %1694 = vmatpush1.bf16.xpose.msra.mxu0 0
    %1695 = vmatprep.subr.bf16.mxu0 0
    %1696 = vmatpush1.bf16.xpose.msra.mxu0 0
    %1697 = vmatprep.subr.bf16.mxu0 0
    %1698 = vmatpush1.bf16.xpose.msra.mxu0 0
    %1699 = vmatprep.subr.bf16.mxu0 0
    %1700 = vmatpush1.bf16.xpose.msra.mxu0 0
    %1701 = vmatprep.mubr.bf16.mxu0 0
    %1702 = vmatmul.mubr.bf16.gmra.mrb[0].mxu0 %v1664
    %v1703 = vpop.f32.mrb[0].mxu0
    %v1704 = vadd.f32 %v100, %v1703
    %v1705 = vpop.f32.mrb[0].mxu0
    %v1706 = vpop.f32.mrb[0].mxu0
    %v1707 = vpop.f32.mrb[0].mxu0
    %1708 = vdwg.mxu0
    %v1709 = vrot.slane %v1369, 1
    %v1710 = vsel %vm1278, %v1370, %v1709
    %v1711 = vrot.slane %v1371, 7
    %v1712 = vsel %vm1281, %v1711, %v1710
    %v1713 = vrot.slane %v1372, 6
    %v1714 = vsel %vm1284, %v1713, %v1712
    %v1715 = vrot.slane %v1373, 5
    %v1716 = vsel %vm1287, %v1715, %v1714
    %v1717 = vrot.slane %v1374, 4
    %v1718 = vsel %vm1290, %v1717, %v1716
    %v1719 = vrot.slane %v1375, 3
    %v1720 = vsel %vm1293, %v1719, %v1718
    %v1721 = vrot.slane %v1376, 2
    %v1722 = vsel %vm1296, %v1721, %v1720
    %v1723 = vpack.c.b16 %v1722, %v1722
    %v1724 = vrot.slane %v1369, 5
    %v1725 = vrot.slane %v1370, 4
    %v1726 = vsel %vm1278, %v1725, %v1724
    %v1727 = vrot.slane %v1371, 3
    %v1728 = vsel %vm1281, %v1727, %v1726
    %v1729 = vrot.slane %v1372, 2
    %v1730 = vsel %vm1284, %v1729, %v1728
    %v1731 = vrot.slane %v1373, 1
    %v1732 = vsel %vm1287, %v1731, %v1730
    %v1733 = vsel %vm1290, %v1374, %v1732
    %v1734 = vrot.slane %v1375, 7
    %v1735 = vsel %vm1293, %v1734, %v1733
    %v1736 = vrot.slane %v1376, 6
    %v1737 = vsel %vm1296, %v1736, %v1735
    %v1738 = vpack.c.b16 %v1737, %v1737
    %v1740 = vsel %vm1314, %v1723, 0
    %v1743 = vsel %vm1314, %v1738, 0
    %1745 = vmatprep.subr.bf16.mxu0 0
    %1746 = vmatpush1.bf16.xpose.msra.mxu0 %v1743
    %1747 = vmatprep.subr.bf16.mxu0 0
    %1748 = vmatpush1.bf16.xpose.msra.mxu0 0
    %1749 = vmatprep.subr.bf16.mxu0 0
    %1750 = vmatpush1.bf16.xpose.msra.mxu0 0
    %1751 = vmatprep.subr.bf16.mxu0 0
    %1752 = vmatpush1.bf16.xpose.msra.mxu0 0
    %1753 = vmatprep.subr.bf16.mxu0 0
    %1754 = vmatpush1.bf16.xpose.msra.mxu0 0
    %1755 = vmatprep.subr.bf16.mxu0 0
    %1756 = vmatpush1.bf16.xpose.msra.mxu0 0
    %1757 = vmatprep.subr.bf16.mxu0 0
    %1758 = vmatpush1.bf16.xpose.msra.mxu0 0
    %1759 = vmatprep.subr.bf16.mxu0 0
    %1760 = vmatpush1.bf16.xpose.msra.mxu0 0
    %1761 = vmatprep.subr.bf16.mxu0 0
    %1762 = vmatpush1.bf16.xpose.msra.mxu0 0
    %1763 = vmatprep.subr.bf16.mxu0 0
    %1764 = vmatpush1.bf16.xpose.msra.mxu0 0
    %1765 = vmatprep.subr.bf16.mxu0 0
    %1766 = vmatpush1.bf16.xpose.msra.mxu0 0
    %1767 = vmatprep.subr.bf16.mxu0 0
    %1768 = vmatpush1.bf16.xpose.msra.mxu0 0
    %1769 = vmatprep.subr.bf16.mxu0 0
    %1770 = vmatpush1.bf16.xpose.msra.mxu0 0
    %1771 = vmatprep.subr.bf16.mxu0 0
    %1772 = vmatpush1.bf16.xpose.msra.mxu0 0
    %1773 = vmatprep.subr.bf16.mxu0 0
    %1774 = vmatpush1.bf16.xpose.msra.mxu0 0
    %1775 = vmatprep.subr.bf16.mxu0 0
    %1776 = vmatpush1.bf16.xpose.msra.mxu0 0
    %1777 = vmatprep.mubr.bf16.mxu0 0
    %1778 = vmatmul.mubr.bf16.gmra.mrb[0].mxu0 %v1740
    %v1779 = vpop.f32.mrb[0].mxu0
    %v1780 = vadd.f32 %v101, %v1779
    %v1781 = vpop.f32.mrb[0].mxu0
    %v1782 = vpop.f32.mrb[0].mxu0
    %v1783 = vpop.f32.mrb[0].mxu0
    %1784 = vdwg.mxu0
    %v1785 = vsel %vm1453, %v1704, -inf
    %1786 = vmax.xlane.f32.xlu0 %v1785
    %v1787 = vpop.xlane.xlu0 %1786
    %v1788 = vsel %vm1453, %v1780, -inf
    %1789 = vmax.xlane.f32.xlu0 %v1788
    %v1790 = vpop.xlane.xlu0 %1789
    %v1791 = vsub.f32 %v1704, %v1787
    %v1792 = vsub.f32 %v1780, %v1790
    %v1793 = vmul.f32 %v1791, 1.442695
    %v1794 = vpow.pop %v1793
    %v1795 = vmul.f32 %v1792, 1.442695
    %v1796 = vpow.pop %v1795
    %v1797 = vsel %vm1453, %v1794, 0.0
    %1798 = vadd.xlane.f32.xlu0 %v1797
    %v1799 = vpop.xlane.xlu0 %1798
    %v1800 = vsel %vm1453, %v1796, 0.0
    %1801 = vadd.xlane.f32.xlu0 %v1800
    %v1802 = vpop.xlane.xlu0 %1801
    %v1803 = vrcp.pop %v1799
    %v1804 = vrcp.pop %v1802
    %v1805 = vmul.f32 %v1794, %v1803
    %v1806 = vmul.f32 %v1796, %v1804
    %v1807 = vpack.c.bf16 %v1805, %v1805
    %v1808 = vpack.c.bf16 %v1806, %v1806
    %v1809 = vrot.slane %v1486, 1
    %v1810 = vsel %vm1278, %v1487, %v1809
    %v1811 = vrot.slane %v1488, 7
    %v1812 = vsel %vm1281, %v1811, %v1810
    %v1813 = vrot.slane %v1489, 6
    %v1814 = vsel %vm1284, %v1813, %v1812
    %v1815 = vrot.slane %v1490, 5
    %v1816 = vsel %vm1287, %v1815, %v1814
    %v1817 = vrot.slane %v1491, 4
    %v1818 = vsel %vm1290, %v1817, %v1816
    %v1819 = vrot.slane %v1492, 3
    %v1820 = vsel %vm1293, %v1819, %v1818
    %v1821 = vrot.slane %v1493, 2
    %v1822 = vsel %vm1296, %v1821, %v1820
    %v1823 = vpack.c.b16 %v1822, %v1822
    %v1825 = vsel %vm1453, %v1807, 0
    %v1828 = vsel %vm1512, %v1823, 0
    %1830 = vmatprep.subr.bf16.mxu0 0
    %1831 = vmatpush1.bf16.msra.mxu0 %v1828
    %1832 = vmatprep.subr.bf16.mxu0 0
    %1833 = vmatpush1.bf16.msra.mxu0 0
    %1834 = vmatprep.subr.bf16.mxu0 0
    %1835 = vmatpush1.bf16.msra.mxu0 0
    %1836 = vmatprep.subr.bf16.mxu0 0
    %1837 = vmatpush1.bf16.msra.mxu0 0
    %1838 = vmatprep.subr.bf16.mxu0 0
    %1839 = vmatpush1.bf16.msra.mxu0 0
    %1840 = vmatprep.subr.bf16.mxu0 0
    %1841 = vmatpush1.bf16.msra.mxu0 0
    %1842 = vmatprep.subr.bf16.mxu0 0
    %1843 = vmatpush1.bf16.msra.mxu0 0
    %1844 = vmatprep.subr.bf16.mxu0 0
    %1845 = vmatpush1.bf16.msra.mxu0 0
    %1846 = vmatprep.subr.bf16.mxu0 0
    %1847 = vmatpush1.bf16.msra.mxu0 0
    %1848 = vmatprep.subr.bf16.mxu0 0
    %1849 = vmatpush1.bf16.msra.mxu0 0
    %1850 = vmatprep.subr.bf16.mxu0 0
    %1851 = vmatpush1.bf16.msra.mxu0 0
    %1852 = vmatprep.subr.bf16.mxu0 0
    %1853 = vmatpush1.bf16.msra.mxu0 0
    %1854 = vmatprep.subr.bf16.mxu0 0
    %1855 = vmatpush1.bf16.msra.mxu0 0
    %1856 = vmatprep.subr.bf16.mxu0 0
    %1857 = vmatpush1.bf16.msra.mxu0 0
    %1858 = vmatprep.subr.bf16.mxu0 0
    %1859 = vmatpush1.bf16.msra.mxu0 0
    %1860 = vmatprep.subr.bf16.mxu0 0
    %1861 = vmatpush1.bf16.msra.mxu0 0
    %1862 = vmatprep.mubr.bf16.mxu0 0
    %1863 = vmatmul.mubr.bf16.gmra.mrb[0].mxu0 %v1825
    %v1864 = vpop.f32.mrb[0].mxu0
    %v1865 = vadd.f32 0.0, %v1864
    %v1866 = vpop.f32.mrb[0].mxu0
    %v1867 = vpop.f32.mrb[0].mxu0
    %v1868 = vpop.f32.mrb[0].mxu0
    %1869 = vdwg.mxu0
    %v1870 = vrot.slane %v1564, 1
    %v1871 = vsel %vm1278, %v1565, %v1870
    %v1872 = vrot.slane %v1566, 7
    %v1873 = vsel %vm1281, %v1872, %v1871
    %v1874 = vrot.slane %v1567, 6
    %v1875 = vsel %vm1284, %v1874, %v1873
    %v1876 = vrot.slane %v1568, 5
    %v1877 = vsel %vm1287, %v1876, %v1875
    %v1878 = vrot.slane %v1569, 4
    %v1879 = vsel %vm1290, %v1878, %v1877
    %v1880 = vrot.slane %v1570, 3
    %v1881 = vsel %vm1293, %v1880, %v1879
    %v1882 = vrot.slane %v1571, 2
    %v1883 = vsel %vm1296, %v1882, %v1881
    %v1884 = vpack.c.b16 %v1883, %v1883
    %v1886 = vsel %vm1453, %v1808, 0
    %v1889 = vsel %vm1512, %v1884, 0
    %1891 = vmatprep.subr.bf16.mxu0 0
    %1892 = vmatpush1.bf16.msra.mxu0 %v1889
    %1893 = vmatprep.subr.bf16.mxu0 0
    %1894 = vmatpush1.bf16.msra.mxu0 0
    %1895 = vmatprep.subr.bf16.mxu0 0
    %1896 = vmatpush1.bf16.msra.mxu0 0
    %1897 = vmatprep.subr.bf16.mxu0 0
    %1898 = vmatpush1.bf16.msra.mxu0 0
    %1899 = vmatprep.subr.bf16.mxu0 0
    %1900 = vmatpush1.bf16.msra.mxu0 0
    %1901 = vmatprep.subr.bf16.mxu0 0
    %1902 = vmatpush1.bf16.msra.mxu0 0
    %1903 = vmatprep.subr.bf16.mxu0 0
    %1904 = vmatpush1.bf16.msra.mxu0 0
    %1905 = vmatprep.subr.bf16.mxu0 0
    %1906 = vmatpush1.bf16.msra.mxu0 0
    %1907 = vmatprep.subr.bf16.mxu0 0
    %1908 = vmatpush1.bf16.msra.mxu0 0
    %1909 = vmatprep.subr.bf16.mxu0 0
    %1910 = vmatpush1.bf16.msra.mxu0 0
    %1911 = vmatprep.subr.bf16.mxu0 0
    %1912 = vmatpush1.bf16.msra.mxu0 0
    %1913 = vmatprep.subr.bf16.mxu0 0
    %1914 = vmatpush1.bf16.msra.mxu0 0
    %1915 = vmatprep.subr.bf16.mxu0 0
    %1916 = vmatpush1.bf16.msra.mxu0 0
    %1917 = vmatprep.subr.bf16.mxu0 0
    %1918 = vmatpush1.bf16.msra.mxu0 0
    %1919 = vmatprep.subr.bf16.mxu0 0
    %1920 = vmatpush1.bf16.msra.mxu0 0
    %1921 = vmatprep.subr.bf16.mxu0 0
    %1922 = vmatpush1.bf16.msra.mxu0 0
    %1923 = vmatprep.mubr.bf16.mxu0 0
    %1924 = vmatmul.mubr.bf16.gmra.mrb[0].mxu0 %v1886
    %v1925 = vpop.f32.mrb[0].mxu0
    %v1926 = vadd.f32 0.0, %v1925
    %v1927 = vpop.f32.mrb[0].mxu0
    %v1928 = vpop.f32.mrb[0].mxu0
    %v1929 = vpop.f32.mrb[0].mxu0
    %1930 = vdwg.mxu0
    %v1931 = vrot.slane %v1269, 2
    %v1932 = vrot.slane %v1270, 1
    %v1933 = vsel %vm1278, %v1932, %v1931
    %v1934 = vsel %vm1281, %v1271, %v1933
    %v1935 = vrot.slane %v1272, 7
    %v1936 = vsel %vm1284, %v1935, %v1934
    %v1937 = vrot.slane %v1273, 6
    %v1938 = vsel %vm1287, %v1937, %v1936
    %v1939 = vrot.slane %v1274, 5
    %v1940 = vsel %vm1290, %v1939, %v1938
    %v1941 = vrot.slane %v1275, 4
    %v1942 = vsel %vm1293, %v1941, %v1940
    %v1943 = vrot.slane %v1276, 3
    %v1944 = vsel %vm1296, %v1943, %v1942
    %v1945 = vpack.c.b16 %v1944, %v1944
    %v1946 = vrot.slane %v1269, 6
    %v1947 = vrot.slane %v1270, 5
    %v1948 = vsel %vm1278, %v1947, %v1946
    %v1949 = vrot.slane %v1271, 4
    %v1950 = vsel %vm1281, %v1949, %v1948
    %v1951 = vrot.slane %v1272, 3
    %v1952 = vsel %vm1284, %v1951, %v1950
    %v1953 = vrot.slane %v1273, 2
    %v1954 = vsel %vm1287, %v1953, %v1952
    %v1955 = vrot.slane %v1274, 1
    %v1956 = vsel %vm1290, %v1955, %v1954
    %v1957 = vsel %vm1293, %v1275, %v1956
    %v1958 = vrot.slane %v1276, 7
    %v1959 = vsel %vm1296, %v1958, %v1957
    %v1960 = vpack.c.b16 %v1959, %v1959
    %v1962 = vsel %vm1314, %v1945, 0
    %v1965 = vsel %vm1314, %v1960, 0
    %1967 = vmatprep.subr.bf16.mxu0 0
    %1968 = vmatpush1.bf16.xpose.msra.mxu0 %v1965
    %1969 = vmatprep.subr.bf16.mxu0 0
    %1970 = vmatpush1.bf16.xpose.msra.mxu0 0
    %1971 = vmatprep.subr.bf16.mxu0 0
    %1972 = vmatpush1.bf16.xpose.msra.mxu0 0
    %1973 = vmatprep.subr.bf16.mxu0 0
    %1974 = vmatpush1.bf16.xpose.msra.mxu0 0
    %1975 = vmatprep.subr.bf16.mxu0 0
    %1976 = vmatpush1.bf16.xpose.msra.mxu0 0
    %1977 = vmatprep.subr.bf16.mxu0 0
    %1978 = vmatpush1.bf16.xpose.msra.mxu0 0
    %1979 = vmatprep.subr.bf16.mxu0 0
    %1980 = vmatpush1.bf16.xpose.msra.mxu0 0
    %1981 = vmatprep.subr.bf16.mxu0 0
    %1982 = vmatpush1.bf16.xpose.msra.mxu0 0
    %1983 = vmatprep.subr.bf16.mxu0 0
    %1984 = vmatpush1.bf16.xpose.msra.mxu0 0
    %1985 = vmatprep.subr.bf16.mxu0 0
    %1986 = vmatpush1.bf16.xpose.msra.mxu0 0
    %1987 = vmatprep.subr.bf16.mxu0 0
    %1988 = vmatpush1.bf16.xpose.msra.mxu0 0
    %1989 = vmatprep.subr.bf16.mxu0 0
    %1990 = vmatpush1.bf16.xpose.msra.mxu0 0
    %1991 = vmatprep.subr.bf16.mxu0 0
    %1992 = vmatpush1.bf16.xpose.msra.mxu0 0
    %1993 = vmatprep.subr.bf16.mxu0 0
    %1994 = vmatpush1.bf16.xpose.msra.mxu0 0
    %1995 = vmatprep.subr.bf16.mxu0 0
    %1996 = vmatpush1.bf16.xpose.msra.mxu0 0
    %1997 = vmatprep.subr.bf16.mxu0 0
    %1998 = vmatpush1.bf16.xpose.msra.mxu0 0
    %1999 = vmatprep.mubr.bf16.mxu0 0
    %2000 = vmatmul.mubr.bf16.gmra.mrb[0].mxu0 %v1962
    %v2001 = vpop.f32.mrb[0].mxu0
    %v2002 = vadd.f32 %v100, %v2001
    %v2003 = vpop.f32.mrb[0].mxu0
    %v2004 = vpop.f32.mrb[0].mxu0
    %v2005 = vpop.f32.mrb[0].mxu0
    %2006 = vdwg.mxu0
    %v2007 = vrot.slane %v1369, 2
    %v2008 = vrot.slane %v1370, 1
    %v2009 = vsel %vm1278, %v2008, %v2007
    %v2010 = vsel %vm1281, %v1371, %v2009
    %v2011 = vrot.slane %v1372, 7
    %v2012 = vsel %vm1284, %v2011, %v2010
    %v2013 = vrot.slane %v1373, 6
    %v2014 = vsel %vm1287, %v2013, %v2012
    %v2015 = vrot.slane %v1374, 5
    %v2016 = vsel %vm1290, %v2015, %v2014
    %v2017 = vrot.slane %v1375, 4
    %v2018 = vsel %vm1293, %v2017, %v2016
    %v2019 = vrot.slane %v1376, 3
    %v2020 = vsel %vm1296, %v2019, %v2018
    %v2021 = vpack.c.b16 %v2020, %v2020
    %v2022 = vrot.slane %v1369, 6
    %v2023 = vrot.slane %v1370, 5
    %v2024 = vsel %vm1278, %v2023, %v2022
    %v2025 = vrot.slane %v1371, 4
    %v2026 = vsel %vm1281, %v2025, %v2024
    %v2027 = vrot.slane %v1372, 3
    %v2028 = vsel %vm1284, %v2027, %v2026
    %v2029 = vrot.slane %v1373, 2
    %v2030 = vsel %vm1287, %v2029, %v2028
    %v2031 = vrot.slane %v1374, 1
    %v2032 = vsel %vm1290, %v2031, %v2030
    %v2033 = vsel %vm1293, %v1375, %v2032
    %v2034 = vrot.slane %v1376, 7
    %v2035 = vsel %vm1296, %v2034, %v2033
    %v2036 = vpack.c.b16 %v2035, %v2035
    %v2038 = vsel %vm1314, %v2021, 0
    %v2041 = vsel %vm1314, %v2036, 0
    %2043 = vmatprep.subr.bf16.mxu0 0
    %2044 = vmatpush1.bf16.xpose.msra.mxu0 %v2041
    %2045 = vmatprep.subr.bf16.mxu0 0
    %2046 = vmatpush1.bf16.xpose.msra.mxu0 0
    %2047 = vmatprep.subr.bf16.mxu0 0
    %2048 = vmatpush1.bf16.xpose.msra.mxu0 0
    %2049 = vmatprep.subr.bf16.mxu0 0
    %2050 = vmatpush1.bf16.xpose.msra.mxu0 0
    %2051 = vmatprep.subr.bf16.mxu0 0
    %2052 = vmatpush1.bf16.xpose.msra.mxu0 0
    %2053 = vmatprep.subr.bf16.mxu0 0
    %2054 = vmatpush1.bf16.xpose.msra.mxu0 0
    %2055 = vmatprep.subr.bf16.mxu0 0
    %2056 = vmatpush1.bf16.xpose.msra.mxu0 0
    %2057 = vmatprep.subr.bf16.mxu0 0
    %2058 = vmatpush1.bf16.xpose.msra.mxu0 0
    %2059 = vmatprep.subr.bf16.mxu0 0
    %2060 = vmatpush1.bf16.xpose.msra.mxu0 0
    %2061 = vmatprep.subr.bf16.mxu0 0
    %2062 = vmatpush1.bf16.xpose.msra.mxu0 0
    %2063 = vmatprep.subr.bf16.mxu0 0
    %2064 = vmatpush1.bf16.xpose.msra.mxu0 0
    %2065 = vmatprep.subr.bf16.mxu0 0
    %2066 = vmatpush1.bf16.xpose.msra.mxu0 0
    %2067 = vmatprep.subr.bf16.mxu0 0
    %2068 = vmatpush1.bf16.xpose.msra.mxu0 0
    %2069 = vmatprep.subr.bf16.mxu0 0
    %2070 = vmatpush1.bf16.xpose.msra.mxu0 0
    %2071 = vmatprep.subr.bf16.mxu0 0
    %2072 = vmatpush1.bf16.xpose.msra.mxu0 0
    %2073 = vmatprep.subr.bf16.mxu0 0
    %2074 = vmatpush1.bf16.xpose.msra.mxu0 0
    %2075 = vmatprep.mubr.bf16.mxu0 0
    %2076 = vmatmul.mubr.bf16.gmra.mrb[0].mxu0 %v2038
    %v2077 = vpop.f32.mrb[0].mxu0
    %v2078 = vadd.f32 %v101, %v2077
    %v2079 = vpop.f32.mrb[0].mxu0
    %v2080 = vpop.f32.mrb[0].mxu0
    %v2081 = vpop.f32.mrb[0].mxu0
    %2082 = vdwg.mxu0
    %v2083 = vsel %vm1453, %v2002, -inf
    %2084 = vmax.xlane.f32.xlu0 %v2083
    %v2085 = vpop.xlane.xlu0 %2084
    %v2086 = vsel %vm1453, %v2078, -inf
    %2087 = vmax.xlane.f32.xlu0 %v2086
    %v2088 = vpop.xlane.xlu0 %2087
    %v2089 = vsub.f32 %v2002, %v2085
    %v2090 = vsub.f32 %v2078, %v2088
    %v2091 = vmul.f32 %v2089, 1.442695
    %v2092 = vpow.pop %v2091
    %v2093 = vmul.f32 %v2090, 1.442695
    %v2094 = vpow.pop %v2093
    %v2095 = vsel %vm1453, %v2092, 0.0
    %2096 = vadd.xlane.f32.xlu0 %v2095
    %v2097 = vpop.xlane.xlu0 %2096
    %v2098 = vsel %vm1453, %v2094, 0.0
    %2099 = vadd.xlane.f32.xlu0 %v2098
    %v2100 = vpop.xlane.xlu0 %2099
    %v2101 = vrcp.pop %v2097
    %v2102 = vrcp.pop %v2100
    %v2103 = vmul.f32 %v2092, %v2101
    %v2104 = vmul.f32 %v2094, %v2102
    %v2105 = vpack.c.bf16 %v2103, %v2103
    %v2106 = vpack.c.bf16 %v2104, %v2104
    %v2107 = vrot.slane %v1486, 2
    %v2108 = vrot.slane %v1487, 1
    %v2109 = vsel %vm1278, %v2108, %v2107
    %v2110 = vsel %vm1281, %v1488, %v2109
    %v2111 = vrot.slane %v1489, 7
    %v2112 = vsel %vm1284, %v2111, %v2110
    %v2113 = vrot.slane %v1490, 6
    %v2114 = vsel %vm1287, %v2113, %v2112
    %v2115 = vrot.slane %v1491, 5
    %v2116 = vsel %vm1290, %v2115, %v2114
    %v2117 = vrot.slane %v1492, 4
    %v2118 = vsel %vm1293, %v2117, %v2116
    %v2119 = vrot.slane %v1493, 3
    %v2120 = vsel %vm1296, %v2119, %v2118
    %v2121 = vpack.c.b16 %v2120, %v2120
    %v2123 = vsel %vm1453, %v2105, 0
    %v2126 = vsel %vm1512, %v2121, 0
    %2128 = vmatprep.subr.bf16.mxu0 0
    %2129 = vmatpush1.bf16.msra.mxu0 %v2126
    %2130 = vmatprep.subr.bf16.mxu0 0
    %2131 = vmatpush1.bf16.msra.mxu0 0
    %2132 = vmatprep.subr.bf16.mxu0 0
    %2133 = vmatpush1.bf16.msra.mxu0 0
    %2134 = vmatprep.subr.bf16.mxu0 0
    %2135 = vmatpush1.bf16.msra.mxu0 0
    %2136 = vmatprep.subr.bf16.mxu0 0
    %2137 = vmatpush1.bf16.msra.mxu0 0
    %2138 = vmatprep.subr.bf16.mxu0 0
    %2139 = vmatpush1.bf16.msra.mxu0 0
    %2140 = vmatprep.subr.bf16.mxu0 0
    %2141 = vmatpush1.bf16.msra.mxu0 0
    %2142 = vmatprep.subr.bf16.mxu0 0
    %2143 = vmatpush1.bf16.msra.mxu0 0
    %2144 = vmatprep.subr.bf16.mxu0 0
    %2145 = vmatpush1.bf16.msra.mxu0 0
    %2146 = vmatprep.subr.bf16.mxu0 0
    %2147 = vmatpush1.bf16.msra.mxu0 0
    %2148 = vmatprep.subr.bf16.mxu0 0
    %2149 = vmatpush1.bf16.msra.mxu0 0
    %2150 = vmatprep.subr.bf16.mxu0 0
    %2151 = vmatpush1.bf16.msra.mxu0 0
    %2152 = vmatprep.subr.bf16.mxu0 0
    %2153 = vmatpush1.bf16.msra.mxu0 0
    %2154 = vmatprep.subr.bf16.mxu0 0
    %2155 = vmatpush1.bf16.msra.mxu0 0
    %2156 = vmatprep.subr.bf16.mxu0 0
    %2157 = vmatpush1.bf16.msra.mxu0 0
    %2158 = vmatprep.subr.bf16.mxu0 0
    %2159 = vmatpush1.bf16.msra.mxu0 0
    %2160 = vmatprep.mubr.bf16.mxu0 0
    %2161 = vmatmul.mubr.bf16.gmra.mrb[0].mxu0 %v2123
    %v2162 = vpop.f32.mrb[0].mxu0
    %v2163 = vadd.f32 0.0, %v2162
    %v2164 = vpop.f32.mrb[0].mxu0
    %v2165 = vpop.f32.mrb[0].mxu0
    %v2166 = vpop.f32.mrb[0].mxu0
    %2167 = vdwg.mxu0
    %v2168 = vrot.slane %v1564, 2
    %v2169 = vrot.slane %v1565, 1
    %v2170 = vsel %vm1278, %v2169, %v2168
    %v2171 = vsel %vm1281, %v1566, %v2170
    %v2172 = vrot.slane %v1567, 7
    %v2173 = vsel %vm1284, %v2172, %v2171
    %v2174 = vrot.slane %v1568, 6
    %v2175 = vsel %vm1287, %v2174, %v2173
    %v2176 = vrot.slane %v1569, 5
    %v2177 = vsel %vm1290, %v2176, %v2175
    %v2178 = vrot.slane %v1570, 4
    %v2179 = vsel %vm1293, %v2178, %v2177
    %v2180 = vrot.slane %v1571, 3
    %v2181 = vsel %vm1296, %v2180, %v2179
    %v2182 = vpack.c.b16 %v2181, %v2181
    %v2184 = vsel %vm1453, %v2106, 0
    %v2187 = vsel %vm1512, %v2182, 0
    %2189 = vmatprep.subr.bf16.mxu0 0
    %2190 = vmatpush1.bf16.msra.mxu0 %v2187
    %2191 = vmatprep.subr.bf16.mxu0 0
    %2192 = vmatpush1.bf16.msra.mxu0 0
    %2193 = vmatprep.subr.bf16.mxu0 0
    %2194 = vmatpush1.bf16.msra.mxu0 0
    %2195 = vmatprep.subr.bf16.mxu0 0
    %2196 = vmatpush1.bf16.msra.mxu0 0
    %2197 = vmatprep.subr.bf16.mxu0 0
    %2198 = vmatpush1.bf16.msra.mxu0 0
    %2199 = vmatprep.subr.bf16.mxu0 0
    %2200 = vmatpush1.bf16.msra.mxu0 0
    %2201 = vmatprep.subr.bf16.mxu0 0
    %2202 = vmatpush1.bf16.msra.mxu0 0
    %2203 = vmatprep.subr.bf16.mxu0 0
    %2204 = vmatpush1.bf16.msra.mxu0 0
    %2205 = vmatprep.subr.bf16.mxu0 0
    %2206 = vmatpush1.bf16.msra.mxu0 0
    %2207 = vmatprep.subr.bf16.mxu0 0
    %2208 = vmatpush1.bf16.msra.mxu0 0
    %2209 = vmatprep.subr.bf16.mxu0 0
    %2210 = vmatpush1.bf16.msra.mxu0 0
    %2211 = vmatprep.subr.bf16.mxu0 0
    %2212 = vmatpush1.bf16.msra.mxu0 0
    %2213 = vmatprep.subr.bf16.mxu0 0
    %2214 = vmatpush1.bf16.msra.mxu0 0
    %2215 = vmatprep.subr.bf16.mxu0 0
    %2216 = vmatpush1.bf16.msra.mxu0 0
    %2217 = vmatprep.subr.bf16.mxu0 0
    %2218 = vmatpush1.bf16.msra.mxu0 0
    %2219 = vmatprep.subr.bf16.mxu0 0
    %2220 = vmatpush1.bf16.msra.mxu0 0
    %2221 = vmatprep.mubr.bf16.mxu0 0
    %2222 = vmatmul.mubr.bf16.gmra.mrb[0].mxu0 %v2184
    %v2223 = vpop.f32.mrb[0].mxu0
    %v2224 = vadd.f32 0.0, %v2223
    %v2225 = vpop.f32.mrb[0].mxu0
    %v2226 = vpop.f32.mrb[0].mxu0
    %v2227 = vpop.f32.mrb[0].mxu0
    %2228 = vdwg.mxu0
    %v2229 = vrot.slane %v1269, 3
    %v2230 = vrot.slane %v1270, 2
    %v2231 = vsel %vm1278, %v2230, %v2229
    %v2232 = vrot.slane %v1271, 1
    %v2233 = vsel %vm1281, %v2232, %v2231
    %v2234 = vsel %vm1284, %v1272, %v2233
    %v2235 = vrot.slane %v1273, 7
    %v2236 = vsel %vm1287, %v2235, %v2234
    %v2237 = vrot.slane %v1274, 6
    %v2238 = vsel %vm1290, %v2237, %v2236
    %v2239 = vrot.slane %v1275, 5
    %v2240 = vsel %vm1293, %v2239, %v2238
    %v2241 = vrot.slane %v1276, 4
    %v2242 = vsel %vm1296, %v2241, %v2240
    %v2243 = vpack.c.b16 %v2242, %v2242
    %v2244 = vrot.slane %v1269, 7
    %v2245 = vrot.slane %v1270, 6
    %v2246 = vsel %vm1278, %v2245, %v2244
    %v2247 = vrot.slane %v1271, 5
    %v2248 = vsel %vm1281, %v2247, %v2246
    %v2249 = vrot.slane %v1272, 4
    %v2250 = vsel %vm1284, %v2249, %v2248
    %v2251 = vrot.slane %v1273, 3
    %v2252 = vsel %vm1287, %v2251, %v2250
    %v2253 = vrot.slane %v1274, 2
    %v2254 = vsel %vm1290, %v2253, %v2252
    %v2255 = vrot.slane %v1275, 1
    %v2256 = vsel %vm1293, %v2255, %v2254
    %v2257 = vsel %vm1296, %v1276, %v2256
    %v2258 = vpack.c.b16 %v2257, %v2257
    %v2260 = vsel %vm1314, %v2243, 0
    %v2263 = vsel %vm1314, %v2258, 0
    %2265 = vmatprep.subr.bf16.mxu0 0
    %2266 = vmatpush1.bf16.xpose.msra.mxu0 %v2263
    %2267 = vmatprep.subr.bf16.mxu0 0
    %2268 = vmatpush1.bf16.xpose.msra.mxu0 0
    %2269 = vmatprep.subr.bf16.mxu0 0
    %2270 = vmatpush1.bf16.xpose.msra.mxu0 0
    %2271 = vmatprep.subr.bf16.mxu0 0
    %2272 = vmatpush1.bf16.xpose.msra.mxu0 0
    %2273 = vmatprep.subr.bf16.mxu0 0
    %2274 = vmatpush1.bf16.xpose.msra.mxu0 0
    %2275 = vmatprep.subr.bf16.mxu0 0
    %2276 = vmatpush1.bf16.xpose.msra.mxu0 0
    %2277 = vmatprep.subr.bf16.mxu0 0
    %2278 = vmatpush1.bf16.xpose.msra.mxu0 0
    %2279 = vmatprep.subr.bf16.mxu0 0
    %2280 = vmatpush1.bf16.xpose.msra.mxu0 0
    %2281 = vmatprep.subr.bf16.mxu0 0
    %2282 = vmatpush1.bf16.xpose.msra.mxu0 0
    %2283 = vmatprep.subr.bf16.mxu0 0
    %2284 = vmatpush1.bf16.xpose.msra.mxu0 0
    %2285 = vmatprep.subr.bf16.mxu0 0
    %2286 = vmatpush1.bf16.xpose.msra.mxu0 0
    %2287 = vmatprep.subr.bf16.mxu0 0
    %2288 = vmatpush1.bf16.xpose.msra.mxu0 0
    %2289 = vmatprep.subr.bf16.mxu0 0
    %2290 = vmatpush1.bf16.xpose.msra.mxu0 0
    %2291 = vmatprep.subr.bf16.mxu0 0
    %2292 = vmatpush1.bf16.xpose.msra.mxu0 0
    %2293 = vmatprep.subr.bf16.mxu0 0
    %2294 = vmatpush1.bf16.xpose.msra.mxu0 0
    %2295 = vmatprep.subr.bf16.mxu0 0
    %2296 = vmatpush1.bf16.xpose.msra.mxu0 0
    %2297 = vmatprep.mubr.bf16.mxu0 0
    %2298 = vmatmul.mubr.bf16.gmra.mrb[0].mxu0 %v2260
    %v2299 = vpop.f32.mrb[0].mxu0
    %v2300 = vadd.f32 %v100, %v2299
    %v2301 = vpop.f32.mrb[0].mxu0
    %v2302 = vpop.f32.mrb[0].mxu0
    %v2303 = vpop.f32.mrb[0].mxu0
    %2304 = vdwg.mxu0
    %v2305 = vrot.slane %v1369, 3
    %v2306 = vrot.slane %v1370, 2
    %v2307 = vsel %vm1278, %v2306, %v2305
    %v2308 = vrot.slane %v1371, 1
    %v2309 = vsel %vm1281, %v2308, %v2307
    %v2310 = vsel %vm1284, %v1372, %v2309
    %v2311 = vrot.slane %v1373, 7
    %v2312 = vsel %vm1287, %v2311, %v2310
    %v2313 = vrot.slane %v1374, 6
    %v2314 = vsel %vm1290, %v2313, %v2312
    %v2315 = vrot.slane %v1375, 5
    %v2316 = vsel %vm1293, %v2315, %v2314
    %v2317 = vrot.slane %v1376, 4
    %v2318 = vsel %vm1296, %v2317, %v2316
    %v2319 = vpack.c.b16 %v2318, %v2318
    %v2320 = vrot.slane %v1369, 7
    %v2321 = vrot.slane %v1370, 6
    %v2322 = vsel %vm1278, %v2321, %v2320
    %v2323 = vrot.slane %v1371, 5
    %v2324 = vsel %vm1281, %v2323, %v2322
    %v2325 = vrot.slane %v1372, 4
    %v2326 = vsel %vm1284, %v2325, %v2324
    %v2327 = vrot.slane %v1373, 3
    %v2328 = vsel %vm1287, %v2327, %v2326
    %v2329 = vrot.slane %v1374, 2
    %v2330 = vsel %vm1290, %v2329, %v2328
    %v2331 = vrot.slane %v1375, 1
    %v2332 = vsel %vm1293, %v2331, %v2330
    %v2333 = vsel %vm1296, %v1376, %v2332
    %v2334 = vpack.c.b16 %v2333, %v2333
    %v2336 = vsel %vm1314, %v2319, 0
    %v2339 = vsel %vm1314, %v2334, 0
    %2341 = vmatprep.subr.bf16.mxu0 0
    %2342 = vmatpush1.bf16.xpose.msra.mxu0 %v2339
    %2343 = vmatprep.subr.bf16.mxu0 0
    %2344 = vmatpush1.bf16.xpose.msra.mxu0 0
    %2345 = vmatprep.subr.bf16.mxu0 0
    %2346 = vmatpush1.bf16.xpose.msra.mxu0 0
    %2347 = vmatprep.subr.bf16.mxu0 0
    %2348 = vmatpush1.bf16.xpose.msra.mxu0 0
    %2349 = vmatprep.subr.bf16.mxu0 0
    %2350 = vmatpush1.bf16.xpose.msra.mxu0 0
    %2351 = vmatprep.subr.bf16.mxu0 0
    %2352 = vmatpush1.bf16.xpose.msra.mxu0 0
    %2353 = vmatprep.subr.bf16.mxu0 0
    %2354 = vmatpush1.bf16.xpose.msra.mxu0 0
    %2355 = vmatprep.subr.bf16.mxu0 0
    %2356 = vmatpush1.bf16.xpose.msra.mxu0 0
    %2357 = vmatprep.subr.bf16.mxu0 0
    %2358 = vmatpush1.bf16.xpose.msra.mxu0 0
    %2359 = vmatprep.subr.bf16.mxu0 0
    %2360 = vmatpush1.bf16.xpose.msra.mxu0 0
    %2361 = vmatprep.subr.bf16.mxu0 0
    %2362 = vmatpush1.bf16.xpose.msra.mxu0 0
    %2363 = vmatprep.subr.bf16.mxu0 0
    %2364 = vmatpush1.bf16.xpose.msra.mxu0 0
    %2365 = vmatprep.subr.bf16.mxu0 0
    %2366 = vmatpush1.bf16.xpose.msra.mxu0 0
    %2367 = vmatprep.subr.bf16.mxu0 0
    %2368 = vmatpush1.bf16.xpose.msra.mxu0 0
    %2369 = vmatprep.subr.bf16.mxu0 0
    %2370 = vmatpush1.bf16.xpose.msra.mxu0 0
    %2371 = vmatprep.subr.bf16.mxu0 0
    %2372 = vmatpush1.bf16.xpose.msra.mxu0 0
    %2373 = vmatprep.mubr.bf16.mxu0 0
    %2374 = vmatmul.mubr.bf16.gmra.mrb[0].mxu0 %v2336
    %v2375 = vpop.f32.mrb[0].mxu0
    %v2376 = vadd.f32 %v101, %v2375
    %v2377 = vpop.f32.mrb[0].mxu0
    %v2378 = vpop.f32.mrb[0].mxu0
    %v2379 = vpop.f32.mrb[0].mxu0
    %2380 = vdwg.mxu0
    %v2381 = vsel %vm1453, %v2300, -inf
    %2382 = vmax.xlane.f32.xlu0 %v2381
    %v2383 = vpop.xlane.xlu0 %2382
    %v2384 = vsel %vm1453, %v2376, -inf
    %2385 = vmax.xlane.f32.xlu0 %v2384
    %v2386 = vpop.xlane.xlu0 %2385
    %v2387 = vsub.f32 %v2300, %v2383
    %v2388 = vsub.f32 %v2376, %v2386
    %v2389 = vmul.f32 %v2387, 1.442695
    %v2390 = vpow.pop %v2389
    %v2391 = vmul.f32 %v2388, 1.442695
    %v2392 = vpow.pop %v2391
    %v2393 = vsel %vm1453, %v2390, 0.0
    %2394 = vadd.xlane.f32.xlu0 %v2393
    %v2395 = vpop.xlane.xlu0 %2394
    %v2396 = vsel %vm1453, %v2392, 0.0
    %2397 = vadd.xlane.f32.xlu0 %v2396
    %v2398 = vpop.xlane.xlu0 %2397
    %v2399 = vrcp.pop %v2395
    %v2400 = vrcp.pop %v2398
    %v2401 = vmul.f32 %v2390, %v2399
    %v2402 = vmul.f32 %v2392, %v2400
    %v2403 = vpack.c.bf16 %v2401, %v2401
    %v2404 = vpack.c.bf16 %v2402, %v2402
    %v2405 = vrot.slane %v1486, 3
    %v2406 = vrot.slane %v1487, 2
    %v2407 = vsel %vm1278, %v2406, %v2405
    %v2408 = vrot.slane %v1488, 1
    %v2409 = vsel %vm1281, %v2408, %v2407
    %v2410 = vsel %vm1284, %v1489, %v2409
    %v2411 = vrot.slane %v1490, 7
    %v2412 = vsel %vm1287, %v2411, %v2410
    %v2413 = vrot.slane %v1491, 6
    %v2414 = vsel %vm1290, %v2413, %v2412
    %v2415 = vrot.slane %v1492, 5
    %v2416 = vsel %vm1293, %v2415, %v2414
    %v2417 = vrot.slane %v1493, 4
    %v2418 = vsel %vm1296, %v2417, %v2416
    %v2419 = vpack.c.b16 %v2418, %v2418
    %v2421 = vsel %vm1453, %v2403, 0
    %v2424 = vsel %vm1512, %v2419, 0
    %2426 = vmatprep.subr.bf16.mxu0 0
    %2427 = vmatpush1.bf16.msra.mxu0 %v2424
    %2428 = vmatprep.subr.bf16.mxu0 0
    %2429 = vmatpush1.bf16.msra.mxu0 0
    %2430 = vmatprep.subr.bf16.mxu0 0
    %2431 = vmatpush1.bf16.msra.mxu0 0
    %2432 = vmatprep.subr.bf16.mxu0 0
    %2433 = vmatpush1.bf16.msra.mxu0 0
    %2434 = vmatprep.subr.bf16.mxu0 0
    %2435 = vmatpush1.bf16.msra.mxu0 0
    %2436 = vmatprep.subr.bf16.mxu0 0
    %2437 = vmatpush1.bf16.msra.mxu0 0
    %2438 = vmatprep.subr.bf16.mxu0 0
    %2439 = vmatpush1.bf16.msra.mxu0 0
    %2440 = vmatprep.subr.bf16.mxu0 0
    %2441 = vmatpush1.bf16.msra.mxu0 0
    %2442 = vmatprep.subr.bf16.mxu0 0
    %2443 = vmatpush1.bf16.msra.mxu0 0
    %2444 = vmatprep.subr.bf16.mxu0 0
    %2445 = vmatpush1.bf16.msra.mxu0 0
    %2446 = vmatprep.subr.bf16.mxu0 0
    %2447 = vmatpush1.bf16.msra.mxu0 0
    %2448 = vmatprep.subr.bf16.mxu0 0
    %2449 = vmatpush1.bf16.msra.mxu0 0
    %2450 = vmatprep.subr.bf16.mxu0 0
    %2451 = vmatpush1.bf16.msra.mxu0 0
    %2452 = vmatprep.subr.bf16.mxu0 0
    %2453 = vmatpush1.bf16.msra.mxu0 0
    %2454 = vmatprep.subr.bf16.mxu0 0
    %2455 = vmatpush1.bf16.msra.mxu0 0
    %2456 = vmatprep.subr.bf16.mxu0 0
    %2457 = vmatpush1.bf16.msra.mxu0 0
    %2458 = vmatprep.mubr.bf16.mxu0 0
    %2459 = vmatmul.mubr.bf16.gmra.mrb[0].mxu0 %v2421
    %v2460 = vpop.f32.mrb[0].mxu0
    %v2461 = vadd.f32 0.0, %v2460
    %v2462 = vpop.f32.mrb[0].mxu0
    %v2463 = vpop.f32.mrb[0].mxu0
    %v2464 = vpop.f32.mrb[0].mxu0
    %2465 = vdwg.mxu0
    %v2466 = vrot.slane %v1564, 3
    %v2467 = vrot.slane %v1565, 2
    %v2468 = vsel %vm1278, %v2467, %v2466
    %v2469 = vrot.slane %v1566, 1
    %v2470 = vsel %vm1281, %v2469, %v2468
    %v2471 = vsel %vm1284, %v1567, %v2470
    %v2472 = vrot.slane %v1568, 7
    %v2473 = vsel %vm1287, %v2472, %v2471
    %v2474 = vrot.slane %v1569, 6
    %v2475 = vsel %vm1290, %v2474, %v2473
    %v2476 = vrot.slane %v1570, 5
    %v2477 = vsel %vm1293, %v2476, %v2475
    %v2478 = vrot.slane %v1571, 4
    %v2479 = vsel %vm1296, %v2478, %v2477
    %v2480 = vpack.c.b16 %v2479, %v2479
    %v2482 = vsel %vm1453, %v2404, 0
    %v2485 = vsel %vm1512, %v2480, 0
    %2487 = vmatprep.subr.bf16.mxu0 0
    %2488 = vmatpush1.bf16.msra.mxu0 %v2485
    %2489 = vmatprep.subr.bf16.mxu0 0
    %2490 = vmatpush1.bf16.msra.mxu0 0
    %2491 = vmatprep.subr.bf16.mxu0 0
    %2492 = vmatpush1.bf16.msra.mxu0 0
    %2493 = vmatprep.subr.bf16.mxu0 0
    %2494 = vmatpush1.bf16.msra.mxu0 0
    %2495 = vmatprep.subr.bf16.mxu0 0
    %2496 = vmatpush1.bf16.msra.mxu0 0
    %2497 = vmatprep.subr.bf16.mxu0 0
    %2498 = vmatpush1.bf16.msra.mxu0 0
    %2499 = vmatprep.subr.bf16.mxu0 0
    %2500 = vmatpush1.bf16.msra.mxu0 0
    %2501 = vmatprep.subr.bf16.mxu0 0
    %2502 = vmatpush1.bf16.msra.mxu0 0
    %2503 = vmatprep.subr.bf16.mxu0 0
    %2504 = vmatpush1.bf16.msra.mxu0 0
    %2505 = vmatprep.subr.bf16.mxu0 0
    %2506 = vmatpush1.bf16.msra.mxu0 0
    %2507 = vmatprep.subr.bf16.mxu0 0
    %2508 = vmatpush1.bf16.msra.mxu0 0
    %2509 = vmatprep.subr.bf16.mxu0 0
    %2510 = vmatpush1.bf16.msra.mxu0 0
    %2511 = vmatprep.subr.bf16.mxu0 0
    %2512 = vmatpush1.bf16.msra.mxu0 0
    %2513 = vmatprep.subr.bf16.mxu0 0
    %2514 = vmatpush1.bf16.msra.mxu0 0
    %2515 = vmatprep.subr.bf16.mxu0 0
    %2516 = vmatpush1.bf16.msra.mxu0 0
    %2517 = vmatprep.subr.bf16.mxu0 0
    %2518 = vmatpush1.bf16.msra.mxu0 0
    %2519 = vmatprep.mubr.bf16.mxu0 0
    %2520 = vmatmul.mubr.bf16.gmra.mrb[0].mxu0 %v2482
    %v2521 = vpop.f32.mrb[0].mxu0
    %v2522 = vadd.f32 0.0, %v2521
    %v2523 = vpop.f32.mrb[0].mxu0
    %v2524 = vpop.f32.mrb[0].mxu0
    %v2525 = vpop.f32.mrb[0].mxu0
    %2526 = vdwg.mxu0
    %2529 = vrot.lane.b32.xlu0 %v1865, 32
    %v2530 = vpop.permute.xlu0 %2529
    %2531 = vrot.lane.b32.xlu0 %v1926, 32
    %v2532 = vpop.permute.xlu0 %2531
    %2537 = vrot.lane.b32.xlu0 %v2163, 64
    %v2538 = vpop.permute.xlu0 %2537
    %2539 = vrot.lane.b32.xlu0 %v2224, 64
    %v2540 = vpop.permute.xlu0 %2539
    %2545 = vrot.lane.b32.xlu0 %v2461, 96
    %v2546 = vpop.permute.xlu0 %2545
    %2547 = vrot.lane.b32.xlu0 %v2522, 96
    %v2548 = vpop.permute.xlu0 %2547
    %v2551 = vsel %vm1314, %v1551, %v2530
    %v2552 = vsel %vm1314, %v1628, %v2532
    %vm2553 = vcmask 523264
    %v2554 = vsel %vm2553, %v2551, %v2538
    %v2555 = vsel %vm2553, %v2552, %v2540
    %vm2556 = vcmask 785408
    %v2557 = vsel %vm2556, %v2554, %v2546
    %v2558 = vsel %vm2556, %v2555, %v2548
    %v2559 = vpack.c.bf16 %v2558, %v2557
    %v2560 = vld [vmem:[%s11] sm:$0x1]
    %v2562 = vlaneseq
    %v2563 = vshrl.u32 %v2562, 7
    %v2564 = vsub.s32 0, %v2563
    %v2565 = vrot.slane %v2560, %v2564
    %v2583 = vunpack.c.l.b16 %v1213
    %v2584 = vunpack.c.l.b16 %v1214
    %v2585 = vunpack.c.l.b16 %v1215
    %v2586 = vunpack.c.l.b16 %v1216
    %v2587 = vunpack.c.l.b16 %v1217
    %v2588 = vunpack.c.l.b16 %v1218
    %v2589 = vunpack.c.l.b16 %v1219
    %v2590 = vunpack.c.l.b16 %v1220
    %v2591 = vunpack.c.l.b16 %v1221
    %v2592 = vunpack.c.l.b16 %v1222
    %v2593 = vunpack.c.l.b16 %v1223
    %v2594 = vunpack.c.l.b16 %v1224
    %v2595 = vunpack.c.l.b16 %v1225
    %v2596 = vunpack.c.l.b16 %v1226
    %v2597 = vunpack.c.l.b16 %v1227
    %v2598 = vunpack.c.l.b16 %v1228
    %v2599 = vpack.c.b16 %v2584, %v2583
    %v2600 = vpack.c.b16 %v2586, %v2585
    %v2601 = vpack.c.b16 %v2588, %v2587
    %v2602 = vpack.c.b16 %v2590, %v2589
    %v2603 = vpack.c.b16 %v2592, %v2591
    %v2604 = vpack.c.b16 %v2594, %v2593
    %v2605 = vpack.c.b16 %v2596, %v2595
    %v2606 = vpack.c.b16 %v2598, %v2597
    %2615 = vmatprep.subr.bf16.mxu0 0
    %2616 = vmatpush1.bf16.msra.mxu0 %v2599
    %2617 = vmatprep.subr.bf16.mxu0 0
    %2618 = vmatpush1.bf16.msra.mxu0 %v2600
    %2619 = vmatprep.subr.bf16.mxu0 0
    %2620 = vmatpush1.bf16.msra.mxu0 %v2601
    %2621 = vmatprep.subr.bf16.mxu0 0
    %2622 = vmatpush1.bf16.msra.mxu0 %v2602
    %2623 = vmatprep.subr.bf16.mxu0 0
    %2624 = vmatpush1.bf16.msra.mxu0 %v2603
    %2625 = vmatprep.subr.bf16.mxu0 0
    %2626 = vmatpush1.bf16.msra.mxu0 %v2604
    %2627 = vmatprep.subr.bf16.mxu0 0
    %2628 = vmatpush1.bf16.msra.mxu0 %v2605
    %2629 = vmatprep.subr.bf16.mxu0 0
    %2630 = vmatpush1.bf16.msra.mxu0 %v2606
    %2631 = vmatprep.subr.bf16.mxu0 0
    %2632 = vmatpush1.bf16.msra.mxu0 0
    %2633 = vmatprep.subr.bf16.mxu0 0
    %2634 = vmatpush1.bf16.msra.mxu0 0
    %2635 = vmatprep.subr.bf16.mxu0 0
    %2636 = vmatpush1.bf16.msra.mxu0 0
    %2637 = vmatprep.subr.bf16.mxu0 0
    %2638 = vmatpush1.bf16.msra.mxu0 0
    %2639 = vmatprep.subr.bf16.mxu0 0
    %2640 = vmatpush1.bf16.msra.mxu0 0
    %2641 = vmatprep.subr.bf16.mxu0 0
    %2642 = vmatpush1.bf16.msra.mxu0 0
    %2643 = vmatprep.subr.bf16.mxu0 0
    %2644 = vmatpush1.bf16.msra.mxu0 0
    %2645 = vmatprep.subr.bf16.mxu0 0
    %2646 = vmatpush1.bf16.msra.mxu0 0
    %2647 = vmatprep.mubr.bf16.mxu0 0
    %2648 = vmatmul.mubr.bf16.gmra.mrb[0].mxu0 %v2559
    %v2649 = vpop.f32.mrb[0].mxu0
    %v2650 = vadd.f32 %v2565, %v2649
    %v2651 = vpop.f32.mrb[0].mxu0
    %v2652 = vpop.f32.mrb[0].mxu0
    %v2653 = vadd.f32 %v2565, %v2652
    %v2654 = vpop.f32.mrb[0].mxu0
    %2655 = vdwg.mxu0
    %v2656 = vadd.f32 %v2650, %v147
    %v2657 = vadd.f32 %v2653, %v148
    %v2658 = vld [vmem:[%s12] sm:$0x1]
    %v2659 = vld [vmem:[%s13] sm:$0x1]
    %2660 = vadd.xlane.f32.xlu0 %v2656
    %v2661 = vpop.xlane.xlu0 %2660
    %2662 = vadd.xlane.f32.xlu0 %v2657
    %v2663 = vpop.xlane.xlu0 %2662
    %v2664 = vmul.f32 %v2661, %v114
    %v2665 = vmul.f32 %v2663, %v114
    %v2666 = vsub.f32 %v2656, %v2664
    %v2667 = vsub.f32 %v2657, %v2665
    %v2668 = vmul.f32 %v2666, %v2666
    %v2669 = vmul.f32 %v2667, %v2667
    %2670 = vadd.xlane.f32.xlu0 %v2668
    %v2671 = vpop.xlane.xlu0 %2670
    %2672 = vadd.xlane.f32.xlu0 %v2669
    %v2673 = vpop.xlane.xlu0 %2672
    %v2674 = vmul.f32 %v2671, %v114
    %v2675 = vmul.f32 %v2673, %v114
    %v2676 = vadd.f32 %v2674, 1e-12
    %v2677 = vadd.f32 %v2675, 1e-12
    %v2678 = vrsqrt.pop %v2676
    %v2679 = vrsqrt.pop %v2677
    %v2680 = vmul.f32 %v2666, %v2678
    %v2681 = vmul.f32 %v2667, %v2679
    %v2683 = vlaneseq
    %v2684 = vshrl.u32 %v2683, 7
    %v2685 = vsub.s32 0, %v2684
    %v2686 = vrot.slane %v2658, %v2685
    %v2688 = vmul.f32 %v2680, %v2686
    %v2689 = vmul.f32 %v2681, %v2686
    %v2691 = vlaneseq
    %v2692 = vshrl.u32 %v2691, 7
    %v2693 = vsub.s32 0, %v2692
    %v2694 = vrot.slane %v2659, %v2693
    %v2696 = vadd.f32 %v2688, %v2694
    %v2697 = vadd.f32 %v2689, %v2694
    %v2698 = vmul.f32 %v2696, %v93
    %v2699 = vmul.f32 %v2697, %v98
    %v2700 = vpack.c.bf16 %v2699, %v2698
    %v2701 = vld [vmem:[%s14] sm:$0xf]
    %v2702 = vld [vmem:[%s14 + $0x4] sm:$0xf]
    %v2703 = vld [vmem:[%s14 + $0x8] sm:$0xf]
    %v2704 = vld [vmem:[%s14 + $0xc] sm:$0xf]
    %v2705 = vld [vmem:[%s14 + $0x10] sm:$0xf]
    %v2706 = vld [vmem:[%s14 + $0x14] sm:$0xf]
    %v2707 = vld [vmem:[%s14 + $0x18] sm:$0xf]
    %v2708 = vld [vmem:[%s14 + $0x1c] sm:$0xf]
    %v2709 = vld [vmem:[%s14 + $0x20] sm:$0xf]
    %v2710 = vld [vmem:[%s14 + $0x24] sm:$0xf]
    %v2711 = vld [vmem:[%s14 + $0x28] sm:$0xf]
    %v2712 = vld [vmem:[%s14 + $0x2c] sm:$0xf]
    %v2713 = vld [vmem:[%s14 + $0x30] sm:$0xf]
    %v2714 = vld [vmem:[%s14 + $0x34] sm:$0xf]
    %v2715 = vld [vmem:[%s14 + $0x38] sm:$0xf]
    %v2716 = vld [vmem:[%s14 + $0x3c] sm:$0xf]
    %v2717 = vld [vmem:[%s15] sm:$0x1]
    %v2719 = vlaneseq
    %v2720 = vshrl.u32 %v2719, 7
    %v2721 = vsub.s32 0, %v2720
    %v2722 = vrot.slane %v2717, %v2721
    %v2740 = vunpack.c.l.b16 %v2701
    %v2741 = vunpack.c.l.b16 %v2702
    %v2742 = vunpack.c.l.b16 %v2703
    %v2743 = vunpack.c.l.b16 %v2704
    %v2744 = vunpack.c.l.b16 %v2705
    %v2745 = vunpack.c.l.b16 %v2706
    %v2746 = vunpack.c.l.b16 %v2707
    %v2747 = vunpack.c.l.b16 %v2708
    %v2748 = vunpack.c.l.b16 %v2709
    %v2749 = vunpack.c.l.b16 %v2710
    %v2750 = vunpack.c.l.b16 %v2711
    %v2751 = vunpack.c.l.b16 %v2712
    %v2752 = vunpack.c.l.b16 %v2713
    %v2753 = vunpack.c.l.b16 %v2714
    %v2754 = vunpack.c.l.b16 %v2715
    %v2755 = vunpack.c.l.b16 %v2716
    %v2756 = vpack.c.b16 %v2741, %v2740
    %v2757 = vpack.c.b16 %v2743, %v2742
    %v2758 = vpack.c.b16 %v2745, %v2744
    %v2759 = vpack.c.b16 %v2747, %v2746
    %v2760 = vpack.c.b16 %v2749, %v2748
    %v2761 = vpack.c.b16 %v2751, %v2750
    %v2762 = vpack.c.b16 %v2753, %v2752
    %v2763 = vpack.c.b16 %v2755, %v2754
    %2772 = vmatprep.subr.bf16.mxu0 0
    %2773 = vmatpush1.bf16.msra.mxu0 %v2756
    %2774 = vmatprep.subr.bf16.mxu0 0
    %2775 = vmatpush1.bf16.msra.mxu0 %v2757
    %2776 = vmatprep.subr.bf16.mxu0 0
    %2777 = vmatpush1.bf16.msra.mxu0 %v2758
    %2778 = vmatprep.subr.bf16.mxu0 0
    %2779 = vmatpush1.bf16.msra.mxu0 %v2759
    %2780 = vmatprep.subr.bf16.mxu0 0
    %2781 = vmatpush1.bf16.msra.mxu0 %v2760
    %2782 = vmatprep.subr.bf16.mxu0 0
    %2783 = vmatpush1.bf16.msra.mxu0 %v2761
    %2784 = vmatprep.subr.bf16.mxu0 0
    %2785 = vmatpush1.bf16.msra.mxu0 %v2762
    %2786 = vmatprep.subr.bf16.mxu0 0
    %2787 = vmatpush1.bf16.msra.mxu0 %v2763
    %2788 = vmatprep.subr.bf16.mxu0 0
    %2789 = vmatpush1.bf16.msra.mxu0 0
    %2790 = vmatprep.subr.bf16.mxu0 0
    %2791 = vmatpush1.bf16.msra.mxu0 0
    %2792 = vmatprep.subr.bf16.mxu0 0
    %2793 = vmatpush1.bf16.msra.mxu0 0
    %2794 = vmatprep.subr.bf16.mxu0 0
    %2795 = vmatpush1.bf16.msra.mxu0 0
    %2796 = vmatprep.subr.bf16.mxu0 0
    %2797 = vmatpush1.bf16.msra.mxu0 0
    %2798 = vmatprep.subr.bf16.mxu0 0
    %2799 = vmatpush1.bf16.msra.mxu0 0
    %2800 = vmatprep.subr.bf16.mxu0 0
    %2801 = vmatpush1.bf16.msra.mxu0 0
    %2802 = vmatprep.subr.bf16.mxu0 0
    %2803 = vmatpush1.bf16.msra.mxu0 0
    %2804 = vmatprep.mubr.bf16.mxu0 0
    %2805 = vmatmul.mubr.bf16.gmra.mrb[0].mxu0 %v2700
    %v2806 = vpop.f32.mrb[0].mxu0
    %v2807 = vadd.f32 %v2722, %v2806
    %v2808 = vpop.f32.mrb[0].mxu0
    %v2809 = vpop.f32.mrb[0].mxu0
    %v2810 = vadd.f32 %v2722, %v2809
    %v2811 = vpop.f32.mrb[0].mxu0
    %2812 = vdwg.mxu0
    %2815 = vrot.lane.b32.xlu0 %v2807, 96
    %v2816 = vpop.permute.xlu0 %2815
    %2817 = vrot.lane.b32.xlu0 %v2810, 96
    %v2818 = vpop.permute.xlu0 %2817
    %2821 = vrot.lane.b32.xlu0 %v2807, 64
    %v2822 = vpop.permute.xlu0 %2821
    %2823 = vrot.lane.b32.xlu0 %v2810, 64
    %v2824 = vpop.permute.xlu0 %2823
    %2827 = vrot.lane.b32.xlu0 %v2807, 32
    %v2828 = vpop.permute.xlu0 %2827
    %2829 = vrot.lane.b32.xlu0 %v2810, 32
    %v2830 = vpop.permute.xlu0 %2829
    %v2833 = vcombine.low %v2807, %v2822
    %v2834 = vcombine.high %v2807, %v2822
    %v2836 = vunpack.c.l.s4 1983009808
    %v2837 = vunpack.c.0.s8 %v2836
    %v2838 = vlaneseq
    %v2839 = vshrl.u32 %v2838, 7
    %v2840 = vsub.s32 %v2837, %v2839
    %v2841 = vrot.slane %v2833, %v2840
    %v2843 = vunpack.c.l.s4 1983009808
    %v2844 = vunpack.c.0.s8 %v2843
    %v2845 = vlaneseq
    %v2846 = vshrl.u32 %v2845, 7
    %v2847 = vsub.s32 %v2844, %v2846
    %v2848 = vrot.slane %v2834, %v2847
    %v2849 = vcombine.low %v2816, %v2828
    %v2850 = vcombine.high %v2816, %v2828
    %v2852 = vunpack.c.l.s4 1983009808
    %v2853 = vunpack.c.0.s8 %v2852
    %v2854 = vlaneseq
    %v2855 = vshrl.u32 %v2854, 7
    %v2856 = vsub.s32 %v2853, %v2855
    %v2857 = vrot.slane %v2849, %v2856
    %v2859 = vunpack.c.l.s4 1983009808
    %v2860 = vunpack.c.0.s8 %v2859
    %v2861 = vlaneseq
    %v2862 = vshrl.u32 %v2861, 7
    %v2863 = vsub.s32 %v2860, %v2862
    %v2864 = vrot.slane %v2850, %v2863
    %v2865 = vcombine.low %v2841, %v2857
    %v2866 = vcombine.high %v2841, %v2857
    %v2868 = vunpack.c.l.s4 1934713408
    %v2869 = vunpack.c.0.s8 %v2868
    %v2870 = vlaneseq
    %v2871 = vshrl.u32 %v2870, 7
    %v2872 = vsub.s32 %v2869, %v2871
    %v2873 = vrot.slane %v2865, %v2872
    %v2875 = vunpack.c.l.s4 1934713408
    %v2876 = vunpack.c.0.s8 %v2875
    %v2877 = vlaneseq
    %v2878 = vshrl.u32 %v2877, 7
    %v2879 = vsub.s32 %v2876, %v2878
    %v2880 = vrot.slane %v2866, %v2879
    %v2881 = vcombine.low %v2848, %v2864
    %v2882 = vcombine.high %v2848, %v2864
    %v2884 = vunpack.c.l.s4 1934713408
    %v2885 = vunpack.c.0.s8 %v2884
    %v2886 = vlaneseq
    %v2887 = vshrl.u32 %v2886, 7
    %v2888 = vsub.s32 %v2885, %v2887
    %v2889 = vrot.slane %v2881, %v2888
    %v2891 = vunpack.c.l.s4 1934713408
    %v2892 = vunpack.c.0.s8 %v2891
    %v2893 = vlaneseq
    %v2894 = vshrl.u32 %v2893, 7
    %v2895 = vsub.s32 %v2892, %v2894
    %v2896 = vrot.slane %v2882, %v2895
    %v2897 = vcombine.high %v2873, 0.0
    %v2898 = vcombine.high %v2880, 0.0
    %v2899 = vcombine.high %v2889, 0.0
    %v2900 = vcombine.high %v2896, 0.0
    %v2901 = vcombine.low %v2810, %v2824
    %v2902 = vcombine.high %v2810, %v2824
    %v2904 = vunpack.c.l.s4 1983009808
    %v2905 = vunpack.c.0.s8 %v2904
    %v2906 = vlaneseq
    %v2907 = vshrl.u32 %v2906, 7
    %v2908 = vsub.s32 %v2905, %v2907
    %v2909 = vrot.slane %v2901, %v2908
    %v2911 = vunpack.c.l.s4 1983009808
    %v2912 = vunpack.c.0.s8 %v2911
    %v2913 = vlaneseq
    %v2914 = vshrl.u32 %v2913, 7
    %v2915 = vsub.s32 %v2912, %v2914
    %v2916 = vrot.slane %v2902, %v2915
    %v2917 = vcombine.low %v2818, %v2830
    %v2918 = vcombine.high %v2818, %v2830
    %v2920 = vunpack.c.l.s4 1983009808
    %v2921 = vunpack.c.0.s8 %v2920
    %v2922 = vlaneseq
    %v2923 = vshrl.u32 %v2922, 7
    %v2924 = vsub.s32 %v2921, %v2923
    %v2925 = vrot.slane %v2917, %v2924
    %v2927 = vunpack.c.l.s4 1983009808
    %v2928 = vunpack.c.0.s8 %v2927
    %v2929 = vlaneseq
    %v2930 = vshrl.u32 %v2929, 7
    %v2931 = vsub.s32 %v2928, %v2930
    %v2932 = vrot.slane %v2918, %v2931
    %v2933 = vcombine.low %v2909, %v2925
    %v2934 = vcombine.high %v2909, %v2925
    %v2936 = vunpack.c.l.s4 1934713408
    %v2937 = vunpack.c.0.s8 %v2936
    %v2938 = vlaneseq
    %v2939 = vshrl.u32 %v2938, 7
    %v2940 = vsub.s32 %v2937, %v2939
    %v2941 = vrot.slane %v2933, %v2940
    %v2943 = vunpack.c.l.s4 1934713408
    %v2944 = vunpack.c.0.s8 %v2943
    %v2945 = vlaneseq
    %v2946 = vshrl.u32 %v2945, 7
    %v2947 = vsub.s32 %v2944, %v2946
    %v2948 = vrot.slane %v2934, %v2947
    %v2949 = vcombine.low %v2916, %v2932
    %v2950 = vcombine.high %v2916, %v2932
    %v2952 = vunpack.c.l.s4 1934713408
    %v2953 = vunpack.c.0.s8 %v2952
    %v2954 = vlaneseq
    %v2955 = vshrl.u32 %v2954, 7
    %v2956 = vsub.s32 %v2953, %v2955
    %v2957 = vrot.slane %v2949, %v2956
    %v2959 = vunpack.c.l.s4 1934713408
    %v2960 = vunpack.c.0.s8 %v2959
    %v2961 = vlaneseq
    %v2962 = vshrl.u32 %v2961, 7
    %v2963 = vsub.s32 %v2960, %v2962
    %v2964 = vrot.slane %v2950, %v2963
    %v2965 = vcombine.high %v2941, 0.0
    %v2966 = vcombine.high %v2948, 0.0
    %v2967 = vcombine.high %v2957, 0.0
    %v2968 = vcombine.high %v2964, 0.0
    %2973 = vrot.lane.b32.xlu0 %v412, 96
    %v2974 = vpop.permute.xlu0 %2973
    %2975 = vrot.lane.b32.xlu0 %v416, 96
    %v2976 = vpop.permute.xlu0 %2975
    %2977 = vrot.lane.b32.xlu0 %v422, 96
    %v2978 = vpop.permute.xlu0 %2977
    %2979 = vrot.lane.b32.xlu0 %v426, 96
    %v2980 = vpop.permute.xlu0 %2979
    %2985 = vrot.lane.b32.xlu0 %v412, 64
    %v2986 = vpop.permute.xlu0 %2985
    %2987 = vrot.lane.b32.xlu0 %v416, 64
    %v2988 = vpop.permute.xlu0 %2987
    %2989 = vrot.lane.b32.xlu0 %v422, 64
    %v2990 = vpop.permute.xlu0 %2989
    %2991 = vrot.lane.b32.xlu0 %v426, 64
    %v2992 = vpop.permute.xlu0 %2991
    %2997 = vrot.lane.b32.xlu0 %v412, 32
    %v2998 = vpop.permute.xlu0 %2997
    %2999 = vrot.lane.b32.xlu0 %v416, 32
    %v3000 = vpop.permute.xlu0 %2999
    %3001 = vrot.lane.b32.xlu0 %v422, 32
    %v3002 = vpop.permute.xlu0 %3001
    %3003 = vrot.lane.b32.xlu0 %v426, 32
    %v3004 = vpop.permute.xlu0 %3003
    %3013 = vrot.lane.b32.xlu0 %v414, 96
    %v3014 = vpop.permute.xlu0 %3013
    %3015 = vrot.lane.b32.xlu0 %v418, 96
    %v3016 = vpop.permute.xlu0 %3015
    %3017 = vrot.lane.b32.xlu0 %v424, 96
    %v3018 = vpop.permute.xlu0 %3017
    %3019 = vrot.lane.b32.xlu0 %v428, 96
    %v3020 = vpop.permute.xlu0 %3019
    %3025 = vrot.lane.b32.xlu0 %v414, 64
    %v3026 = vpop.permute.xlu0 %3025
    %3027 = vrot.lane.b32.xlu0 %v418, 64
    %v3028 = vpop.permute.xlu0 %3027
    %3029 = vrot.lane.b32.xlu0 %v424, 64
    %v3030 = vpop.permute.xlu0 %3029
    %3031 = vrot.lane.b32.xlu0 %v428, 64
    %v3032 = vpop.permute.xlu0 %3031
    %3037 = vrot.lane.b32.xlu0 %v414, 32
    %v3038 = vpop.permute.xlu0 %3037
    %3039 = vrot.lane.b32.xlu0 %v418, 32
    %v3040 = vpop.permute.xlu0 %3039
    %3041 = vrot.lane.b32.xlu0 %v424, 32
    %v3042 = vpop.permute.xlu0 %3041
    %3043 = vrot.lane.b32.xlu0 %v428, 32
    %v3044 = vpop.permute.xlu0 %3043
    %v3049 = vcombine.low %v412, %v2986
    %v3050 = vcombine.high %v412, %v2986
    %v3052 = vunpack.c.l.s4 1983009808
    %v3053 = vunpack.c.0.s8 %v3052
    %v3054 = vlaneseq
    %v3055 = vshrl.u32 %v3054, 7
    %v3056 = vsub.s32 %v3053, %v3055
    %v3057 = vrot.slane %v3049, %v3056
    %v3059 = vunpack.c.l.s4 1983009808
    %v3060 = vunpack.c.0.s8 %v3059
    %v3061 = vlaneseq
    %v3062 = vshrl.u32 %v3061, 7
    %v3063 = vsub.s32 %v3060, %v3062
    %v3064 = vrot.slane %v3050, %v3063
    %v3065 = vcombine.low %v2974, %v2998
    %v3066 = vcombine.high %v2974, %v2998
    %v3068 = vunpack.c.l.s4 1983009808
    %v3069 = vunpack.c.0.s8 %v3068
    %v3070 = vlaneseq
    %v3071 = vshrl.u32 %v3070, 7
    %v3072 = vsub.s32 %v3069, %v3071
    %v3073 = vrot.slane %v3065, %v3072
    %v3075 = vunpack.c.l.s4 1983009808
    %v3076 = vunpack.c.0.s8 %v3075
    %v3077 = vlaneseq
    %v3078 = vshrl.u32 %v3077, 7
    %v3079 = vsub.s32 %v3076, %v3078
    %v3080 = vrot.slane %v3066, %v3079
    %v3081 = vcombine.low %v414, %v3026
    %v3082 = vcombine.high %v414, %v3026
    %v3084 = vunpack.c.l.s4 1983009808
    %v3085 = vunpack.c.0.s8 %v3084
    %v3086 = vlaneseq
    %v3087 = vshrl.u32 %v3086, 7
    %v3088 = vsub.s32 %v3085, %v3087
    %v3089 = vrot.slane %v3081, %v3088
    %v3091 = vunpack.c.l.s4 1983009808
    %v3092 = vunpack.c.0.s8 %v3091
    %v3093 = vlaneseq
    %v3094 = vshrl.u32 %v3093, 7
    %v3095 = vsub.s32 %v3092, %v3094
    %v3096 = vrot.slane %v3082, %v3095
    %v3097 = vcombine.low %v3014, %v3038
    %v3098 = vcombine.high %v3014, %v3038
    %v3100 = vunpack.c.l.s4 1983009808
    %v3101 = vunpack.c.0.s8 %v3100
    %v3102 = vlaneseq
    %v3103 = vshrl.u32 %v3102, 7
    %v3104 = vsub.s32 %v3101, %v3103
    %v3105 = vrot.slane %v3097, %v3104
    %v3107 = vunpack.c.l.s4 1983009808
    %v3108 = vunpack.c.0.s8 %v3107
    %v3109 = vlaneseq
    %v3110 = vshrl.u32 %v3109, 7
    %v3111 = vsub.s32 %v3108, %v3110
    %v3112 = vrot.slane %v3098, %v3111
    %v3113 = vcombine.low %v3057, %v3073
    %v3114 = vcombine.high %v3057, %v3073
    %v3116 = vunpack.c.l.s4 1934713408
    %v3117 = vunpack.c.0.s8 %v3116
    %v3118 = vlaneseq
    %v3119 = vshrl.u32 %v3118, 7
    %v3120 = vsub.s32 %v3117, %v3119
    %v3121 = vrot.slane %v3113, %v3120
    %v3123 = vunpack.c.l.s4 1934713408
    %v3124 = vunpack.c.0.s8 %v3123
    %v3125 = vlaneseq
    %v3126 = vshrl.u32 %v3125, 7
    %v3127 = vsub.s32 %v3124, %v3126
    %v3128 = vrot.slane %v3114, %v3127
    %v3129 = vcombine.low %v3064, %v3080
    %v3130 = vcombine.high %v3064, %v3080
    %v3132 = vunpack.c.l.s4 1934713408
    %v3133 = vunpack.c.0.s8 %v3132
    %v3134 = vlaneseq
    %v3135 = vshrl.u32 %v3134, 7
    %v3136 = vsub.s32 %v3133, %v3135
    %v3137 = vrot.slane %v3129, %v3136
    %v3139 = vunpack.c.l.s4 1934713408
    %v3140 = vunpack.c.0.s8 %v3139
    %v3141 = vlaneseq
    %v3142 = vshrl.u32 %v3141, 7
    %v3143 = vsub.s32 %v3140, %v3142
    %v3144 = vrot.slane %v3130, %v3143
    %v3145 = vcombine.low %v3089, %v3105
    %v3146 = vcombine.high %v3089, %v3105
    %v3148 = vunpack.c.l.s4 1934713408
    %v3149 = vunpack.c.0.s8 %v3148
    %v3150 = vlaneseq
    %v3151 = vshrl.u32 %v3150, 7
    %v3152 = vsub.s32 %v3149, %v3151
    %v3153 = vrot.slane %v3145, %v3152
    %v3155 = vunpack.c.l.s4 1934713408
    %v3156 = vunpack.c.0.s8 %v3155
    %v3157 = vlaneseq
    %v3158 = vshrl.u32 %v3157, 7
    %v3159 = vsub.s32 %v3156, %v3158
    %v3160 = vrot.slane %v3146, %v3159
    %v3161 = vcombine.low %v3096, %v3112
    %v3162 = vcombine.high %v3096, %v3112
    %v3164 = vunpack.c.l.s4 1934713408
    %v3165 = vunpack.c.0.s8 %v3164
    %v3166 = vlaneseq
    %v3167 = vshrl.u32 %v3166, 7
    %v3168 = vsub.s32 %v3165, %v3167
    %v3169 = vrot.slane %v3161, %v3168
    %v3171 = vunpack.c.l.s4 1934713408
    %v3172 = vunpack.c.0.s8 %v3171
    %v3173 = vlaneseq
    %v3174 = vshrl.u32 %v3173, 7
    %v3175 = vsub.s32 %v3172, %v3174
    %v3176 = vrot.slane %v3162, %v3175
    %v3177 = vcombine.low %v3121, %v3153
    %v3178 = vcombine.high %v3121, %v3153
    %v3179 = vcombine.low %v3128, %v3160
    %v3180 = vcombine.high %v3128, %v3160
    %v3181 = vcombine.low %v3137, %v3169
    %v3182 = vcombine.high %v3137, %v3169
    %v3183 = vcombine.low %v3144, %v3176
    %v3184 = vcombine.high %v3144, %v3176
    %v3185 = vcombine.low %v416, %v2988
    %v3186 = vcombine.high %v416, %v2988
    %v3188 = vunpack.c.l.s4 1983009808
    %v3189 = vunpack.c.0.s8 %v3188
    %v3190 = vlaneseq
    %v3191 = vshrl.u32 %v3190, 7
    %v3192 = vsub.s32 %v3189, %v3191
    %v3193 = vrot.slane %v3185, %v3192
    %v3195 = vunpack.c.l.s4 1983009808
    %v3196 = vunpack.c.0.s8 %v3195
    %v3197 = vlaneseq
    %v3198 = vshrl.u32 %v3197, 7
    %v3199 = vsub.s32 %v3196, %v3198
    %v3200 = vrot.slane %v3186, %v3199
    %v3201 = vcombine.low %v2976, %v3000
    %v3202 = vcombine.high %v2976, %v3000
    %v3204 = vunpack.c.l.s4 1983009808
    %v3205 = vunpack.c.0.s8 %v3204
    %v3206 = vlaneseq
    %v3207 = vshrl.u32 %v3206, 7
    %v3208 = vsub.s32 %v3205, %v3207
    %v3209 = vrot.slane %v3201, %v3208
    %v3211 = vunpack.c.l.s4 1983009808
    %v3212 = vunpack.c.0.s8 %v3211
    %v3213 = vlaneseq
    %v3214 = vshrl.u32 %v3213, 7
    %v3215 = vsub.s32 %v3212, %v3214
    %v3216 = vrot.slane %v3202, %v3215
    %v3217 = vcombine.low %v418, %v3028
    %v3218 = vcombine.high %v418, %v3028
    %v3220 = vunpack.c.l.s4 1983009808
    %v3221 = vunpack.c.0.s8 %v3220
    %v3222 = vlaneseq
    %v3223 = vshrl.u32 %v3222, 7
    %v3224 = vsub.s32 %v3221, %v3223
    %v3225 = vrot.slane %v3217, %v3224
    %v3227 = vunpack.c.l.s4 1983009808
    %v3228 = vunpack.c.0.s8 %v3227
    %v3229 = vlaneseq
    %v3230 = vshrl.u32 %v3229, 7
    %v3231 = vsub.s32 %v3228, %v3230
    %v3232 = vrot.slane %v3218, %v3231
    %v3233 = vcombine.low %v3016, %v3040
    %v3234 = vcombine.high %v3016, %v3040
    %v3236 = vunpack.c.l.s4 1983009808
    %v3237 = vunpack.c.0.s8 %v3236
    %v3238 = vlaneseq
    %v3239 = vshrl.u32 %v3238, 7
    %v3240 = vsub.s32 %v3237, %v3239
    %v3241 = vrot.slane %v3233, %v3240
    %v3243 = vunpack.c.l.s4 1983009808
    %v3244 = vunpack.c.0.s8 %v3243
    %v3245 = vlaneseq
    %v3246 = vshrl.u32 %v3245, 7
    %v3247 = vsub.s32 %v3244, %v3246
    %v3248 = vrot.slane %v3234, %v3247
    %v3249 = vcombine.low %v3193, %v3209
    %v3250 = vcombine.high %v3193, %v3209
    %v3252 = vunpack.c.l.s4 1934713408
    %v3253 = vunpack.c.0.s8 %v3252
    %v3254 = vlaneseq
    %v3255 = vshrl.u32 %v3254, 7
    %v3256 = vsub.s32 %v3253, %v3255
    %v3257 = vrot.slane %v3249, %v3256
    %v3259 = vunpack.c.l.s4 1934713408
    %v3260 = vunpack.c.0.s8 %v3259
    %v3261 = vlaneseq
    %v3262 = vshrl.u32 %v3261, 7
    %v3263 = vsub.s32 %v3260, %v3262
    %v3264 = vrot.slane %v3250, %v3263
    %v3265 = vcombine.low %v3200, %v3216
    %v3266 = vcombine.high %v3200, %v3216
    %v3268 = vunpack.c.l.s4 1934713408
    %v3269 = vunpack.c.0.s8 %v3268
    %v3270 = vlaneseq
    %v3271 = vshrl.u32 %v3270, 7
    %v3272 = vsub.s32 %v3269, %v3271
    %v3273 = vrot.slane %v3265, %v3272
    %v3275 = vunpack.c.l.s4 1934713408
    %v3276 = vunpack.c.0.s8 %v3275
    %v3277 = vlaneseq
    %v3278 = vshrl.u32 %v3277, 7
    %v3279 = vsub.s32 %v3276, %v3278
    %v3280 = vrot.slane %v3266, %v3279
    %v3281 = vcombine.low %v3225, %v3241
    %v3282 = vcombine.high %v3225, %v3241
    %v3284 = vunpack.c.l.s4 1934713408
    %v3285 = vunpack.c.0.s8 %v3284
    %v3286 = vlaneseq
    %v3287 = vshrl.u32 %v3286, 7
    %v3288 = vsub.s32 %v3285, %v3287
    %v3289 = vrot.slane %v3281, %v3288
    %v3291 = vunpack.c.l.s4 1934713408
    %v3292 = vunpack.c.0.s8 %v3291
    %v3293 = vlaneseq
    %v3294 = vshrl.u32 %v3293, 7
    %v3295 = vsub.s32 %v3292, %v3294
    %v3296 = vrot.slane %v3282, %v3295
    %v3297 = vcombine.low %v3232, %v3248
    %v3298 = vcombine.high %v3232, %v3248
    %v3300 = vunpack.c.l.s4 1934713408
    %v3301 = vunpack.c.0.s8 %v3300
    %v3302 = vlaneseq
    %v3303 = vshrl.u32 %v3302, 7
    %v3304 = vsub.s32 %v3301, %v3303
    %v3305 = vrot.slane %v3297, %v3304
    %v3307 = vunpack.c.l.s4 1934713408
    %v3308 = vunpack.c.0.s8 %v3307
    %v3309 = vlaneseq
    %v3310 = vshrl.u32 %v3309, 7
    %v3311 = vsub.s32 %v3308, %v3310
    %v3312 = vrot.slane %v3298, %v3311
    %v3313 = vcombine.low %v3257, %v3289
    %v3314 = vcombine.high %v3257, %v3289
    %v3315 = vcombine.low %v3264, %v3296
    %v3316 = vcombine.high %v3264, %v3296
    %v3317 = vcombine.low %v3273, %v3305
    %v3318 = vcombine.high %v3273, %v3305
    %v3319 = vcombine.low %v3280, %v3312
    %v3320 = vcombine.high %v3280, %v3312
    %v3321 = vcombine.low %v422, %v2990
    %v3322 = vcombine.high %v422, %v2990
    %v3324 = vunpack.c.l.s4 1983009808
    %v3325 = vunpack.c.0.s8 %v3324
    %v3326 = vlaneseq
    %v3327 = vshrl.u32 %v3326, 7
    %v3328 = vsub.s32 %v3325, %v3327
    %v3329 = vrot.slane %v3321, %v3328
    %v3331 = vunpack.c.l.s4 1983009808
    %v3332 = vunpack.c.0.s8 %v3331
    %v3333 = vlaneseq
    %v3334 = vshrl.u32 %v3333, 7
    %v3335 = vsub.s32 %v3332, %v3334
    %v3336 = vrot.slane %v3322, %v3335
    %v3337 = vcombine.low %v2978, %v3002
    %v3338 = vcombine.high %v2978, %v3002
    %v3340 = vunpack.c.l.s4 1983009808
    %v3341 = vunpack.c.0.s8 %v3340
    %v3342 = vlaneseq
    %v3343 = vshrl.u32 %v3342, 7
    %v3344 = vsub.s32 %v3341, %v3343
    %v3345 = vrot.slane %v3337, %v3344
    %v3347 = vunpack.c.l.s4 1983009808
    %v3348 = vunpack.c.0.s8 %v3347
    %v3349 = vlaneseq
    %v3350 = vshrl.u32 %v3349, 7
    %v3351 = vsub.s32 %v3348, %v3350
    %v3352 = vrot.slane %v3338, %v3351
    %v3353 = vcombine.low %v424, %v3030
    %v3354 = vcombine.high %v424, %v3030
    %v3356 = vunpack.c.l.s4 1983009808
    %v3357 = vunpack.c.0.s8 %v3356
    %v3358 = vlaneseq
    %v3359 = vshrl.u32 %v3358, 7
    %v3360 = vsub.s32 %v3357, %v3359
    %v3361 = vrot.slane %v3353, %v3360
    %v3363 = vunpack.c.l.s4 1983009808
    %v3364 = vunpack.c.0.s8 %v3363
    %v3365 = vlaneseq
    %v3366 = vshrl.u32 %v3365, 7
    %v3367 = vsub.s32 %v3364, %v3366
    %v3368 = vrot.slane %v3354, %v3367
    %v3369 = vcombine.low %v3018, %v3042
    %v3370 = vcombine.high %v3018, %v3042
    %v3372 = vunpack.c.l.s4 1983009808
    %v3373 = vunpack.c.0.s8 %v3372
    %v3374 = vlaneseq
    %v3375 = vshrl.u32 %v3374, 7
    %v3376 = vsub.s32 %v3373, %v3375
    %v3377 = vrot.slane %v3369, %v3376
    %v3379 = vunpack.c.l.s4 1983009808
    %v3380 = vunpack.c.0.s8 %v3379
    %v3381 = vlaneseq
    %v3382 = vshrl.u32 %v3381, 7
    %v3383 = vsub.s32 %v3380, %v3382
    %v3384 = vrot.slane %v3370, %v3383
    %v3385 = vcombine.low %v3329, %v3345
    %v3386 = vcombine.high %v3329, %v3345
    %v3388 = vunpack.c.l.s4 1934713408
    %v3389 = vunpack.c.0.s8 %v3388
    %v3390 = vlaneseq
    %v3391 = vshrl.u32 %v3390, 7
    %v3392 = vsub.s32 %v3389, %v3391
    %v3393 = vrot.slane %v3385, %v3392
    %v3395 = vunpack.c.l.s4 1934713408
    %v3396 = vunpack.c.0.s8 %v3395
    %v3397 = vlaneseq
    %v3398 = vshrl.u32 %v3397, 7
    %v3399 = vsub.s32 %v3396, %v3398
    %v3400 = vrot.slane %v3386, %v3399
    %v3401 = vcombine.low %v3336, %v3352
    %v3402 = vcombine.high %v3336, %v3352
    %v3404 = vunpack.c.l.s4 1934713408
    %v3405 = vunpack.c.0.s8 %v3404
    %v3406 = vlaneseq
    %v3407 = vshrl.u32 %v3406, 7
    %v3408 = vsub.s32 %v3405, %v3407
    %v3409 = vrot.slane %v3401, %v3408
    %v3411 = vunpack.c.l.s4 1934713408
    %v3412 = vunpack.c.0.s8 %v3411
    %v3413 = vlaneseq
    %v3414 = vshrl.u32 %v3413, 7
    %v3415 = vsub.s32 %v3412, %v3414
    %v3416 = vrot.slane %v3402, %v3415
    %v3417 = vcombine.low %v3361, %v3377
    %v3418 = vcombine.high %v3361, %v3377
    %v3420 = vunpack.c.l.s4 1934713408
    %v3421 = vunpack.c.0.s8 %v3420
    %v3422 = vlaneseq
    %v3423 = vshrl.u32 %v3422, 7
    %v3424 = vsub.s32 %v3421, %v3423
    %v3425 = vrot.slane %v3417, %v3424
    %v3427 = vunpack.c.l.s4 1934713408
    %v3428 = vunpack.c.0.s8 %v3427
    %v3429 = vlaneseq
    %v3430 = vshrl.u32 %v3429, 7
    %v3431 = vsub.s32 %v3428, %v3430
    %v3432 = vrot.slane %v3418, %v3431
    %v3433 = vcombine.low %v3368, %v3384
    %v3434 = vcombine.high %v3368, %v3384
    %v3436 = vunpack.c.l.s4 1934713408
    %v3437 = vunpack.c.0.s8 %v3436
    %v3438 = vlaneseq
    %v3439 = vshrl.u32 %v3438, 7
    %v3440 = vsub.s32 %v3437, %v3439
    %v3441 = vrot.slane %v3433, %v3440
    %v3443 = vunpack.c.l.s4 1934713408
    %v3444 = vunpack.c.0.s8 %v3443
    %v3445 = vlaneseq
    %v3446 = vshrl.u32 %v3445, 7
    %v3447 = vsub.s32 %v3444, %v3446
    %v3448 = vrot.slane %v3434, %v3447
    %v3449 = vcombine.low %v3393, %v3425
    %v3450 = vcombine.high %v3393, %v3425
    %v3451 = vcombine.low %v3400, %v3432
    %v3452 = vcombine.high %v3400, %v3432
    %v3453 = vcombine.low %v3409, %v3441
    %v3454 = vcombine.high %v3409, %v3441
    %v3455 = vcombine.low %v3416, %v3448
    %v3456 = vcombine.high %v3416, %v3448
    %v3457 = vcombine.low %v426, %v2992
    %v3458 = vcombine.high %v426, %v2992
    %v3460 = vunpack.c.l.s4 1983009808
    %v3461 = vunpack.c.0.s8 %v3460
    %v3462 = vlaneseq
    %v3463 = vshrl.u32 %v3462, 7
    %v3464 = vsub.s32 %v3461, %v3463
    %v3465 = vrot.slane %v3457, %v3464
    %v3467 = vunpack.c.l.s4 1983009808
    %v3468 = vunpack.c.0.s8 %v3467
    %v3469 = vlaneseq
    %v3470 = vshrl.u32 %v3469, 7
    %v3471 = vsub.s32 %v3468, %v3470
    %v3472 = vrot.slane %v3458, %v3471
    %v3473 = vcombine.low %v2980, %v3004
    %v3474 = vcombine.high %v2980, %v3004
    %v3476 = vunpack.c.l.s4 1983009808
    %v3477 = vunpack.c.0.s8 %v3476
    %v3478 = vlaneseq
    %v3479 = vshrl.u32 %v3478, 7
    %v3480 = vsub.s32 %v3477, %v3479
    %v3481 = vrot.slane %v3473, %v3480
    %v3483 = vunpack.c.l.s4 1983009808
    %v3484 = vunpack.c.0.s8 %v3483
    %v3485 = vlaneseq
    %v3486 = vshrl.u32 %v3485, 7
    %v3487 = vsub.s32 %v3484, %v3486
    %v3488 = vrot.slane %v3474, %v3487
    %v3489 = vcombine.low %v428, %v3032
    %v3490 = vcombine.high %v428, %v3032
    %v3492 = vunpack.c.l.s4 1983009808
    %v3493 = vunpack.c.0.s8 %v3492
    %v3494 = vlaneseq
    %v3495 = vshrl.u32 %v3494, 7
    %v3496 = vsub.s32 %v3493, %v3495
    %v3497 = vrot.slane %v3489, %v3496
    %v3499 = vunpack.c.l.s4 1983009808
    %v3500 = vunpack.c.0.s8 %v3499
    %v3501 = vlaneseq
    %v3502 = vshrl.u32 %v3501, 7
    %v3503 = vsub.s32 %v3500, %v3502
    %v3504 = vrot.slane %v3490, %v3503
    %v3505 = vcombine.low %v3020, %v3044
    %v3506 = vcombine.high %v3020, %v3044
    %v3508 = vunpack.c.l.s4 1983009808
    %v3509 = vunpack.c.0.s8 %v3508
    %v3510 = vlaneseq
    %v3511 = vshrl.u32 %v3510, 7
    %v3512 = vsub.s32 %v3509, %v3511
    %v3513 = vrot.slane %v3505, %v3512
    %v3515 = vunpack.c.l.s4 1983009808
    %v3516 = vunpack.c.0.s8 %v3515
    %v3517 = vlaneseq
    %v3518 = vshrl.u32 %v3517, 7
    %v3519 = vsub.s32 %v3516, %v3518
    %v3520 = vrot.slane %v3506, %v3519
    %v3521 = vcombine.low %v3465, %v3481
    %v3522 = vcombine.high %v3465, %v3481
    %v3524 = vunpack.c.l.s4 1934713408
    %v3525 = vunpack.c.0.s8 %v3524
    %v3526 = vlaneseq
    %v3527 = vshrl.u32 %v3526, 7
    %v3528 = vsub.s32 %v3525, %v3527
    %v3529 = vrot.slane %v3521, %v3528
    %v3531 = vunpack.c.l.s4 1934713408
    %v3532 = vunpack.c.0.s8 %v3531
    %v3533 = vlaneseq
    %v3534 = vshrl.u32 %v3533, 7
    %v3535 = vsub.s32 %v3532, %v3534
    %v3536 = vrot.slane %v3522, %v3535
    %v3537 = vcombine.low %v3472, %v3488
    %v3538 = vcombine.high %v3472, %v3488
    %v3540 = vunpack.c.l.s4 1934713408
    %v3541 = vunpack.c.0.s8 %v3540
    %v3542 = vlaneseq
    %v3543 = vshrl.u32 %v3542, 7
    %v3544 = vsub.s32 %v3541, %v3543
    %v3545 = vrot.slane %v3537, %v3544
    %v3547 = vunpack.c.l.s4 1934713408
    %v3548 = vunpack.c.0.s8 %v3547
    %v3549 = vlaneseq
    %v3550 = vshrl.u32 %v3549, 7
    %v3551 = vsub.s32 %v3548, %v3550
    %v3552 = vrot.slane %v3538, %v3551
    %v3553 = vcombine.low %v3497, %v3513
    %v3554 = vcombine.high %v3497, %v3513
    %v3556 = vunpack.c.l.s4 1934713408
    %v3557 = vunpack.c.0.s8 %v3556
    %v3558 = vlaneseq
    %v3559 = vshrl.u32 %v3558, 7
    %v3560 = vsub.s32 %v3557, %v3559
    %v3561 = vrot.slane %v3553, %v3560
    %v3563 = vunpack.c.l.s4 1934713408
    %v3564 = vunpack.c.0.s8 %v3563
    %v3565 = vlaneseq
    %v3566 = vshrl.u32 %v3565, 7
    %v3567 = vsub.s32 %v3564, %v3566
    %v3568 = vrot.slane %v3554, %v3567
    %v3569 = vcombine.low %v3504, %v3520
    %v3570 = vcombine.high %v3504, %v3520
    %v3572 = vunpack.c.l.s4 1934713408
    %v3573 = vunpack.c.0.s8 %v3572
    %v3574 = vlaneseq
    %v3575 = vshrl.u32 %v3574, 7
    %v3576 = vsub.s32 %v3573, %v3575
    %v3577 = vrot.slane %v3569, %v3576
    %v3579 = vunpack.c.l.s4 1934713408
    %v3580 = vunpack.c.0.s8 %v3579
    %v3581 = vlaneseq
    %v3582 = vshrl.u32 %v3581, 7
    %v3583 = vsub.s32 %v3580, %v3582
    %v3584 = vrot.slane %v3570, %v3583
    %v3585 = vcombine.low %v3529, %v3561
    %v3586 = vcombine.high %v3529, %v3561
    %v3587 = vcombine.low %v3536, %v3568
    %v3588 = vcombine.high %v3536, %v3568
    %v3589 = vcombine.low %v3545, %v3577
    %v3590 = vcombine.high %v3545, %v3577
    %v3591 = vcombine.low %v3552, %v3584
    %v3592 = vcombine.high %v3552, %v3584
    %v3593 = vld [vmem:[%s16] sm:$0xf]
    %v3594 = vld [vmem:[%s16 + $0x4] sm:$0xf]
    %v3595 = vld [vmem:[%s16 + $0x8] sm:$0xf]
    %v3596 = vld [vmem:[%s16 + $0xc] sm:$0xf]
    %v3597 = vld [vmem:[%s16 + $0x10] sm:$0xf]
    %v3598 = vld [vmem:[%s16 + $0x14] sm:$0xf]
    %v3599 = vld [vmem:[%s16 + $0x18] sm:$0xf]
    %v3600 = vld [vmem:[%s16 + $0x1c] sm:$0xf]
    %v3601 = vld [vmem:[%s16 + $0x20] sm:$0xf]
    %v3602 = vld [vmem:[%s16 + $0x24] sm:$0xf]
    %v3603 = vld [vmem:[%s16 + $0x28] sm:$0xf]
    %v3604 = vld [vmem:[%s16 + $0x2c] sm:$0xf]
    %v3605 = vld [vmem:[%s16 + $0x30] sm:$0xf]
    %v3606 = vld [vmem:[%s16 + $0x34] sm:$0xf]
    %v3607 = vld [vmem:[%s16 + $0x38] sm:$0xf]
    %v3608 = vld [vmem:[%s16 + $0x3c] sm:$0xf]
    %v3609 = vpack.c.bf16 %v2873, %v2873
    %v3610 = vpack.c.bf16 %v2897, %v2897
    %v3611 = vpack.c.bf16 %v2880, %v2880
    %v3612 = vpack.c.bf16 %v2898, %v2898
    %v3613 = vpack.c.bf16 %v2889, %v2889
    %v3614 = vpack.c.bf16 %v2899, %v2899
    %v3615 = vpack.c.bf16 %v2896, %v2896
    %v3616 = vpack.c.bf16 %v2900, %v2900
    %v3617 = vpack.c.bf16 %v2941, %v2941
    %v3618 = vpack.c.bf16 %v2965, %v2965
    %v3619 = vpack.c.bf16 %v2948, %v2948
    %v3620 = vpack.c.bf16 %v2966, %v2966
    %v3621 = vpack.c.bf16 %v2957, %v2957
    %v3622 = vpack.c.bf16 %v2967, %v2967
    %v3623 = vpack.c.bf16 %v2964, %v2964
    %v3624 = vpack.c.bf16 %v2968, %v2968
    %v3625 = vpack.c.bf16 %v3177, %v3177
    %v3626 = vpack.c.bf16 %v3178, %v3178
    %v3627 = vpack.c.bf16 %v3179, %v3179
    %v3628 = vpack.c.bf16 %v3180, %v3180
    %v3629 = vpack.c.bf16 %v3181, %v3181
    %v3630 = vpack.c.bf16 %v3182, %v3182
    %v3631 = vpack.c.bf16 %v3183, %v3183
    %v3632 = vpack.c.bf16 %v3184, %v3184
    %v3633 = vpack.c.bf16 %v3313, %v3313
    %v3634 = vpack.c.bf16 %v3314, %v3314
    %v3635 = vpack.c.bf16 %v3315, %v3315
    %v3636 = vpack.c.bf16 %v3316, %v3316
    %v3637 = vpack.c.bf16 %v3317, %v3317
    %v3638 = vpack.c.bf16 %v3318, %v3318
    %v3639 = vpack.c.bf16 %v3319, %v3319
    %v3640 = vpack.c.bf16 %v3320, %v3320
    %v3641 = vpack.c.bf16 %v3449, %v3449
    %v3642 = vpack.c.bf16 %v3450, %v3450
    %v3643 = vpack.c.bf16 %v3451, %v3451
    %v3644 = vpack.c.bf16 %v3452, %v3452
    %v3645 = vpack.c.bf16 %v3453, %v3453
    %v3646 = vpack.c.bf16 %v3454, %v3454
    %v3647 = vpack.c.bf16 %v3455, %v3455
    %v3648 = vpack.c.bf16 %v3456, %v3456
    %v3649 = vpack.c.bf16 %v3585, %v3585
    %v3650 = vpack.c.bf16 %v3586, %v3586
    %v3651 = vpack.c.bf16 %v3587, %v3587
    %v3652 = vpack.c.bf16 %v3588, %v3588
    %v3653 = vpack.c.bf16 %v3589, %v3589
    %v3654 = vpack.c.bf16 %v3590, %v3590
    %v3655 = vpack.c.bf16 %v3591, %v3591
    %v3656 = vpack.c.bf16 %v3592, %v3592
    %v3665 = vunpack.c.l.b16 %v3609
    %v3666 = vunpack.c.l.b16 %v3610
    %v3667 = vunpack.c.l.b16 %v3611
    %v3668 = vunpack.c.l.b16 %v3612
    %v3669 = vunpack.c.l.b16 %v3613
    %v3670 = vunpack.c.l.b16 %v3614
    %v3671 = vunpack.c.l.b16 %v3615
    %v3672 = vunpack.c.l.b16 %v3616
    %v3673 = vrot.slane %v3666, 7
    %v3674 = vsel %vm1278, %v3673, %v3665
    %v3675 = vrot.slane %v3667, 6
    %v3676 = vsel %vm1281, %v3675, %v3674
    %v3677 = vrot.slane %v3668, 5
    %v3678 = vsel %vm1284, %v3677, %v3676
    %v3679 = vrot.slane %v3669, 4
    %v3680 = vsel %vm1287, %v3679, %v3678
    %v3681 = vrot.slane %v3670, 3
    %v3682 = vsel %vm1290, %v3681, %v3680
    %v3683 = vrot.slane %v3671, 2
    %v3684 = vsel %vm1293, %v3683, %v3682
    %v3685 = vrot.slane %v3672, 1
    %v3686 = vsel %vm1296, %v3685, %v3684
    %v3687 = vpack.c.b16 %v3686, %v3686
    %v3704 = vunpack.c.l.b16 %v3625
    %v3705 = vunpack.c.l.b16 %v3626
    %v3706 = vunpack.c.l.b16 %v3627
    %v3707 = vunpack.c.l.b16 %v3628
    %v3708 = vunpack.c.l.b16 %v3629
    %v3709 = vunpack.c.l.b16 %v3630
    %v3710 = vunpack.c.l.b16 %v3631
    %v3711 = vunpack.c.l.b16 %v3632
    %v3712 = vunpack.c.l.b16 %v3633
    %v3713 = vunpack.c.l.b16 %v3634
    %v3714 = vunpack.c.l.b16 %v3635
    %v3715 = vunpack.c.l.b16 %v3636
    %v3716 = vunpack.c.l.b16 %v3637
    %v3717 = vunpack.c.l.b16 %v3638
    %v3718 = vunpack.c.l.b16 %v3639
    %v3719 = vunpack.c.l.b16 %v3640
    %v3720 = vrot.slane %v3705, 7
    %v3721 = vsel %vm1278, %v3720, %v3704
    %v3722 = vrot.slane %v3706, 6
    %v3723 = vsel %vm1281, %v3722, %v3721
    %v3724 = vrot.slane %v3707, 5
    %v3725 = vsel %vm1284, %v3724, %v3723
    %v3726 = vrot.slane %v3708, 4
    %v3727 = vsel %vm1287, %v3726, %v3725
    %v3728 = vrot.slane %v3709, 3
    %v3729 = vsel %vm1290, %v3728, %v3727
    %v3730 = vrot.slane %v3710, 2
    %v3731 = vsel %vm1293, %v3730, %v3729
    %v3732 = vrot.slane %v3711, 1
    %v3733 = vsel %vm1296, %v3732, %v3731
    %v3734 = vrot.slane %v3713, 7
    %v3735 = vsel %vm1278, %v3734, %v3712
    %v3736 = vrot.slane %v3714, 6
    %v3737 = vsel %vm1281, %v3736, %v3735
    %v3738 = vrot.slane %v3715, 5
    %v3739 = vsel %vm1284, %v3738, %v3737
    %v3740 = vrot.slane %v3716, 4
    %v3741 = vsel %vm1287, %v3740, %v3739
    %v3742 = vrot.slane %v3717, 3
    %v3743 = vsel %vm1290, %v3742, %v3741
    %v3744 = vrot.slane %v3718, 2
    %v3745 = vsel %vm1293, %v3744, %v3743
    %v3746 = vrot.slane %v3719, 1
    %v3747 = vsel %vm1296, %v3746, %v3745
    %v3748 = vpack.c.b16 %v3747, %v3733
    %v3750 = vsel %vm1314, %v3687, 0
    %v3753 = vsel %vm1314, %v3748, 0
    %3755 = vmatprep.subr.bf16.mxu0 0
    %3756 = vmatpush1.bf16.xpose.msra.mxu0 %v3753
    %3757 = vmatprep.subr.bf16.mxu0 0
    %3758 = vmatpush1.bf16.xpose.msra.mxu0 0
    %3759 = vmatprep.subr.bf16.mxu0 0
    %3760 = vmatpush1.bf16.xpose.msra.mxu0 0
    %3761 = vmatprep.subr.bf16.mxu0 0
    %3762 = vmatpush1.bf16.xpose.msra.mxu0 0
    %3763 = vmatprep.subr.bf16.mxu0 0
    %3764 = vmatpush1.bf16.xpose.msra.mxu0 0
    %3765 = vmatprep.subr.bf16.mxu0 0
    %3766 = vmatpush1.bf16.xpose.msra.mxu0 0
    %3767 = vmatprep.subr.bf16.mxu0 0
    %3768 = vmatpush1.bf16.xpose.msra.mxu0 0
    %3769 = vmatprep.subr.bf16.mxu0 0
    %3770 = vmatpush1.bf16.xpose.msra.mxu0 0
    %3771 = vmatprep.subr.bf16.mxu0 0
    %3772 = vmatpush1.bf16.xpose.msra.mxu0 0
    %3773 = vmatprep.subr.bf16.mxu0 0
    %3774 = vmatpush1.bf16.xpose.msra.mxu0 0
    %3775 = vmatprep.subr.bf16.mxu0 0
    %3776 = vmatpush1.bf16.xpose.msra.mxu0 0
    %3777 = vmatprep.subr.bf16.mxu0 0
    %3778 = vmatpush1.bf16.xpose.msra.mxu0 0
    %3779 = vmatprep.subr.bf16.mxu0 0
    %3780 = vmatpush1.bf16.xpose.msra.mxu0 0
    %3781 = vmatprep.subr.bf16.mxu0 0
    %3782 = vmatpush1.bf16.xpose.msra.mxu0 0
    %3783 = vmatprep.subr.bf16.mxu0 0
    %3784 = vmatpush1.bf16.xpose.msra.mxu0 0
    %3785 = vmatprep.subr.bf16.mxu0 0
    %3786 = vmatpush1.bf16.xpose.msra.mxu0 0
    %3787 = vmatprep.mubr.bf16.mxu0 0
    %3788 = vmatmul.mubr.bf16.gmra.mrb[0].mxu0 %v3750
    %v3789 = vpop.f32.mrb[0].mxu0
    %v3790 = vadd.f32 0.0, %v3789
    %v3791 = vpop.f32.mrb[0].mxu0
    %v3792 = vpop.f32.mrb[0].mxu0
    %v3793 = vpop.f32.mrb[0].mxu0
    %3794 = vdwg.mxu0
    %v3803 = vunpack.c.l.b16 %v3617
    %v3804 = vunpack.c.l.b16 %v3618
    %v3805 = vunpack.c.l.b16 %v3619
    %v3806 = vunpack.c.l.b16 %v3620
    %v3807 = vunpack.c.l.b16 %v3621
    %v3808 = vunpack.c.l.b16 %v3622
    %v3809 = vunpack.c.l.b16 %v3623
    %v3810 = vunpack.c.l.b16 %v3624
    %v3811 = vrot.slane %v3804, 7
    %v3812 = vsel %vm1278, %v3811, %v3803
    %v3813 = vrot.slane %v3805, 6
    %v3814 = vsel %vm1281, %v3813, %v3812
    %v3815 = vrot.slane %v3806, 5
    %v3816 = vsel %vm1284, %v3815, %v3814
    %v3817 = vrot.slane %v3807, 4
    %v3818 = vsel %vm1287, %v3817, %v3816
    %v3819 = vrot.slane %v3808, 3
    %v3820 = vsel %vm1290, %v3819, %v3818
    %v3821 = vrot.slane %v3809, 2
    %v3822 = vsel %vm1293, %v3821, %v3820
    %v3823 = vrot.slane %v3810, 1
    %v3824 = vsel %vm1296, %v3823, %v3822
    %v3825 = vpack.c.b16 %v3824, %v3824
    %v3842 = vunpack.c.l.b16 %v3641
    %v3843 = vunpack.c.l.b16 %v3642
    %v3844 = vunpack.c.l.b16 %v3643
    %v3845 = vunpack.c.l.b16 %v3644
    %v3846 = vunpack.c.l.b16 %v3645
    %v3847 = vunpack.c.l.b16 %v3646
    %v3848 = vunpack.c.l.b16 %v3647
    %v3849 = vunpack.c.l.b16 %v3648
    %v3850 = vunpack.c.l.b16 %v3649
    %v3851 = vunpack.c.l.b16 %v3650
    %v3852 = vunpack.c.l.b16 %v3651
    %v3853 = vunpack.c.l.b16 %v3652
    %v3854 = vunpack.c.l.b16 %v3653
    %v3855 = vunpack.c.l.b16 %v3654
    %v3856 = vunpack.c.l.b16 %v3655
    %v3857 = vunpack.c.l.b16 %v3656
    %v3858 = vrot.slane %v3843, 7
    %v3859 = vsel %vm1278, %v3858, %v3842
    %v3860 = vrot.slane %v3844, 6
    %v3861 = vsel %vm1281, %v3860, %v3859
    %v3862 = vrot.slane %v3845, 5
    %v3863 = vsel %vm1284, %v3862, %v3861
    %v3864 = vrot.slane %v3846, 4
    %v3865 = vsel %vm1287, %v3864, %v3863
    %v3866 = vrot.slane %v3847, 3
    %v3867 = vsel %vm1290, %v3866, %v3865
    %v3868 = vrot.slane %v3848, 2
    %v3869 = vsel %vm1293, %v3868, %v3867
    %v3870 = vrot.slane %v3849, 1
    %v3871 = vsel %vm1296, %v3870, %v3869
    %v3872 = vrot.slane %v3851, 7
    %v3873 = vsel %vm1278, %v3872, %v3850
    %v3874 = vrot.slane %v3852, 6
    %v3875 = vsel %vm1281, %v3874, %v3873
    %v3876 = vrot.slane %v3853, 5
    %v3877 = vsel %vm1284, %v3876, %v3875
    %v3878 = vrot.slane %v3854, 4
    %v3879 = vsel %vm1287, %v3878, %v3877
    %v3880 = vrot.slane %v3855, 3
    %v3881 = vsel %vm1290, %v3880, %v3879
    %v3882 = vrot.slane %v3856, 2
    %v3883 = vsel %vm1293, %v3882, %v3881
    %v3884 = vrot.slane %v3857, 1
    %v3885 = vsel %vm1296, %v3884, %v3883
    %v3886 = vpack.c.b16 %v3885, %v3871
    %v3888 = vsel %vm1314, %v3825, 0
    %v3891 = vsel %vm1314, %v3886, 0
    %3893 = vmatprep.subr.bf16.mxu0 0
    %3894 = vmatpush1.bf16.xpose.msra.mxu0 %v3891
    %3895 = vmatprep.subr.bf16.mxu0 0
    %3896 = vmatpush1.bf16.xpose.msra.mxu0 0
    %3897 = vmatprep.subr.bf16.mxu0 0
    %3898 = vmatpush1.bf16.xpose.msra.mxu0 0
    %3899 = vmatprep.subr.bf16.mxu0 0
    %3900 = vmatpush1.bf16.xpose.msra.mxu0 0
    %3901 = vmatprep.subr.bf16.mxu0 0
    %3902 = vmatpush1.bf16.xpose.msra.mxu0 0
    %3903 = vmatprep.subr.bf16.mxu0 0
    %3904 = vmatpush1.bf16.xpose.msra.mxu0 0
    %3905 = vmatprep.subr.bf16.mxu0 0
    %3906 = vmatpush1.bf16.xpose.msra.mxu0 0
    %3907 = vmatprep.subr.bf16.mxu0 0
    %3908 = vmatpush1.bf16.xpose.msra.mxu0 0
    %3909 = vmatprep.subr.bf16.mxu0 0
    %3910 = vmatpush1.bf16.xpose.msra.mxu0 0
    %3911 = vmatprep.subr.bf16.mxu0 0
    %3912 = vmatpush1.bf16.xpose.msra.mxu0 0
    %3913 = vmatprep.subr.bf16.mxu0 0
    %3914 = vmatpush1.bf16.xpose.msra.mxu0 0
    %3915 = vmatprep.subr.bf16.mxu0 0
    %3916 = vmatpush1.bf16.xpose.msra.mxu0 0
    %3917 = vmatprep.subr.bf16.mxu0 0
    %3918 = vmatpush1.bf16.xpose.msra.mxu0 0
    %3919 = vmatprep.subr.bf16.mxu0 0
    %3920 = vmatpush1.bf16.xpose.msra.mxu0 0
    %3921 = vmatprep.subr.bf16.mxu0 0
    %3922 = vmatpush1.bf16.xpose.msra.mxu0 0
    %3923 = vmatprep.subr.bf16.mxu0 0
    %3924 = vmatpush1.bf16.xpose.msra.mxu0 0
    %3925 = vmatprep.mubr.bf16.mxu0 0
    %3926 = vmatmul.mubr.bf16.gmra.mrb[0].mxu0 %v3888
    %v3927 = vpop.f32.mrb[0].mxu0
    %v3928 = vadd.f32 0.0, %v3927
    %v3929 = vpop.f32.mrb[0].mxu0
    %v3930 = vpop.f32.mrb[0].mxu0
    %v3931 = vpop.f32.mrb[0].mxu0
    %3932 = vdwg.mxu0
    %vm3933 = vcmask 130048
    %v3934 = vsel %vm3933, %v3790, -inf
    %3935 = vmax.xlane.f32.xlu0 %v3934
    %v3936 = vpop.xlane.xlu0 %3935
    %v3937 = vsel %vm3933, %v3928, -inf
    %3938 = vmax.xlane.f32.xlu0 %v3937
    %v3939 = vpop.xlane.xlu0 %3938
    %v3940 = vsub.f32 %v3790, %v3936
    %v3941 = vsub.f32 %v3928, %v3939
    %v3942 = vmul.f32 %v3940, 1.442695
    %v3943 = vpow.pop %v3942
    %v3944 = vmul.f32 %v3941, 1.442695
    %v3945 = vpow.pop %v3944
    %v3946 = vsel %vm3933, %v3943, 0.0
    %3947 = vadd.xlane.f32.xlu0 %v3946
    %v3948 = vpop.xlane.xlu0 %3947
    %v3949 = vsel %vm3933, %v3945, 0.0
    %3950 = vadd.xlane.f32.xlu0 %v3949
    %v3951 = vpop.xlane.xlu0 %3950
    %v3952 = vrcp.pop %v3948
    %v3953 = vrcp.pop %v3951
    %v3954 = vmul.f32 %v3943, %v3952
    %v3955 = vmul.f32 %v3945, %v3953
    %v3956 = vpack.c.bf16 %v3954, %v3954
    %v3957 = vpack.c.bf16 %v3955, %v3955
    %v3958 = vrot.slane %v3704, 4
    %v3959 = vrot.slane %v3705, 3
    %v3960 = vsel %vm1278, %v3959, %v3958
    %v3961 = vrot.slane %v3706, 2
    %v3962 = vsel %vm1281, %v3961, %v3960
    %v3963 = vrot.slane %v3707, 1
    %v3964 = vsel %vm1284, %v3963, %v3962
    %v3965 = vsel %vm1287, %v3708, %v3964
    %v3966 = vrot.slane %v3709, 7
    %v3967 = vsel %vm1290, %v3966, %v3965
    %v3968 = vrot.slane %v3710, 6
    %v3969 = vsel %vm1293, %v3968, %v3967
    %v3970 = vrot.slane %v3711, 5
    %v3971 = vsel %vm1296, %v3970, %v3969
    %v3972 = vrot.slane %v3712, 4
    %v3973 = vrot.slane %v3713, 3
    %v3974 = vsel %vm1278, %v3973, %v3972
    %v3975 = vrot.slane %v3714, 2
    %v3976 = vsel %vm1281, %v3975, %v3974
    %v3977 = vrot.slane %v3715, 1
    %v3978 = vsel %vm1284, %v3977, %v3976
    %v3979 = vsel %vm1287, %v3716, %v3978
    %v3980 = vrot.slane %v3717, 7
    %v3981 = vsel %vm1290, %v3980, %v3979
    %v3982 = vrot.slane %v3718, 6
    %v3983 = vsel %vm1293, %v3982, %v3981
    %v3984 = vrot.slane %v3719, 5
    %v3985 = vsel %vm1296, %v3984, %v3983
    %v3986 = vpack.c.b16 %v3985, %v3971
    %v3989 = vsel %vm3933, %v3956, 0
    %3991 = vmatprep.subr.bf16.mxu0 0
    %3992 = vmatpush1.bf16.msra.mxu0 %v3986
    %3993 = vmatprep.subr.bf16.mxu0 0
    %3994 = vmatpush1.bf16.msra.mxu0 0
    %3995 = vmatprep.subr.bf16.mxu0 0
    %3996 = vmatpush1.bf16.msra.mxu0 0
    %3997 = vmatprep.subr.bf16.mxu0 0
    %3998 = vmatpush1.bf16.msra.mxu0 0
    %3999 = vmatprep.subr.bf16.mxu0 0
    %4000 = vmatpush1.bf16.msra.mxu0 0
    %4001 = vmatprep.subr.bf16.mxu0 0
    %4002 = vmatpush1.bf16.msra.mxu0 0
    %4003 = vmatprep.subr.bf16.mxu0 0
    %4004 = vmatpush1.bf16.msra.mxu0 0
    %4005 = vmatprep.subr.bf16.mxu0 0
    %4006 = vmatpush1.bf16.msra.mxu0 0
    %4007 = vmatprep.subr.bf16.mxu0 0
    %4008 = vmatpush1.bf16.msra.mxu0 0
    %4009 = vmatprep.subr.bf16.mxu0 0
    %4010 = vmatpush1.bf16.msra.mxu0 0
    %4011 = vmatprep.subr.bf16.mxu0 0
    %4012 = vmatpush1.bf16.msra.mxu0 0
    %4013 = vmatprep.subr.bf16.mxu0 0
    %4014 = vmatpush1.bf16.msra.mxu0 0
    %4015 = vmatprep.subr.bf16.mxu0 0
    %4016 = vmatpush1.bf16.msra.mxu0 0
    %4017 = vmatprep.subr.bf16.mxu0 0
    %4018 = vmatpush1.bf16.msra.mxu0 0
    %4019 = vmatprep.subr.bf16.mxu0 0
    %4020 = vmatpush1.bf16.msra.mxu0 0
    %4021 = vmatprep.subr.bf16.mxu0 0
    %4022 = vmatpush1.bf16.msra.mxu0 0
    %4023 = vmatprep.mubr.bf16.mxu0 0
    %4024 = vmatmul.mubr.bf16.gmra.mrb[0].mxu0 %v3989
    %v4025 = vpop.f32.mrb[0].mxu0
    %v4026 = vadd.f32 0.0, %v4025
    %v4027 = vpop.f32.mrb[0].mxu0
    %v4028 = vpop.f32.mrb[0].mxu0
    %v4029 = vpop.f32.mrb[0].mxu0
    %4030 = vdwg.mxu0
    %v4031 = vrot.slane %v3842, 4
    %v4032 = vrot.slane %v3843, 3
    %v4033 = vsel %vm1278, %v4032, %v4031
    %v4034 = vrot.slane %v3844, 2
    %v4035 = vsel %vm1281, %v4034, %v4033
    %v4036 = vrot.slane %v3845, 1
    %v4037 = vsel %vm1284, %v4036, %v4035
    %v4038 = vsel %vm1287, %v3846, %v4037
    %v4039 = vrot.slane %v3847, 7
    %v4040 = vsel %vm1290, %v4039, %v4038
    %v4041 = vrot.slane %v3848, 6
    %v4042 = vsel %vm1293, %v4041, %v4040
    %v4043 = vrot.slane %v3849, 5
    %v4044 = vsel %vm1296, %v4043, %v4042
    %v4045 = vrot.slane %v3850, 4
    %v4046 = vrot.slane %v3851, 3
    %v4047 = vsel %vm1278, %v4046, %v4045
    %v4048 = vrot.slane %v3852, 2
    %v4049 = vsel %vm1281, %v4048, %v4047
    %v4050 = vrot.slane %v3853, 1
    %v4051 = vsel %vm1284, %v4050, %v4049
    %v4052 = vsel %vm1287, %v3854, %v4051
    %v4053 = vrot.slane %v3855, 7
    %v4054 = vsel %vm1290, %v4053, %v4052
    %v4055 = vrot.slane %v3856, 6
    %v4056 = vsel %vm1293, %v4055, %v4054
    %v4057 = vrot.slane %v3857, 5
    %v4058 = vsel %vm1296, %v4057, %v4056
    %v4059 = vpack.c.b16 %v4058, %v4044
    %v4062 = vsel %vm3933, %v3957, 0
    %4064 = vmatprep.subr.bf16.mxu0 0
    %4065 = vmatpush1.bf16.msra.mxu0 %v4059
    %4066 = vmatprep.subr.bf16.mxu0 0
    %4067 = vmatpush1.bf16.msra.mxu0 0
    %4068 = vmatprep.subr.bf16.mxu0 0
    %4069 = vmatpush1.bf16.msra.mxu0 0
    %4070 = vmatprep.subr.bf16.mxu0 0
    %4071 = vmatpush1.bf16.msra.mxu0 0
    %4072 = vmatprep.subr.bf16.mxu0 0
    %4073 = vmatpush1.bf16.msra.mxu0 0
    %4074 = vmatprep.subr.bf16.mxu0 0
    %4075 = vmatpush1.bf16.msra.mxu0 0
    %4076 = vmatprep.subr.bf16.mxu0 0
    %4077 = vmatpush1.bf16.msra.mxu0 0
    %4078 = vmatprep.subr.bf16.mxu0 0
    %4079 = vmatpush1.bf16.msra.mxu0 0
    %4080 = vmatprep.subr.bf16.mxu0 0
    %4081 = vmatpush1.bf16.msra.mxu0 0
    %4082 = vmatprep.subr.bf16.mxu0 0
    %4083 = vmatpush1.bf16.msra.mxu0 0
    %4084 = vmatprep.subr.bf16.mxu0 0
    %4085 = vmatpush1.bf16.msra.mxu0 0
    %4086 = vmatprep.subr.bf16.mxu0 0
    %4087 = vmatpush1.bf16.msra.mxu0 0
    %4088 = vmatprep.subr.bf16.mxu0 0
    %4089 = vmatpush1.bf16.msra.mxu0 0
    %4090 = vmatprep.subr.bf16.mxu0 0
    %4091 = vmatpush1.bf16.msra.mxu0 0
    %4092 = vmatprep.subr.bf16.mxu0 0
    %4093 = vmatpush1.bf16.msra.mxu0 0
    %4094 = vmatprep.subr.bf16.mxu0 0
    %4095 = vmatpush1.bf16.msra.mxu0 0
    %4096 = vmatprep.mubr.bf16.mxu0 0
    %4097 = vmatmul.mubr.bf16.gmra.mrb[0].mxu0 %v4062
    %v4098 = vpop.f32.mrb[0].mxu0
    %v4099 = vadd.f32 0.0, %v4098
    %v4100 = vpop.f32.mrb[0].mxu0
    %v4101 = vpop.f32.mrb[0].mxu0
    %v4102 = vpop.f32.mrb[0].mxu0
    %4103 = vdwg.mxu0
    %v4104 = vrot.slane %v3665, 1
    %v4105 = vsel %vm1278, %v3666, %v4104
    %v4106 = vrot.slane %v3667, 7
    %v4107 = vsel %vm1281, %v4106, %v4105
    %v4108 = vrot.slane %v3668, 6
    %v4109 = vsel %vm1284, %v4108, %v4107
    %v4110 = vrot.slane %v3669, 5
    %v4111 = vsel %vm1287, %v4110, %v4109
    %v4112 = vrot.slane %v3670, 4
    %v4113 = vsel %vm1290, %v4112, %v4111
    %v4114 = vrot.slane %v3671, 3
    %v4115 = vsel %vm1293, %v4114, %v4113
    %v4116 = vrot.slane %v3672, 2
    %v4117 = vsel %vm1296, %v4116, %v4115
    %v4118 = vpack.c.b16 %v4117, %v4117
    %v4119 = vrot.slane %v3704, 1
    %v4120 = vsel %vm1278, %v3705, %v4119
    %v4121 = vrot.slane %v3706, 7
    %v4122 = vsel %vm1281, %v4121, %v4120
    %v4123 = vrot.slane %v3707, 6
    %v4124 = vsel %vm1284, %v4123, %v4122
    %v4125 = vrot.slane %v3708, 5
    %v4126 = vsel %vm1287, %v4125, %v4124
    %v4127 = vrot.slane %v3709, 4
    %v4128 = vsel %vm1290, %v4127, %v4126
    %v4129 = vrot.slane %v3710, 3
    %v4130 = vsel %vm1293, %v4129, %v4128
    %v4131 = vrot.slane %v3711, 2
    %v4132 = vsel %vm1296, %v4131, %v4130
    %v4133 = vrot.slane %v3712, 1
    %v4134 = vsel %vm1278, %v3713, %v4133
    %v4135 = vrot.slane %v3714, 7
    %v4136 = vsel %vm1281, %v4135, %v4134
    %v4137 = vrot.slane %v3715, 6
    %v4138 = vsel %vm1284, %v4137, %v4136
    %v4139 = vrot.slane %v3716, 5
    %v4140 = vsel %vm1287, %v4139, %v4138
    %v4141 = vrot.slane %v3717, 4
    %v4142 = vsel %vm1290, %v4141, %v4140
    %v4143 = vrot.slane %v3718, 3
    %v4144 = vsel %vm1293, %v4143, %v4142
    %v4145 = vrot.slane %v3719, 2
    %v4146 = vsel %vm1296, %v4145, %v4144
    %v4147 = vpack.c.b16 %v4146, %v4132
    %v4149 = vsel %vm1314, %v4118, 0
    %v4152 = vsel %vm1314, %v4147, 0
    %4154 = vmatprep.subr.bf16.mxu0 0
    %4155 = vmatpush1.bf16.xpose.msra.mxu0 %v4152
    %4156 = vmatprep.subr.bf16.mxu0 0
    %4157 = vmatpush1.bf16.xpose.msra.mxu0 0
    %4158 = vmatprep.subr.bf16.mxu0 0
    %4159 = vmatpush1.bf16.xpose.msra.mxu0 0
    %4160 = vmatprep.subr.bf16.mxu0 0
    %4161 = vmatpush1.bf16.xpose.msra.mxu0 0
    %4162 = vmatprep.subr.bf16.mxu0 0
    %4163 = vmatpush1.bf16.xpose.msra.mxu0 0
    %4164 = vmatprep.subr.bf16.mxu0 0
    %4165 = vmatpush1.bf16.xpose.msra.mxu0 0
    %4166 = vmatprep.subr.bf16.mxu0 0
    %4167 = vmatpush1.bf16.xpose.msra.mxu0 0
    %4168 = vmatprep.subr.bf16.mxu0 0
    %4169 = vmatpush1.bf16.xpose.msra.mxu0 0
    %4170 = vmatprep.subr.bf16.mxu0 0
    %4171 = vmatpush1.bf16.xpose.msra.mxu0 0
    %4172 = vmatprep.subr.bf16.mxu0 0
    %4173 = vmatpush1.bf16.xpose.msra.mxu0 0
    %4174 = vmatprep.subr.bf16.mxu0 0
    %4175 = vmatpush1.bf16.xpose.msra.mxu0 0
    %4176 = vmatprep.subr.bf16.mxu0 0
    %4177 = vmatpush1.bf16.xpose.msra.mxu0 0
    %4178 = vmatprep.subr.bf16.mxu0 0
    %4179 = vmatpush1.bf16.xpose.msra.mxu0 0
    %4180 = vmatprep.subr.bf16.mxu0 0
    %4181 = vmatpush1.bf16.xpose.msra.mxu0 0
    %4182 = vmatprep.subr.bf16.mxu0 0
    %4183 = vmatpush1.bf16.xpose.msra.mxu0 0
    %4184 = vmatprep.subr.bf16.mxu0 0
    %4185 = vmatpush1.bf16.xpose.msra.mxu0 0
    %4186 = vmatprep.mubr.bf16.mxu0 0
    %4187 = vmatmul.mubr.bf16.gmra.mrb[0].mxu0 %v4149
    %v4188 = vpop.f32.mrb[0].mxu0
    %v4189 = vadd.f32 0.0, %v4188
    %v4190 = vpop.f32.mrb[0].mxu0
    %v4191 = vpop.f32.mrb[0].mxu0
    %v4192 = vpop.f32.mrb[0].mxu0
    %4193 = vdwg.mxu0
    %v4194 = vrot.slane %v3803, 1
    %v4195 = vsel %vm1278, %v3804, %v4194
    %v4196 = vrot.slane %v3805, 7
    %v4197 = vsel %vm1281, %v4196, %v4195
    %v4198 = vrot.slane %v3806, 6
    %v4199 = vsel %vm1284, %v4198, %v4197
    %v4200 = vrot.slane %v3807, 5
    %v4201 = vsel %vm1287, %v4200, %v4199
    %v4202 = vrot.slane %v3808, 4
    %v4203 = vsel %vm1290, %v4202, %v4201
    %v4204 = vrot.slane %v3809, 3
    %v4205 = vsel %vm1293, %v4204, %v4203
    %v4206 = vrot.slane %v3810, 2
    %v4207 = vsel %vm1296, %v4206, %v4205
    %v4208 = vpack.c.b16 %v4207, %v4207
    %v4209 = vrot.slane %v3842, 1
    %v4210 = vsel %vm1278, %v3843, %v4209
    %v4211 = vrot.slane %v3844, 7
    %v4212 = vsel %vm1281, %v4211, %v4210
    %v4213 = vrot.slane %v3845, 6
    %v4214 = vsel %vm1284, %v4213, %v4212
    %v4215 = vrot.slane %v3846, 5
    %v4216 = vsel %vm1287, %v4215, %v4214
    %v4217 = vrot.slane %v3847, 4
    %v4218 = vsel %vm1290, %v4217, %v4216
    %v4219 = vrot.slane %v3848, 3
    %v4220 = vsel %vm1293, %v4219, %v4218
    %v4221 = vrot.slane %v3849, 2
    %v4222 = vsel %vm1296, %v4221, %v4220
    %v4223 = vrot.slane %v3850, 1
    %v4224 = vsel %vm1278, %v3851, %v4223
    %v4225 = vrot.slane %v3852, 7
    %v4226 = vsel %vm1281, %v4225, %v4224
    %v4227 = vrot.slane %v3853, 6
    %v4228 = vsel %vm1284, %v4227, %v4226
    %v4229 = vrot.slane %v3854, 5
    %v4230 = vsel %vm1287, %v4229, %v4228
    %v4231 = vrot.slane %v3855, 4
    %v4232 = vsel %vm1290, %v4231, %v4230
    %v4233 = vrot.slane %v3856, 3
    %v4234 = vsel %vm1293, %v4233, %v4232
    %v4235 = vrot.slane %v3857, 2
    %v4236 = vsel %vm1296, %v4235, %v4234
    %v4237 = vpack.c.b16 %v4236, %v4222
    %v4239 = vsel %vm1314, %v4208, 0
    %v4242 = vsel %vm1314, %v4237, 0
    %4244 = vmatprep.subr.bf16.mxu0 0
    %4245 = vmatpush1.bf16.xpose.msra.mxu0 %v4242
    %4246 = vmatprep.subr.bf16.mxu0 0
    %4247 = vmatpush1.bf16.xpose.msra.mxu0 0
    %4248 = vmatprep.subr.bf16.mxu0 0
    %4249 = vmatpush1.bf16.xpose.msra.mxu0 0
    %4250 = vmatprep.subr.bf16.mxu0 0
    %4251 = vmatpush1.bf16.xpose.msra.mxu0 0
    %4252 = vmatprep.subr.bf16.mxu0 0
    %4253 = vmatpush1.bf16.xpose.msra.mxu0 0
    %4254 = vmatprep.subr.bf16.mxu0 0
    %4255 = vmatpush1.bf16.xpose.msra.mxu0 0
    %4256 = vmatprep.subr.bf16.mxu0 0
    %4257 = vmatpush1.bf16.xpose.msra.mxu0 0
    %4258 = vmatprep.subr.bf16.mxu0 0
    %4259 = vmatpush1.bf16.xpose.msra.mxu0 0
    %4260 = vmatprep.subr.bf16.mxu0 0
    %4261 = vmatpush1.bf16.xpose.msra.mxu0 0
    %4262 = vmatprep.subr.bf16.mxu0 0
    %4263 = vmatpush1.bf16.xpose.msra.mxu0 0
    %4264 = vmatprep.subr.bf16.mxu0 0
    %4265 = vmatpush1.bf16.xpose.msra.mxu0 0
    %4266 = vmatprep.subr.bf16.mxu0 0
    %4267 = vmatpush1.bf16.xpose.msra.mxu0 0
    %4268 = vmatprep.subr.bf16.mxu0 0
    %4269 = vmatpush1.bf16.xpose.msra.mxu0 0
    %4270 = vmatprep.subr.bf16.mxu0 0
    %4271 = vmatpush1.bf16.xpose.msra.mxu0 0
    %4272 = vmatprep.subr.bf16.mxu0 0
    %4273 = vmatpush1.bf16.xpose.msra.mxu0 0
    %4274 = vmatprep.subr.bf16.mxu0 0
    %4275 = vmatpush1.bf16.xpose.msra.mxu0 0
    %4276 = vmatprep.mubr.bf16.mxu0 0
    %4277 = vmatmul.mubr.bf16.gmra.mrb[0].mxu0 %v4239
    %v4278 = vpop.f32.mrb[0].mxu0
    %v4279 = vadd.f32 0.0, %v4278
    %v4280 = vpop.f32.mrb[0].mxu0
    %v4281 = vpop.f32.mrb[0].mxu0
    %v4282 = vpop.f32.mrb[0].mxu0
    %4283 = vdwg.mxu0
    %v4284 = vsel %vm3933, %v4189, -inf
    %4285 = vmax.xlane.f32.xlu0 %v4284
    %v4286 = vpop.xlane.xlu0 %4285
    %v4287 = vsel %vm3933, %v4279, -inf
    %4288 = vmax.xlane.f32.xlu0 %v4287
    %v4289 = vpop.xlane.xlu0 %4288
    %v4290 = vsub.f32 %v4189, %v4286
    %v4291 = vsub.f32 %v4279, %v4289
    %v4292 = vmul.f32 %v4290, 1.442695
    %v4293 = vpow.pop %v4292
    %v4294 = vmul.f32 %v4291, 1.442695
    %v4295 = vpow.pop %v4294
    %v4296 = vsel %vm3933, %v4293, 0.0
    %4297 = vadd.xlane.f32.xlu0 %v4296
    %v4298 = vpop.xlane.xlu0 %4297
    %v4299 = vsel %vm3933, %v4295, 0.0
    %4300 = vadd.xlane.f32.xlu0 %v4299
    %v4301 = vpop.xlane.xlu0 %4300
    %v4302 = vrcp.pop %v4298
    %v4303 = vrcp.pop %v4301
    %v4304 = vmul.f32 %v4293, %v4302
    %v4305 = vmul.f32 %v4295, %v4303
    %v4306 = vpack.c.bf16 %v4304, %v4304
    %v4307 = vpack.c.bf16 %v4305, %v4305
    %v4308 = vrot.slane %v3704, 5
    %v4309 = vrot.slane %v3705, 4
    %v4310 = vsel %vm1278, %v4309, %v4308
    %v4311 = vrot.slane %v3706, 3
    %v4312 = vsel %vm1281, %v4311, %v4310
    %v4313 = vrot.slane %v3707, 2
    %v4314 = vsel %vm1284, %v4313, %v4312
    %v4315 = vrot.slane %v3708, 1
    %v4316 = vsel %vm1287, %v4315, %v4314
    %v4317 = vsel %vm1290, %v3709, %v4316
    %v4318 = vrot.slane %v3710, 7
    %v4319 = vsel %vm1293, %v4318, %v4317
    %v4320 = vrot.slane %v3711, 6
    %v4321 = vsel %vm1296, %v4320, %v4319
    %v4322 = vrot.slane %v3712, 5
    %v4323 = vrot.slane %v3713, 4
    %v4324 = vsel %vm1278, %v4323, %v4322
    %v4325 = vrot.slane %v3714, 3
    %v4326 = vsel %vm1281, %v4325, %v4324
    %v4327 = vrot.slane %v3715, 2
    %v4328 = vsel %vm1284, %v4327, %v4326
    %v4329 = vrot.slane %v3716, 1
    %v4330 = vsel %vm1287, %v4329, %v4328
    %v4331 = vsel %vm1290, %v3717, %v4330
    %v4332 = vrot.slane %v3718, 7
    %v4333 = vsel %vm1293, %v4332, %v4331
    %v4334 = vrot.slane %v3719, 6
    %v4335 = vsel %vm1296, %v4334, %v4333
    %v4336 = vpack.c.b16 %v4335, %v4321
    %v4339 = vsel %vm3933, %v4306, 0
    %4341 = vmatprep.subr.bf16.mxu0 0
    %4342 = vmatpush1.bf16.msra.mxu0 %v4336
    %4343 = vmatprep.subr.bf16.mxu0 0
    %4344 = vmatpush1.bf16.msra.mxu0 0
    %4345 = vmatprep.subr.bf16.mxu0 0
    %4346 = vmatpush1.bf16.msra.mxu0 0
    %4347 = vmatprep.subr.bf16.mxu0 0
    %4348 = vmatpush1.bf16.msra.mxu0 0
    %4349 = vmatprep.subr.bf16.mxu0 0
    %4350 = vmatpush1.bf16.msra.mxu0 0
    %4351 = vmatprep.subr.bf16.mxu0 0
    %4352 = vmatpush1.bf16.msra.mxu0 0
    %4353 = vmatprep.subr.bf16.mxu0 0
    %4354 = vmatpush1.bf16.msra.mxu0 0
    %4355 = vmatprep.subr.bf16.mxu0 0
    %4356 = vmatpush1.bf16.msra.mxu0 0
    %4357 = vmatprep.subr.bf16.mxu0 0
    %4358 = vmatpush1.bf16.msra.mxu0 0
    %4359 = vmatprep.subr.bf16.mxu0 0
    %4360 = vmatpush1.bf16.msra.mxu0 0
    %4361 = vmatprep.subr.bf16.mxu0 0
    %4362 = vmatpush1.bf16.msra.mxu0 0
    %4363 = vmatprep.subr.bf16.mxu0 0
    %4364 = vmatpush1.bf16.msra.mxu0 0
    %4365 = vmatprep.subr.bf16.mxu0 0
    %4366 = vmatpush1.bf16.msra.mxu0 0
    %4367 = vmatprep.subr.bf16.mxu0 0
    %4368 = vmatpush1.bf16.msra.mxu0 0
    %4369 = vmatprep.subr.bf16.mxu0 0
    %4370 = vmatpush1.bf16.msra.mxu0 0
    %4371 = vmatprep.subr.bf16.mxu0 0
    %4372 = vmatpush1.bf16.msra.mxu0 0
    %4373 = vmatprep.mubr.bf16.mxu0 0
    %4374 = vmatmul.mubr.bf16.gmra.mrb[0].mxu0 %v4339
    %v4375 = vpop.f32.mrb[0].mxu0
    %v4376 = vadd.f32 0.0, %v4375
    %v4377 = vpop.f32.mrb[0].mxu0
    %v4378 = vpop.f32.mrb[0].mxu0
    %v4379 = vpop.f32.mrb[0].mxu0
    %4380 = vdwg.mxu0
    %v4381 = vrot.slane %v3842, 5
    %v4382 = vrot.slane %v3843, 4
    %v4383 = vsel %vm1278, %v4382, %v4381
    %v4384 = vrot.slane %v3844, 3
    %v4385 = vsel %vm1281, %v4384, %v4383
    %v4386 = vrot.slane %v3845, 2
    %v4387 = vsel %vm1284, %v4386, %v4385
    %v4388 = vrot.slane %v3846, 1
    %v4389 = vsel %vm1287, %v4388, %v4387
    %v4390 = vsel %vm1290, %v3847, %v4389
    %v4391 = vrot.slane %v3848, 7
    %v4392 = vsel %vm1293, %v4391, %v4390
    %v4393 = vrot.slane %v3849, 6
    %v4394 = vsel %vm1296, %v4393, %v4392
    %v4395 = vrot.slane %v3850, 5
    %v4396 = vrot.slane %v3851, 4
    %v4397 = vsel %vm1278, %v4396, %v4395
    %v4398 = vrot.slane %v3852, 3
    %v4399 = vsel %vm1281, %v4398, %v4397
    %v4400 = vrot.slane %v3853, 2
    %v4401 = vsel %vm1284, %v4400, %v4399
    %v4402 = vrot.slane %v3854, 1
    %v4403 = vsel %vm1287, %v4402, %v4401
    %v4404 = vsel %vm1290, %v3855, %v4403
    %v4405 = vrot.slane %v3856, 7
    %v4406 = vsel %vm1293, %v4405, %v4404
    %v4407 = vrot.slane %v3857, 6
    %v4408 = vsel %vm1296, %v4407, %v4406
    %v4409 = vpack.c.b16 %v4408, %v4394
    %v4412 = vsel %vm3933, %v4307, 0
    %4414 = vmatprep.subr.bf16.mxu0 0
    %4415 = vmatpush1.bf16.msra.mxu0 %v4409
    %4416 = vmatprep.subr.bf16.mxu0 0
    %4417 = vmatpush1.bf16.msra.mxu0 0
    %4418 = vmatprep.subr.bf16.mxu0 0
    %4419 = vmatpush1.bf16.msra.mxu0 0
    %4420 = vmatprep.subr.bf16.mxu0 0
    %4421 = vmatpush1.bf16.msra.mxu0 0
    %4422 = vmatprep.subr.bf16.mxu0 0
    %4423 = vmatpush1.bf16.msra.mxu0 0
    %4424 = vmatprep.subr.bf16.mxu0 0
    %4425 = vmatpush1.bf16.msra.mxu0 0
    %4426 = vmatprep.subr.bf16.mxu0 0
    %4427 = vmatpush1.bf16.msra.mxu0 0
    %4428 = vmatprep.subr.bf16.mxu0 0
    %4429 = vmatpush1.bf16.msra.mxu0 0
    %4430 = vmatprep.subr.bf16.mxu0 0
    %4431 = vmatpush1.bf16.msra.mxu0 0
    %4432 = vmatprep.subr.bf16.mxu0 0
    %4433 = vmatpush1.bf16.msra.mxu0 0
    %4434 = vmatprep.subr.bf16.mxu0 0
    %4435 = vmatpush1.bf16.msra.mxu0 0
    %4436 = vmatprep.subr.bf16.mxu0 0
    %4437 = vmatpush1.bf16.msra.mxu0 0
    %4438 = vmatprep.subr.bf16.mxu0 0
    %4439 = vmatpush1.bf16.msra.mxu0 0
    %4440 = vmatprep.subr.bf16.mxu0 0
    %4441 = vmatpush1.bf16.msra.mxu0 0
    %4442 = vmatprep.subr.bf16.mxu0 0
    %4443 = vmatpush1.bf16.msra.mxu0 0
    %4444 = vmatprep.subr.bf16.mxu0 0
    %4445 = vmatpush1.bf16.msra.mxu0 0
    %4446 = vmatprep.mubr.bf16.mxu0 0
    %4447 = vmatmul.mubr.bf16.gmra.mrb[0].mxu0 %v4412
    %v4448 = vpop.f32.mrb[0].mxu0
    %v4449 = vadd.f32 0.0, %v4448
    %v4450 = vpop.f32.mrb[0].mxu0
    %v4451 = vpop.f32.mrb[0].mxu0
    %v4452 = vpop.f32.mrb[0].mxu0
    %4453 = vdwg.mxu0
    %v4454 = vrot.slane %v3665, 2
    %v4455 = vrot.slane %v3666, 1
    %v4456 = vsel %vm1278, %v4455, %v4454
    %v4457 = vsel %vm1281, %v3667, %v4456
    %v4458 = vrot.slane %v3668, 7
    %v4459 = vsel %vm1284, %v4458, %v4457
    %v4460 = vrot.slane %v3669, 6
    %v4461 = vsel %vm1287, %v4460, %v4459
    %v4462 = vrot.slane %v3670, 5
    %v4463 = vsel %vm1290, %v4462, %v4461
    %v4464 = vrot.slane %v3671, 4
    %v4465 = vsel %vm1293, %v4464, %v4463
    %v4466 = vrot.slane %v3672, 3
    %v4467 = vsel %vm1296, %v4466, %v4465
    %v4468 = vpack.c.b16 %v4467, %v4467
    %v4469 = vrot.slane %v3704, 2
    %v4470 = vrot.slane %v3705, 1
    %v4471 = vsel %vm1278, %v4470, %v4469
    %v4472 = vsel %vm1281, %v3706, %v4471
    %v4473 = vrot.slane %v3707, 7
    %v4474 = vsel %vm1284, %v4473, %v4472
    %v4475 = vrot.slane %v3708, 6
    %v4476 = vsel %vm1287, %v4475, %v4474
    %v4477 = vrot.slane %v3709, 5
    %v4478 = vsel %vm1290, %v4477, %v4476
    %v4479 = vrot.slane %v3710, 4
    %v4480 = vsel %vm1293, %v4479, %v4478
    %v4481 = vrot.slane %v3711, 3
    %v4482 = vsel %vm1296, %v4481, %v4480
    %v4483 = vrot.slane %v3712, 2
    %v4484 = vrot.slane %v3713, 1
    %v4485 = vsel %vm1278, %v4484, %v4483
    %v4486 = vsel %vm1281, %v3714, %v4485
    %v4487 = vrot.slane %v3715, 7
    %v4488 = vsel %vm1284, %v4487, %v4486
    %v4489 = vrot.slane %v3716, 6
    %v4490 = vsel %vm1287, %v4489, %v4488
    %v4491 = vrot.slane %v3717, 5
    %v4492 = vsel %vm1290, %v4491, %v4490
    %v4493 = vrot.slane %v3718, 4
    %v4494 = vsel %vm1293, %v4493, %v4492
    %v4495 = vrot.slane %v3719, 3
    %v4496 = vsel %vm1296, %v4495, %v4494
    %v4497 = vpack.c.b16 %v4496, %v4482
    %v4499 = vsel %vm1314, %v4468, 0
    %v4502 = vsel %vm1314, %v4497, 0
    %4504 = vmatprep.subr.bf16.mxu0 0
    %4505 = vmatpush1.bf16.xpose.msra.mxu0 %v4502
    %4506 = vmatprep.subr.bf16.mxu0 0
    %4507 = vmatpush1.bf16.xpose.msra.mxu0 0
    %4508 = vmatprep.subr.bf16.mxu0 0
    %4509 = vmatpush1.bf16.xpose.msra.mxu0 0
    %4510 = vmatprep.subr.bf16.mxu0 0
    %4511 = vmatpush1.bf16.xpose.msra.mxu0 0
    %4512 = vmatprep.subr.bf16.mxu0 0
    %4513 = vmatpush1.bf16.xpose.msra.mxu0 0
    %4514 = vmatprep.subr.bf16.mxu0 0
    %4515 = vmatpush1.bf16.xpose.msra.mxu0 0
    %4516 = vmatprep.subr.bf16.mxu0 0
    %4517 = vmatpush1.bf16.xpose.msra.mxu0 0
    %4518 = vmatprep.subr.bf16.mxu0 0
    %4519 = vmatpush1.bf16.xpose.msra.mxu0 0
    %4520 = vmatprep.subr.bf16.mxu0 0
    %4521 = vmatpush1.bf16.xpose.msra.mxu0 0
    %4522 = vmatprep.subr.bf16.mxu0 0
    %4523 = vmatpush1.bf16.xpose.msra.mxu0 0
    %4524 = vmatprep.subr.bf16.mxu0 0
    %4525 = vmatpush1.bf16.xpose.msra.mxu0 0
    %4526 = vmatprep.subr.bf16.mxu0 0
    %4527 = vmatpush1.bf16.xpose.msra.mxu0 0
    %4528 = vmatprep.subr.bf16.mxu0 0
    %4529 = vmatpush1.bf16.xpose.msra.mxu0 0
    %4530 = vmatprep.subr.bf16.mxu0 0
    %4531 = vmatpush1.bf16.xpose.msra.mxu0 0
    %4532 = vmatprep.subr.bf16.mxu0 0
    %4533 = vmatpush1.bf16.xpose.msra.mxu0 0
    %4534 = vmatprep.subr.bf16.mxu0 0
    %4535 = vmatpush1.bf16.xpose.msra.mxu0 0
    %4536 = vmatprep.mubr.bf16.mxu0 0
    %4537 = vmatmul.mubr.bf16.gmra.mrb[0].mxu0 %v4499
    %v4538 = vpop.f32.mrb[0].mxu0
    %v4539 = vadd.f32 0.0, %v4538
    %v4540 = vpop.f32.mrb[0].mxu0
    %v4541 = vpop.f32.mrb[0].mxu0
    %v4542 = vpop.f32.mrb[0].mxu0
    %4543 = vdwg.mxu0
    %v4544 = vrot.slane %v3803, 2
    %v4545 = vrot.slane %v3804, 1
    %v4546 = vsel %vm1278, %v4545, %v4544
    %v4547 = vsel %vm1281, %v3805, %v4546
    %v4548 = vrot.slane %v3806, 7
    %v4549 = vsel %vm1284, %v4548, %v4547
    %v4550 = vrot.slane %v3807, 6
    %v4551 = vsel %vm1287, %v4550, %v4549
    %v4552 = vrot.slane %v3808, 5
    %v4553 = vsel %vm1290, %v4552, %v4551
    %v4554 = vrot.slane %v3809, 4
    %v4555 = vsel %vm1293, %v4554, %v4553
    %v4556 = vrot.slane %v3810, 3
    %v4557 = vsel %vm1296, %v4556, %v4555
    %v4558 = vpack.c.b16 %v4557, %v4557
    %v4559 = vrot.slane %v3842, 2
    %v4560 = vrot.slane %v3843, 1
    %v4561 = vsel %vm1278, %v4560, %v4559
    %v4562 = vsel %vm1281, %v3844, %v4561
    %v4563 = vrot.slane %v3845, 7
    %v4564 = vsel %vm1284, %v4563, %v4562
    %v4565 = vrot.slane %v3846, 6
    %v4566 = vsel %vm1287, %v4565, %v4564
    %v4567 = vrot.slane %v3847, 5
    %v4568 = vsel %vm1290, %v4567, %v4566
    %v4569 = vrot.slane %v3848, 4
    %v4570 = vsel %vm1293, %v4569, %v4568
    %v4571 = vrot.slane %v3849, 3
    %v4572 = vsel %vm1296, %v4571, %v4570
    %v4573 = vrot.slane %v3850, 2
    %v4574 = vrot.slane %v3851, 1
    %v4575 = vsel %vm1278, %v4574, %v4573
    %v4576 = vsel %vm1281, %v3852, %v4575
    %v4577 = vrot.slane %v3853, 7
    %v4578 = vsel %vm1284, %v4577, %v4576
    %v4579 = vrot.slane %v3854, 6
    %v4580 = vsel %vm1287, %v4579, %v4578
    %v4581 = vrot.slane %v3855, 5
    %v4582 = vsel %vm1290, %v4581, %v4580
    %v4583 = vrot.slane %v3856, 4
    %v4584 = vsel %vm1293, %v4583, %v4582
    %v4585 = vrot.slane %v3857, 3
    %v4586 = vsel %vm1296, %v4585, %v4584
    %v4587 = vpack.c.b16 %v4586, %v4572
    %v4589 = vsel %vm1314, %v4558, 0
    %v4592 = vsel %vm1314, %v4587, 0
    %4594 = vmatprep.subr.bf16.mxu0 0
    %4595 = vmatpush1.bf16.xpose.msra.mxu0 %v4592
    %4596 = vmatprep.subr.bf16.mxu0 0
    %4597 = vmatpush1.bf16.xpose.msra.mxu0 0
    %4598 = vmatprep.subr.bf16.mxu0 0
    %4599 = vmatpush1.bf16.xpose.msra.mxu0 0
    %4600 = vmatprep.subr.bf16.mxu0 0
    %4601 = vmatpush1.bf16.xpose.msra.mxu0 0
    %4602 = vmatprep.subr.bf16.mxu0 0
    %4603 = vmatpush1.bf16.xpose.msra.mxu0 0
    %4604 = vmatprep.subr.bf16.mxu0 0
    %4605 = vmatpush1.bf16.xpose.msra.mxu0 0
    %4606 = vmatprep.subr.bf16.mxu0 0
    %4607 = vmatpush1.bf16.xpose.msra.mxu0 0
    %4608 = vmatprep.subr.bf16.mxu0 0
    %4609 = vmatpush1.bf16.xpose.msra.mxu0 0
    %4610 = vmatprep.subr.bf16.mxu0 0
    %4611 = vmatpush1.bf16.xpose.msra.mxu0 0
    %4612 = vmatprep.subr.bf16.mxu0 0
    %4613 = vmatpush1.bf16.xpose.msra.mxu0 0
    %4614 = vmatprep.subr.bf16.mxu0 0
    %4615 = vmatpush1.bf16.xpose.msra.mxu0 0
    %4616 = vmatprep.subr.bf16.mxu0 0
    %4617 = vmatpush1.bf16.xpose.msra.mxu0 0
    %4618 = vmatprep.subr.bf16.mxu0 0
    %4619 = vmatpush1.bf16.xpose.msra.mxu0 0
    %4620 = vmatprep.subr.bf16.mxu0 0
    %4621 = vmatpush1.bf16.xpose.msra.mxu0 0
    %4622 = vmatprep.subr.bf16.mxu0 0
    %4623 = vmatpush1.bf16.xpose.msra.mxu0 0
    %4624 = vmatprep.subr.bf16.mxu0 0
    %4625 = vmatpush1.bf16.xpose.msra.mxu0 0
    %4626 = vmatprep.mubr.bf16.mxu0 0
    %4627 = vmatmul.mubr.bf16.gmra.mrb[0].mxu0 %v4589
    %v4628 = vpop.f32.mrb[0].mxu0
    %v4629 = vadd.f32 0.0, %v4628
    %v4630 = vpop.f32.mrb[0].mxu0
    %v4631 = vpop.f32.mrb[0].mxu0
    %v4632 = vpop.f32.mrb[0].mxu0
    %4633 = vdwg.mxu0
    %v4634 = vsel %vm3933, %v4539, -inf
    %4635 = vmax.xlane.f32.xlu0 %v4634
    %v4636 = vpop.xlane.xlu0 %4635
    %v4637 = vsel %vm3933, %v4629, -inf
    %4638 = vmax.xlane.f32.xlu0 %v4637
    %v4639 = vpop.xlane.xlu0 %4638
    %v4640 = vsub.f32 %v4539, %v4636
    %v4641 = vsub.f32 %v4629, %v4639
    %v4642 = vmul.f32 %v4640, 1.442695
    %v4643 = vpow.pop %v4642
    %v4644 = vmul.f32 %v4641, 1.442695
    %v4645 = vpow.pop %v4644
    %v4646 = vsel %vm3933, %v4643, 0.0
    %4647 = vadd.xlane.f32.xlu0 %v4646
    %v4648 = vpop.xlane.xlu0 %4647
    %v4649 = vsel %vm3933, %v4645, 0.0
    %4650 = vadd.xlane.f32.xlu0 %v4649
    %v4651 = vpop.xlane.xlu0 %4650
    %v4652 = vrcp.pop %v4648
    %v4653 = vrcp.pop %v4651
    %v4654 = vmul.f32 %v4643, %v4652
    %v4655 = vmul.f32 %v4645, %v4653
    %v4656 = vpack.c.bf16 %v4654, %v4654
    %v4657 = vpack.c.bf16 %v4655, %v4655
    %v4658 = vrot.slane %v3704, 6
    %v4659 = vrot.slane %v3705, 5
    %v4660 = vsel %vm1278, %v4659, %v4658
    %v4661 = vrot.slane %v3706, 4
    %v4662 = vsel %vm1281, %v4661, %v4660
    %v4663 = vrot.slane %v3707, 3
    %v4664 = vsel %vm1284, %v4663, %v4662
    %v4665 = vrot.slane %v3708, 2
    %v4666 = vsel %vm1287, %v4665, %v4664
    %v4667 = vrot.slane %v3709, 1
    %v4668 = vsel %vm1290, %v4667, %v4666
    %v4669 = vsel %vm1293, %v3710, %v4668
    %v4670 = vrot.slane %v3711, 7
    %v4671 = vsel %vm1296, %v4670, %v4669
    %v4672 = vrot.slane %v3712, 6
    %v4673 = vrot.slane %v3713, 5
    %v4674 = vsel %vm1278, %v4673, %v4672
    %v4675 = vrot.slane %v3714, 4
    %v4676 = vsel %vm1281, %v4675, %v4674
    %v4677 = vrot.slane %v3715, 3
    %v4678 = vsel %vm1284, %v4677, %v4676
    %v4679 = vrot.slane %v3716, 2
    %v4680 = vsel %vm1287, %v4679, %v4678
    %v4681 = vrot.slane %v3717, 1
    %v4682 = vsel %vm1290, %v4681, %v4680
    %v4683 = vsel %vm1293, %v3718, %v4682
    %v4684 = vrot.slane %v3719, 7
    %v4685 = vsel %vm1296, %v4684, %v4683
    %v4686 = vpack.c.b16 %v4685, %v4671
    %v4689 = vsel %vm3933, %v4656, 0
    %4691 = vmatprep.subr.bf16.mxu0 0
    %4692 = vmatpush1.bf16.msra.mxu0 %v4686
    %4693 = vmatprep.subr.bf16.mxu0 0
    %4694 = vmatpush1.bf16.msra.mxu0 0
    %4695 = vmatprep.subr.bf16.mxu0 0
    %4696 = vmatpush1.bf16.msra.mxu0 0
    %4697 = vmatprep.subr.bf16.mxu0 0
    %4698 = vmatpush1.bf16.msra.mxu0 0
    %4699 = vmatprep.subr.bf16.mxu0 0
    %4700 = vmatpush1.bf16.msra.mxu0 0
    %4701 = vmatprep.subr.bf16.mxu0 0
    %4702 = vmatpush1.bf16.msra.mxu0 0
    %4703 = vmatprep.subr.bf16.mxu0 0
    %4704 = vmatpush1.bf16.msra.mxu0 0
    %4705 = vmatprep.subr.bf16.mxu0 0
    %4706 = vmatpush1.bf16.msra.mxu0 0
    %4707 = vmatprep.subr.bf16.mxu0 0
    %4708 = vmatpush1.bf16.msra.mxu0 0
    %4709 = vmatprep.subr.bf16.mxu0 0
    %4710 = vmatpush1.bf16.msra.mxu0 0
    %4711 = vmatprep.subr.bf16.mxu0 0
    %4712 = vmatpush1.bf16.msra.mxu0 0
    %4713 = vmatprep.subr.bf16.mxu0 0
    %4714 = vmatpush1.bf16.msra.mxu0 0
    %4715 = vmatprep.subr.bf16.mxu0 0
    %4716 = vmatpush1.bf16.msra.mxu0 0
    %4717 = vmatprep.subr.bf16.mxu0 0
    %4718 = vmatpush1.bf16.msra.mxu0 0
    %4719 = vmatprep.subr.bf16.mxu0 0
    %4720 = vmatpush1.bf16.msra.mxu0 0
    %4721 = vmatprep.subr.bf16.mxu0 0
    %4722 = vmatpush1.bf16.msra.mxu0 0
    %4723 = vmatprep.mubr.bf16.mxu0 0
    %4724 = vmatmul.mubr.bf16.gmra.mrb[0].mxu0 %v4689
    %v4725 = vpop.f32.mrb[0].mxu0
    %v4726 = vadd.f32 0.0, %v4725
    %v4727 = vpop.f32.mrb[0].mxu0
    %v4728 = vpop.f32.mrb[0].mxu0
    %v4729 = vpop.f32.mrb[0].mxu0
    %4730 = vdwg.mxu0
    %v4731 = vrot.slane %v3842, 6
    %v4732 = vrot.slane %v3843, 5
    %v4733 = vsel %vm1278, %v4732, %v4731
    %v4734 = vrot.slane %v3844, 4
    %v4735 = vsel %vm1281, %v4734, %v4733
    %v4736 = vrot.slane %v3845, 3
    %v4737 = vsel %vm1284, %v4736, %v4735
    %v4738 = vrot.slane %v3846, 2
    %v4739 = vsel %vm1287, %v4738, %v4737
    %v4740 = vrot.slane %v3847, 1
    %v4741 = vsel %vm1290, %v4740, %v4739
    %v4742 = vsel %vm1293, %v3848, %v4741
    %v4743 = vrot.slane %v3849, 7
    %v4744 = vsel %vm1296, %v4743, %v4742
    %v4745 = vrot.slane %v3850, 6
    %v4746 = vrot.slane %v3851, 5
    %v4747 = vsel %vm1278, %v4746, %v4745
    %v4748 = vrot.slane %v3852, 4
    %v4749 = vsel %vm1281, %v4748, %v4747
    %v4750 = vrot.slane %v3853, 3
    %v4751 = vsel %vm1284, %v4750, %v4749
    %v4752 = vrot.slane %v3854, 2
    %v4753 = vsel %vm1287, %v4752, %v4751
    %v4754 = vrot.slane %v3855, 1
    %v4755 = vsel %vm1290, %v4754, %v4753
    %v4756 = vsel %vm1293, %v3856, %v4755
    %v4757 = vrot.slane %v3857, 7
    %v4758 = vsel %vm1296, %v4757, %v4756
    %v4759 = vpack.c.b16 %v4758, %v4744
    %v4762 = vsel %vm3933, %v4657, 0
    %4764 = vmatprep.subr.bf16.mxu0 0
    %4765 = vmatpush1.bf16.msra.mxu0 %v4759
    %4766 = vmatprep.subr.bf16.mxu0 0
    %4767 = vmatpush1.bf16.msra.mxu0 0
    %4768 = vmatprep.subr.bf16.mxu0 0
    %4769 = vmatpush1.bf16.msra.mxu0 0
    %4770 = vmatprep.subr.bf16.mxu0 0
    %4771 = vmatpush1.bf16.msra.mxu0 0
    %4772 = vmatprep.subr.bf16.mxu0 0
    %4773 = vmatpush1.bf16.msra.mxu0 0
    %4774 = vmatprep.subr.bf16.mxu0 0
    %4775 = vmatpush1.bf16.msra.mxu0 0
    %4776 = vmatprep.subr.bf16.mxu0 0
    %4777 = vmatpush1.bf16.msra.mxu0 0
    %4778 = vmatprep.subr.bf16.mxu0 0
    %4779 = vmatpush1.bf16.msra.mxu0 0
    %4780 = vmatprep.subr.bf16.mxu0 0
    %4781 = vmatpush1.bf16.msra.mxu0 0
    %4782 = vmatprep.subr.bf16.mxu0 0
    %4783 = vmatpush1.bf16.msra.mxu0 0
    %4784 = vmatprep.subr.bf16.mxu0 0
    %4785 = vmatpush1.bf16.msra.mxu0 0
    %4786 = vmatprep.subr.bf16.mxu0 0
    %4787 = vmatpush1.bf16.msra.mxu0 0
    %4788 = vmatprep.subr.bf16.mxu0 0
    %4789 = vmatpush1.bf16.msra.mxu0 0
    %4790 = vmatprep.subr.bf16.mxu0 0
    %4791 = vmatpush1.bf16.msra.mxu0 0
    %4792 = vmatprep.subr.bf16.mxu0 0
    %4793 = vmatpush1.bf16.msra.mxu0 0
    %4794 = vmatprep.subr.bf16.mxu0 0
    %4795 = vmatpush1.bf16.msra.mxu0 0
    %4796 = vmatprep.mubr.bf16.mxu0 0
    %4797 = vmatmul.mubr.bf16.gmra.mrb[0].mxu0 %v4762
    %v4798 = vpop.f32.mrb[0].mxu0
    %v4799 = vadd.f32 0.0, %v4798
    %v4800 = vpop.f32.mrb[0].mxu0
    %v4801 = vpop.f32.mrb[0].mxu0
    %v4802 = vpop.f32.mrb[0].mxu0
    %4803 = vdwg.mxu0
    %v4804 = vrot.slane %v3665, 3
    %v4805 = vrot.slane %v3666, 2
    %v4806 = vsel %vm1278, %v4805, %v4804
    %v4807 = vrot.slane %v3667, 1
    %v4808 = vsel %vm1281, %v4807, %v4806
    %v4809 = vsel %vm1284, %v3668, %v4808
    %v4810 = vrot.slane %v3669, 7
    %v4811 = vsel %vm1287, %v4810, %v4809
    %v4812 = vrot.slane %v3670, 6
    %v4813 = vsel %vm1290, %v4812, %v4811
    %v4814 = vrot.slane %v3671, 5
    %v4815 = vsel %vm1293, %v4814, %v4813
    %v4816 = vrot.slane %v3672, 4
    %v4817 = vsel %vm1296, %v4816, %v4815
    %v4818 = vpack.c.b16 %v4817, %v4817
    %v4819 = vrot.slane %v3704, 3
    %v4820 = vrot.slane %v3705, 2
    %v4821 = vsel %vm1278, %v4820, %v4819
    %v4822 = vrot.slane %v3706, 1
    %v4823 = vsel %vm1281, %v4822, %v4821
    %v4824 = vsel %vm1284, %v3707, %v4823
    %v4825 = vrot.slane %v3708, 7
    %v4826 = vsel %vm1287, %v4825, %v4824
    %v4827 = vrot.slane %v3709, 6
    %v4828 = vsel %vm1290, %v4827, %v4826
    %v4829 = vrot.slane %v3710, 5
    %v4830 = vsel %vm1293, %v4829, %v4828
    %v4831 = vrot.slane %v3711, 4
    %v4832 = vsel %vm1296, %v4831, %v4830
    %v4833 = vrot.slane %v3712, 3
    %v4834 = vrot.slane %v3713, 2
    %v4835 = vsel %vm1278, %v4834, %v4833
    %v4836 = vrot.slane %v3714, 1
    %v4837 = vsel %vm1281, %v4836, %v4835
    %v4838 = vsel %vm1284, %v3715, %v4837
    %v4839 = vrot.slane %v3716, 7
    %v4840 = vsel %vm1287, %v4839, %v4838
    %v4841 = vrot.slane %v3717, 6
    %v4842 = vsel %vm1290, %v4841, %v4840
    %v4843 = vrot.slane %v3718, 5
    %v4844 = vsel %vm1293, %v4843, %v4842
    %v4845 = vrot.slane %v3719, 4
    %v4846 = vsel %vm1296, %v4845, %v4844
    %v4847 = vpack.c.b16 %v4846, %v4832
    %v4849 = vsel %vm1314, %v4818, 0
    %v4852 = vsel %vm1314, %v4847, 0
    %4854 = vmatprep.subr.bf16.mxu0 0
    %4855 = vmatpush1.bf16.xpose.msra.mxu0 %v4852
    %4856 = vmatprep.subr.bf16.mxu0 0
    %4857 = vmatpush1.bf16.xpose.msra.mxu0 0
    %4858 = vmatprep.subr.bf16.mxu0 0
    %4859 = vmatpush1.bf16.xpose.msra.mxu0 0
    %4860 = vmatprep.subr.bf16.mxu0 0
    %4861 = vmatpush1.bf16.xpose.msra.mxu0 0
    %4862 = vmatprep.subr.bf16.mxu0 0
    %4863 = vmatpush1.bf16.xpose.msra.mxu0 0
    %4864 = vmatprep.subr.bf16.mxu0 0
    %4865 = vmatpush1.bf16.xpose.msra.mxu0 0
    %4866 = vmatprep.subr.bf16.mxu0 0
    %4867 = vmatpush1.bf16.xpose.msra.mxu0 0
    %4868 = vmatprep.subr.bf16.mxu0 0
    %4869 = vmatpush1.bf16.xpose.msra.mxu0 0
    %4870 = vmatprep.subr.bf16.mxu0 0
    %4871 = vmatpush1.bf16.xpose.msra.mxu0 0
    %4872 = vmatprep.subr.bf16.mxu0 0
    %4873 = vmatpush1.bf16.xpose.msra.mxu0 0
    %4874 = vmatprep.subr.bf16.mxu0 0
    %4875 = vmatpush1.bf16.xpose.msra.mxu0 0
    %4876 = vmatprep.subr.bf16.mxu0 0
    %4877 = vmatpush1.bf16.xpose.msra.mxu0 0
    %4878 = vmatprep.subr.bf16.mxu0 0
    %4879 = vmatpush1.bf16.xpose.msra.mxu0 0
    %4880 = vmatprep.subr.bf16.mxu0 0
    %4881 = vmatpush1.bf16.xpose.msra.mxu0 0
    %4882 = vmatprep.subr.bf16.mxu0 0
    %4883 = vmatpush1.bf16.xpose.msra.mxu0 0
    %4884 = vmatprep.subr.bf16.mxu0 0
    %4885 = vmatpush1.bf16.xpose.msra.mxu0 0
    %4886 = vmatprep.mubr.bf16.mxu0 0
    %4887 = vmatmul.mubr.bf16.gmra.mrb[0].mxu0 %v4849
    %v4888 = vpop.f32.mrb[0].mxu0
    %v4889 = vadd.f32 0.0, %v4888
    %v4890 = vpop.f32.mrb[0].mxu0
    %v4891 = vpop.f32.mrb[0].mxu0
    %v4892 = vpop.f32.mrb[0].mxu0
    %4893 = vdwg.mxu0
    %v4894 = vrot.slane %v3803, 3
    %v4895 = vrot.slane %v3804, 2
    %v4896 = vsel %vm1278, %v4895, %v4894
    %v4897 = vrot.slane %v3805, 1
    %v4898 = vsel %vm1281, %v4897, %v4896
    %v4899 = vsel %vm1284, %v3806, %v4898
    %v4900 = vrot.slane %v3807, 7
    %v4901 = vsel %vm1287, %v4900, %v4899
    %v4902 = vrot.slane %v3808, 6
    %v4903 = vsel %vm1290, %v4902, %v4901
    %v4904 = vrot.slane %v3809, 5
    %v4905 = vsel %vm1293, %v4904, %v4903
    %v4906 = vrot.slane %v3810, 4
    %v4907 = vsel %vm1296, %v4906, %v4905
    %v4908 = vpack.c.b16 %v4907, %v4907
    %v4909 = vrot.slane %v3842, 3
    %v4910 = vrot.slane %v3843, 2
    %v4911 = vsel %vm1278, %v4910, %v4909
    %v4912 = vrot.slane %v3844, 1
    %v4913 = vsel %vm1281, %v4912, %v4911
    %v4914 = vsel %vm1284, %v3845, %v4913
    %v4915 = vrot.slane %v3846, 7
    %v4916 = vsel %vm1287, %v4915, %v4914
    %v4917 = vrot.slane %v3847, 6
    %v4918 = vsel %vm1290, %v4917, %v4916
    %v4919 = vrot.slane %v3848, 5
    %v4920 = vsel %vm1293, %v4919, %v4918
    %v4921 = vrot.slane %v3849, 4
    %v4922 = vsel %vm1296, %v4921, %v4920
    %v4923 = vrot.slane %v3850, 3
    %v4924 = vrot.slane %v3851, 2
    %v4925 = vsel %vm1278, %v4924, %v4923
    %v4926 = vrot.slane %v3852, 1
    %v4927 = vsel %vm1281, %v4926, %v4925
    %v4928 = vsel %vm1284, %v3853, %v4927
    %v4929 = vrot.slane %v3854, 7
    %v4930 = vsel %vm1287, %v4929, %v4928
    %v4931 = vrot.slane %v3855, 6
    %v4932 = vsel %vm1290, %v4931, %v4930
    %v4933 = vrot.slane %v3856, 5
    %v4934 = vsel %vm1293, %v4933, %v4932
    %v4935 = vrot.slane %v3857, 4
    %v4936 = vsel %vm1296, %v4935, %v4934
    %v4937 = vpack.c.b16 %v4936, %v4922
    %v4939 = vsel %vm1314, %v4908, 0
    %v4942 = vsel %vm1314, %v4937, 0
    %4944 = vmatprep.subr.bf16.mxu0 0
    %4945 = vmatpush1.bf16.xpose.msra.mxu0 %v4942
    %4946 = vmatprep.subr.bf16.mxu0 0
    %4947 = vmatpush1.bf16.xpose.msra.mxu0 0
    %4948 = vmatprep.subr.bf16.mxu0 0
    %4949 = vmatpush1.bf16.xpose.msra.mxu0 0
    %4950 = vmatprep.subr.bf16.mxu0 0
    %4951 = vmatpush1.bf16.xpose.msra.mxu0 0
    %4952 = vmatprep.subr.bf16.mxu0 0
    %4953 = vmatpush1.bf16.xpose.msra.mxu0 0
    %4954 = vmatprep.subr.bf16.mxu0 0
    %4955 = vmatpush1.bf16.xpose.msra.mxu0 0
    %4956 = vmatprep.subr.bf16.mxu0 0
    %4957 = vmatpush1.bf16.xpose.msra.mxu0 0
    %4958 = vmatprep.subr.bf16.mxu0 0
    %4959 = vmatpush1.bf16.xpose.msra.mxu0 0
    %4960 = vmatprep.subr.bf16.mxu0 0
    %4961 = vmatpush1.bf16.xpose.msra.mxu0 0
    %4962 = vmatprep.subr.bf16.mxu0 0
    %4963 = vmatpush1.bf16.xpose.msra.mxu0 0
    %4964 = vmatprep.subr.bf16.mxu0 0
    %4965 = vmatpush1.bf16.xpose.msra.mxu0 0
    %4966 = vmatprep.subr.bf16.mxu0 0
    %4967 = vmatpush1.bf16.xpose.msra.mxu0 0
    %4968 = vmatprep.subr.bf16.mxu0 0
    %4969 = vmatpush1.bf16.xpose.msra.mxu0 0
    %4970 = vmatprep.subr.bf16.mxu0 0
    %4971 = vmatpush1.bf16.xpose.msra.mxu0 0
    %4972 = vmatprep.subr.bf16.mxu0 0
    %4973 = vmatpush1.bf16.xpose.msra.mxu0 0
    %4974 = vmatprep.subr.bf16.mxu0 0
    %4975 = vmatpush1.bf16.xpose.msra.mxu0 0
    %4976 = vmatprep.mubr.bf16.mxu0 0
    %4977 = vmatmul.mubr.bf16.gmra.mrb[0].mxu0 %v4939
    %v4978 = vpop.f32.mrb[0].mxu0
    %v4979 = vadd.f32 0.0, %v4978
    %v4980 = vpop.f32.mrb[0].mxu0
    %v4981 = vpop.f32.mrb[0].mxu0
    %v4982 = vpop.f32.mrb[0].mxu0
    %4983 = vdwg.mxu0
    %v4984 = vsel %vm3933, %v4889, -inf
    %4985 = vmax.xlane.f32.xlu0 %v4984
    %v4986 = vpop.xlane.xlu0 %4985
    %v4987 = vsel %vm3933, %v4979, -inf
    %4988 = vmax.xlane.f32.xlu0 %v4987
    %v4989 = vpop.xlane.xlu0 %4988
    %v4990 = vsub.f32 %v4889, %v4986
    %v4991 = vsub.f32 %v4979, %v4989
    %v4992 = vmul.f32 %v4990, 1.442695
    %v4993 = vpow.pop %v4992
    %v4994 = vmul.f32 %v4991, 1.442695
    %v4995 = vpow.pop %v4994
    %v4996 = vsel %vm3933, %v4993, 0.0
    %4997 = vadd.xlane.f32.xlu0 %v4996
    %v4998 = vpop.xlane.xlu0 %4997
    %v4999 = vsel %vm3933, %v4995, 0.0
    %5000 = vadd.xlane.f32.xlu0 %v4999
    %v5001 = vpop.xlane.xlu0 %5000
    %v5002 = vrcp.pop %v4998
    %v5003 = vrcp.pop %v5001
    %v5004 = vmul.f32 %v4993, %v5002
    %v5005 = vmul.f32 %v4995, %v5003
    %v5006 = vpack.c.bf16 %v5004, %v5004
    %v5007 = vpack.c.bf16 %v5005, %v5005
    %v5008 = vrot.slane %v3704, 7
    %v5009 = vrot.slane %v3705, 6
    %v5010 = vsel %vm1278, %v5009, %v5008
    %v5011 = vrot.slane %v3706, 5
    %v5012 = vsel %vm1281, %v5011, %v5010
    %v5013 = vrot.slane %v3707, 4
    %v5014 = vsel %vm1284, %v5013, %v5012
    %v5015 = vrot.slane %v3708, 3
    %v5016 = vsel %vm1287, %v5015, %v5014
    %v5017 = vrot.slane %v3709, 2
    %v5018 = vsel %vm1290, %v5017, %v5016
    %v5019 = vrot.slane %v3710, 1
    %v5020 = vsel %vm1293, %v5019, %v5018
    %v5021 = vsel %vm1296, %v3711, %v5020
    %v5022 = vrot.slane %v3712, 7
    %v5023 = vrot.slane %v3713, 6
    %v5024 = vsel %vm1278, %v5023, %v5022
    %v5025 = vrot.slane %v3714, 5
    %v5026 = vsel %vm1281, %v5025, %v5024
    %v5027 = vrot.slane %v3715, 4
    %v5028 = vsel %vm1284, %v5027, %v5026
    %v5029 = vrot.slane %v3716, 3
    %v5030 = vsel %vm1287, %v5029, %v5028
    %v5031 = vrot.slane %v3717, 2
    %v5032 = vsel %vm1290, %v5031, %v5030
    %v5033 = vrot.slane %v3718, 1
    %v5034 = vsel %vm1293, %v5033, %v5032
    %v5035 = vsel %vm1296, %v3719, %v5034
    %v5036 = vpack.c.b16 %v5035, %v5021
    %v5039 = vsel %vm3933, %v5006, 0
    %5041 = vmatprep.subr.bf16.mxu0 0
    %5042 = vmatpush1.bf16.msra.mxu0 %v5036
    %5043 = vmatprep.subr.bf16.mxu0 0
    %5044 = vmatpush1.bf16.msra.mxu0 0
    %5045 = vmatprep.subr.bf16.mxu0 0
    %5046 = vmatpush1.bf16.msra.mxu0 0
    %5047 = vmatprep.subr.bf16.mxu0 0
    %5048 = vmatpush1.bf16.msra.mxu0 0
    %5049 = vmatprep.subr.bf16.mxu0 0
    %5050 = vmatpush1.bf16.msra.mxu0 0
    %5051 = vmatprep.subr.bf16.mxu0 0
    %5052 = vmatpush1.bf16.msra.mxu0 0
    %5053 = vmatprep.subr.bf16.mxu0 0
    %5054 = vmatpush1.bf16.msra.mxu0 0
    %5055 = vmatprep.subr.bf16.mxu0 0
    %5056 = vmatpush1.bf16.msra.mxu0 0
    %5057 = vmatprep.subr.bf16.mxu0 0
    %5058 = vmatpush1.bf16.msra.mxu0 0
    %5059 = vmatprep.subr.bf16.mxu0 0
    %5060 = vmatpush1.bf16.msra.mxu0 0
    %5061 = vmatprep.subr.bf16.mxu0 0
    %5062 = vmatpush1.bf16.msra.mxu0 0
    %5063 = vmatprep.subr.bf16.mxu0 0
    %5064 = vmatpush1.bf16.msra.mxu0 0
    %5065 = vmatprep.subr.bf16.mxu0 0
    %5066 = vmatpush1.bf16.msra.mxu0 0
    %5067 = vmatprep.subr.bf16.mxu0 0
    %5068 = vmatpush1.bf16.msra.mxu0 0
    %5069 = vmatprep.subr.bf16.mxu0 0
    %5070 = vmatpush1.bf16.msra.mxu0 0
    %5071 = vmatprep.subr.bf16.mxu0 0
    %5072 = vmatpush1.bf16.msra.mxu0 0
    %5073 = vmatprep.mubr.bf16.mxu0 0
    %5074 = vmatmul.mubr.bf16.gmra.mrb[0].mxu0 %v5039
    %v5075 = vpop.f32.mrb[0].mxu0
    %v5076 = vadd.f32 0.0, %v5075
    %v5077 = vpop.f32.mrb[0].mxu0
    %v5078 = vpop.f32.mrb[0].mxu0
    %v5079 = vpop.f32.mrb[0].mxu0
    %5080 = vdwg.mxu0
    %v5081 = vrot.slane %v3842, 7
    %v5082 = vrot.slane %v3843, 6
    %v5083 = vsel %vm1278, %v5082, %v5081
    %v5084 = vrot.slane %v3844, 5
    %v5085 = vsel %vm1281, %v5084, %v5083
    %v5086 = vrot.slane %v3845, 4
    %v5087 = vsel %vm1284, %v5086, %v5085
    %v5088 = vrot.slane %v3846, 3
    %v5089 = vsel %vm1287, %v5088, %v5087
    %v5090 = vrot.slane %v3847, 2
    %v5091 = vsel %vm1290, %v5090, %v5089
    %v5092 = vrot.slane %v3848, 1
    %v5093 = vsel %vm1293, %v5092, %v5091
    %v5094 = vsel %vm1296, %v3849, %v5093
    %v5095 = vrot.slane %v3850, 7
    %v5096 = vrot.slane %v3851, 6
    %v5097 = vsel %vm1278, %v5096, %v5095
    %v5098 = vrot.slane %v3852, 5
    %v5099 = vsel %vm1281, %v5098, %v5097
    %v5100 = vrot.slane %v3853, 4
    %v5101 = vsel %vm1284, %v5100, %v5099
    %v5102 = vrot.slane %v3854, 3
    %v5103 = vsel %vm1287, %v5102, %v5101
    %v5104 = vrot.slane %v3855, 2
    %v5105 = vsel %vm1290, %v5104, %v5103
    %v5106 = vrot.slane %v3856, 1
    %v5107 = vsel %vm1293, %v5106, %v5105
    %v5108 = vsel %vm1296, %v3857, %v5107
    %v5109 = vpack.c.b16 %v5108, %v5094
    %v5112 = vsel %vm3933, %v5007, 0
    %5114 = vmatprep.subr.bf16.mxu0 0
    %5115 = vmatpush1.bf16.msra.mxu0 %v5109
    %5116 = vmatprep.subr.bf16.mxu0 0
    %5117 = vmatpush1.bf16.msra.mxu0 0
    %5118 = vmatprep.subr.bf16.mxu0 0
    %5119 = vmatpush1.bf16.msra.mxu0 0
    %5120 = vmatprep.subr.bf16.mxu0 0
    %5121 = vmatpush1.bf16.msra.mxu0 0
    %5122 = vmatprep.subr.bf16.mxu0 0
    %5123 = vmatpush1.bf16.msra.mxu0 0
    %5124 = vmatprep.subr.bf16.mxu0 0
    %5125 = vmatpush1.bf16.msra.mxu0 0
    %5126 = vmatprep.subr.bf16.mxu0 0
    %5127 = vmatpush1.bf16.msra.mxu0 0
    %5128 = vmatprep.subr.bf16.mxu0 0
    %5129 = vmatpush1.bf16.msra.mxu0 0
    %5130 = vmatprep.subr.bf16.mxu0 0
    %5131 = vmatpush1.bf16.msra.mxu0 0
    %5132 = vmatprep.subr.bf16.mxu0 0
    %5133 = vmatpush1.bf16.msra.mxu0 0
    %5134 = vmatprep.subr.bf16.mxu0 0
    %5135 = vmatpush1.bf16.msra.mxu0 0
    %5136 = vmatprep.subr.bf16.mxu0 0
    %5137 = vmatpush1.bf16.msra.mxu0 0
    %5138 = vmatprep.subr.bf16.mxu0 0
    %5139 = vmatpush1.bf16.msra.mxu0 0
    %5140 = vmatprep.subr.bf16.mxu0 0
    %5141 = vmatpush1.bf16.msra.mxu0 0
    %5142 = vmatprep.subr.bf16.mxu0 0
    %5143 = vmatpush1.bf16.msra.mxu0 0
    %5144 = vmatprep.subr.bf16.mxu0 0
    %5145 = vmatpush1.bf16.msra.mxu0 0
    %5146 = vmatprep.mubr.bf16.mxu0 0
    %5147 = vmatmul.mubr.bf16.gmra.mrb[0].mxu0 %v5112
    %v5148 = vpop.f32.mrb[0].mxu0
    %v5149 = vadd.f32 0.0, %v5148
    %v5150 = vpop.f32.mrb[0].mxu0
    %v5151 = vpop.f32.mrb[0].mxu0
    %v5152 = vpop.f32.mrb[0].mxu0
    %5153 = vdwg.mxu0
    %5156 = vrot.lane.b32.xlu0 %v4376, 32
    %v5157 = vpop.permute.xlu0 %5156
    %5158 = vrot.lane.b32.xlu0 %v4449, 32
    %v5159 = vpop.permute.xlu0 %5158
    %5164 = vrot.lane.b32.xlu0 %v4726, 64
    %v5165 = vpop.permute.xlu0 %5164
    %5166 = vrot.lane.b32.xlu0 %v4799, 64
    %v5167 = vpop.permute.xlu0 %5166
    %5172 = vrot.lane.b32.xlu0 %v5076, 96
    %v5173 = vpop.permute.xlu0 %5172
    %5174 = vrot.lane.b32.xlu0 %v5149, 96
    %v5175 = vpop.permute.xlu0 %5174
    %v5178 = vsel %vm1314, %v4026, %v5157
    %v5179 = vsel %vm1314, %v4099, %v5159
    %v5180 = vsel %vm2553, %v5178, %v5165
    %v5181 = vsel %vm2553, %v5179, %v5167
    %v5182 = vsel %vm2556, %v5180, %v5173
    %v5183 = vsel %vm2556, %v5181, %v5175
    %v5184 = vpack.c.bf16 %v5183, %v5182
    %v5185 = vld [vmem:[%s17] sm:$0x1]
    %v5187 = vlaneseq
    %v5188 = vshrl.u32 %v5187, 7
    %v5189 = vsub.s32 0, %v5188
    %v5190 = vrot.slane %v5185, %v5189
    %v5208 = vunpack.c.l.b16 %v3593
    %v5209 = vunpack.c.l.b16 %v3594
    %v5210 = vunpack.c.l.b16 %v3595
    %v5211 = vunpack.c.l.b16 %v3596
    %v5212 = vunpack.c.l.b16 %v3597
    %v5213 = vunpack.c.l.b16 %v3598
    %v5214 = vunpack.c.l.b16 %v3599
    %v5215 = vunpack.c.l.b16 %v3600
    %v5216 = vunpack.c.l.b16 %v3601
    %v5217 = vunpack.c.l.b16 %v3602
    %v5218 = vunpack.c.l.b16 %v3603
    %v5219 = vunpack.c.l.b16 %v3604
    %v5220 = vunpack.c.l.b16 %v3605
    %v5221 = vunpack.c.l.b16 %v3606
    %v5222 = vunpack.c.l.b16 %v3607
    %v5223 = vunpack.c.l.b16 %v3608
    %v5224 = vpack.c.b16 %v5209, %v5208
    %v5225 = vpack.c.b16 %v5211, %v5210
    %v5226 = vpack.c.b16 %v5213, %v5212
    %v5227 = vpack.c.b16 %v5215, %v5214
    %v5228 = vpack.c.b16 %v5217, %v5216
    %v5229 = vpack.c.b16 %v5219, %v5218
    %v5230 = vpack.c.b16 %v5221, %v5220
    %v5231 = vpack.c.b16 %v5223, %v5222
    %5240 = vmatprep.subr.bf16.mxu0 0
    %5241 = vmatpush1.bf16.msra.mxu0 %v5224
    %5242 = vmatprep.subr.bf16.mxu0 0
    %5243 = vmatpush1.bf16.msra.mxu0 %v5225
    %5244 = vmatprep.subr.bf16.mxu0 0
    %5245 = vmatpush1.bf16.msra.mxu0 %v5226
    %5246 = vmatprep.subr.bf16.mxu0 0
    %5247 = vmatpush1.bf16.msra.mxu0 %v5227
    %5248 = vmatprep.subr.bf16.mxu0 0
    %5249 = vmatpush1.bf16.msra.mxu0 %v5228
    %5250 = vmatprep.subr.bf16.mxu0 0
    %5251 = vmatpush1.bf16.msra.mxu0 %v5229
    %5252 = vmatprep.subr.bf16.mxu0 0
    %5253 = vmatpush1.bf16.msra.mxu0 %v5230
    %5254 = vmatprep.subr.bf16.mxu0 0
    %5255 = vmatpush1.bf16.msra.mxu0 %v5231
    %5256 = vmatprep.subr.bf16.mxu0 0
    %5257 = vmatpush1.bf16.msra.mxu0 0
    %5258 = vmatprep.subr.bf16.mxu0 0
    %5259 = vmatpush1.bf16.msra.mxu0 0
    %5260 = vmatprep.subr.bf16.mxu0 0
    %5261 = vmatpush1.bf16.msra.mxu0 0
    %5262 = vmatprep.subr.bf16.mxu0 0
    %5263 = vmatpush1.bf16.msra.mxu0 0
    %5264 = vmatprep.subr.bf16.mxu0 0
    %5265 = vmatpush1.bf16.msra.mxu0 0
    %5266 = vmatprep.subr.bf16.mxu0 0
    %5267 = vmatpush1.bf16.msra.mxu0 0
    %5268 = vmatprep.subr.bf16.mxu0 0
    %5269 = vmatpush1.bf16.msra.mxu0 0
    %5270 = vmatprep.subr.bf16.mxu0 0
    %5271 = vmatpush1.bf16.msra.mxu0 0
    %5272 = vmatprep.mubr.bf16.mxu0 0
    %5273 = vmatmul.mubr.bf16.gmra.mrb[0].mxu0 %v5184
    %v5274 = vpop.f32.mrb[0].mxu0
    %v5275 = vadd.f32 %v5190, %v5274
    %v5276 = vpop.f32.mrb[0].mxu0
    %v5277 = vpop.f32.mrb[0].mxu0
    %v5278 = vadd.f32 %v5190, %v5277
    %v5279 = vpop.f32.mrb[0].mxu0
    %5280 = vdwg.mxu0
    %v5281 = vadd.f32 %v5275, %v2698
    %v5282 = vadd.f32 %v5278, %v2699
    %v5283 = vld [vmem:[%s18] sm:$0x1]
    %v5284 = vld [vmem:[%s19] sm:$0x1]
    %5285 = vadd.xlane.f32.xlu0 %v5281
    %v5286 = vpop.xlane.xlu0 %5285
    %5287 = vadd.xlane.f32.xlu0 %v5282
    %v5288 = vpop.xlane.xlu0 %5287
    %v5289 = vmul.f32 %v5286, %v114
    %v5290 = vmul.f32 %v5288, %v114
    %v5291 = vsub.f32 %v5281, %v5289
    %v5292 = vsub.f32 %v5282, %v5290
    %v5293 = vmul.f32 %v5291, %v5291
    %v5294 = vmul.f32 %v5292, %v5292
    %5295 = vadd.xlane.f32.xlu0 %v5293
    %v5296 = vpop.xlane.xlu0 %5295
    %5297 = vadd.xlane.f32.xlu0 %v5294
    %v5298 = vpop.xlane.xlu0 %5297
    %v5299 = vmul.f32 %v5296, %v114
    %v5300 = vmul.f32 %v5298, %v114
    %v5301 = vadd.f32 %v5299, 1e-12
    %v5302 = vadd.f32 %v5300, 1e-12
    %v5303 = vrsqrt.pop %v5301
    %v5304 = vrsqrt.pop %v5302
    %v5305 = vmul.f32 %v5291, %v5303
    %v5306 = vmul.f32 %v5292, %v5304
    %v5308 = vlaneseq
    %v5309 = vshrl.u32 %v5308, 7
    %v5310 = vsub.s32 0, %v5309
    %v5311 = vrot.slane %v5283, %v5310
    %v5313 = vmul.f32 %v5305, %v5311
    %v5314 = vmul.f32 %v5306, %v5311
    %v5316 = vlaneseq
    %v5317 = vshrl.u32 %v5316, 7
    %v5318 = vsub.s32 0, %v5317
    %v5319 = vrot.slane %v5284, %v5318
    %v5321 = vadd.f32 %v5313, %v5319
    %v5322 = vadd.f32 %v5314, %v5319
    %v5323 = vmul.f32 %v5321, %v93
    %v5324 = vmul.f32 %v5322, %v98
    %v5325 = vpack.c.bf16 %v5324, %v5323
    %v5326 = vld [vmem:[%s20] sm:$0xff]
    %v5327 = vld [vmem:[%s20 + $0x8] sm:$0xff]
    %v5328 = vld [vmem:[%s20 + $0x10] sm:$0xff]
    %v5329 = vld [vmem:[%s20 + $0x18] sm:$0xff]
    %v5330 = vld [vmem:[%s20 + $0x20] sm:$0xff]
    %v5331 = vld [vmem:[%s20 + $0x28] sm:$0xff]
    %v5332 = vld [vmem:[%s20 + $0x30] sm:$0xff]
    %v5333 = vld [vmem:[%s20 + $0x38] sm:$0xff]
    %v5334 = vld [vmem:[%s20 + $0x40] sm:$0xff]
    %v5335 = vld [vmem:[%s20 + $0x48] sm:$0xff]
    %v5336 = vld [vmem:[%s20 + $0x50] sm:$0xff]
    %v5337 = vld [vmem:[%s20 + $0x58] sm:$0xff]
    %v5338 = vld [vmem:[%s20 + $0x60] sm:$0xff]
    %v5339 = vld [vmem:[%s20 + $0x68] sm:$0xff]
    %v5340 = vld [vmem:[%s20 + $0x70] sm:$0xff]
    %v5341 = vld [vmem:[%s20 + $0x78] sm:$0xff]
    %v5342 = vld [vmem:[%s21] sm:$0x3]
    %v5344 = vlaneseq
    %v5345 = vshrl.u32 %v5344, 7
    %v5346 = vsub.s32 0, %v5345
    %v5347 = vrot.slane %v5342, %v5346
    %v5348 = vlaneseq
    %v5349 = vshrl.u32 %v5348, 7
    %v5350 = vsub.s32 1, %v5349
    %v5351 = vrot.slane %v5342, %v5350
    %v5370 = vunpack.c.l.b16 %v5326
    %v5371 = vunpack.c.h.b16 %v5326
    %v5372 = vunpack.c.l.b16 %v5327
    %v5373 = vunpack.c.h.b16 %v5327
    %v5374 = vunpack.c.l.b16 %v5328
    %v5375 = vunpack.c.h.b16 %v5328
    %v5376 = vunpack.c.l.b16 %v5329
    %v5377 = vunpack.c.h.b16 %v5329
    %v5378 = vunpack.c.l.b16 %v5330
    %v5379 = vunpack.c.h.b16 %v5330
    %v5380 = vunpack.c.l.b16 %v5331
    %v5381 = vunpack.c.h.b16 %v5331
    %v5382 = vunpack.c.l.b16 %v5332
    %v5383 = vunpack.c.h.b16 %v5332
    %v5384 = vunpack.c.l.b16 %v5333
    %v5385 = vunpack.c.h.b16 %v5333
    %v5386 = vunpack.c.l.b16 %v5334
    %v5387 = vunpack.c.h.b16 %v5334
    %v5388 = vunpack.c.l.b16 %v5335
    %v5389 = vunpack.c.h.b16 %v5335
    %v5390 = vunpack.c.l.b16 %v5336
    %v5391 = vunpack.c.h.b16 %v5336
    %v5392 = vunpack.c.l.b16 %v5337
    %v5393 = vunpack.c.h.b16 %v5337
    %v5394 = vunpack.c.l.b16 %v5338
    %v5395 = vunpack.c.h.b16 %v5338
    %v5396 = vunpack.c.l.b16 %v5339
    %v5397 = vunpack.c.h.b16 %v5339
    %v5398 = vunpack.c.l.b16 %v5340
    %v5399 = vunpack.c.h.b16 %v5340
    %v5400 = vunpack.c.l.b16 %v5341
    %v5401 = vunpack.c.h.b16 %v5341
    %v5402 = vpack.c.b16 %v5372, %v5370
    %v5403 = vpack.c.b16 %v5373, %v5371
    %v5404 = vpack.c.b16 %v5376, %v5374
    %v5405 = vpack.c.b16 %v5377, %v5375
    %v5406 = vpack.c.b16 %v5380, %v5378
    %v5407 = vpack.c.b16 %v5381, %v5379
    %v5408 = vpack.c.b16 %v5384, %v5382
    %v5409 = vpack.c.b16 %v5385, %v5383
    %v5410 = vpack.c.b16 %v5388, %v5386
    %v5411 = vpack.c.b16 %v5389, %v5387
    %v5412 = vpack.c.b16 %v5392, %v5390
    %v5413 = vpack.c.b16 %v5393, %v5391
    %v5414 = vpack.c.b16 %v5396, %v5394
    %v5415 = vpack.c.b16 %v5397, %v5395
    %v5416 = vpack.c.b16 %v5400, %v5398
    %v5417 = vpack.c.b16 %v5401, %v5399
    %5434 = vmatprep.subr.bf16.mxu0 %v5403
    %5435 = vmatpush1.bf16.msra.mxu0 %v5402
    %5436 = vmatprep.subr.bf16.mxu0 %v5405
    %5437 = vmatpush1.bf16.msra.mxu0 %v5404
    %5438 = vmatprep.subr.bf16.mxu0 %v5407
    %5439 = vmatpush1.bf16.msra.mxu0 %v5406
    %5440 = vmatprep.subr.bf16.mxu0 %v5409
    %5441 = vmatpush1.bf16.msra.mxu0 %v5408
    %5442 = vmatprep.subr.bf16.mxu0 %v5411
    %5443 = vmatpush1.bf16.msra.mxu0 %v5410
    %5444 = vmatprep.subr.bf16.mxu0 %v5413
    %5445 = vmatpush1.bf16.msra.mxu0 %v5412
    %5446 = vmatprep.subr.bf16.mxu0 %v5415
    %5447 = vmatpush1.bf16.msra.mxu0 %v5414
    %5448 = vmatprep.subr.bf16.mxu0 %v5417
    %5449 = vmatpush1.bf16.msra.mxu0 %v5416
    %5450 = vmatprep.subr.bf16.mxu0 0
    %5451 = vmatpush1.bf16.msra.mxu0 0
    %5452 = vmatprep.subr.bf16.mxu0 0
    %5453 = vmatpush1.bf16.msra.mxu0 0
    %5454 = vmatprep.subr.bf16.mxu0 0
    %5455 = vmatpush1.bf16.msra.mxu0 0
    %5456 = vmatprep.subr.bf16.mxu0 0
    %5457 = vmatpush1.bf16.msra.mxu0 0
    %5458 = vmatprep.subr.bf16.mxu0 0
    %5459 = vmatpush1.bf16.msra.mxu0 0
    %5460 = vmatprep.subr.bf16.mxu0 0
    %5461 = vmatpush1.bf16.msra.mxu0 0
    %5462 = vmatprep.subr.bf16.mxu0 0
    %5463 = vmatpush1.bf16.msra.mxu0 0
    %5464 = vmatprep.subr.bf16.mxu0 0
    %5465 = vmatpush1.bf16.msra.mxu0 0
    %5466 = vmatprep.mubr.bf16.mxu0 0
    %5467 = vmatmul.mubr.bf16.gmra.mrb[0].mxu0 %v5325
    %v5468 = vpop.f32.mrb[0].mxu0
    %v5469 = vadd.f32 %v5347, %v5468
    %v5470 = vpop.f32.mrb[0].mxu0
    %v5471 = vadd.f32 %v5351, %v5470
    %v5472 = vpop.f32.mrb[0].mxu0
    %v5473 = vadd.f32 %v5347, %v5472
    %v5474 = vpop.f32.mrb[0].mxu0
    %v5475 = vadd.f32 %v5351, %v5474
    %5476 = vdwg.mxu0
    %v5477 = vmul.f32 %v5469, %v5469
    %v5478 = vmul.f32 %v5471, %v5471
    %v5479 = vmul.f32 %v5473, %v5473
    %v5480 = vmul.f32 %v5475, %v5475
    %v5481 = vmul.f32 %v5469, %v5477
    %v5482 = vmul.f32 %v5471, %v5478
    %v5483 = vmul.f32 %v5473, %v5479
    %v5484 = vmul.f32 %v5475, %v5480
    %v5485 = vmul.f32 %v5481, 0.044715
    %v5486 = vmul.f32 %v5482, 0.044715
    %v5487 = vmul.f32 %v5483, 0.044715
    %v5488 = vmul.f32 %v5484, 0.044715
    %v5489 = vadd.f32 %v5469, %v5485
    %v5490 = vadd.f32 %v5471, %v5486
    %v5491 = vadd.f32 %v5473, %v5487
    %v5492 = vadd.f32 %v5475, %v5488
    %v5493 = vmul.f32 %v5489, 0.7978846
    %v5494 = vmul.f32 %v5490, 0.7978846
    %v5495 = vmul.f32 %v5491, 0.7978846
    %v5496 = vmul.f32 %v5492, 0.7978846
    %v5497 = vtanh.pop %v5493
    %v5498 = vtanh.pop %v5494
    %v5499 = vtanh.pop %v5495
    %v5500 = vtanh.pop %v5496
    %v5501 = vadd.f32 %v5497, 1.0
    %v5502 = vadd.f32 %v5498, 1.0
    %v5503 = vadd.f32 %v5499, 1.0
    %v5504 = vadd.f32 %v5500, 1.0
    %v5505 = vmul.f32 %v5501, 0.5
    %v5506 = vmul.f32 %v5502, 0.5
    %v5507 = vmul.f32 %v5503, 0.5
    %v5508 = vmul.f32 %v5504, 0.5
    %v5509 = vmul.f32 %v5469, %v5505
    %v5510 = vmul.f32 %v5471, %v5506
    %v5511 = vmul.f32 %v5473, %v5507
    %v5512 = vmul.f32 %v5475, %v5508
    %v5513 = vpack.c.bf16 %v5511, %v5509
    %v5514 = vpack.c.bf16 %v5512, %v5510
    %v5515 = vld [vmem:[%s22] sm:$0xf]
    %v5516 = vld [vmem:[%s22 + $0x4] sm:$0xf]
    %v5517 = vld [vmem:[%s22 + $0x8] sm:$0xf]
    %v5518 = vld [vmem:[%s22 + $0xc] sm:$0xf]
    %v5519 = vld [vmem:[%s22 + $0x10] sm:$0xf]
    %v5520 = vld [vmem:[%s22 + $0x14] sm:$0xf]
    %v5521 = vld [vmem:[%s22 + $0x18] sm:$0xf]
    %v5522 = vld [vmem:[%s22 + $0x1c] sm:$0xf]
    %v5523 = vld [vmem:[%s22 + $0x20] sm:$0xf]
    %v5524 = vld [vmem:[%s22 + $0x24] sm:$0xf]
    %v5525 = vld [vmem:[%s22 + $0x28] sm:$0xf]
    %v5526 = vld [vmem:[%s22 + $0x2c] sm:$0xf]
    %v5527 = vld [vmem:[%s22 + $0x30] sm:$0xf]
    %v5528 = vld [vmem:[%s22 + $0x34] sm:$0xf]
    %v5529 = vld [vmem:[%s22 + $0x38] sm:$0xf]
    %v5530 = vld [vmem:[%s22 + $0x3c] sm:$0xf]
    %v5531 = vld [vmem:[%s22 + $0x40] sm:$0xf]
    %v5532 = vld [vmem:[%s22 + $0x44] sm:$0xf]
    %v5533 = vld [vmem:[%s22 + $0x48] sm:$0xf]
    %v5534 = vld [vmem:[%s22 + $0x4c] sm:$0xf]
    %v5535 = vld [vmem:[%s22 + $0x50] sm:$0xf]
    %v5536 = vld [vmem:[%s22 + $0x54] sm:$0xf]
    %v5537 = vld [vmem:[%s22 + $0x58] sm:$0xf]
    %v5538 = vld [vmem:[%s22 + $0x5c] sm:$0xf]
    %v5539 = vld [vmem:[%s22 + $0x60] sm:$0xf]
    %v5540 = vld [vmem:[%s22 + $0x64] sm:$0xf]
    %v5541 = vld [vmem:[%s22 + $0x68] sm:$0xf]
    %v5542 = vld [vmem:[%s22 + $0x6c] sm:$0xf]
    %v5543 = vld [vmem:[%s22 + $0x70] sm:$0xf]
    %v5544 = vld [vmem:[%s22 + $0x74] sm:$0xf]
    %v5545 = vld [vmem:[%s22 + $0x78] sm:$0xf]
    %v5546 = vld [vmem:[%s22 + $0x7c] sm:$0xf]
    %v5547 = vld [vmem:[%s23] sm:$0x1]
    %v5549 = vlaneseq
    %v5550 = vshrl.u32 %v5549, 7
    %v5551 = vsub.s32 0, %v5550
    %v5552 = vrot.slane %v5547, %v5551
    %v5586 = vunpack.c.l.b16 %v5515
    %v5587 = vunpack.c.l.b16 %v5516
    %v5588 = vunpack.c.l.b16 %v5517
    %v5589 = vunpack.c.l.b16 %v5518
    %v5590 = vunpack.c.l.b16 %v5519
    %v5591 = vunpack.c.l.b16 %v5520
    %v5592 = vunpack.c.l.b16 %v5521
    %v5593 = vunpack.c.l.b16 %v5522
    %v5594 = vunpack.c.l.b16 %v5523
    %v5595 = vunpack.c.l.b16 %v5524
    %v5596 = vunpack.c.l.b16 %v5525
    %v5597 = vunpack.c.l.b16 %v5526
    %v5598 = vunpack.c.l.b16 %v5527
    %v5599 = vunpack.c.l.b16 %v5528
    %v5600 = vunpack.c.l.b16 %v5529
    %v5601 = vunpack.c.l.b16 %v5530
    %v5602 = vunpack.c.l.b16 %v5531
    %v5603 = vunpack.c.l.b16 %v5532
    %v5604 = vunpack.c.l.b16 %v5533
    %v5605 = vunpack.c.l.b16 %v5534
    %v5606 = vunpack.c.l.b16 %v5535
    %v5607 = vunpack.c.l.b16 %v5536
    %v5608 = vunpack.c.l.b16 %v5537
    %v5609 = vunpack.c.l.b16 %v5538
    %v5610 = vunpack.c.l.b16 %v5539
    %v5611 = vunpack.c.l.b16 %v5540
    %v5612 = vunpack.c.l.b16 %v5541
    %v5613 = vunpack.c.l.b16 %v5542
    %v5614 = vunpack.c.l.b16 %v5543
    %v5615 = vunpack.c.l.b16 %v5544
    %v5616 = vunpack.c.l.b16 %v5545
    %v5617 = vunpack.c.l.b16 %v5546
    %v5618 = vpack.c.b16 %v5587, %v5586
    %v5619 = vpack.c.b16 %v5589, %v5588
    %v5620 = vpack.c.b16 %v5591, %v5590
    %v5621 = vpack.c.b16 %v5593, %v5592
    %v5622 = vpack.c.b16 %v5595, %v5594
    %v5623 = vpack.c.b16 %v5597, %v5596
    %v5624 = vpack.c.b16 %v5599, %v5598
    %v5625 = vpack.c.b16 %v5601, %v5600
    %v5626 = vpack.c.b16 %v5603, %v5602
    %v5627 = vpack.c.b16 %v5605, %v5604
    %v5628 = vpack.c.b16 %v5607, %v5606
    %v5629 = vpack.c.b16 %v5609, %v5608
    %v5630 = vpack.c.b16 %v5611, %v5610
    %v5631 = vpack.c.b16 %v5613, %v5612
    %v5632 = vpack.c.b16 %v5615, %v5614
    %v5633 = vpack.c.b16 %v5617, %v5616
    %5650 = vmatprep.subr.bf16.mxu0 0
    %5651 = vmatpush1.bf16.msra.mxu0 %v5618
    %5652 = vmatprep.subr.bf16.mxu0 0
    %5653 = vmatpush1.bf16.msra.mxu0 %v5619
    %5654 = vmatprep.subr.bf16.mxu0 0
    %5655 = vmatpush1.bf16.msra.mxu0 %v5620
    %5656 = vmatprep.subr.bf16.mxu0 0
    %5657 = vmatpush1.bf16.msra.mxu0 %v5621
    %5658 = vmatprep.subr.bf16.mxu0 0
    %5659 = vmatpush1.bf16.msra.mxu0 %v5622
    %5660 = vmatprep.subr.bf16.mxu0 0
    %5661 = vmatpush1.bf16.msra.mxu0 %v5623
    %5662 = vmatprep.subr.bf16.mxu0 0
    %5663 = vmatpush1.bf16.msra.mxu0 %v5624
    %5664 = vmatprep.subr.bf16.mxu0 0
    %5665 = vmatpush1.bf16.msra.mxu0 %v5625
    %5666 = vmatprep.subr.bf16.mxu0 0
    %5667 = vmatpush1.bf16.msra.mxu0 %v5626
    %5668 = vmatprep.subr.bf16.mxu0 0
    %5669 = vmatpush1.bf16.msra.mxu0 %v5627
    %5670 = vmatprep.subr.bf16.mxu0 0
    %5671 = vmatpush1.bf16.msra.mxu0 %v5628
    %5672 = vmatprep.subr.bf16.mxu0 0
    %5673 = vmatpush1.bf16.msra.mxu0 %v5629
    %5674 = vmatprep.subr.bf16.mxu0 0
    %5675 = vmatpush1.bf16.msra.mxu0 %v5630
    %5676 = vmatprep.subr.bf16.mxu0 0
    %5677 = vmatpush1.bf16.msra.mxu0 %v5631
    %5678 = vmatprep.subr.bf16.mxu0 0
    %5679 = vmatpush1.bf16.msra.mxu0 %v5632
    %5680 = vmatprep.subr.bf16.mxu0 0
    %5681 = vmatpush1.bf16.msra.mxu0 %v5633
    %5682 = vmatprep.mubr.bf16.mxu0 %v5514
    %5683 = vmatmul.mubr.bf16.gmra.mrb[0].mxu0 %v5513
    %v5684 = vpop.f32.mrb[0].mxu0
    %v5685 = vadd.f32 %v5552, %v5684
    %v5686 = vpop.f32.mrb[0].mxu0
    %v5687 = vpop.f32.mrb[0].mxu0
    %v5688 = vadd.f32 %v5552, %v5687
    %v5689 = vpop.f32.mrb[0].mxu0
    %5690 = vdwg.mxu0
    %v5691 = vadd.f32 %v5685, %v5323
    %v5692 = vadd.f32 %v5688, %v5324
    %v5693 = vld [vmem:[%s24] sm:$0x1]
    %v5694 = vld [vmem:[%s25] sm:$0x1]
    %5695 = vadd.xlane.f32.xlu0 %v5691
    %v5696 = vpop.xlane.xlu0 %5695
    %5697 = vadd.xlane.f32.xlu0 %v5692
    %v5698 = vpop.xlane.xlu0 %5697
    %v5699 = vmul.f32 %v5696, %v114
    %v5700 = vmul.f32 %v5698, %v114
    %v5701 = vsub.f32 %v5691, %v5699
    %v5702 = vsub.f32 %v5692, %v5700
    %v5703 = vmul.f32 %v5701, %v5701
    %v5704 = vmul.f32 %v5702, %v5702
    %5705 = vadd.xlane.f32.xlu0 %v5703
    %v5706 = vpop.xlane.xlu0 %5705
    %5707 = vadd.xlane.f32.xlu0 %v5704
    %v5708 = vpop.xlane.xlu0 %5707
    %v5709 = vmul.f32 %v5706, %v114
    %v5710 = vmul.f32 %v5708, %v114
    %v5711 = vadd.f32 %v5709, 1e-12
    %v5712 = vadd.f32 %v5710, 1e-12
    %v5713 = vrsqrt.pop %v5711
    %v5714 = vrsqrt.pop %v5712
    %v5715 = vmul.f32 %v5701, %v5713
    %v5716 = vmul.f32 %v5702, %v5714
    %v5718 = vlaneseq
    %v5719 = vshrl.u32 %v5718, 7
    %v5720 = vsub.s32 0, %v5719
    %v5721 = vrot.slane %v5693, %v5720
    %v5723 = vmul.f32 %v5715, %v5721
    %v5724 = vmul.f32 %v5716, %v5721
    %v5726 = vlaneseq
    %v5727 = vshrl.u32 %v5726, 7
    %v5728 = vsub.s32 0, %v5727
    %v5729 = vrot.slane %v5694, %v5728
    %v5731 = vadd.f32 %v5723, %v5729
    %v5732 = vadd.f32 %v5724, %v5729
    %v5733 = vmul.f32 %v5731, %v93
    %v5734 = vmul.f32 %v5732, %v98
    %v5735 = vpack.c.bf16 %v5734, %v5733
    %s5736 = scalar_lea.vmem %s8, 192
    %v5737 = vld [vmem:[%s5736] sm:$0xff]
    %v5738 = vld [vmem:[%s5736 + $0x8] sm:$0xf]
    %v5739 = vld [vmem:[%s5736 + $0xc] sm:$0xff]
    %v5740 = vld [vmem:[%s5736 + $0x14] sm:$0xf]
    %v5741 = vld [vmem:[%s5736 + $0x18] sm:$0xff]
    %v5742 = vld [vmem:[%s5736 + $0x20] sm:$0xf]
    %v5743 = vld [vmem:[%s5736 + $0x24] sm:$0xff]
    %v5744 = vld [vmem:[%s5736 + $0x2c] sm:$0xf]
    %v5745 = vld [vmem:[%s5736 + $0x30] sm:$0xff]
    %v5746 = vld [vmem:[%s5736 + $0x38] sm:$0xf]
    %v5747 = vld [vmem:[%s5736 + $0x3c] sm:$0xff]
    %v5748 = vld [vmem:[%s5736 + $0x44] sm:$0xf]
    %v5749 = vld [vmem:[%s5736 + $0x48] sm:$0xff]
    %v5750 = vld [vmem:[%s5736 + $0x50] sm:$0xf]
    %v5751 = vld [vmem:[%s5736 + $0x54] sm:$0xff]
    %v5752 = vld [vmem:[%s5736 + $0x5c] sm:$0xf]
    %v5753 = vld [vmem:[%s5736 + $0x60] sm:$0xff]
    %v5754 = vld [vmem:[%s5736 + $0x68] sm:$0xf]
    %v5755 = vld [vmem:[%s5736 + $0x6c] sm:$0xff]
    %v5756 = vld [vmem:[%s5736 + $0x74] sm:$0xf]
    %v5757 = vld [vmem:[%s5736 + $0x78] sm:$0xff]
    %v5758 = vld [vmem:[%s5736 + $0x80] sm:$0xf]
    %v5759 = vld [vmem:[%s5736 + $0x84] sm:$0xff]
    %v5760 = vld [vmem:[%s5736 + $0x8c] sm:$0xf]
    %v5761 = vld [vmem:[%s5736 + $0x90] sm:$0xff]
    %v5762 = vld [vmem:[%s5736 + $0x98] sm:$0xf]
    %v5763 = vld [vmem:[%s5736 + $0x9c] sm:$0xff]
    %v5764 = vld [vmem:[%s5736 + $0xa4] sm:$0xf]
    %v5765 = vld [vmem:[%s5736 + $0xa8] sm:$0xff]
    %v5766 = vld [vmem:[%s5736 + $0xb0] sm:$0xf]
    %v5767 = vld [vmem:[%s5736 + $0xb4] sm:$0xff]
    %v5768 = vld [vmem:[%s5736 + $0xbc] sm:$0xf]
    %s5769 = scalar_lea.vmem %s9, 3
    %v5770 = vld [vmem:[%s5769] sm:$0x7]
    %v5772 = vlaneseq
    %v5773 = vshrl.u32 %v5772, 7
    %v5774 = vsub.s32 0, %v5773
    %v5775 = vrot.slane %v5770, %v5774
    %v5776 = vlaneseq
    %v5777 = vshrl.u32 %v5776, 7
    %v5778 = vsub.s32 1, %v5777
    %v5779 = vrot.slane %v5770, %v5778
    %v5780 = vlaneseq
    %v5781 = vshrl.u32 %v5780, 7
    %v5782 = vsub.s32 2, %v5781
    %v5783 = vrot.slane %v5770, %v5782
    %v5819 = vunpack.c.l.b16 %v5737
    %v5820 = vunpack.c.h.b16 %v5737
    %v5821 = vunpack.c.l.b16 %v5738
    %v5822 = vunpack.c.l.b16 %v5739
    %v5823 = vunpack.c.h.b16 %v5739
    %v5824 = vunpack.c.l.b16 %v5740
    %v5825 = vunpack.c.l.b16 %v5741
    %v5826 = vunpack.c.h.b16 %v5741
    %v5827 = vunpack.c.l.b16 %v5742
    %v5828 = vunpack.c.l.b16 %v5743
    %v5829 = vunpack.c.h.b16 %v5743
    %v5830 = vunpack.c.l.b16 %v5744
    %v5831 = vunpack.c.l.b16 %v5745
    %v5832 = vunpack.c.h.b16 %v5745
    %v5833 = vunpack.c.l.b16 %v5746
    %v5834 = vunpack.c.l.b16 %v5747
    %v5835 = vunpack.c.h.b16 %v5747
    %v5836 = vunpack.c.l.b16 %v5748
    %v5837 = vunpack.c.l.b16 %v5749
    %v5838 = vunpack.c.h.b16 %v5749
    %v5839 = vunpack.c.l.b16 %v5750
    %v5840 = vunpack.c.l.b16 %v5751
    %v5841 = vunpack.c.h.b16 %v5751
    %v5842 = vunpack.c.l.b16 %v5752
    %v5843 = vunpack.c.l.b16 %v5753
    %v5844 = vunpack.c.h.b16 %v5753
    %v5845 = vunpack.c.l.b16 %v5754
    %v5846 = vunpack.c.l.b16 %v5755
    %v5847 = vunpack.c.h.b16 %v5755
    %v5848 = vunpack.c.l.b16 %v5756
    %v5849 = vunpack.c.l.b16 %v5757
    %v5850 = vunpack.c.h.b16 %v5757
    %v5851 = vunpack.c.l.b16 %v5758
    %v5852 = vunpack.c.l.b16 %v5759
    %v5853 = vunpack.c.h.b16 %v5759
    %v5854 = vunpack.c.l.b16 %v5760
    %v5855 = vunpack.c.l.b16 %v5761
    %v5856 = vunpack.c.h.b16 %v5761
    %v5857 = vunpack.c.l.b16 %v5762
    %v5858 = vunpack.c.l.b16 %v5763
    %v5859 = vunpack.c.h.b16 %v5763
    %v5860 = vunpack.c.l.b16 %v5764
    %v5861 = vunpack.c.l.b16 %v5765
    %v5862 = vunpack.c.h.b16 %v5765
    %v5863 = vunpack.c.l.b16 %v5766
    %v5864 = vunpack.c.l.b16 %v5767
    %v5865 = vunpack.c.h.b16 %v5767
    %v5866 = vunpack.c.l.b16 %v5768
    %v5867 = vpack.c.b16 %v5822, %v5819
    %v5868 = vpack.c.b16 %v5823, %v5820
    %v5869 = vpack.c.b16 %v5824, %v5821
    %v5870 = vpack.c.b16 %v5828, %v5825
    %v5871 = vpack.c.b16 %v5829, %v5826
    %v5872 = vpack.c.b16 %v5830, %v5827
    %v5873 = vpack.c.b16 %v5834, %v5831
    %v5874 = vpack.c.b16 %v5835, %v5832
    %v5875 = vpack.c.b16 %v5836, %v5833
    %v5876 = vpack.c.b16 %v5840, %v5837
    %v5877 = vpack.c.b16 %v5841, %v5838
    %v5878 = vpack.c.b16 %v5842, %v5839
    %v5879 = vpack.c.b16 %v5846, %v5843
    %v5880 = vpack.c.b16 %v5847, %v5844
    %v5881 = vpack.c.b16 %v5848, %v5845
    %v5882 = vpack.c.b16 %v5852, %v5849
    %v5883 = vpack.c.b16 %v5853, %v5850
    %v5884 = vpack.c.b16 %v5854, %v5851
    %v5885 = vpack.c.b16 %v5858, %v5855
    %v5886 = vpack.c.b16 %v5859, %v5856
    %v5887 = vpack.c.b16 %v5860, %v5857
    %v5888 = vpack.c.b16 %v5864, %v5861
    %v5889 = vpack.c.b16 %v5865, %v5862
    %v5890 = vpack.c.b16 %v5866, %v5863
    %5915 = vmatprep.subr.bf16.mxu0 %v5868
    %5916 = vmatpush1.bf16.msra.mxu0 %v5867
    %5917 = vmatprep.subr.bf16.mxu0 %v5871
    %5918 = vmatpush1.bf16.msra.mxu0 %v5870
    %5919 = vmatprep.subr.bf16.mxu0 %v5874
    %5920 = vmatpush1.bf16.msra.mxu0 %v5873
    %5921 = vmatprep.subr.bf16.mxu0 %v5877
    %5922 = vmatpush1.bf16.msra.mxu0 %v5876
    %5923 = vmatprep.subr.bf16.mxu0 %v5880
    %5924 = vmatpush1.bf16.msra.mxu0 %v5879
    %5925 = vmatprep.subr.bf16.mxu0 %v5883
    %5926 = vmatpush1.bf16.msra.mxu0 %v5882
    %5927 = vmatprep.subr.bf16.mxu0 %v5886
    %5928 = vmatpush1.bf16.msra.mxu0 %v5885
    %5929 = vmatprep.subr.bf16.mxu0 %v5889
    %5930 = vmatpush1.bf16.msra.mxu0 %v5888
    %5931 = vmatprep.subr.bf16.mxu0 0
    %5932 = vmatpush1.bf16.msra.mxu0 0
    %5933 = vmatprep.subr.bf16.mxu0 0
    %5934 = vmatpush1.bf16.msra.mxu0 0
    %5935 = vmatprep.subr.bf16.mxu0 0
    %5936 = vmatpush1.bf16.msra.mxu0 0
    %5937 = vmatprep.subr.bf16.mxu0 0
    %5938 = vmatpush1.bf16.msra.mxu0 0
    %5939 = vmatprep.subr.bf16.mxu0 0
    %5940 = vmatpush1.bf16.msra.mxu0 0
    %5941 = vmatprep.subr.bf16.mxu0 0
    %5942 = vmatpush1.bf16.msra.mxu0 0
    %5943 = vmatprep.subr.bf16.mxu0 0
    %5944 = vmatpush1.bf16.msra.mxu0 0
    %5945 = vmatprep.subr.bf16.mxu0 0
    %5946 = vmatpush1.bf16.msra.mxu0 0
    %5947 = vmatprep.mubr.bf16.mxu0 0
    %5948 = vmatmul.mubr.bf16.gmra.mrb[0].mxu0 %v5735
    %v5949 = vpop.f32.mrb[0].mxu0
    %v5950 = vadd.f32 %v5775, %v5949
    %v5951 = vpop.f32.mrb[0].mxu0
    %v5952 = vadd.f32 %v5779, %v5951
    %v5953 = vpop.f32.mrb[0].mxu0
    %v5954 = vadd.f32 %v5775, %v5953
    %v5955 = vpop.f32.mrb[0].mxu0
    %v5956 = vadd.f32 %v5779, %v5955
    %5957 = vdwg.mxu0
    %5958 = vmatprep.subr.bf16.mxu0 0
    %5959 = vmatpush1.bf16.msra.mxu0 %v5869
    %5960 = vmatprep.subr.bf16.mxu0 0
    %5961 = vmatpush1.bf16.msra.mxu0 %v5872
    %5962 = vmatprep.subr.bf16.mxu0 0
    %5963 = vmatpush1.bf16.msra.mxu0 %v5875
    %5964 = vmatprep.subr.bf16.mxu0 0
    %5965 = vmatpush1.bf16.msra.mxu0 %v5878
    %5966 = vmatprep.subr.bf16.mxu0 0
    %5967 = vmatpush1.bf16.msra.mxu0 %v5881
    %5968 = vmatprep.subr.bf16.mxu0 0
    %5969 = vmatpush1.bf16.msra.mxu0 %v5884
    %5970 = vmatprep.subr.bf16.mxu0 0
    %5971 = vmatpush1.bf16.msra.mxu0 %v5887
    %5972 = vmatprep.subr.bf16.mxu0 0
    %5973 = vmatpush1.bf16.msra.mxu0 %v5890
    %5974 = vmatprep.subr.bf16.mxu0 0
    %5975 = vmatpush1.bf16.msra.mxu0 0
    %5976 = vmatprep.subr.bf16.mxu0 0
    %5977 = vmatpush1.bf16.msra.mxu0 0
    %5978 = vmatprep.subr.bf16.mxu0 0
    %5979 = vmatpush1.bf16.msra.mxu0 0
    %5980 = vmatprep.subr.bf16.mxu0 0
    %5981 = vmatpush1.bf16.msra.mxu0 0
    %5982 = vmatprep.subr.bf16.mxu0 0
    %5983 = vmatpush1.bf16.msra.mxu0 0
    %5984 = vmatprep.subr.bf16.mxu0 0
    %5985 = vmatpush1.bf16.msra.mxu0 0
    %5986 = vmatprep.subr.bf16.mxu0 0
    %5987 = vmatpush1.bf16.msra.mxu0 0
    %5988 = vmatprep.subr.bf16.mxu0 0
    %5989 = vmatpush1.bf16.msra.mxu0 0
    %5990 = vmatprep.mubr.bf16.mxu0 0
    %5991 = vmatmul.mubr.bf16.gmra.mrb[0].mxu0 %v5735
    %v5992 = vpop.f32.mrb[0].mxu0
    %v5993 = vadd.f32 %v5783, %v5992
    %v5994 = vpop.f32.mrb[0].mxu0
    %v5995 = vpop.f32.mrb[0].mxu0
    %v5996 = vadd.f32 %v5783, %v5995
    %v5997 = vpop.f32.mrb[0].mxu0
    %5998 = vdwg.mxu0
    %6001 = vrot.lane.b32.xlu0 %v5950, 96
    %v6002 = vpop.permute.xlu0 %6001
    %6003 = vrot.lane.b32.xlu0 %v5954, 96
    %v6004 = vpop.permute.xlu0 %6003
    %6007 = vrot.lane.b32.xlu0 %v5950, 64
    %v6008 = vpop.permute.xlu0 %6007
    %6009 = vrot.lane.b32.xlu0 %v5954, 64
    %v6010 = vpop.permute.xlu0 %6009
    %6013 = vrot.lane.b32.xlu0 %v5950, 32
    %v6014 = vpop.permute.xlu0 %6013
    %6015 = vrot.lane.b32.xlu0 %v5954, 32
    %v6016 = vpop.permute.xlu0 %6015
    %6021 = vrot.lane.b32.xlu0 %v5952, 96
    %v6022 = vpop.permute.xlu0 %6021
    %6023 = vrot.lane.b32.xlu0 %v5956, 96
    %v6024 = vpop.permute.xlu0 %6023
    %6027 = vrot.lane.b32.xlu0 %v5952, 64
    %v6028 = vpop.permute.xlu0 %6027
    %6029 = vrot.lane.b32.xlu0 %v5956, 64
    %v6030 = vpop.permute.xlu0 %6029
    %6033 = vrot.lane.b32.xlu0 %v5952, 32
    %v6034 = vpop.permute.xlu0 %6033
    %6035 = vrot.lane.b32.xlu0 %v5956, 32
    %v6036 = vpop.permute.xlu0 %6035
    %6041 = vrot.lane.b32.xlu0 %v5993, 96
    %v6042 = vpop.permute.xlu0 %6041
    %6043 = vrot.lane.b32.xlu0 %v5996, 96
    %v6044 = vpop.permute.xlu0 %6043
    %6047 = vrot.lane.b32.xlu0 %v5993, 64
    %v6048 = vpop.permute.xlu0 %6047
    %6049 = vrot.lane.b32.xlu0 %v5996, 64
    %v6050 = vpop.permute.xlu0 %6049
    %6053 = vrot.lane.b32.xlu0 %v5993, 32
    %v6054 = vpop.permute.xlu0 %6053
    %6055 = vrot.lane.b32.xlu0 %v5996, 32
    %v6056 = vpop.permute.xlu0 %6055
    %v6059 = vcombine.low %v5950, %v6008
    %v6060 = vcombine.high %v5950, %v6008
    %v6062 = vunpack.c.l.s4 1983009808
    %v6063 = vunpack.c.0.s8 %v6062
    %v6064 = vlaneseq
    %v6065 = vshrl.u32 %v6064, 7
    %v6066 = vsub.s32 %v6063, %v6065
    %v6067 = vrot.slane %v6059, %v6066
    %v6069 = vunpack.c.l.s4 1983009808
    %v6070 = vunpack.c.0.s8 %v6069
    %v6071 = vlaneseq
    %v6072 = vshrl.u32 %v6071, 7
    %v6073 = vsub.s32 %v6070, %v6072
    %v6074 = vrot.slane %v6060, %v6073
    %v6075 = vcombine.low %v6002, %v6014
    %v6076 = vcombine.high %v6002, %v6014
    %v6078 = vunpack.c.l.s4 1983009808
    %v6079 = vunpack.c.0.s8 %v6078
    %v6080 = vlaneseq
    %v6081 = vshrl.u32 %v6080, 7
    %v6082 = vsub.s32 %v6079, %v6081
    %v6083 = vrot.slane %v6075, %v6082
    %v6085 = vunpack.c.l.s4 1983009808
    %v6086 = vunpack.c.0.s8 %v6085
    %v6087 = vlaneseq
    %v6088 = vshrl.u32 %v6087, 7
    %v6089 = vsub.s32 %v6086, %v6088
    %v6090 = vrot.slane %v6076, %v6089
    %v6091 = vcombine.low %v5952, %v6028
    %v6092 = vcombine.high %v5952, %v6028
    %v6094 = vunpack.c.l.s4 1983009808
    %v6095 = vunpack.c.0.s8 %v6094
    %v6096 = vlaneseq
    %v6097 = vshrl.u32 %v6096, 7
    %v6098 = vsub.s32 %v6095, %v6097
    %v6099 = vrot.slane %v6091, %v6098
    %v6101 = vunpack.c.l.s4 1983009808
    %v6102 = vunpack.c.0.s8 %v6101
    %v6103 = vlaneseq
    %v6104 = vshrl.u32 %v6103, 7
    %v6105 = vsub.s32 %v6102, %v6104
    %v6106 = vrot.slane %v6092, %v6105
    %v6107 = vcombine.low %v6022, %v6034
    %v6108 = vcombine.high %v6022, %v6034
    %v6110 = vunpack.c.l.s4 1983009808
    %v6111 = vunpack.c.0.s8 %v6110
    %v6112 = vlaneseq
    %v6113 = vshrl.u32 %v6112, 7
    %v6114 = vsub.s32 %v6111, %v6113
    %v6115 = vrot.slane %v6107, %v6114
    %v6117 = vunpack.c.l.s4 1983009808
    %v6118 = vunpack.c.0.s8 %v6117
    %v6119 = vlaneseq
    %v6120 = vshrl.u32 %v6119, 7
    %v6121 = vsub.s32 %v6118, %v6120
    %v6122 = vrot.slane %v6108, %v6121
    %v6123 = vcombine.low %v6067, %v6083
    %v6124 = vcombine.high %v6067, %v6083
    %v6126 = vunpack.c.l.s4 1934713408
    %v6127 = vunpack.c.0.s8 %v6126
    %v6128 = vlaneseq
    %v6129 = vshrl.u32 %v6128, 7
    %v6130 = vsub.s32 %v6127, %v6129
    %v6131 = vrot.slane %v6123, %v6130
    %v6133 = vunpack.c.l.s4 1934713408
    %v6134 = vunpack.c.0.s8 %v6133
    %v6135 = vlaneseq
    %v6136 = vshrl.u32 %v6135, 7
    %v6137 = vsub.s32 %v6134, %v6136
    %v6138 = vrot.slane %v6124, %v6137
    %v6139 = vcombine.low %v6074, %v6090
    %v6140 = vcombine.high %v6074, %v6090
    %v6142 = vunpack.c.l.s4 1934713408
    %v6143 = vunpack.c.0.s8 %v6142
    %v6144 = vlaneseq
    %v6145 = vshrl.u32 %v6144, 7
    %v6146 = vsub.s32 %v6143, %v6145
    %v6147 = vrot.slane %v6139, %v6146
    %v6149 = vunpack.c.l.s4 1934713408
    %v6150 = vunpack.c.0.s8 %v6149
    %v6151 = vlaneseq
    %v6152 = vshrl.u32 %v6151, 7
    %v6153 = vsub.s32 %v6150, %v6152
    %v6154 = vrot.slane %v6140, %v6153
    %v6155 = vcombine.low %v6099, %v6115
    %v6156 = vcombine.high %v6099, %v6115
    %v6158 = vunpack.c.l.s4 1934713408
    %v6159 = vunpack.c.0.s8 %v6158
    %v6160 = vlaneseq
    %v6161 = vshrl.u32 %v6160, 7
    %v6162 = vsub.s32 %v6159, %v6161
    %v6163 = vrot.slane %v6155, %v6162
    %v6165 = vunpack.c.l.s4 1934713408
    %v6166 = vunpack.c.0.s8 %v6165
    %v6167 = vlaneseq
    %v6168 = vshrl.u32 %v6167, 7
    %v6169 = vsub.s32 %v6166, %v6168
    %v6170 = vrot.slane %v6156, %v6169
    %v6171 = vcombine.low %v6106, %v6122
    %v6172 = vcombine.high %v6106, %v6122
    %v6174 = vunpack.c.l.s4 1934713408
    %v6175 = vunpack.c.0.s8 %v6174
    %v6176 = vlaneseq
    %v6177 = vshrl.u32 %v6176, 7
    %v6178 = vsub.s32 %v6175, %v6177
    %v6179 = vrot.slane %v6171, %v6178
    %v6181 = vunpack.c.l.s4 1934713408
    %v6182 = vunpack.c.0.s8 %v6181
    %v6183 = vlaneseq
    %v6184 = vshrl.u32 %v6183, 7
    %v6185 = vsub.s32 %v6182, %v6184
    %v6186 = vrot.slane %v6172, %v6185
    %v6187 = vcombine.low %v6131, %v6163
    %v6188 = vcombine.high %v6131, %v6163
    %v6189 = vcombine.low %v6138, %v6170
    %v6190 = vcombine.high %v6138, %v6170
    %v6191 = vcombine.low %v6147, %v6179
    %v6192 = vcombine.high %v6147, %v6179
    %v6193 = vcombine.low %v6154, %v6186
    %v6194 = vcombine.high %v6154, %v6186
    %v6195 = vcombine.low %v5993, %v6048
    %v6196 = vcombine.high %v5993, %v6048
    %v6198 = vunpack.c.l.s4 1983009808
    %v6199 = vunpack.c.0.s8 %v6198
    %v6200 = vlaneseq
    %v6201 = vshrl.u32 %v6200, 7
    %v6202 = vsub.s32 %v6199, %v6201
    %v6203 = vrot.slane %v6195, %v6202
    %v6205 = vunpack.c.l.s4 1983009808
    %v6206 = vunpack.c.0.s8 %v6205
    %v6207 = vlaneseq
    %v6208 = vshrl.u32 %v6207, 7
    %v6209 = vsub.s32 %v6206, %v6208
    %v6210 = vrot.slane %v6196, %v6209
    %v6211 = vcombine.low %v6042, %v6054
    %v6212 = vcombine.high %v6042, %v6054
    %v6214 = vunpack.c.l.s4 1983009808
    %v6215 = vunpack.c.0.s8 %v6214
    %v6216 = vlaneseq
    %v6217 = vshrl.u32 %v6216, 7
    %v6218 = vsub.s32 %v6215, %v6217
    %v6219 = vrot.slane %v6211, %v6218
    %v6221 = vunpack.c.l.s4 1983009808
    %v6222 = vunpack.c.0.s8 %v6221
    %v6223 = vlaneseq
    %v6224 = vshrl.u32 %v6223, 7
    %v6225 = vsub.s32 %v6222, %v6224
    %v6226 = vrot.slane %v6212, %v6225
    %v6227 = vcombine.low %v6203, %v6219
    %v6228 = vcombine.high %v6203, %v6219
    %v6230 = vunpack.c.l.s4 1934713408
    %v6231 = vunpack.c.0.s8 %v6230
    %v6232 = vlaneseq
    %v6233 = vshrl.u32 %v6232, 7
    %v6234 = vsub.s32 %v6231, %v6233
    %v6235 = vrot.slane %v6227, %v6234
    %v6237 = vunpack.c.l.s4 1934713408
    %v6238 = vunpack.c.0.s8 %v6237
    %v6239 = vlaneseq
    %v6240 = vshrl.u32 %v6239, 7
    %v6241 = vsub.s32 %v6238, %v6240
    %v6242 = vrot.slane %v6228, %v6241
    %v6243 = vcombine.low %v6210, %v6226
    %v6244 = vcombine.high %v6210, %v6226
    %v6246 = vunpack.c.l.s4 1934713408
    %v6247 = vunpack.c.0.s8 %v6246
    %v6248 = vlaneseq
    %v6249 = vshrl.u32 %v6248, 7
    %v6250 = vsub.s32 %v6247, %v6249
    %v6251 = vrot.slane %v6243, %v6250
    %v6253 = vunpack.c.l.s4 1934713408
    %v6254 = vunpack.c.0.s8 %v6253
    %v6255 = vlaneseq
    %v6256 = vshrl.u32 %v6255, 7
    %v6257 = vsub.s32 %v6254, %v6256
    %v6258 = vrot.slane %v6244, %v6257
    %v6259 = vcombine.high %v6235, 0.0
    %v6260 = vcombine.high %v6242, 0.0
    %v6261 = vcombine.high %v6251, 0.0
    %v6262 = vcombine.high %v6258, 0.0
    %v6263 = vcombine.low %v5954, %v6010
    %v6264 = vcombine.high %v5954, %v6010
    %v6266 = vunpack.c.l.s4 1983009808
    %v6267 = vunpack.c.0.s8 %v6266
    %v6268 = vlaneseq
    %v6269 = vshrl.u32 %v6268, 7
    %v6270 = vsub.s32 %v6267, %v6269
    %v6271 = vrot.slane %v6263, %v6270
    %v6273 = vunpack.c.l.s4 1983009808
    %v6274 = vunpack.c.0.s8 %v6273
    %v6275 = vlaneseq
    %v6276 = vshrl.u32 %v6275, 7
    %v6277 = vsub.s32 %v6274, %v6276
    %v6278 = vrot.slane %v6264, %v6277
    %v6279 = vcombine.low %v6004, %v6016
    %v6280 = vcombine.high %v6004, %v6016
    %v6282 = vunpack.c.l.s4 1983009808
    %v6283 = vunpack.c.0.s8 %v6282
    %v6284 = vlaneseq
    %v6285 = vshrl.u32 %v6284, 7
    %v6286 = vsub.s32 %v6283, %v6285
    %v6287 = vrot.slane %v6279, %v6286
    %v6289 = vunpack.c.l.s4 1983009808
    %v6290 = vunpack.c.0.s8 %v6289
    %v6291 = vlaneseq
    %v6292 = vshrl.u32 %v6291, 7
    %v6293 = vsub.s32 %v6290, %v6292
    %v6294 = vrot.slane %v6280, %v6293
    %v6295 = vcombine.low %v5956, %v6030
    %v6296 = vcombine.high %v5956, %v6030
    %v6298 = vunpack.c.l.s4 1983009808
    %v6299 = vunpack.c.0.s8 %v6298
    %v6300 = vlaneseq
    %v6301 = vshrl.u32 %v6300, 7
    %v6302 = vsub.s32 %v6299, %v6301
    %v6303 = vrot.slane %v6295, %v6302
    %v6305 = vunpack.c.l.s4 1983009808
    %v6306 = vunpack.c.0.s8 %v6305
    %v6307 = vlaneseq
    %v6308 = vshrl.u32 %v6307, 7
    %v6309 = vsub.s32 %v6306, %v6308
    %v6310 = vrot.slane %v6296, %v6309
    %v6311 = vcombine.low %v6024, %v6036
    %v6312 = vcombine.high %v6024, %v6036
    %v6314 = vunpack.c.l.s4 1983009808
    %v6315 = vunpack.c.0.s8 %v6314
    %v6316 = vlaneseq
    %v6317 = vshrl.u32 %v6316, 7
    %v6318 = vsub.s32 %v6315, %v6317
    %v6319 = vrot.slane %v6311, %v6318
    %v6321 = vunpack.c.l.s4 1983009808
    %v6322 = vunpack.c.0.s8 %v6321
    %v6323 = vlaneseq
    %v6324 = vshrl.u32 %v6323, 7
    %v6325 = vsub.s32 %v6322, %v6324
    %v6326 = vrot.slane %v6312, %v6325
    %v6327 = vcombine.low %v6271, %v6287
    %v6328 = vcombine.high %v6271, %v6287
    %v6330 = vunpack.c.l.s4 1934713408
    %v6331 = vunpack.c.0.s8 %v6330
    %v6332 = vlaneseq
    %v6333 = vshrl.u32 %v6332, 7
    %v6334 = vsub.s32 %v6331, %v6333
    %v6335 = vrot.slane %v6327, %v6334
    %v6337 = vunpack.c.l.s4 1934713408
    %v6338 = vunpack.c.0.s8 %v6337
    %v6339 = vlaneseq
    %v6340 = vshrl.u32 %v6339, 7
    %v6341 = vsub.s32 %v6338, %v6340
    %v6342 = vrot.slane %v6328, %v6341
    %v6343 = vcombine.low %v6278, %v6294
    %v6344 = vcombine.high %v6278, %v6294
    %v6346 = vunpack.c.l.s4 1934713408
    %v6347 = vunpack.c.0.s8 %v6346
    %v6348 = vlaneseq
    %v6349 = vshrl.u32 %v6348, 7
    %v6350 = vsub.s32 %v6347, %v6349
    %v6351 = vrot.slane %v6343, %v6350
    %v6353 = vunpack.c.l.s4 1934713408
    %v6354 = vunpack.c.0.s8 %v6353
    %v6355 = vlaneseq
    %v6356 = vshrl.u32 %v6355, 7
    %v6357 = vsub.s32 %v6354, %v6356
    %v6358 = vrot.slane %v6344, %v6357
    %v6359 = vcombine.low %v6303, %v6319
    %v6360 = vcombine.high %v6303, %v6319
    %v6362 = vunpack.c.l.s4 1934713408
    %v6363 = vunpack.c.0.s8 %v6362
    %v6364 = vlaneseq
    %v6365 = vshrl.u32 %v6364, 7
    %v6366 = vsub.s32 %v6363, %v6365
    %v6367 = vrot.slane %v6359, %v6366
    %v6369 = vunpack.c.l.s4 1934713408
    %v6370 = vunpack.c.0.s8 %v6369
    %v6371 = vlaneseq
    %v6372 = vshrl.u32 %v6371, 7
    %v6373 = vsub.s32 %v6370, %v6372
    %v6374 = vrot.slane %v6360, %v6373
    %v6375 = vcombine.low %v6310, %v6326
    %v6376 = vcombine.high %v6310, %v6326
    %v6378 = vunpack.c.l.s4 1934713408
    %v6379 = vunpack.c.0.s8 %v6378
    %v6380 = vlaneseq
    %v6381 = vshrl.u32 %v6380, 7
    %v6382 = vsub.s32 %v6379, %v6381
    %v6383 = vrot.slane %v6375, %v6382
    %v6385 = vunpack.c.l.s4 1934713408
    %v6386 = vunpack.c.0.s8 %v6385
    %v6387 = vlaneseq
    %v6388 = vshrl.u32 %v6387, 7
    %v6389 = vsub.s32 %v6386, %v6388
    %v6390 = vrot.slane %v6376, %v6389
    %v6391 = vcombine.low %v6335, %v6367
    %v6392 = vcombine.high %v6335, %v6367
    %v6393 = vcombine.low %v6342, %v6374
    %v6394 = vcombine.high %v6342, %v6374
    %v6395 = vcombine.low %v6351, %v6383
    %v6396 = vcombine.high %v6351, %v6383
    %v6397 = vcombine.low %v6358, %v6390
    %v6398 = vcombine.high %v6358, %v6390
    %v6399 = vcombine.low %v5996, %v6050
    %v6400 = vcombine.high %v5996, %v6050
    %v6402 = vunpack.c.l.s4 1983009808
    %v6403 = vunpack.c.0.s8 %v6402
    %v6404 = vlaneseq
    %v6405 = vshrl.u32 %v6404, 7
    %v6406 = vsub.s32 %v6403, %v6405
    %v6407 = vrot.slane %v6399, %v6406
    %v6409 = vunpack.c.l.s4 1983009808
    %v6410 = vunpack.c.0.s8 %v6409
    %v6411 = vlaneseq
    %v6412 = vshrl.u32 %v6411, 7
    %v6413 = vsub.s32 %v6410, %v6412
    %v6414 = vrot.slane %v6400, %v6413
    %v6415 = vcombine.low %v6044, %v6056
    %v6416 = vcombine.high %v6044, %v6056
    %v6418 = vunpack.c.l.s4 1983009808
    %v6419 = vunpack.c.0.s8 %v6418
    %v6420 = vlaneseq
    %v6421 = vshrl.u32 %v6420, 7
    %v6422 = vsub.s32 %v6419, %v6421
    %v6423 = vrot.slane %v6415, %v6422
    %v6425 = vunpack.c.l.s4 1983009808
    %v6426 = vunpack.c.0.s8 %v6425
    %v6427 = vlaneseq
    %v6428 = vshrl.u32 %v6427, 7
    %v6429 = vsub.s32 %v6426, %v6428
    %v6430 = vrot.slane %v6416, %v6429
    %v6431 = vcombine.low %v6407, %v6423
    %v6432 = vcombine.high %v6407, %v6423
    %v6434 = vunpack.c.l.s4 1934713408
    %v6435 = vunpack.c.0.s8 %v6434
    %v6436 = vlaneseq
    %v6437 = vshrl.u32 %v6436, 7
    %v6438 = vsub.s32 %v6435, %v6437
    %v6439 = vrot.slane %v6431, %v6438
    %v6441 = vunpack.c.l.s4 1934713408
    %v6442 = vunpack.c.0.s8 %v6441
    %v6443 = vlaneseq
    %v6444 = vshrl.u32 %v6443, 7
    %v6445 = vsub.s32 %v6442, %v6444
    %v6446 = vrot.slane %v6432, %v6445
    %v6447 = vcombine.low %v6414, %v6430
    %v6448 = vcombine.high %v6414, %v6430
    %v6450 = vunpack.c.l.s4 1934713408
    %v6451 = vunpack.c.0.s8 %v6450
    %v6452 = vlaneseq
    %v6453 = vshrl.u32 %v6452, 7
    %v6454 = vsub.s32 %v6451, %v6453
    %v6455 = vrot.slane %v6447, %v6454
    %v6457 = vunpack.c.l.s4 1934713408
    %v6458 = vunpack.c.0.s8 %v6457
    %v6459 = vlaneseq
    %v6460 = vshrl.u32 %v6459, 7
    %v6461 = vsub.s32 %v6458, %v6460
    %v6462 = vrot.slane %v6448, %v6461
    %v6463 = vcombine.high %v6439, 0.0
    %v6464 = vcombine.high %v6446, 0.0
    %v6465 = vcombine.high %v6455, 0.0
    %v6466 = vcombine.high %v6462, 0.0
    %s6467 = scalar_lea.vmem %s10, 64
    %v6468 = vld [vmem:[%s6467] sm:$0xf]
    %v6469 = vld [vmem:[%s6467 + $0x4] sm:$0xf]
    %v6470 = vld [vmem:[%s6467 + $0x8] sm:$0xf]
    %v6471 = vld [vmem:[%s6467 + $0xc] sm:$0xf]
    %v6472 = vld [vmem:[%s6467 + $0x10] sm:$0xf]
    %v6473 = vld [vmem:[%s6467 + $0x14] sm:$0xf]
    %v6474 = vld [vmem:[%s6467 + $0x18] sm:$0xf]
    %v6475 = vld [vmem:[%s6467 + $0x1c] sm:$0xf]
    %v6476 = vld [vmem:[%s6467 + $0x20] sm:$0xf]
    %v6477 = vld [vmem:[%s6467 + $0x24] sm:$0xf]
    %v6478 = vld [vmem:[%s6467 + $0x28] sm:$0xf]
    %v6479 = vld [vmem:[%s6467 + $0x2c] sm:$0xf]
    %v6480 = vld [vmem:[%s6467 + $0x30] sm:$0xf]
    %v6481 = vld [vmem:[%s6467 + $0x34] sm:$0xf]
    %v6482 = vld [vmem:[%s6467 + $0x38] sm:$0xf]
    %v6483 = vld [vmem:[%s6467 + $0x3c] sm:$0xf]
    %v6484 = vpack.c.bf16 %v6187, %v6187
    %v6485 = vpack.c.bf16 %v6188, %v6188
    %v6486 = vpack.c.bf16 %v6189, %v6189
    %v6487 = vpack.c.bf16 %v6190, %v6190
    %v6488 = vpack.c.bf16 %v6191, %v6191
    %v6489 = vpack.c.bf16 %v6192, %v6192
    %v6490 = vpack.c.bf16 %v6193, %v6193
    %v6491 = vpack.c.bf16 %v6194, %v6194
    %v6492 = vpack.c.bf16 %v6391, %v6391
    %v6493 = vpack.c.bf16 %v6392, %v6392
    %v6494 = vpack.c.bf16 %v6393, %v6393
    %v6495 = vpack.c.bf16 %v6394, %v6394
    %v6496 = vpack.c.bf16 %v6395, %v6395
    %v6497 = vpack.c.bf16 %v6396, %v6396
    %v6498 = vpack.c.bf16 %v6397, %v6397
    %v6499 = vpack.c.bf16 %v6398, %v6398
    %v6500 = vpack.c.bf16 %v6235, %v6235
    %v6501 = vpack.c.bf16 %v6259, %v6259
    %v6502 = vpack.c.bf16 %v6242, %v6242
    %v6503 = vpack.c.bf16 %v6260, %v6260
    %v6504 = vpack.c.bf16 %v6251, %v6251
    %v6505 = vpack.c.bf16 %v6261, %v6261
    %v6506 = vpack.c.bf16 %v6258, %v6258
    %v6507 = vpack.c.bf16 %v6262, %v6262
    %v6508 = vpack.c.bf16 %v6439, %v6439
    %v6509 = vpack.c.bf16 %v6463, %v6463
    %v6510 = vpack.c.bf16 %v6446, %v6446
    %v6511 = vpack.c.bf16 %v6464, %v6464
    %v6512 = vpack.c.bf16 %v6455, %v6455
    %v6513 = vpack.c.bf16 %v6465, %v6465
    %v6514 = vpack.c.bf16 %v6462, %v6462
    %v6515 = vpack.c.bf16 %v6466, %v6466
    %v6524 = vunpack.c.l.b16 %v6484
    %v6525 = vunpack.c.l.b16 %v6485
    %v6526 = vunpack.c.l.b16 %v6486
    %v6527 = vunpack.c.l.b16 %v6487
    %v6528 = vunpack.c.l.b16 %v6488
    %v6529 = vunpack.c.l.b16 %v6489
    %v6530 = vunpack.c.l.b16 %v6490
    %v6531 = vunpack.c.l.b16 %v6491
    %v6532 = vrot.slane %v6525, 7
    %v6533 = vsel %vm1278, %v6532, %v6524
    %v6534 = vrot.slane %v6526, 6
    %v6535 = vsel %vm1281, %v6534, %v6533
    %v6536 = vrot.slane %v6527, 5
    %v6537 = vsel %vm1284, %v6536, %v6535
    %v6538 = vrot.slane %v6528, 4
    %v6539 = vsel %vm1287, %v6538, %v6537
    %v6540 = vrot.slane %v6529, 3
    %v6541 = vsel %vm1290, %v6540, %v6539
    %v6542 = vrot.slane %v6530, 2
    %v6543 = vsel %vm1293, %v6542, %v6541
    %v6544 = vrot.slane %v6531, 1
    %v6545 = vsel %vm1296, %v6544, %v6543
    %v6546 = vpack.c.b16 %v6545, %v6545
    %v6547 = vrot.slane %v6524, 4
    %v6548 = vrot.slane %v6525, 3
    %v6549 = vsel %vm1278, %v6548, %v6547
    %v6550 = vrot.slane %v6526, 2
    %v6551 = vsel %vm1281, %v6550, %v6549
    %v6552 = vrot.slane %v6527, 1
    %v6553 = vsel %vm1284, %v6552, %v6551
    %v6554 = vsel %vm1287, %v6528, %v6553
    %v6555 = vrot.slane %v6529, 7
    %v6556 = vsel %vm1290, %v6555, %v6554
    %v6557 = vrot.slane %v6530, 6
    %v6558 = vsel %vm1293, %v6557, %v6556
    %v6559 = vrot.slane %v6531, 5
    %v6560 = vsel %vm1296, %v6559, %v6558
    %v6561 = vpack.c.b16 %v6560, %v6560
    %v6563 = vsel %vm1314, %v6546, 0
    %v6566 = vsel %vm1314, %v6561, 0
    %6568 = vmatprep.subr.bf16.mxu0 0
    %6569 = vmatpush1.bf16.xpose.msra.mxu0 %v6566
    %6570 = vmatprep.subr.bf16.mxu0 0
    %6571 = vmatpush1.bf16.xpose.msra.mxu0 0
    %6572 = vmatprep.subr.bf16.mxu0 0
    %6573 = vmatpush1.bf16.xpose.msra.mxu0 0
    %6574 = vmatprep.subr.bf16.mxu0 0
    %6575 = vmatpush1.bf16.xpose.msra.mxu0 0
    %6576 = vmatprep.subr.bf16.mxu0 0
    %6577 = vmatpush1.bf16.xpose.msra.mxu0 0
    %6578 = vmatprep.subr.bf16.mxu0 0
    %6579 = vmatpush1.bf16.xpose.msra.mxu0 0
    %6580 = vmatprep.subr.bf16.mxu0 0
    %6581 = vmatpush1.bf16.xpose.msra.mxu0 0
    %6582 = vmatprep.subr.bf16.mxu0 0
    %6583 = vmatpush1.bf16.xpose.msra.mxu0 0
    %6584 = vmatprep.subr.bf16.mxu0 0
    %6585 = vmatpush1.bf16.xpose.msra.mxu0 0
    %6586 = vmatprep.subr.bf16.mxu0 0
    %6587 = vmatpush1.bf16.xpose.msra.mxu0 0
    %6588 = vmatprep.subr.bf16.mxu0 0
    %6589 = vmatpush1.bf16.xpose.msra.mxu0 0
    %6590 = vmatprep.subr.bf16.mxu0 0
    %6591 = vmatpush1.bf16.xpose.msra.mxu0 0
    %6592 = vmatprep.subr.bf16.mxu0 0
    %6593 = vmatpush1.bf16.xpose.msra.mxu0 0
    %6594 = vmatprep.subr.bf16.mxu0 0
    %6595 = vmatpush1.bf16.xpose.msra.mxu0 0
    %6596 = vmatprep.subr.bf16.mxu0 0
    %6597 = vmatpush1.bf16.xpose.msra.mxu0 0
    %6598 = vmatprep.subr.bf16.mxu0 0
    %6599 = vmatpush1.bf16.xpose.msra.mxu0 0
    %6600 = vmatprep.mubr.bf16.mxu0 0
    %6601 = vmatmul.mubr.bf16.gmra.mrb[0].mxu0 %v6563
    %v6602 = vpop.f32.mrb[0].mxu0
    %v6603 = vadd.f32 %v100, %v6602
    %v6604 = vpop.f32.mrb[0].mxu0
    %v6605 = vpop.f32.mrb[0].mxu0
    %v6606 = vpop.f32.mrb[0].mxu0
    %6607 = vdwg.mxu0
    %v6616 = vunpack.c.l.b16 %v6492
    %v6617 = vunpack.c.l.b16 %v6493
    %v6618 = vunpack.c.l.b16 %v6494
    %v6619 = vunpack.c.l.b16 %v6495
    %v6620 = vunpack.c.l.b16 %v6496
    %v6621 = vunpack.c.l.b16 %v6497
    %v6622 = vunpack.c.l.b16 %v6498
    %v6623 = vunpack.c.l.b16 %v6499
    %v6624 = vrot.slane %v6617, 7
    %v6625 = vsel %vm1278, %v6624, %v6616
    %v6626 = vrot.slane %v6618, 6
    %v6627 = vsel %vm1281, %v6626, %v6625
    %v6628 = vrot.slane %v6619, 5
    %v6629 = vsel %vm1284, %v6628, %v6627
    %v6630 = vrot.slane %v6620, 4
    %v6631 = vsel %vm1287, %v6630, %v6629
    %v6632 = vrot.slane %v6621, 3
    %v6633 = vsel %vm1290, %v6632, %v6631
    %v6634 = vrot.slane %v6622, 2
    %v6635 = vsel %vm1293, %v6634, %v6633
    %v6636 = vrot.slane %v6623, 1
    %v6637 = vsel %vm1296, %v6636, %v6635
    %v6638 = vpack.c.b16 %v6637, %v6637
    %v6639 = vrot.slane %v6616, 4
    %v6640 = vrot.slane %v6617, 3
    %v6641 = vsel %vm1278, %v6640, %v6639
    %v6642 = vrot.slane %v6618, 2
    %v6643 = vsel %vm1281, %v6642, %v6641
    %v6644 = vrot.slane %v6619, 1
    %v6645 = vsel %vm1284, %v6644, %v6643
    %v6646 = vsel %vm1287, %v6620, %v6645
    %v6647 = vrot.slane %v6621, 7
    %v6648 = vsel %vm1290, %v6647, %v6646
    %v6649 = vrot.slane %v6622, 6
    %v6650 = vsel %vm1293, %v6649, %v6648
    %v6651 = vrot.slane %v6623, 5
    %v6652 = vsel %vm1296, %v6651, %v6650
    %v6653 = vpack.c.b16 %v6652, %v6652
    %v6655 = vsel %vm1314, %v6638, 0
    %v6658 = vsel %vm1314, %v6653, 0
    %6660 = vmatprep.subr.bf16.mxu0 0
    %6661 = vmatpush1.bf16.xpose.msra.mxu0 %v6658
    %6662 = vmatprep.subr.bf16.mxu0 0
    %6663 = vmatpush1.bf16.xpose.msra.mxu0 0
    %6664 = vmatprep.subr.bf16.mxu0 0
    %6665 = vmatpush1.bf16.xpose.msra.mxu0 0
    %6666 = vmatprep.subr.bf16.mxu0 0
    %6667 = vmatpush1.bf16.xpose.msra.mxu0 0
    %6668 = vmatprep.subr.bf16.mxu0 0
    %6669 = vmatpush1.bf16.xpose.msra.mxu0 0
    %6670 = vmatprep.subr.bf16.mxu0 0
    %6671 = vmatpush1.bf16.xpose.msra.mxu0 0
    %6672 = vmatprep.subr.bf16.mxu0 0
    %6673 = vmatpush1.bf16.xpose.msra.mxu0 0
    %6674 = vmatprep.subr.bf16.mxu0 0
    %6675 = vmatpush1.bf16.xpose.msra.mxu0 0
    %6676 = vmatprep.subr.bf16.mxu0 0
    %6677 = vmatpush1.bf16.xpose.msra.mxu0 0
    %6678 = vmatprep.subr.bf16.mxu0 0
    %6679 = vmatpush1.bf16.xpose.msra.mxu0 0
    %6680 = vmatprep.subr.bf16.mxu0 0
    %6681 = vmatpush1.bf16.xpose.msra.mxu0 0
    %6682 = vmatprep.subr.bf16.mxu0 0
    %6683 = vmatpush1.bf16.xpose.msra.mxu0 0
    %6684 = vmatprep.subr.bf16.mxu0 0
    %6685 = vmatpush1.bf16.xpose.msra.mxu0 0
    %6686 = vmatprep.subr.bf16.mxu0 0
    %6687 = vmatpush1.bf16.xpose.msra.mxu0 0
    %6688 = vmatprep.subr.bf16.mxu0 0
    %6689 = vmatpush1.bf16.xpose.msra.mxu0 0
    %6690 = vmatprep.subr.bf16.mxu0 0
    %6691 = vmatpush1.bf16.xpose.msra.mxu0 0
    %6692 = vmatprep.mubr.bf16.mxu0 0
    %6693 = vmatmul.mubr.bf16.gmra.mrb[0].mxu0 %v6655
    %v6694 = vpop.f32.mrb[0].mxu0
    %v6695 = vadd.f32 %v101, %v6694
    %v6696 = vpop.f32.mrb[0].mxu0
    %v6697 = vpop.f32.mrb[0].mxu0
    %v6698 = vpop.f32.mrb[0].mxu0
    %6699 = vdwg.mxu0
    %v6700 = vsel %vm1453, %v6603, -inf
    %6701 = vmax.xlane.f32.xlu0 %v6700
    %v6702 = vpop.xlane.xlu0 %6701
    %v6703 = vsel %vm1453, %v6695, -inf
    %6704 = vmax.xlane.f32.xlu0 %v6703
    %v6705 = vpop.xlane.xlu0 %6704
    %v6706 = vsub.f32 %v6603, %v6702
    %v6707 = vsub.f32 %v6695, %v6705
    %v6708 = vmul.f32 %v6706, 1.442695
    %v6709 = vpow.pop %v6708
    %v6710 = vmul.f32 %v6707, 1.442695
    %v6711 = vpow.pop %v6710
    %v6712 = vsel %vm1453, %v6709, 0.0
    %6713 = vadd.xlane.f32.xlu0 %v6712
    %v6714 = vpop.xlane.xlu0 %6713
    %v6715 = vsel %vm1453, %v6711, 0.0
    %6716 = vadd.xlane.f32.xlu0 %v6715
    %v6717 = vpop.xlane.xlu0 %6716
    %v6718 = vrcp.pop %v6714
    %v6719 = vrcp.pop %v6717
    %v6720 = vmul.f32 %v6709, %v6718
    %v6721 = vmul.f32 %v6711, %v6719
    %v6722 = vpack.c.bf16 %v6720, %v6720
    %v6723 = vpack.c.bf16 %v6721, %v6721
    %v6732 = vunpack.c.l.b16 %v6500
    %v6733 = vunpack.c.l.b16 %v6501
    %v6734 = vunpack.c.l.b16 %v6502
    %v6735 = vunpack.c.l.b16 %v6503
    %v6736 = vunpack.c.l.b16 %v6504
    %v6737 = vunpack.c.l.b16 %v6505
    %v6738 = vunpack.c.l.b16 %v6506
    %v6739 = vunpack.c.l.b16 %v6507
    %v6740 = vrot.slane %v6733, 7
    %v6741 = vsel %vm1278, %v6740, %v6732
    %v6742 = vrot.slane %v6734, 6
    %v6743 = vsel %vm1281, %v6742, %v6741
    %v6744 = vrot.slane %v6735, 5
    %v6745 = vsel %vm1284, %v6744, %v6743
    %v6746 = vrot.slane %v6736, 4
    %v6747 = vsel %vm1287, %v6746, %v6745
    %v6748 = vrot.slane %v6737, 3
    %v6749 = vsel %vm1290, %v6748, %v6747
    %v6750 = vrot.slane %v6738, 2
    %v6751 = vsel %vm1293, %v6750, %v6749
    %v6752 = vrot.slane %v6739, 1
    %v6753 = vsel %vm1296, %v6752, %v6751
    %v6754 = vpack.c.b16 %v6753, %v6753
    %v6756 = vsel %vm1453, %v6722, 0
    %v6759 = vsel %vm1512, %v6754, 0
    %6761 = vmatprep.subr.bf16.mxu0 0
    %6762 = vmatpush1.bf16.msra.mxu0 %v6759
    %6763 = vmatprep.subr.bf16.mxu0 0
    %6764 = vmatpush1.bf16.msra.mxu0 0
    %6765 = vmatprep.subr.bf16.mxu0 0
    %6766 = vmatpush1.bf16.msra.mxu0 0
    %6767 = vmatprep.subr.bf16.mxu0 0
    %6768 = vmatpush1.bf16.msra.mxu0 0
    %6769 = vmatprep.subr.bf16.mxu0 0
    %6770 = vmatpush1.bf16.msra.mxu0 0
    %6771 = vmatprep.subr.bf16.mxu0 0
    %6772 = vmatpush1.bf16.msra.mxu0 0
    %6773 = vmatprep.subr.bf16.mxu0 0
    %6774 = vmatpush1.bf16.msra.mxu0 0
    %6775 = vmatprep.subr.bf16.mxu0 0
    %6776 = vmatpush1.bf16.msra.mxu0 0
    %6777 = vmatprep.subr.bf16.mxu0 0
    %6778 = vmatpush1.bf16.msra.mxu0 0
    %6779 = vmatprep.subr.bf16.mxu0 0
    %6780 = vmatpush1.bf16.msra.mxu0 0
    %6781 = vmatprep.subr.bf16.mxu0 0
    %6782 = vmatpush1.bf16.msra.mxu0 0
    %6783 = vmatprep.subr.bf16.mxu0 0
    %6784 = vmatpush1.bf16.msra.mxu0 0
    %6785 = vmatprep.subr.bf16.mxu0 0
    %6786 = vmatpush1.bf16.msra.mxu0 0
    %6787 = vmatprep.subr.bf16.mxu0 0
    %6788 = vmatpush1.bf16.msra.mxu0 0
    %6789 = vmatprep.subr.bf16.mxu0 0
    %6790 = vmatpush1.bf16.msra.mxu0 0
    %6791 = vmatprep.subr.bf16.mxu0 0
    %6792 = vmatpush1.bf16.msra.mxu0 0
    %6793 = vmatprep.mubr.bf16.mxu0 0
    %6794 = vmatmul.mubr.bf16.gmra.mrb[0].mxu0 %v6756
    %v6795 = vpop.f32.mrb[0].mxu0
    %v6796 = vadd.f32 0.0, %v6795
    %v6797 = vpop.f32.mrb[0].mxu0
    %v6798 = vpop.f32.mrb[0].mxu0
    %v6799 = vpop.f32.mrb[0].mxu0
    %6800 = vdwg.mxu0
    %v6809 = vunpack.c.l.b16 %v6508
    %v6810 = vunpack.c.l.b16 %v6509
    %v6811 = vunpack.c.l.b16 %v6510
    %v6812 = vunpack.c.l.b16 %v6511
    %v6813 = vunpack.c.l.b16 %v6512
    %v6814 = vunpack.c.l.b16 %v6513
    %v6815 = vunpack.c.l.b16 %v6514
    %v6816 = vunpack.c.l.b16 %v6515
    %v6817 = vrot.slane %v6810, 7
    %v6818 = vsel %vm1278, %v6817, %v6809
    %v6819 = vrot.slane %v6811, 6
    %v6820 = vsel %vm1281, %v6819, %v6818
    %v6821 = vrot.slane %v6812, 5
    %v6822 = vsel %vm1284, %v6821, %v6820
    %v6823 = vrot.slane %v6813, 4
    %v6824 = vsel %vm1287, %v6823, %v6822
    %v6825 = vrot.slane %v6814, 3
    %v6826 = vsel %vm1290, %v6825, %v6824
    %v6827 = vrot.slane %v6815, 2
    %v6828 = vsel %vm1293, %v6827, %v6826
    %v6829 = vrot.slane %v6816, 1
    %v6830 = vsel %vm1296, %v6829, %v6828
    %v6831 = vpack.c.b16 %v6830, %v6830
    %v6833 = vsel %vm1453, %v6723, 0
    %v6836 = vsel %vm1512, %v6831, 0
    %6838 = vmatprep.subr.bf16.mxu0 0
    %6839 = vmatpush1.bf16.msra.mxu0 %v6836
    %6840 = vmatprep.subr.bf16.mxu0 0
    %6841 = vmatpush1.bf16.msra.mxu0 0
    %6842 = vmatprep.subr.bf16.mxu0 0
    %6843 = vmatpush1.bf16.msra.mxu0 0
    %6844 = vmatprep.subr.bf16.mxu0 0
    %6845 = vmatpush1.bf16.msra.mxu0 0
    %6846 = vmatprep.subr.bf16.mxu0 0
    %6847 = vmatpush1.bf16.msra.mxu0 0
    %6848 = vmatprep.subr.bf16.mxu0 0
    %6849 = vmatpush1.bf16.msra.mxu0 0
    %6850 = vmatprep.subr.bf16.mxu0 0
    %6851 = vmatpush1.bf16.msra.mxu0 0
    %6852 = vmatprep.subr.bf16.mxu0 0
    %6853 = vmatpush1.bf16.msra.mxu0 0
    %6854 = vmatprep.subr.bf16.mxu0 0
    %6855 = vmatpush1.bf16.msra.mxu0 0
    %6856 = vmatprep.subr.bf16.mxu0 0
    %6857 = vmatpush1.bf16.msra.mxu0 0
    %6858 = vmatprep.subr.bf16.mxu0 0
    %6859 = vmatpush1.bf16.msra.mxu0 0
    %6860 = vmatprep.subr.bf16.mxu0 0
    %6861 = vmatpush1.bf16.msra.mxu0 0
    %6862 = vmatprep.subr.bf16.mxu0 0
    %6863 = vmatpush1.bf16.msra.mxu0 0
    %6864 = vmatprep.subr.bf16.mxu0 0
    %6865 = vmatpush1.bf16.msra.mxu0 0
    %6866 = vmatprep.subr.bf16.mxu0 0
    %6867 = vmatpush1.bf16.msra.mxu0 0
    %6868 = vmatprep.subr.bf16.mxu0 0
    %6869 = vmatpush1.bf16.msra.mxu0 0
    %6870 = vmatprep.mubr.bf16.mxu0 0
    %6871 = vmatmul.mubr.bf16.gmra.mrb[0].mxu0 %v6833
    %v6872 = vpop.f32.mrb[0].mxu0
    %v6873 = vadd.f32 0.0, %v6872
    %v6874 = vpop.f32.mrb[0].mxu0
    %v6875 = vpop.f32.mrb[0].mxu0
    %v6876 = vpop.f32.mrb[0].mxu0
    %6877 = vdwg.mxu0
    %v6878 = vrot.slane %v6524, 1
    %v6879 = vsel %vm1278, %v6525, %v6878
    %v6880 = vrot.slane %v6526, 7
    %v6881 = vsel %vm1281, %v6880, %v6879
    %v6882 = vrot.slane %v6527, 6
    %v6883 = vsel %vm1284, %v6882, %v6881
    %v6884 = vrot.slane %v6528, 5
    %v6885 = vsel %vm1287, %v6884, %v6883
    %v6886 = vrot.slane %v6529, 4
    %v6887 = vsel %vm1290, %v6886, %v6885
    %v6888 = vrot.slane %v6530, 3
    %v6889 = vsel %vm1293, %v6888, %v6887
    %v6890 = vrot.slane %v6531, 2
    %v6891 = vsel %vm1296, %v6890, %v6889
    %v6892 = vpack.c.b16 %v6891, %v6891
    %v6893 = vrot.slane %v6524, 5
    %v6894 = vrot.slane %v6525, 4
    %v6895 = vsel %vm1278, %v6894, %v6893
    %v6896 = vrot.slane %v6526, 3
    %v6897 = vsel %vm1281, %v6896, %v6895
    %v6898 = vrot.slane %v6527, 2
    %v6899 = vsel %vm1284, %v6898, %v6897
    %v6900 = vrot.slane %v6528, 1
    %v6901 = vsel %vm1287, %v6900, %v6899
    %v6902 = vsel %vm1290, %v6529, %v6901
    %v6903 = vrot.slane %v6530, 7
    %v6904 = vsel %vm1293, %v6903, %v6902
    %v6905 = vrot.slane %v6531, 6
    %v6906 = vsel %vm1296, %v6905, %v6904
    %v6907 = vpack.c.b16 %v6906, %v6906
    %v6909 = vsel %vm1314, %v6892, 0
    %v6912 = vsel %vm1314, %v6907, 0
    %6914 = vmatprep.subr.bf16.mxu0 0
    %6915 = vmatpush1.bf16.xpose.msra.mxu0 %v6912
    %6916 = vmatprep.subr.bf16.mxu0 0
    %6917 = vmatpush1.bf16.xpose.msra.mxu0 0
    %6918 = vmatprep.subr.bf16.mxu0 0
    %6919 = vmatpush1.bf16.xpose.msra.mxu0 0
    %6920 = vmatprep.subr.bf16.mxu0 0
    %6921 = vmatpush1.bf16.xpose.msra.mxu0 0
    %6922 = vmatprep.subr.bf16.mxu0 0
    %6923 = vmatpush1.bf16.xpose.msra.mxu0 0
    %6924 = vmatprep.subr.bf16.mxu0 0
    %6925 = vmatpush1.bf16.xpose.msra.mxu0 0
    %6926 = vmatprep.subr.bf16.mxu0 0
    %6927 = vmatpush1.bf16.xpose.msra.mxu0 0
    %6928 = vmatprep.subr.bf16.mxu0 0
    %6929 = vmatpush1.bf16.xpose.msra.mxu0 0
    %6930 = vmatprep.subr.bf16.mxu0 0
    %6931 = vmatpush1.bf16.xpose.msra.mxu0 0
    %6932 = vmatprep.subr.bf16.mxu0 0
    %6933 = vmatpush1.bf16.xpose.msra.mxu0 0
    %6934 = vmatprep.subr.bf16.mxu0 0
    %6935 = vmatpush1.bf16.xpose.msra.mxu0 0
    %6936 = vmatprep.subr.bf16.mxu0 0
    %6937 = vmatpush1.bf16.xpose.msra.mxu0 0
    %6938 = vmatprep.subr.bf16.mxu0 0
    %6939 = vmatpush1.bf16.xpose.msra.mxu0 0
    %6940 = vmatprep.subr.bf16.mxu0 0
    %6941 = vmatpush1.bf16.xpose.msra.mxu0 0
    %6942 = vmatprep.subr.bf16.mxu0 0
    %6943 = vmatpush1.bf16.xpose.msra.mxu0 0
    %6944 = vmatprep.subr.bf16.mxu0 0
    %6945 = vmatpush1.bf16.xpose.msra.mxu0 0
    %6946 = vmatprep.mubr.bf16.mxu0 0
    %6947 = vmatmul.mubr.bf16.gmra.mrb[0].mxu0 %v6909
    %v6948 = vpop.f32.mrb[0].mxu0
    %v6949 = vadd.f32 %v100, %v6948
    %v6950 = vpop.f32.mrb[0].mxu0
    %v6951 = vpop.f32.mrb[0].mxu0
    %v6952 = vpop.f32.mrb[0].mxu0
    %6953 = vdwg.mxu0
    %v6954 = vrot.slane %v6616, 1
    %v6955 = vsel %vm1278, %v6617, %v6954
    %v6956 = vrot.slane %v6618, 7
    %v6957 = vsel %vm1281, %v6956, %v6955
    %v6958 = vrot.slane %v6619, 6
    %v6959 = vsel %vm1284, %v6958, %v6957
    %v6960 = vrot.slane %v6620, 5
    %v6961 = vsel %vm1287, %v6960, %v6959
    %v6962 = vrot.slane %v6621, 4
    %v6963 = vsel %vm1290, %v6962, %v6961
    %v6964 = vrot.slane %v6622, 3
    %v6965 = vsel %vm1293, %v6964, %v6963
    %v6966 = vrot.slane %v6623, 2
    %v6967 = vsel %vm1296, %v6966, %v6965
    %v6968 = vpack.c.b16 %v6967, %v6967
    %v6969 = vrot.slane %v6616, 5
    %v6970 = vrot.slane %v6617, 4
    %v6971 = vsel %vm1278, %v6970, %v6969
    %v6972 = vrot.slane %v6618, 3
    %v6973 = vsel %vm1281, %v6972, %v6971
    %v6974 = vrot.slane %v6619, 2
    %v6975 = vsel %vm1284, %v6974, %v6973
    %v6976 = vrot.slane %v6620, 1
    %v6977 = vsel %vm1287, %v6976, %v6975
    %v6978 = vsel %vm1290, %v6621, %v6977
    %v6979 = vrot.slane %v6622, 7
    %v6980 = vsel %vm1293, %v6979, %v6978
    %v6981 = vrot.slane %v6623, 6
    %v6982 = vsel %vm1296, %v6981, %v6980
    %v6983 = vpack.c.b16 %v6982, %v6982
    %v6985 = vsel %vm1314, %v6968, 0
    %v6988 = vsel %vm1314, %v6983, 0
    %6990 = vmatprep.subr.bf16.mxu0 0
    %6991 = vmatpush1.bf16.xpose.msra.mxu0 %v6988
    %6992 = vmatprep.subr.bf16.mxu0 0
    %6993 = vmatpush1.bf16.xpose.msra.mxu0 0
    %6994 = vmatprep.subr.bf16.mxu0 0
    %6995 = vmatpush1.bf16.xpose.msra.mxu0 0
    %6996 = vmatprep.subr.bf16.mxu0 0
    %6997 = vmatpush1.bf16.xpose.msra.mxu0 0
    %6998 = vmatprep.subr.bf16.mxu0 0
    %6999 = vmatpush1.bf16.xpose.msra.mxu0 0
    %7000 = vmatprep.subr.bf16.mxu0 0
    %7001 = vmatpush1.bf16.xpose.msra.mxu0 0
    %7002 = vmatprep.subr.bf16.mxu0 0
    %7003 = vmatpush1.bf16.xpose.msra.mxu0 0
    %7004 = vmatprep.subr.bf16.mxu0 0
    %7005 = vmatpush1.bf16.xpose.msra.mxu0 0
    %7006 = vmatprep.subr.bf16.mxu0 0
    %7007 = vmatpush1.bf16.xpose.msra.mxu0 0
    %7008 = vmatprep.subr.bf16.mxu0 0
    %7009 = vmatpush1.bf16.xpose.msra.mxu0 0
    %7010 = vmatprep.subr.bf16.mxu0 0
    %7011 = vmatpush1.bf16.xpose.msra.mxu0 0
    %7012 = vmatprep.subr.bf16.mxu0 0
    %7013 = vmatpush1.bf16.xpose.msra.mxu0 0
    %7014 = vmatprep.subr.bf16.mxu0 0
    %7015 = vmatpush1.bf16.xpose.msra.mxu0 0
    %7016 = vmatprep.subr.bf16.mxu0 0
    %7017 = vmatpush1.bf16.xpose.msra.mxu0 0
    %7018 = vmatprep.subr.bf16.mxu0 0
    %7019 = vmatpush1.bf16.xpose.msra.mxu0 0
    %7020 = vmatprep.subr.bf16.mxu0 0
    %7021 = vmatpush1.bf16.xpose.msra.mxu0 0
    %7022 = vmatprep.mubr.bf16.mxu0 0
    %7023 = vmatmul.mubr.bf16.gmra.mrb[0].mxu0 %v6985
    %v7024 = vpop.f32.mrb[0].mxu0
    %v7025 = vadd.f32 %v101, %v7024
    %v7026 = vpop.f32.mrb[0].mxu0
    %v7027 = vpop.f32.mrb[0].mxu0
    %v7028 = vpop.f32.mrb[0].mxu0
    %7029 = vdwg.mxu0
    %v7030 = vsel %vm1453, %v6949, -inf
    %7031 = vmax.xlane.f32.xlu0 %v7030
    %v7032 = vpop.xlane.xlu0 %7031
    %v7033 = vsel %vm1453, %v7025, -inf
    %7034 = vmax.xlane.f32.xlu0 %v7033
    %v7035 = vpop.xlane.xlu0 %7034
    %v7036 = vsub.f32 %v6949, %v7032
    %v7037 = vsub.f32 %v7025, %v7035
    %v7038 = vmul.f32 %v7036, 1.442695
    %v7039 = vpow.pop %v7038
    %v7040 = vmul.f32 %v7037, 1.442695
    %v7041 = vpow.pop %v7040
    %v7042 = vsel %vm1453, %v7039, 0.0
    %7043 = vadd.xlane.f32.xlu0 %v7042
    %v7044 = vpop.xlane.xlu0 %7043
    %v7045 = vsel %vm1453, %v7041, 0.0
    %7046 = vadd.xlane.f32.xlu0 %v7045
    %v7047 = vpop.xlane.xlu0 %7046
    %v7048 = vrcp.pop %v7044
    %v7049 = vrcp.pop %v7047
    %v7050 = vmul.f32 %v7039, %v7048
    %v7051 = vmul.f32 %v7041, %v7049
    %v7052 = vpack.c.bf16 %v7050, %v7050
    %v7053 = vpack.c.bf16 %v7051, %v7051
    %v7054 = vrot.slane %v6732, 1
    %v7055 = vsel %vm1278, %v6733, %v7054
    %v7056 = vrot.slane %v6734, 7
    %v7057 = vsel %vm1281, %v7056, %v7055
    %v7058 = vrot.slane %v6735, 6
    %v7059 = vsel %vm1284, %v7058, %v7057
    %v7060 = vrot.slane %v6736, 5
    %v7061 = vsel %vm1287, %v7060, %v7059
    %v7062 = vrot.slane %v6737, 4
    %v7063 = vsel %vm1290, %v7062, %v7061
    %v7064 = vrot.slane %v6738, 3
    %v7065 = vsel %vm1293, %v7064, %v7063
    %v7066 = vrot.slane %v6739, 2
    %v7067 = vsel %vm1296, %v7066, %v7065
    %v7068 = vpack.c.b16 %v7067, %v7067
    %v7070 = vsel %vm1453, %v7052, 0
    %v7073 = vsel %vm1512, %v7068, 0
    %7075 = vmatprep.subr.bf16.mxu0 0
    %7076 = vmatpush1.bf16.msra.mxu0 %v7073
    %7077 = vmatprep.subr.bf16.mxu0 0
    %7078 = vmatpush1.bf16.msra.mxu0 0
    %7079 = vmatprep.subr.bf16.mxu0 0
    %7080 = vmatpush1.bf16.msra.mxu0 0
    %7081 = vmatprep.subr.bf16.mxu0 0
    %7082 = vmatpush1.bf16.msra.mxu0 0
    %7083 = vmatprep.subr.bf16.mxu0 0
    %7084 = vmatpush1.bf16.msra.mxu0 0
    %7085 = vmatprep.subr.bf16.mxu0 0
    %7086 = vmatpush1.bf16.msra.mxu0 0
    %7087 = vmatprep.subr.bf16.mxu0 0
    %7088 = vmatpush1.bf16.msra.mxu0 0
    %7089 = vmatprep.subr.bf16.mxu0 0
    %7090 = vmatpush1.bf16.msra.mxu0 0
    %7091 = vmatprep.subr.bf16.mxu0 0
    %7092 = vmatpush1.bf16.msra.mxu0 0
    %7093 = vmatprep.subr.bf16.mxu0 0
    %7094 = vmatpush1.bf16.msra.mxu0 0
    %7095 = vmatprep.subr.bf16.mxu0 0
    %7096 = vmatpush1.bf16.msra.mxu0 0
    %7097 = vmatprep.subr.bf16.mxu0 0
    %7098 = vmatpush1.bf16.msra.mxu0 0
    %7099 = vmatprep.subr.bf16.mxu0 0
    %7100 = vmatpush1.bf16.msra.mxu0 0
    %7101 = vmatprep.subr.bf16.mxu0 0
    %7102 = vmatpush1.bf16.msra.mxu0 0
    %7103 = vmatprep.subr.bf16.mxu0 0
    %7104 = vmatpush1.bf16.msra.mxu0 0
    %7105 = vmatprep.subr.bf16.mxu0 0
    %7106 = vmatpush1.bf16.msra.mxu0 0
    %7107 = vmatprep.mubr.bf16.mxu0 0
    %7108 = vmatmul.mubr.bf16.gmra.mrb[0].mxu0 %v7070
    %v7109 = vpop.f32.mrb[0].mxu0
    %v7110 = vadd.f32 0.0, %v7109
    %v7111 = vpop.f32.mrb[0].mxu0
    %v7112 = vpop.f32.mrb[0].mxu0
    %v7113 = vpop.f32.mrb[0].mxu0
    %7114 = vdwg.mxu0
    %v7115 = vrot.slane %v6809, 1
    %v7116 = vsel %vm1278, %v6810, %v7115
    %v7117 = vrot.slane %v6811, 7
    %v7118 = vsel %vm1281, %v7117, %v7116
    %v7119 = vrot.slane %v6812, 6
    %v7120 = vsel %vm1284, %v7119, %v7118
    %v7121 = vrot.slane %v6813, 5
    %v7122 = vsel %vm1287, %v7121, %v7120
    %v7123 = vrot.slane %v6814, 4
    %v7124 = vsel %vm1290, %v7123, %v7122
    %v7125 = vrot.slane %v6815, 3
    %v7126 = vsel %vm1293, %v7125, %v7124
    %v7127 = vrot.slane %v6816, 2
    %v7128 = vsel %vm1296, %v7127, %v7126
    %v7129 = vpack.c.b16 %v7128, %v7128
    %v7131 = vsel %vm1453, %v7053, 0
    %v7134 = vsel %vm1512, %v7129, 0
    %7136 = vmatprep.subr.bf16.mxu0 0
    %7137 = vmatpush1.bf16.msra.mxu0 %v7134
    %7138 = vmatprep.subr.bf16.mxu0 0
    %7139 = vmatpush1.bf16.msra.mxu0 0
    %7140 = vmatprep.subr.bf16.mxu0 0
    %7141 = vmatpush1.bf16.msra.mxu0 0
    %7142 = vmatprep.subr.bf16.mxu0 0
    %7143 = vmatpush1.bf16.msra.mxu0 0
    %7144 = vmatprep.subr.bf16.mxu0 0
    %7145 = vmatpush1.bf16.msra.mxu0 0
    %7146 = vmatprep.subr.bf16.mxu0 0
    %7147 = vmatpush1.bf16.msra.mxu0 0
    %7148 = vmatprep.subr.bf16.mxu0 0
    %7149 = vmatpush1.bf16.msra.mxu0 0
    %7150 = vmatprep.subr.bf16.mxu0 0
    %7151 = vmatpush1.bf16.msra.mxu0 0
    %7152 = vmatprep.subr.bf16.mxu0 0
    %7153 = vmatpush1.bf16.msra.mxu0 0
    %7154 = vmatprep.subr.bf16.mxu0 0
    %7155 = vmatpush1.bf16.msra.mxu0 0
    %7156 = vmatprep.subr.bf16.mxu0 0
    %7157 = vmatpush1.bf16.msra.mxu0 0
    %7158 = vmatprep.subr.bf16.mxu0 0
    %7159 = vmatpush1.bf16.msra.mxu0 0
    %7160 = vmatprep.subr.bf16.mxu0 0
    %7161 = vmatpush1.bf16.msra.mxu0 0
    %7162 = vmatprep.subr.bf16.mxu0 0
    %7163 = vmatpush1.bf16.msra.mxu0 0
    %7164 = vmatprep.subr.bf16.mxu0 0
    %7165 = vmatpush1.bf16.msra.mxu0 0
    %7166 = vmatprep.subr.bf16.mxu0 0
    %7167 = vmatpush1.bf16.msra.mxu0 0
    %7168 = vmatprep.mubr.bf16.mxu0 0
    %7169 = vmatmul.mubr.bf16.gmra.mrb[0].mxu0 %v7131
    %v7170 = vpop.f32.mrb[0].mxu0
    %v7171 = vadd.f32 0.0, %v7170
    %v7172 = vpop.f32.mrb[0].mxu0
    %v7173 = vpop.f32.mrb[0].mxu0
    %v7174 = vpop.f32.mrb[0].mxu0
    %7175 = vdwg.mxu0
    %v7176 = vrot.slane %v6524, 2
    %v7177 = vrot.slane %v6525, 1
    %v7178 = vsel %vm1278, %v7177, %v7176
    %v7179 = vsel %vm1281, %v6526, %v7178
    %v7180 = vrot.slane %v6527, 7
    %v7181 = vsel %vm1284, %v7180, %v7179
    %v7182 = vrot.slane %v6528, 6
    %v7183 = vsel %vm1287, %v7182, %v7181
    %v7184 = vrot.slane %v6529, 5
    %v7185 = vsel %vm1290, %v7184, %v7183
    %v7186 = vrot.slane %v6530, 4
    %v7187 = vsel %vm1293, %v7186, %v7185
    %v7188 = vrot.slane %v6531, 3
    %v7189 = vsel %vm1296, %v7188, %v7187
    %v7190 = vpack.c.b16 %v7189, %v7189
    %v7191 = vrot.slane %v6524, 6
    %v7192 = vrot.slane %v6525, 5
    %v7193 = vsel %vm1278, %v7192, %v7191
    %v7194 = vrot.slane %v6526, 4
    %v7195 = vsel %vm1281, %v7194, %v7193
    %v7196 = vrot.slane %v6527, 3
    %v7197 = vsel %vm1284, %v7196, %v7195
    %v7198 = vrot.slane %v6528, 2
    %v7199 = vsel %vm1287, %v7198, %v7197
    %v7200 = vrot.slane %v6529, 1
    %v7201 = vsel %vm1290, %v7200, %v7199
    %v7202 = vsel %vm1293, %v6530, %v7201
    %v7203 = vrot.slane %v6531, 7
    %v7204 = vsel %vm1296, %v7203, %v7202
    %v7205 = vpack.c.b16 %v7204, %v7204
    %v7207 = vsel %vm1314, %v7190, 0
    %v7210 = vsel %vm1314, %v7205, 0
    %7212 = vmatprep.subr.bf16.mxu0 0
    %7213 = vmatpush1.bf16.xpose.msra.mxu0 %v7210
    %7214 = vmatprep.subr.bf16.mxu0 0
    %7215 = vmatpush1.bf16.xpose.msra.mxu0 0
    %7216 = vmatprep.subr.bf16.mxu0 0
    %7217 = vmatpush1.bf16.xpose.msra.mxu0 0
    %7218 = vmatprep.subr.bf16.mxu0 0
    %7219 = vmatpush1.bf16.xpose.msra.mxu0 0
    %7220 = vmatprep.subr.bf16.mxu0 0
    %7221 = vmatpush1.bf16.xpose.msra.mxu0 0
    %7222 = vmatprep.subr.bf16.mxu0 0
    %7223 = vmatpush1.bf16.xpose.msra.mxu0 0
    %7224 = vmatprep.subr.bf16.mxu0 0
    %7225 = vmatpush1.bf16.xpose.msra.mxu0 0
    %7226 = vmatprep.subr.bf16.mxu0 0
    %7227 = vmatpush1.bf16.xpose.msra.mxu0 0
    %7228 = vmatprep.subr.bf16.mxu0 0
    %7229 = vmatpush1.bf16.xpose.msra.mxu0 0
    %7230 = vmatprep.subr.bf16.mxu0 0
    %7231 = vmatpush1.bf16.xpose.msra.mxu0 0
    %7232 = vmatprep.subr.bf16.mxu0 0
    %7233 = vmatpush1.bf16.xpose.msra.mxu0 0
    %7234 = vmatprep.subr.bf16.mxu0 0
    %7235 = vmatpush1.bf16.xpose.msra.mxu0 0
    %7236 = vmatprep.subr.bf16.mxu0 0
    %7237 = vmatpush1.bf16.xpose.msra.mxu0 0
    %7238 = vmatprep.subr.bf16.mxu0 0
    %7239 = vmatpush1.bf16.xpose.msra.mxu0 0
    %7240 = vmatprep.subr.bf16.mxu0 0
    %7241 = vmatpush1.bf16.xpose.msra.mxu0 0
    %7242 = vmatprep.subr.bf16.mxu0 0
    %7243 = vmatpush1.bf16.xpose.msra.mxu0 0
    %7244 = vmatprep.mubr.bf16.mxu0 0
    %7245 = vmatmul.mubr.bf16.gmra.mrb[0].mxu0 %v7207
    %v7246 = vpop.f32.mrb[0].mxu0
    %v7247 = vadd.f32 %v100, %v7246
    %v7248 = vpop.f32.mrb[0].mxu0
    %v7249 = vpop.f32.mrb[0].mxu0
    %v7250 = vpop.f32.mrb[0].mxu0
    %7251 = vdwg.mxu0
    %v7252 = vrot.slane %v6616, 2
    %v7253 = vrot.slane %v6617, 1
    %v7254 = vsel %vm1278, %v7253, %v7252
    %v7255 = vsel %vm1281, %v6618, %v7254
    %v7256 = vrot.slane %v6619, 7
    %v7257 = vsel %vm1284, %v7256, %v7255
    %v7258 = vrot.slane %v6620, 6
    %v7259 = vsel %vm1287, %v7258, %v7257
    %v7260 = vrot.slane %v6621, 5
    %v7261 = vsel %vm1290, %v7260, %v7259
    %v7262 = vrot.slane %v6622, 4
    %v7263 = vsel %vm1293, %v7262, %v7261
    %v7264 = vrot.slane %v6623, 3
    %v7265 = vsel %vm1296, %v7264, %v7263
    %v7266 = vpack.c.b16 %v7265, %v7265
    %v7267 = vrot.slane %v6616, 6
    %v7268 = vrot.slane %v6617, 5
    %v7269 = vsel %vm1278, %v7268, %v7267
    %v7270 = vrot.slane %v6618, 4
    %v7271 = vsel %vm1281, %v7270, %v7269
    %v7272 = vrot.slane %v6619, 3
    %v7273 = vsel %vm1284, %v7272, %v7271
    %v7274 = vrot.slane %v6620, 2
    %v7275 = vsel %vm1287, %v7274, %v7273
    %v7276 = vrot.slane %v6621, 1
    %v7277 = vsel %vm1290, %v7276, %v7275
    %v7278 = vsel %vm1293, %v6622, %v7277
    %v7279 = vrot.slane %v6623, 7
    %v7280 = vsel %vm1296, %v7279, %v7278
    %v7281 = vpack.c.b16 %v7280, %v7280
    %v7283 = vsel %vm1314, %v7266, 0
    %v7286 = vsel %vm1314, %v7281, 0
    %7288 = vmatprep.subr.bf16.mxu0 0
    %7289 = vmatpush1.bf16.xpose.msra.mxu0 %v7286
    %7290 = vmatprep.subr.bf16.mxu0 0
    %7291 = vmatpush1.bf16.xpose.msra.mxu0 0
    %7292 = vmatprep.subr.bf16.mxu0 0
    %7293 = vmatpush1.bf16.xpose.msra.mxu0 0
    %7294 = vmatprep.subr.bf16.mxu0 0
    %7295 = vmatpush1.bf16.xpose.msra.mxu0 0
    %7296 = vmatprep.subr.bf16.mxu0 0
    %7297 = vmatpush1.bf16.xpose.msra.mxu0 0
    %7298 = vmatprep.subr.bf16.mxu0 0
    %7299 = vmatpush1.bf16.xpose.msra.mxu0 0
    %7300 = vmatprep.subr.bf16.mxu0 0
    %7301 = vmatpush1.bf16.xpose.msra.mxu0 0
    %7302 = vmatprep.subr.bf16.mxu0 0
    %7303 = vmatpush1.bf16.xpose.msra.mxu0 0
    %7304 = vmatprep.subr.bf16.mxu0 0
    %7305 = vmatpush1.bf16.xpose.msra.mxu0 0
    %7306 = vmatprep.subr.bf16.mxu0 0
    %7307 = vmatpush1.bf16.xpose.msra.mxu0 0
    %7308 = vmatprep.subr.bf16.mxu0 0
    %7309 = vmatpush1.bf16.xpose.msra.mxu0 0
    %7310 = vmatprep.subr.bf16.mxu0 0
    %7311 = vmatpush1.bf16.xpose.msra.mxu0 0
    %7312 = vmatprep.subr.bf16.mxu0 0
    %7313 = vmatpush1.bf16.xpose.msra.mxu0 0
    %7314 = vmatprep.subr.bf16.mxu0 0
    %7315 = vmatpush1.bf16.xpose.msra.mxu0 0
    %7316 = vmatprep.subr.bf16.mxu0 0
    %7317 = vmatpush1.bf16.xpose.msra.mxu0 0
    %7318 = vmatprep.subr.bf16.mxu0 0
    %7319 = vmatpush1.bf16.xpose.msra.mxu0 0
    %7320 = vmatprep.mubr.bf16.mxu0 0
    %7321 = vmatmul.mubr.bf16.gmra.mrb[0].mxu0 %v7283
    %v7322 = vpop.f32.mrb[0].mxu0
    %v7323 = vadd.f32 %v101, %v7322
    %v7324 = vpop.f32.mrb[0].mxu0
    %v7325 = vpop.f32.mrb[0].mxu0
    %v7326 = vpop.f32.mrb[0].mxu0
    %7327 = vdwg.mxu0
    %v7328 = vsel %vm1453, %v7247, -inf
    %7329 = vmax.xlane.f32.xlu0 %v7328
    %v7330 = vpop.xlane.xlu0 %7329
    %v7331 = vsel %vm1453, %v7323, -inf
    %7332 = vmax.xlane.f32.xlu0 %v7331
    %v7333 = vpop.xlane.xlu0 %7332
    %v7334 = vsub.f32 %v7247, %v7330
    %v7335 = vsub.f32 %v7323, %v7333
    %v7336 = vmul.f32 %v7334, 1.442695
    %v7337 = vpow.pop %v7336
    %v7338 = vmul.f32 %v7335, 1.442695
    %v7339 = vpow.pop %v7338
    %v7340 = vsel %vm1453, %v7337, 0.0
    %7341 = vadd.xlane.f32.xlu0 %v7340
    %v7342 = vpop.xlane.xlu0 %7341
    %v7343 = vsel %vm1453, %v7339, 0.0
    %7344 = vadd.xlane.f32.xlu0 %v7343
    %v7345 = vpop.xlane.xlu0 %7344
    %v7346 = vrcp.pop %v7342
    %v7347 = vrcp.pop %v7345
    %v7348 = vmul.f32 %v7337, %v7346
    %v7349 = vmul.f32 %v7339, %v7347
    %v7350 = vpack.c.bf16 %v7348, %v7348
    %v7351 = vpack.c.bf16 %v7349, %v7349
    %v7352 = vrot.slane %v6732, 2
    %v7353 = vrot.slane %v6733, 1
    %v7354 = vsel %vm1278, %v7353, %v7352
    %v7355 = vsel %vm1281, %v6734, %v7354
    %v7356 = vrot.slane %v6735, 7
    %v7357 = vsel %vm1284, %v7356, %v7355
    %v7358 = vrot.slane %v6736, 6
    %v7359 = vsel %vm1287, %v7358, %v7357
    %v7360 = vrot.slane %v6737, 5
    %v7361 = vsel %vm1290, %v7360, %v7359
    %v7362 = vrot.slane %v6738, 4
    %v7363 = vsel %vm1293, %v7362, %v7361
    %v7364 = vrot.slane %v6739, 3
    %v7365 = vsel %vm1296, %v7364, %v7363
    %v7366 = vpack.c.b16 %v7365, %v7365
    %v7368 = vsel %vm1453, %v7350, 0
    %v7371 = vsel %vm1512, %v7366, 0
    %7373 = vmatprep.subr.bf16.mxu0 0
    %7374 = vmatpush1.bf16.msra.mxu0 %v7371
    %7375 = vmatprep.subr.bf16.mxu0 0
    %7376 = vmatpush1.bf16.msra.mxu0 0
    %7377 = vmatprep.subr.bf16.mxu0 0
    %7378 = vmatpush1.bf16.msra.mxu0 0
    %7379 = vmatprep.subr.bf16.mxu0 0
    %7380 = vmatpush1.bf16.msra.mxu0 0
    %7381 = vmatprep.subr.bf16.mxu0 0
    %7382 = vmatpush1.bf16.msra.mxu0 0
    %7383 = vmatprep.subr.bf16.mxu0 0
    %7384 = vmatpush1.bf16.msra.mxu0 0
    %7385 = vmatprep.subr.bf16.mxu0 0
    %7386 = vmatpush1.bf16.msra.mxu0 0
    %7387 = vmatprep.subr.bf16.mxu0 0
    %7388 = vmatpush1.bf16.msra.mxu0 0
    %7389 = vmatprep.subr.bf16.mxu0 0
    %7390 = vmatpush1.bf16.msra.mxu0 0
    %7391 = vmatprep.subr.bf16.mxu0 0
    %7392 = vmatpush1.bf16.msra.mxu0 0
    %7393 = vmatprep.subr.bf16.mxu0 0
    %7394 = vmatpush1.bf16.msra.mxu0 0
    %7395 = vmatprep.subr.bf16.mxu0 0
    %7396 = vmatpush1.bf16.msra.mxu0 0
    %7397 = vmatprep.subr.bf16.mxu0 0
    %7398 = vmatpush1.bf16.msra.mxu0 0
    %7399 = vmatprep.subr.bf16.mxu0 0
    %7400 = vmatpush1.bf16.msra.mxu0 0
    %7401 = vmatprep.subr.bf16.mxu0 0
    %7402 = vmatpush1.bf16.msra.mxu0 0
    %7403 = vmatprep.subr.bf16.mxu0 0
    %7404 = vmatpush1.bf16.msra.mxu0 0
    %7405 = vmatprep.mubr.bf16.mxu0 0
    %7406 = vmatmul.mubr.bf16.gmra.mrb[0].mxu0 %v7368
    %v7407 = vpop.f32.mrb[0].mxu0
    %v7408 = vadd.f32 0.0, %v7407
    %v7409 = vpop.f32.mrb[0].mxu0
    %v7410 = vpop.f32.mrb[0].mxu0
    %v7411 = vpop.f32.mrb[0].mxu0
    %7412 = vdwg.mxu0
    %v7413 = vrot.slane %v6809, 2
    %v7414 = vrot.slane %v6810, 1
    %v7415 = vsel %vm1278, %v7414, %v7413
    %v7416 = vsel %vm1281, %v6811, %v7415
    %v7417 = vrot.slane %v6812, 7
    %v7418 = vsel %vm1284, %v7417, %v7416
    %v7419 = vrot.slane %v6813, 6
    %v7420 = vsel %vm1287, %v7419, %v7418
    %v7421 = vrot.slane %v6814, 5
    %v7422 = vsel %vm1290, %v7421, %v7420
    %v7423 = vrot.slane %v6815, 4
    %v7424 = vsel %vm1293, %v7423, %v7422
    %v7425 = vrot.slane %v6816, 3
    %v7426 = vsel %vm1296, %v7425, %v7424
    %v7427 = vpack.c.b16 %v7426, %v7426
    %v7429 = vsel %vm1453, %v7351, 0
    %v7432 = vsel %vm1512, %v7427, 0
    %7434 = vmatprep.subr.bf16.mxu0 0
    %7435 = vmatpush1.bf16.msra.mxu0 %v7432
    %7436 = vmatprep.subr.bf16.mxu0 0
    %7437 = vmatpush1.bf16.msra.mxu0 0
    %7438 = vmatprep.subr.bf16.mxu0 0
    %7439 = vmatpush1.bf16.msra.mxu0 0
    %7440 = vmatprep.subr.bf16.mxu0 0
    %7441 = vmatpush1.bf16.msra.mxu0 0
    %7442 = vmatprep.subr.bf16.mxu0 0
    %7443 = vmatpush1.bf16.msra.mxu0 0
    %7444 = vmatprep.subr.bf16.mxu0 0
    %7445 = vmatpush1.bf16.msra.mxu0 0
    %7446 = vmatprep.subr.bf16.mxu0 0
    %7447 = vmatpush1.bf16.msra.mxu0 0
    %7448 = vmatprep.subr.bf16.mxu0 0
    %7449 = vmatpush1.bf16.msra.mxu0 0
    %7450 = vmatprep.subr.bf16.mxu0 0
    %7451 = vmatpush1.bf16.msra.mxu0 0
    %7452 = vmatprep.subr.bf16.mxu0 0
    %7453 = vmatpush1.bf16.msra.mxu0 0
    %7454 = vmatprep.subr.bf16.mxu0 0
    %7455 = vmatpush1.bf16.msra.mxu0 0
    %7456 = vmatprep.subr.bf16.mxu0 0
    %7457 = vmatpush1.bf16.msra.mxu0 0
    %7458 = vmatprep.subr.bf16.mxu0 0
    %7459 = vmatpush1.bf16.msra.mxu0 0
    %7460 = vmatprep.subr.bf16.mxu0 0
    %7461 = vmatpush1.bf16.msra.mxu0 0
    %7462 = vmatprep.subr.bf16.mxu0 0
    %7463 = vmatpush1.bf16.msra.mxu0 0
    %7464 = vmatprep.subr.bf16.mxu0 0
    %7465 = vmatpush1.bf16.msra.mxu0 0
    %7466 = vmatprep.mubr.bf16.mxu0 0
    %7467 = vmatmul.mubr.bf16.gmra.mrb[0].mxu0 %v7429
    %v7468 = vpop.f32.mrb[0].mxu0
    %v7469 = vadd.f32 0.0, %v7468
    %v7470 = vpop.f32.mrb[0].mxu0
    %v7471 = vpop.f32.mrb[0].mxu0
    %v7472 = vpop.f32.mrb[0].mxu0
    %7473 = vdwg.mxu0
    %v7474 = vrot.slane %v6524, 3
    %v7475 = vrot.slane %v6525, 2
    %v7476 = vsel %vm1278, %v7475, %v7474
    %v7477 = vrot.slane %v6526, 1
    %v7478 = vsel %vm1281, %v7477, %v7476
    %v7479 = vsel %vm1284, %v6527, %v7478
    %v7480 = vrot.slane %v6528, 7
    %v7481 = vsel %vm1287, %v7480, %v7479
    %v7482 = vrot.slane %v6529, 6
    %v7483 = vsel %vm1290, %v7482, %v7481
    %v7484 = vrot.slane %v6530, 5
    %v7485 = vsel %vm1293, %v7484, %v7483
    %v7486 = vrot.slane %v6531, 4
    %v7487 = vsel %vm1296, %v7486, %v7485
    %v7488 = vpack.c.b16 %v7487, %v7487
    %v7489 = vrot.slane %v6524, 7
    %v7490 = vrot.slane %v6525, 6
    %v7491 = vsel %vm1278, %v7490, %v7489
    %v7492 = vrot.slane %v6526, 5
    %v7493 = vsel %vm1281, %v7492, %v7491
    %v7494 = vrot.slane %v6527, 4
    %v7495 = vsel %vm1284, %v7494, %v7493
    %v7496 = vrot.slane %v6528, 3
    %v7497 = vsel %vm1287, %v7496, %v7495
    %v7498 = vrot.slane %v6529, 2
    %v7499 = vsel %vm1290, %v7498, %v7497
    %v7500 = vrot.slane %v6530, 1
    %v7501 = vsel %vm1293, %v7500, %v7499
    %v7502 = vsel %vm1296, %v6531, %v7501
    %v7503 = vpack.c.b16 %v7502, %v7502
    %v7505 = vsel %vm1314, %v7488, 0
    %v7508 = vsel %vm1314, %v7503, 0
    %7510 = vmatprep.subr.bf16.mxu0 0
    %7511 = vmatpush1.bf16.xpose.msra.mxu0 %v7508
    %7512 = vmatprep.subr.bf16.mxu0 0
    %7513 = vmatpush1.bf16.xpose.msra.mxu0 0
    %7514 = vmatprep.subr.bf16.mxu0 0
    %7515 = vmatpush1.bf16.xpose.msra.mxu0 0
    %7516 = vmatprep.subr.bf16.mxu0 0
    %7517 = vmatpush1.bf16.xpose.msra.mxu0 0
    %7518 = vmatprep.subr.bf16.mxu0 0
    %7519 = vmatpush1.bf16.xpose.msra.mxu0 0
    %7520 = vmatprep.subr.bf16.mxu0 0
    %7521 = vmatpush1.bf16.xpose.msra.mxu0 0
    %7522 = vmatprep.subr.bf16.mxu0 0
    %7523 = vmatpush1.bf16.xpose.msra.mxu0 0
    %7524 = vmatprep.subr.bf16.mxu0 0
    %7525 = vmatpush1.bf16.xpose.msra.mxu0 0
    %7526 = vmatprep.subr.bf16.mxu0 0
    %7527 = vmatpush1.bf16.xpose.msra.mxu0 0
    %7528 = vmatprep.subr.bf16.mxu0 0
    %7529 = vmatpush1.bf16.xpose.msra.mxu0 0
    %7530 = vmatprep.subr.bf16.mxu0 0
    %7531 = vmatpush1.bf16.xpose.msra.mxu0 0
    %7532 = vmatprep.subr.bf16.mxu0 0
    %7533 = vmatpush1.bf16.xpose.msra.mxu0 0
    %7534 = vmatprep.subr.bf16.mxu0 0
    %7535 = vmatpush1.bf16.xpose.msra.mxu0 0
    %7536 = vmatprep.subr.bf16.mxu0 0
    %7537 = vmatpush1.bf16.xpose.msra.mxu0 0
    %7538 = vmatprep.subr.bf16.mxu0 0
    %7539 = vmatpush1.bf16.xpose.msra.mxu0 0
    %7540 = vmatprep.subr.bf16.mxu0 0
    %7541 = vmatpush1.bf16.xpose.msra.mxu0 0
    %7542 = vmatprep.mubr.bf16.mxu0 0
    %7543 = vmatmul.mubr.bf16.gmra.mrb[0].mxu0 %v7505
    %v7544 = vpop.f32.mrb[0].mxu0
    %v7545 = vadd.f32 %v100, %v7544
    %v7546 = vpop.f32.mrb[0].mxu0
    %v7547 = vpop.f32.mrb[0].mxu0
    %v7548 = vpop.f32.mrb[0].mxu0
    %7549 = vdwg.mxu0
    %v7550 = vrot.slane %v6616, 3
    %v7551 = vrot.slane %v6617, 2
    %v7552 = vsel %vm1278, %v7551, %v7550
    %v7553 = vrot.slane %v6618, 1
    %v7554 = vsel %vm1281, %v7553, %v7552
    %v7555 = vsel %vm1284, %v6619, %v7554
    %v7556 = vrot.slane %v6620, 7
    %v7557 = vsel %vm1287, %v7556, %v7555
    %v7558 = vrot.slane %v6621, 6
    %v7559 = vsel %vm1290, %v7558, %v7557
    %v7560 = vrot.slane %v6622, 5
    %v7561 = vsel %vm1293, %v7560, %v7559
    %v7562 = vrot.slane %v6623, 4
    %v7563 = vsel %vm1296, %v7562, %v7561
    %v7564 = vpack.c.b16 %v7563, %v7563
    %v7565 = vrot.slane %v6616, 7
    %v7566 = vrot.slane %v6617, 6
    %v7567 = vsel %vm1278, %v7566, %v7565
    %v7568 = vrot.slane %v6618, 5
    %v7569 = vsel %vm1281, %v7568, %v7567
    %v7570 = vrot.slane %v6619, 4
    %v7571 = vsel %vm1284, %v7570, %v7569
    %v7572 = vrot.slane %v6620, 3
    %v7573 = vsel %vm1287, %v7572, %v7571
    %v7574 = vrot.slane %v6621, 2
    %v7575 = vsel %vm1290, %v7574, %v7573
    %v7576 = vrot.slane %v6622, 1
    %v7577 = vsel %vm1293, %v7576, %v7575
    %v7578 = vsel %vm1296, %v6623, %v7577
    %v7579 = vpack.c.b16 %v7578, %v7578
    %v7581 = vsel %vm1314, %v7564, 0
    %v7584 = vsel %vm1314, %v7579, 0
    %7586 = vmatprep.subr.bf16.mxu0 0
    %7587 = vmatpush1.bf16.xpose.msra.mxu0 %v7584
    %7588 = vmatprep.subr.bf16.mxu0 0
    %7589 = vmatpush1.bf16.xpose.msra.mxu0 0
    %7590 = vmatprep.subr.bf16.mxu0 0
    %7591 = vmatpush1.bf16.xpose.msra.mxu0 0
    %7592 = vmatprep.subr.bf16.mxu0 0
    %7593 = vmatpush1.bf16.xpose.msra.mxu0 0
    %7594 = vmatprep.subr.bf16.mxu0 0
    %7595 = vmatpush1.bf16.xpose.msra.mxu0 0
    %7596 = vmatprep.subr.bf16.mxu0 0
    %7597 = vmatpush1.bf16.xpose.msra.mxu0 0
    %7598 = vmatprep.subr.bf16.mxu0 0
    %7599 = vmatpush1.bf16.xpose.msra.mxu0 0
    %7600 = vmatprep.subr.bf16.mxu0 0
    %7601 = vmatpush1.bf16.xpose.msra.mxu0 0
    %7602 = vmatprep.subr.bf16.mxu0 0
    %7603 = vmatpush1.bf16.xpose.msra.mxu0 0
    %7604 = vmatprep.subr.bf16.mxu0 0
    %7605 = vmatpush1.bf16.xpose.msra.mxu0 0
    %7606 = vmatprep.subr.bf16.mxu0 0
    %7607 = vmatpush1.bf16.xpose.msra.mxu0 0
    %7608 = vmatprep.subr.bf16.mxu0 0
    %7609 = vmatpush1.bf16.xpose.msra.mxu0 0
    %7610 = vmatprep.subr.bf16.mxu0 0
    %7611 = vmatpush1.bf16.xpose.msra.mxu0 0
    %7612 = vmatprep.subr.bf16.mxu0 0
    %7613 = vmatpush1.bf16.xpose.msra.mxu0 0
    %7614 = vmatprep.subr.bf16.mxu0 0
    %7615 = vmatpush1.bf16.xpose.msra.mxu0 0
    %7616 = vmatprep.subr.bf16.mxu0 0
    %7617 = vmatpush1.bf16.xpose.msra.mxu0 0
    %7618 = vmatprep.mubr.bf16.mxu0 0
    %7619 = vmatmul.mubr.bf16.gmra.mrb[0].mxu0 %v7581
    %v7620 = vpop.f32.mrb[0].mxu0
    %v7621 = vadd.f32 %v101, %v7620
    %v7622 = vpop.f32.mrb[0].mxu0
    %v7623 = vpop.f32.mrb[0].mxu0
    %v7624 = vpop.f32.mrb[0].mxu0
    %7625 = vdwg.mxu0
    %v7626 = vsel %vm1453, %v7545, -inf
    %7627 = vmax.xlane.f32.xlu0 %v7626
    %v7628 = vpop.xlane.xlu0 %7627
    %v7629 = vsel %vm1453, %v7621, -inf
    %7630 = vmax.xlane.f32.xlu0 %v7629
    %v7631 = vpop.xlane.xlu0 %7630
    %v7632 = vsub.f32 %v7545, %v7628
    %v7633 = vsub.f32 %v7621, %v7631
    %v7634 = vmul.f32 %v7632, 1.442695
    %v7635 = vpow.pop %v7634
    %v7636 = vmul.f32 %v7633, 1.442695
    %v7637 = vpow.pop %v7636
    %v7638 = vsel %vm1453, %v7635, 0.0
    %7639 = vadd.xlane.f32.xlu0 %v7638
    %v7640 = vpop.xlane.xlu0 %7639
    %v7641 = vsel %vm1453, %v7637, 0.0
    %7642 = vadd.xlane.f32.xlu0 %v7641
    %v7643 = vpop.xlane.xlu0 %7642
    %v7644 = vrcp.pop %v7640
    %v7645 = vrcp.pop %v7643
    %v7646 = vmul.f32 %v7635, %v7644
    %v7647 = vmul.f32 %v7637, %v7645
    %v7648 = vpack.c.bf16 %v7646, %v7646
    %v7649 = vpack.c.bf16 %v7647, %v7647
    %v7650 = vrot.slane %v6732, 3
    %v7651 = vrot.slane %v6733, 2
    %v7652 = vsel %vm1278, %v7651, %v7650
    %v7653 = vrot.slane %v6734, 1
    %v7654 = vsel %vm1281, %v7653, %v7652
    %v7655 = vsel %vm1284, %v6735, %v7654
    %v7656 = vrot.slane %v6736, 7
    %v7657 = vsel %vm1287, %v7656, %v7655
    %v7658 = vrot.slane %v6737, 6
    %v7659 = vsel %vm1290, %v7658, %v7657
    %v7660 = vrot.slane %v6738, 5
    %v7661 = vsel %vm1293, %v7660, %v7659
    %v7662 = vrot.slane %v6739, 4
    %v7663 = vsel %vm1296, %v7662, %v7661
    %v7664 = vpack.c.b16 %v7663, %v7663
    %v7666 = vsel %vm1453, %v7648, 0
    %v7669 = vsel %vm1512, %v7664, 0
    %7671 = vmatprep.subr.bf16.mxu0 0
    %7672 = vmatpush1.bf16.msra.mxu0 %v7669
    %7673 = vmatprep.subr.bf16.mxu0 0
    %7674 = vmatpush1.bf16.msra.mxu0 0
    %7675 = vmatprep.subr.bf16.mxu0 0
    %7676 = vmatpush1.bf16.msra.mxu0 0
    %7677 = vmatprep.subr.bf16.mxu0 0
    %7678 = vmatpush1.bf16.msra.mxu0 0
    %7679 = vmatprep.subr.bf16.mxu0 0
    %7680 = vmatpush1.bf16.msra.mxu0 0
    %7681 = vmatprep.subr.bf16.mxu0 0
    %7682 = vmatpush1.bf16.msra.mxu0 0
    %7683 = vmatprep.subr.bf16.mxu0 0
    %7684 = vmatpush1.bf16.msra.mxu0 0
    %7685 = vmatprep.subr.bf16.mxu0 0
    %7686 = vmatpush1.bf16.msra.mxu0 0
    %7687 = vmatprep.subr.bf16.mxu0 0
    %7688 = vmatpush1.bf16.msra.mxu0 0
    %7689 = vmatprep.subr.bf16.mxu0 0
    %7690 = vmatpush1.bf16.msra.mxu0 0
    %7691 = vmatprep.subr.bf16.mxu0 0
    %7692 = vmatpush1.bf16.msra.mxu0 0
    %7693 = vmatprep.subr.bf16.mxu0 0
    %7694 = vmatpush1.bf16.msra.mxu0 0
    %7695 = vmatprep.subr.bf16.mxu0 0
    %7696 = vmatpush1.bf16.msra.mxu0 0
    %7697 = vmatprep.subr.bf16.mxu0 0
    %7698 = vmatpush1.bf16.msra.mxu0 0
    %7699 = vmatprep.subr.bf16.mxu0 0
    %7700 = vmatpush1.bf16.msra.mxu0 0
    %7701 = vmatprep.subr.bf16.mxu0 0
    %7702 = vmatpush1.bf16.msra.mxu0 0
    %7703 = vmatprep.mubr.bf16.mxu0 0
    %7704 = vmatmul.mubr.bf16.gmra.mrb[0].mxu0 %v7666
    %v7705 = vpop.f32.mrb[0].mxu0
    %v7706 = vadd.f32 0.0, %v7705
    %v7707 = vpop.f32.mrb[0].mxu0
    %v7708 = vpop.f32.mrb[0].mxu0
    %v7709 = vpop.f32.mrb[0].mxu0
    %7710 = vdwg.mxu0
    %v7711 = vrot.slane %v6809, 3
    %v7712 = vrot.slane %v6810, 2
    %v7713 = vsel %vm1278, %v7712, %v7711
    %v7714 = vrot.slane %v6811, 1
    %v7715 = vsel %vm1281, %v7714, %v7713
    %v7716 = vsel %vm1284, %v6812, %v7715
    %v7717 = vrot.slane %v6813, 7
    %v7718 = vsel %vm1287, %v7717, %v7716
    %v7719 = vrot.slane %v6814, 6
    %v7720 = vsel %vm1290, %v7719, %v7718
    %v7721 = vrot.slane %v6815, 5
    %v7722 = vsel %vm1293, %v7721, %v7720
    %v7723 = vrot.slane %v6816, 4
    %v7724 = vsel %vm1296, %v7723, %v7722
    %v7725 = vpack.c.b16 %v7724, %v7724
    %v7727 = vsel %vm1453, %v7649, 0
    %v7730 = vsel %vm1512, %v7725, 0
    %7732 = vmatprep.subr.bf16.mxu0 0
    %7733 = vmatpush1.bf16.msra.mxu0 %v7730
    %7734 = vmatprep.subr.bf16.mxu0 0
    %7735 = vmatpush1.bf16.msra.mxu0 0
    %7736 = vmatprep.subr.bf16.mxu0 0
    %7737 = vmatpush1.bf16.msra.mxu0 0
    %7738 = vmatprep.subr.bf16.mxu0 0
    %7739 = vmatpush1.bf16.msra.mxu0 0
    %7740 = vmatprep.subr.bf16.mxu0 0
    %7741 = vmatpush1.bf16.msra.mxu0 0
    %7742 = vmatprep.subr.bf16.mxu0 0
    %7743 = vmatpush1.bf16.msra.mxu0 0
    %7744 = vmatprep.subr.bf16.mxu0 0
    %7745 = vmatpush1.bf16.msra.mxu0 0
    %7746 = vmatprep.subr.bf16.mxu0 0
    %7747 = vmatpush1.bf16.msra.mxu0 0
    %7748 = vmatprep.subr.bf16.mxu0 0
    %7749 = vmatpush1.bf16.msra.mxu0 0
    %7750 = vmatprep.subr.bf16.mxu0 0
    %7751 = vmatpush1.bf16.msra.mxu0 0
    %7752 = vmatprep.subr.bf16.mxu0 0
    %7753 = vmatpush1.bf16.msra.mxu0 0
    %7754 = vmatprep.subr.bf16.mxu0 0
    %7755 = vmatpush1.bf16.msra.mxu0 0
    %7756 = vmatprep.subr.bf16.mxu0 0
    %7757 = vmatpush1.bf16.msra.mxu0 0
    %7758 = vmatprep.subr.bf16.mxu0 0
    %7759 = vmatpush1.bf16.msra.mxu0 0
    %7760 = vmatprep.subr.bf16.mxu0 0
    %7761 = vmatpush1.bf16.msra.mxu0 0
    %7762 = vmatprep.subr.bf16.mxu0 0
    %7763 = vmatpush1.bf16.msra.mxu0 0
    %7764 = vmatprep.mubr.bf16.mxu0 0
    %7765 = vmatmul.mubr.bf16.gmra.mrb[0].mxu0 %v7727
    %v7766 = vpop.f32.mrb[0].mxu0
    %v7767 = vadd.f32 0.0, %v7766
    %v7768 = vpop.f32.mrb[0].mxu0
    %v7769 = vpop.f32.mrb[0].mxu0
    %v7770 = vpop.f32.mrb[0].mxu0
    %7771 = vdwg.mxu0
    %7774 = vrot.lane.b32.xlu0 %v7110, 32
    %v7775 = vpop.permute.xlu0 %7774
    %7776 = vrot.lane.b32.xlu0 %v7171, 32
    %v7777 = vpop.permute.xlu0 %7776
    %7782 = vrot.lane.b32.xlu0 %v7408, 64
    %v7783 = vpop.permute.xlu0 %7782
    %7784 = vrot.lane.b32.xlu0 %v7469, 64
    %v7785 = vpop.permute.xlu0 %7784
    %7790 = vrot.lane.b32.xlu0 %v7706, 96
    %v7791 = vpop.permute.xlu0 %7790
    %7792 = vrot.lane.b32.xlu0 %v7767, 96
    %v7793 = vpop.permute.xlu0 %7792
    %v7796 = vsel %vm1314, %v6796, %v7775
    %v7797 = vsel %vm1314, %v6873, %v7777
    %v7798 = vsel %vm2553, %v7796, %v7783
    %v7799 = vsel %vm2553, %v7797, %v7785
    %v7800 = vsel %vm2556, %v7798, %v7791
    %v7801 = vsel %vm2556, %v7799, %v7793
    %v7802 = vpack.c.bf16 %v7801, %v7800
    %s7803 = scalar_lea.vmem %s11, 1
    %v7804 = vld [vmem:[%s7803] sm:$0x1]
    %v7806 = vlaneseq
    %v7807 = vshrl.u32 %v7806, 7
    %v7808 = vsub.s32 0, %v7807
    %v7809 = vrot.slane %v7804, %v7808
    %v7827 = vunpack.c.l.b16 %v6468
    %v7828 = vunpack.c.l.b16 %v6469
    %v7829 = vunpack.c.l.b16 %v6470
    %v7830 = vunpack.c.l.b16 %v6471
    %v7831 = vunpack.c.l.b16 %v6472
    %v7832 = vunpack.c.l.b16 %v6473
    %v7833 = vunpack.c.l.b16 %v6474
    %v7834 = vunpack.c.l.b16 %v6475
    %v7835 = vunpack.c.l.b16 %v6476
    %v7836 = vunpack.c.l.b16 %v6477
    %v7837 = vunpack.c.l.b16 %v6478
    %v7838 = vunpack.c.l.b16 %v6479
    %v7839 = vunpack.c.l.b16 %v6480
    %v7840 = vunpack.c.l.b16 %v6481
    %v7841 = vunpack.c.l.b16 %v6482
    %v7842 = vunpack.c.l.b16 %v6483
    %v7843 = vpack.c.b16 %v7828, %v7827
    %v7844 = vpack.c.b16 %v7830, %v7829
    %v7845 = vpack.c.b16 %v7832, %v7831
    %v7846 = vpack.c.b16 %v7834, %v7833
    %v7847 = vpack.c.b16 %v7836, %v7835
    %v7848 = vpack.c.b16 %v7838, %v7837
    %v7849 = vpack.c.b16 %v7840, %v7839
    %v7850 = vpack.c.b16 %v7842, %v7841
    %7859 = vmatprep.subr.bf16.mxu0 0
    %7860 = vmatpush1.bf16.msra.mxu0 %v7843
    %7861 = vmatprep.subr.bf16.mxu0 0
    %7862 = vmatpush1.bf16.msra.mxu0 %v7844
    %7863 = vmatprep.subr.bf16.mxu0 0
    %7864 = vmatpush1.bf16.msra.mxu0 %v7845
    %7865 = vmatprep.subr.bf16.mxu0 0
    %7866 = vmatpush1.bf16.msra.mxu0 %v7846
    %7867 = vmatprep.subr.bf16.mxu0 0
    %7868 = vmatpush1.bf16.msra.mxu0 %v7847
    %7869 = vmatprep.subr.bf16.mxu0 0
    %7870 = vmatpush1.bf16.msra.mxu0 %v7848
    %7871 = vmatprep.subr.bf16.mxu0 0
    %7872 = vmatpush1.bf16.msra.mxu0 %v7849
    %7873 = vmatprep.subr.bf16.mxu0 0
    %7874 = vmatpush1.bf16.msra.mxu0 %v7850
    %7875 = vmatprep.subr.bf16.mxu0 0
    %7876 = vmatpush1.bf16.msra.mxu0 0
    %7877 = vmatprep.subr.bf16.mxu0 0
    %7878 = vmatpush1.bf16.msra.mxu0 0
    %7879 = vmatprep.subr.bf16.mxu0 0
    %7880 = vmatpush1.bf16.msra.mxu0 0
    %7881 = vmatprep.subr.bf16.mxu0 0
    %7882 = vmatpush1.bf16.msra.mxu0 0
    %7883 = vmatprep.subr.bf16.mxu0 0
    %7884 = vmatpush1.bf16.msra.mxu0 0
    %7885 = vmatprep.subr.bf16.mxu0 0
    %7886 = vmatpush1.bf16.msra.mxu0 0
    %7887 = vmatprep.subr.bf16.mxu0 0
    %7888 = vmatpush1.bf16.msra.mxu0 0
    %7889 = vmatprep.subr.bf16.mxu0 0
    %7890 = vmatpush1.bf16.msra.mxu0 0
    %7891 = vmatprep.mubr.bf16.mxu0 0
    %7892 = vmatmul.mubr.bf16.gmra.mrb[0].mxu0 %v7802
    %v7893 = vpop.f32.mrb[0].mxu0
    %v7894 = vadd.f32 %v7809, %v7893
    %v7895 = vpop.f32.mrb[0].mxu0
    %v7896 = vpop.f32.mrb[0].mxu0
    %v7897 = vadd.f32 %v7809, %v7896
    %v7898 = vpop.f32.mrb[0].mxu0
    %7899 = vdwg.mxu0
    %v7900 = vadd.f32 %v7894, %v5733
    %v7901 = vadd.f32 %v7897, %v5734
    %s7902 = scalar_lea.vmem %s12, 1
    %v7903 = vld [vmem:[%s7902] sm:$0x1]
    %s7904 = scalar_lea.vmem %s13, 1
    %v7905 = vld [vmem:[%s7904] sm:$0x1]
    %7906 = vadd.xlane.f32.xlu0 %v7900
    %v7907 = vpop.xlane.xlu0 %7906
    %7908 = vadd.xlane.f32.xlu0 %v7901
    %v7909 = vpop.xlane.xlu0 %7908
    %v7910 = vmul.f32 %v7907, %v114
    %v7911 = vmul.f32 %v7909, %v114
    %v7912 = vsub.f32 %v7900, %v7910
    %v7913 = vsub.f32 %v7901, %v7911
    %v7914 = vmul.f32 %v7912, %v7912
    %v7915 = vmul.f32 %v7913, %v7913
    %7916 = vadd.xlane.f32.xlu0 %v7914
    %v7917 = vpop.xlane.xlu0 %7916
    %7918 = vadd.xlane.f32.xlu0 %v7915
    %v7919 = vpop.xlane.xlu0 %7918
    %v7920 = vmul.f32 %v7917, %v114
    %v7921 = vmul.f32 %v7919, %v114
    %v7922 = vadd.f32 %v7920, 1e-12
    %v7923 = vadd.f32 %v7921, 1e-12
    %v7924 = vrsqrt.pop %v7922
    %v7925 = vrsqrt.pop %v7923
    %v7926 = vmul.f32 %v7912, %v7924
    %v7927 = vmul.f32 %v7913, %v7925
    %v7929 = vlaneseq
    %v7930 = vshrl.u32 %v7929, 7
    %v7931 = vsub.s32 0, %v7930
    %v7932 = vrot.slane %v7903, %v7931
    %v7934 = vmul.f32 %v7926, %v7932
    %v7935 = vmul.f32 %v7927, %v7932
    %v7937 = vlaneseq
    %v7938 = vshrl.u32 %v7937, 7
    %v7939 = vsub.s32 0, %v7938
    %v7940 = vrot.slane %v7905, %v7939
    %v7942 = vadd.f32 %v7934, %v7940
    %v7943 = vadd.f32 %v7935, %v7940
    %v7944 = vmul.f32 %v7942, %v93
    %v7945 = vmul.f32 %v7943, %v98
    %v7946 = vpack.c.bf16 %v7945, %v7944
    %s7947 = scalar_lea.vmem %s14, 64
    %v7948 = vld [vmem:[%s7947] sm:$0xf]
    %v7949 = vld [vmem:[%s7947 + $0x4] sm:$0xf]
    %v7950 = vld [vmem:[%s7947 + $0x8] sm:$0xf]
    %v7951 = vld [vmem:[%s7947 + $0xc] sm:$0xf]
    %v7952 = vld [vmem:[%s7947 + $0x10] sm:$0xf]
    %v7953 = vld [vmem:[%s7947 + $0x14] sm:$0xf]
    %v7954 = vld [vmem:[%s7947 + $0x18] sm:$0xf]
    %v7955 = vld [vmem:[%s7947 + $0x1c] sm:$0xf]
    %v7956 = vld [vmem:[%s7947 + $0x20] sm:$0xf]
    %v7957 = vld [vmem:[%s7947 + $0x24] sm:$0xf]
    %v7958 = vld [vmem:[%s7947 + $0x28] sm:$0xf]
    %v7959 = vld [vmem:[%s7947 + $0x2c] sm:$0xf]
    %v7960 = vld [vmem:[%s7947 + $0x30] sm:$0xf]
    %v7961 = vld [vmem:[%s7947 + $0x34] sm:$0xf]
    %v7962 = vld [vmem:[%s7947 + $0x38] sm:$0xf]
    %v7963 = vld [vmem:[%s7947 + $0x3c] sm:$0xf]
    %s7964 = scalar_lea.vmem %s15, 1
    %v7965 = vld [vmem:[%s7964] sm:$0x1]
    %v7967 = vlaneseq
    %v7968 = vshrl.u32 %v7967, 7
    %v7969 = vsub.s32 0, %v7968
    %v7970 = vrot.slane %v7965, %v7969
    %v7988 = vunpack.c.l.b16 %v7948
    %v7989 = vunpack.c.l.b16 %v7949
    %v7990 = vunpack.c.l.b16 %v7950
    %v7991 = vunpack.c.l.b16 %v7951
    %v7992 = vunpack.c.l.b16 %v7952
    %v7993 = vunpack.c.l.b16 %v7953
    %v7994 = vunpack.c.l.b16 %v7954
    %v7995 = vunpack.c.l.b16 %v7955
    %v7996 = vunpack.c.l.b16 %v7956
    %v7997 = vunpack.c.l.b16 %v7957
    %v7998 = vunpack.c.l.b16 %v7958
    %v7999 = vunpack.c.l.b16 %v7959
    %v8000 = vunpack.c.l.b16 %v7960
    %v8001 = vunpack.c.l.b16 %v7961
    %v8002 = vunpack.c.l.b16 %v7962
    %v8003 = vunpack.c.l.b16 %v7963
    %v8004 = vpack.c.b16 %v7989, %v7988
    %v8005 = vpack.c.b16 %v7991, %v7990
    %v8006 = vpack.c.b16 %v7993, %v7992
    %v8007 = vpack.c.b16 %v7995, %v7994
    %v8008 = vpack.c.b16 %v7997, %v7996
    %v8009 = vpack.c.b16 %v7999, %v7998
    %v8010 = vpack.c.b16 %v8001, %v8000
    %v8011 = vpack.c.b16 %v8003, %v8002
    %8020 = vmatprep.subr.bf16.mxu0 0
    %8021 = vmatpush1.bf16.msra.mxu0 %v8004
    %8022 = vmatprep.subr.bf16.mxu0 0
    %8023 = vmatpush1.bf16.msra.mxu0 %v8005
    %8024 = vmatprep.subr.bf16.mxu0 0
    %8025 = vmatpush1.bf16.msra.mxu0 %v8006
    %8026 = vmatprep.subr.bf16.mxu0 0
    %8027 = vmatpush1.bf16.msra.mxu0 %v8007
    %8028 = vmatprep.subr.bf16.mxu0 0
    %8029 = vmatpush1.bf16.msra.mxu0 %v8008
    %8030 = vmatprep.subr.bf16.mxu0 0
    %8031 = vmatpush1.bf16.msra.mxu0 %v8009
    %8032 = vmatprep.subr.bf16.mxu0 0
    %8033 = vmatpush1.bf16.msra.mxu0 %v8010
    %8034 = vmatprep.subr.bf16.mxu0 0
    %8035 = vmatpush1.bf16.msra.mxu0 %v8011
    %8036 = vmatprep.subr.bf16.mxu0 0
    %8037 = vmatpush1.bf16.msra.mxu0 0
    %8038 = vmatprep.subr.bf16.mxu0 0
    %8039 = vmatpush1.bf16.msra.mxu0 0
    %8040 = vmatprep.subr.bf16.mxu0 0
    %8041 = vmatpush1.bf16.msra.mxu0 0
    %8042 = vmatprep.subr.bf16.mxu0 0
    %8043 = vmatpush1.bf16.msra.mxu0 0
    %8044 = vmatprep.subr.bf16.mxu0 0
    %8045 = vmatpush1.bf16.msra.mxu0 0
    %8046 = vmatprep.subr.bf16.mxu0 0
    %8047 = vmatpush1.bf16.msra.mxu0 0
    %8048 = vmatprep.subr.bf16.mxu0 0
    %8049 = vmatpush1.bf16.msra.mxu0 0
    %8050 = vmatprep.subr.bf16.mxu0 0
    %8051 = vmatpush1.bf16.msra.mxu0 0
    %8052 = vmatprep.mubr.bf16.mxu0 0
    %8053 = vmatmul.mubr.bf16.gmra.mrb[0].mxu0 %v7946
    %v8054 = vpop.f32.mrb[0].mxu0
    %v8055 = vadd.f32 %v7970, %v8054
    %v8056 = vpop.f32.mrb[0].mxu0
    %v8057 = vpop.f32.mrb[0].mxu0
    %v8058 = vadd.f32 %v7970, %v8057
    %v8059 = vpop.f32.mrb[0].mxu0
    %8060 = vdwg.mxu0
    %8063 = vrot.lane.b32.xlu0 %v8055, 96
    %v8064 = vpop.permute.xlu0 %8063
    %8065 = vrot.lane.b32.xlu0 %v8058, 96
    %v8066 = vpop.permute.xlu0 %8065
    %8069 = vrot.lane.b32.xlu0 %v8055, 64
    %v8070 = vpop.permute.xlu0 %8069
    %8071 = vrot.lane.b32.xlu0 %v8058, 64
    %v8072 = vpop.permute.xlu0 %8071
    %8075 = vrot.lane.b32.xlu0 %v8055, 32
    %v8076 = vpop.permute.xlu0 %8075
    %8077 = vrot.lane.b32.xlu0 %v8058, 32
    %v8078 = vpop.permute.xlu0 %8077
    %v8081 = vcombine.low %v8055, %v8070
    %v8082 = vcombine.high %v8055, %v8070
    %v8084 = vunpack.c.l.s4 1983009808
    %v8085 = vunpack.c.0.s8 %v8084
    %v8086 = vlaneseq
    %v8087 = vshrl.u32 %v8086, 7
    %v8088 = vsub.s32 %v8085, %v8087
    %v8089 = vrot.slane %v8081, %v8088
    %v8091 = vunpack.c.l.s4 1983009808
    %v8092 = vunpack.c.0.s8 %v8091
    %v8093 = vlaneseq
    %v8094 = vshrl.u32 %v8093, 7
    %v8095 = vsub.s32 %v8092, %v8094
    %v8096 = vrot.slane %v8082, %v8095
    %v8097 = vcombine.low %v8064, %v8076
    %v8098 = vcombine.high %v8064, %v8076
    %v8100 = vunpack.c.l.s4 1983009808
    %v8101 = vunpack.c.0.s8 %v8100
    %v8102 = vlaneseq
    %v8103 = vshrl.u32 %v8102, 7
    %v8104 = vsub.s32 %v8101, %v8103
    %v8105 = vrot.slane %v8097, %v8104
    %v8107 = vunpack.c.l.s4 1983009808
    %v8108 = vunpack.c.0.s8 %v8107
    %v8109 = vlaneseq
    %v8110 = vshrl.u32 %v8109, 7
    %v8111 = vsub.s32 %v8108, %v8110
    %v8112 = vrot.slane %v8098, %v8111
    %v8113 = vcombine.low %v8089, %v8105
    %v8114 = vcombine.high %v8089, %v8105
    %v8116 = vunpack.c.l.s4 1934713408
    %v8117 = vunpack.c.0.s8 %v8116
    %v8118 = vlaneseq
    %v8119 = vshrl.u32 %v8118, 7
    %v8120 = vsub.s32 %v8117, %v8119
    %v8121 = vrot.slane %v8113, %v8120
    %v8123 = vunpack.c.l.s4 1934713408
    %v8124 = vunpack.c.0.s8 %v8123
    %v8125 = vlaneseq
    %v8126 = vshrl.u32 %v8125, 7
    %v8127 = vsub.s32 %v8124, %v8126
    %v8128 = vrot.slane %v8114, %v8127
    %v8129 = vcombine.low %v8096, %v8112
    %v8130 = vcombine.high %v8096, %v8112
    %v8132 = vunpack.c.l.s4 1934713408
    %v8133 = vunpack.c.0.s8 %v8132
    %v8134 = vlaneseq
    %v8135 = vshrl.u32 %v8134, 7
    %v8136 = vsub.s32 %v8133, %v8135
    %v8137 = vrot.slane %v8129, %v8136
    %v8139 = vunpack.c.l.s4 1934713408
    %v8140 = vunpack.c.0.s8 %v8139
    %v8141 = vlaneseq
    %v8142 = vshrl.u32 %v8141, 7
    %v8143 = vsub.s32 %v8140, %v8142
    %v8144 = vrot.slane %v8130, %v8143
    %v8145 = vcombine.high %v8121, 0.0
    %v8146 = vcombine.high %v8128, 0.0
    %v8147 = vcombine.high %v8137, 0.0
    %v8148 = vcombine.high %v8144, 0.0
    %v8149 = vcombine.low %v8058, %v8072
    %v8150 = vcombine.high %v8058, %v8072
    %v8152 = vunpack.c.l.s4 1983009808
    %v8153 = vunpack.c.0.s8 %v8152
    %v8154 = vlaneseq
    %v8155 = vshrl.u32 %v8154, 7
    %v8156 = vsub.s32 %v8153, %v8155
    %v8157 = vrot.slane %v8149, %v8156
    %v8159 = vunpack.c.l.s4 1983009808
    %v8160 = vunpack.c.0.s8 %v8159
    %v8161 = vlaneseq
    %v8162 = vshrl.u32 %v8161, 7
    %v8163 = vsub.s32 %v8160, %v8162
    %v8164 = vrot.slane %v8150, %v8163
    %v8165 = vcombine.low %v8066, %v8078
    %v8166 = vcombine.high %v8066, %v8078
    %v8168 = vunpack.c.l.s4 1983009808
    %v8169 = vunpack.c.0.s8 %v8168
    %v8170 = vlaneseq
    %v8171 = vshrl.u32 %v8170, 7
    %v8172 = vsub.s32 %v8169, %v8171
    %v8173 = vrot.slane %v8165, %v8172
    %v8175 = vunpack.c.l.s4 1983009808
    %v8176 = vunpack.c.0.s8 %v8175
    %v8177 = vlaneseq
    %v8178 = vshrl.u32 %v8177, 7
    %v8179 = vsub.s32 %v8176, %v8178
    %v8180 = vrot.slane %v8166, %v8179
    %v8181 = vcombine.low %v8157, %v8173
    %v8182 = vcombine.high %v8157, %v8173
    %v8184 = vunpack.c.l.s4 1934713408
    %v8185 = vunpack.c.0.s8 %v8184
    %v8186 = vlaneseq
    %v8187 = vshrl.u32 %v8186, 7
    %v8188 = vsub.s32 %v8185, %v8187
    %v8189 = vrot.slane %v8181, %v8188
    %v8191 = vunpack.c.l.s4 1934713408
    %v8192 = vunpack.c.0.s8 %v8191
    %v8193 = vlaneseq
    %v8194 = vshrl.u32 %v8193, 7
    %v8195 = vsub.s32 %v8192, %v8194
    %v8196 = vrot.slane %v8182, %v8195
    %v8197 = vcombine.low %v8164, %v8180
    %v8198 = vcombine.high %v8164, %v8180
    %v8200 = vunpack.c.l.s4 1934713408
    %v8201 = vunpack.c.0.s8 %v8200
    %v8202 = vlaneseq
    %v8203 = vshrl.u32 %v8202, 7
    %v8204 = vsub.s32 %v8201, %v8203
    %v8205 = vrot.slane %v8197, %v8204
    %v8207 = vunpack.c.l.s4 1934713408
    %v8208 = vunpack.c.0.s8 %v8207
    %v8209 = vlaneseq
    %v8210 = vshrl.u32 %v8209, 7
    %v8211 = vsub.s32 %v8208, %v8210
    %v8212 = vrot.slane %v8198, %v8211
    %v8213 = vcombine.high %v8189, 0.0
    %v8214 = vcombine.high %v8196, 0.0
    %v8215 = vcombine.high %v8205, 0.0
    %v8216 = vcombine.high %v8212, 0.0
    %8221 = vrot.lane.b32.xlu0 %v465, 96
    %v8222 = vpop.permute.xlu0 %8221
    %8223 = vrot.lane.b32.xlu0 %v469, 96
    %v8224 = vpop.permute.xlu0 %8223
    %8225 = vrot.lane.b32.xlu0 %v475, 96
    %v8226 = vpop.permute.xlu0 %8225
    %8227 = vrot.lane.b32.xlu0 %v479, 96
    %v8228 = vpop.permute.xlu0 %8227
    %8233 = vrot.lane.b32.xlu0 %v465, 64
    %v8234 = vpop.permute.xlu0 %8233
    %8235 = vrot.lane.b32.xlu0 %v469, 64
    %v8236 = vpop.permute.xlu0 %8235
    %8237 = vrot.lane.b32.xlu0 %v475, 64
    %v8238 = vpop.permute.xlu0 %8237
    %8239 = vrot.lane.b32.xlu0 %v479, 64
    %v8240 = vpop.permute.xlu0 %8239
    %8245 = vrot.lane.b32.xlu0 %v465, 32
    %v8246 = vpop.permute.xlu0 %8245
    %8247 = vrot.lane.b32.xlu0 %v469, 32
    %v8248 = vpop.permute.xlu0 %8247
    %8249 = vrot.lane.b32.xlu0 %v475, 32
    %v8250 = vpop.permute.xlu0 %8249
    %8251 = vrot.lane.b32.xlu0 %v479, 32
    %v8252 = vpop.permute.xlu0 %8251
    %8261 = vrot.lane.b32.xlu0 %v467, 96
    %v8262 = vpop.permute.xlu0 %8261
    %8263 = vrot.lane.b32.xlu0 %v471, 96
    %v8264 = vpop.permute.xlu0 %8263
    %8265 = vrot.lane.b32.xlu0 %v477, 96
    %v8266 = vpop.permute.xlu0 %8265
    %8267 = vrot.lane.b32.xlu0 %v481, 96
    %v8268 = vpop.permute.xlu0 %8267
    %8273 = vrot.lane.b32.xlu0 %v467, 64
    %v8274 = vpop.permute.xlu0 %8273
    %8275 = vrot.lane.b32.xlu0 %v471, 64
    %v8276 = vpop.permute.xlu0 %8275
    %8277 = vrot.lane.b32.xlu0 %v477, 64
    %v8278 = vpop.permute.xlu0 %8277
    %8279 = vrot.lane.b32.xlu0 %v481, 64
    %v8280 = vpop.permute.xlu0 %8279
    %8285 = vrot.lane.b32.xlu0 %v467, 32
    %v8286 = vpop.permute.xlu0 %8285
    %8287 = vrot.lane.b32.xlu0 %v471, 32
    %v8288 = vpop.permute.xlu0 %8287
    %8289 = vrot.lane.b32.xlu0 %v477, 32
    %v8290 = vpop.permute.xlu0 %8289
    %8291 = vrot.lane.b32.xlu0 %v481, 32
    %v8292 = vpop.permute.xlu0 %8291
    %v8297 = vcombine.low %v465, %v8234
    %v8298 = vcombine.high %v465, %v8234
    %v8300 = vunpack.c.l.s4 1983009808
    %v8301 = vunpack.c.0.s8 %v8300
    %v8302 = vlaneseq
    %v8303 = vshrl.u32 %v8302, 7
    %v8304 = vsub.s32 %v8301, %v8303
    %v8305 = vrot.slane %v8297, %v8304
    %v8307 = vunpack.c.l.s4 1983009808
    %v8308 = vunpack.c.0.s8 %v8307
    %v8309 = vlaneseq
    %v8310 = vshrl.u32 %v8309, 7
    %v8311 = vsub.s32 %v8308, %v8310
    %v8312 = vrot.slane %v8298, %v8311
    %v8313 = vcombine.low %v8222, %v8246
    %v8314 = vcombine.high %v8222, %v8246
    %v8316 = vunpack.c.l.s4 1983009808
    %v8317 = vunpack.c.0.s8 %v8316
    %v8318 = vlaneseq
    %v8319 = vshrl.u32 %v8318, 7
    %v8320 = vsub.s32 %v8317, %v8319
    %v8321 = vrot.slane %v8313, %v8320
    %v8323 = vunpack.c.l.s4 1983009808
    %v8324 = vunpack.c.0.s8 %v8323
    %v8325 = vlaneseq
    %v8326 = vshrl.u32 %v8325, 7
    %v8327 = vsub.s32 %v8324, %v8326
    %v8328 = vrot.slane %v8314, %v8327
    %v8329 = vcombine.low %v467, %v8274
    %v8330 = vcombine.high %v467, %v8274
    %v8332 = vunpack.c.l.s4 1983009808
    %v8333 = vunpack.c.0.s8 %v8332
    %v8334 = vlaneseq
    %v8335 = vshrl.u32 %v8334, 7
    %v8336 = vsub.s32 %v8333, %v8335
    %v8337 = vrot.slane %v8329, %v8336
    %v8339 = vunpack.c.l.s4 1983009808
    %v8340 = vunpack.c.0.s8 %v8339
    %v8341 = vlaneseq
    %v8342 = vshrl.u32 %v8341, 7
    %v8343 = vsub.s32 %v8340, %v8342
    %v8344 = vrot.slane %v8330, %v8343
    %v8345 = vcombine.low %v8262, %v8286
    %v8346 = vcombine.high %v8262, %v8286
    %v8348 = vunpack.c.l.s4 1983009808
    %v8349 = vunpack.c.0.s8 %v8348
    %v8350 = vlaneseq
    %v8351 = vshrl.u32 %v8350, 7
    %v8352 = vsub.s32 %v8349, %v8351
    %v8353 = vrot.slane %v8345, %v8352
    %v8355 = vunpack.c.l.s4 1983009808
    %v8356 = vunpack.c.0.s8 %v8355
    %v8357 = vlaneseq
    %v8358 = vshrl.u32 %v8357, 7
    %v8359 = vsub.s32 %v8356, %v8358
    %v8360 = vrot.slane %v8346, %v8359
    %v8361 = vcombine.low %v8305, %v8321
    %v8362 = vcombine.high %v8305, %v8321
    %v8364 = vunpack.c.l.s4 1934713408
    %v8365 = vunpack.c.0.s8 %v8364
    %v8366 = vlaneseq
    %v8367 = vshrl.u32 %v8366, 7
    %v8368 = vsub.s32 %v8365, %v8367
    %v8369 = vrot.slane %v8361, %v8368
    %v8371 = vunpack.c.l.s4 1934713408
    %v8372 = vunpack.c.0.s8 %v8371
    %v8373 = vlaneseq
    %v8374 = vshrl.u32 %v8373, 7
    %v8375 = vsub.s32 %v8372, %v8374
    %v8376 = vrot.slane %v8362, %v8375
    %v8377 = vcombine.low %v8312, %v8328
    %v8378 = vcombine.high %v8312, %v8328
    %v8380 = vunpack.c.l.s4 1934713408
    %v8381 = vunpack.c.0.s8 %v8380
    %v8382 = vlaneseq
    %v8383 = vshrl.u32 %v8382, 7
    %v8384 = vsub.s32 %v8381, %v8383
    %v8385 = vrot.slane %v8377, %v8384
    %v8387 = vunpack.c.l.s4 1934713408
    %v8388 = vunpack.c.0.s8 %v8387
    %v8389 = vlaneseq
    %v8390 = vshrl.u32 %v8389, 7
    %v8391 = vsub.s32 %v8388, %v8390
    %v8392 = vrot.slane %v8378, %v8391
    %v8393 = vcombine.low %v8337, %v8353
    %v8394 = vcombine.high %v8337, %v8353
    %v8396 = vunpack.c.l.s4 1934713408
    %v8397 = vunpack.c.0.s8 %v8396
    %v8398 = vlaneseq
    %v8399 = vshrl.u32 %v8398, 7
    %v8400 = vsub.s32 %v8397, %v8399
    %v8401 = vrot.slane %v8393, %v8400
    %v8403 = vunpack.c.l.s4 1934713408
    %v8404 = vunpack.c.0.s8 %v8403
    %v8405 = vlaneseq
    %v8406 = vshrl.u32 %v8405, 7
    %v8407 = vsub.s32 %v8404, %v8406
    %v8408 = vrot.slane %v8394, %v8407
    %v8409 = vcombine.low %v8344, %v8360
    %v8410 = vcombine.high %v8344, %v8360
    %v8412 = vunpack.c.l.s4 1934713408
    %v8413 = vunpack.c.0.s8 %v8412
    %v8414 = vlaneseq
    %v8415 = vshrl.u32 %v8414, 7
    %v8416 = vsub.s32 %v8413, %v8415
    %v8417 = vrot.slane %v8409, %v8416
    %v8419 = vunpack.c.l.s4 1934713408
    %v8420 = vunpack.c.0.s8 %v8419
    %v8421 = vlaneseq
    %v8422 = vshrl.u32 %v8421, 7
    %v8423 = vsub.s32 %v8420, %v8422
    %v8424 = vrot.slane %v8410, %v8423
    %v8425 = vcombine.low %v8369, %v8401
    %v8426 = vcombine.high %v8369, %v8401
    %v8427 = vcombine.low %v8376, %v8408
    %v8428 = vcombine.high %v8376, %v8408
    %v8429 = vcombine.low %v8385, %v8417
    %v8430 = vcombine.high %v8385, %v8417
    %v8431 = vcombine.low %v8392, %v8424
    %v8432 = vcombine.high %v8392, %v8424
    %v8433 = vcombine.low %v469, %v8236
    %v8434 = vcombine.high %v469, %v8236
    %v8436 = vunpack.c.l.s4 1983009808
    %v8437 = vunpack.c.0.s8 %v8436
    %v8438 = vlaneseq
    %v8439 = vshrl.u32 %v8438, 7
    %v8440 = vsub.s32 %v8437, %v8439
    %v8441 = vrot.slane %v8433, %v8440
    %v8443 = vunpack.c.l.s4 1983009808
    %v8444 = vunpack.c.0.s8 %v8443
    %v8445 = vlaneseq
    %v8446 = vshrl.u32 %v8445, 7
    %v8447 = vsub.s32 %v8444, %v8446
    %v8448 = vrot.slane %v8434, %v8447
    %v8449 = vcombine.low %v8224, %v8248
    %v8450 = vcombine.high %v8224, %v8248
    %v8452 = vunpack.c.l.s4 1983009808
    %v8453 = vunpack.c.0.s8 %v8452
    %v8454 = vlaneseq
    %v8455 = vshrl.u32 %v8454, 7
    %v8456 = vsub.s32 %v8453, %v8455
    %v8457 = vrot.slane %v8449, %v8456
    %v8459 = vunpack.c.l.s4 1983009808
    %v8460 = vunpack.c.0.s8 %v8459
    %v8461 = vlaneseq
    %v8462 = vshrl.u32 %v8461, 7
    %v8463 = vsub.s32 %v8460, %v8462
    %v8464 = vrot.slane %v8450, %v8463
    %v8465 = vcombine.low %v471, %v8276
    %v8466 = vcombine.high %v471, %v8276
    %v8468 = vunpack.c.l.s4 1983009808
    %v8469 = vunpack.c.0.s8 %v8468
    %v8470 = vlaneseq
    %v8471 = vshrl.u32 %v8470, 7
    %v8472 = vsub.s32 %v8469, %v8471
    %v8473 = vrot.slane %v8465, %v8472
    %v8475 = vunpack.c.l.s4 1983009808
    %v8476 = vunpack.c.0.s8 %v8475
    %v8477 = vlaneseq
    %v8478 = vshrl.u32 %v8477, 7
    %v8479 = vsub.s32 %v8476, %v8478
    %v8480 = vrot.slane %v8466, %v8479
    %v8481 = vcombine.low %v8264, %v8288
    %v8482 = vcombine.high %v8264, %v8288
    %v8484 = vunpack.c.l.s4 1983009808
    %v8485 = vunpack.c.0.s8 %v8484
    %v8486 = vlaneseq
    %v8487 = vshrl.u32 %v8486, 7
    %v8488 = vsub.s32 %v8485, %v8487
    %v8489 = vrot.slane %v8481, %v8488
    %v8491 = vunpack.c.l.s4 1983009808
    %v8492 = vunpack.c.0.s8 %v8491
    %v8493 = vlaneseq
    %v8494 = vshrl.u32 %v8493, 7
    %v8495 = vsub.s32 %v8492, %v8494
    %v8496 = vrot.slane %v8482, %v8495
    %v8497 = vcombine.low %v8441, %v8457
    %v8498 = vcombine.high %v8441, %v8457
    %v8500 = vunpack.c.l.s4 1934713408
    %v8501 = vunpack.c.0.s8 %v8500
    %v8502 = vlaneseq
    %v8503 = vshrl.u32 %v8502, 7
    %v8504 = vsub.s32 %v8501, %v8503
    %v8505 = vrot.slane %v8497, %v8504
    %v8507 = vunpack.c.l.s4 1934713408
    %v8508 = vunpack.c.0.s8 %v8507
    %v8509 = vlaneseq
    %v8510 = vshrl.u32 %v8509, 7
    %v8511 = vsub.s32 %v8508, %v8510
    %v8512 = vrot.slane %v8498, %v8511
    %v8513 = vcombine.low %v8448, %v8464
    %v8514 = vcombine.high %v8448, %v8464
    %v8516 = vunpack.c.l.s4 1934713408
    %v8517 = vunpack.c.0.s8 %v8516
    %v8518 = vlaneseq
    %v8519 = vshrl.u32 %v8518, 7
    %v8520 = vsub.s32 %v8517, %v8519
    %v8521 = vrot.slane %v8513, %v8520
    %v8523 = vunpack.c.l.s4 1934713408
    %v8524 = vunpack.c.0.s8 %v8523
    %v8525 = vlaneseq
    %v8526 = vshrl.u32 %v8525, 7
    %v8527 = vsub.s32 %v8524, %v8526
    %v8528 = vrot.slane %v8514, %v8527
    %v8529 = vcombine.low %v8473, %v8489
    %v8530 = vcombine.high %v8473, %v8489
    %v8532 = vunpack.c.l.s4 1934713408
    %v8533 = vunpack.c.0.s8 %v8532
    %v8534 = vlaneseq
    %v8535 = vshrl.u32 %v8534, 7
    %v8536 = vsub.s32 %v8533, %v8535
    %v8537 = vrot.slane %v8529, %v8536
    %v8539 = vunpack.c.l.s4 1934713408
    %v8540 = vunpack.c.0.s8 %v8539
    %v8541 = vlaneseq
    %v8542 = vshrl.u32 %v8541, 7
    %v8543 = vsub.s32 %v8540, %v8542
    %v8544 = vrot.slane %v8530, %v8543
    %v8545 = vcombine.low %v8480, %v8496
    %v8546 = vcombine.high %v8480, %v8496
    %v8548 = vunpack.c.l.s4 1934713408
    %v8549 = vunpack.c.0.s8 %v8548
    %v8550 = vlaneseq
    %v8551 = vshrl.u32 %v8550, 7
    %v8552 = vsub.s32 %v8549, %v8551
    %v8553 = vrot.slane %v8545, %v8552
    %v8555 = vunpack.c.l.s4 1934713408
    %v8556 = vunpack.c.0.s8 %v8555
    %v8557 = vlaneseq
    %v8558 = vshrl.u32 %v8557, 7
    %v8559 = vsub.s32 %v8556, %v8558
    %v8560 = vrot.slane %v8546, %v8559
    %v8561 = vcombine.low %v8505, %v8537
    %v8562 = vcombine.high %v8505, %v8537
    %v8563 = vcombine.low %v8512, %v8544
    %v8564 = vcombine.high %v8512, %v8544
    %v8565 = vcombine.low %v8521, %v8553
    %v8566 = vcombine.high %v8521, %v8553
    %v8567 = vcombine.low %v8528, %v8560
    %v8568 = vcombine.high %v8528, %v8560
    %v8569 = vcombine.low %v475, %v8238
    %v8570 = vcombine.high %v475, %v8238
    %v8572 = vunpack.c.l.s4 1983009808
    %v8573 = vunpack.c.0.s8 %v8572
    %v8574 = vlaneseq
    %v8575 = vshrl.u32 %v8574, 7
    %v8576 = vsub.s32 %v8573, %v8575
    %v8577 = vrot.slane %v8569, %v8576
    %v8579 = vunpack.c.l.s4 1983009808
    %v8580 = vunpack.c.0.s8 %v8579
    %v8581 = vlaneseq
    %v8582 = vshrl.u32 %v8581, 7
    %v8583 = vsub.s32 %v8580, %v8582
    %v8584 = vrot.slane %v8570, %v8583
    %v8585 = vcombine.low %v8226, %v8250
    %v8586 = vcombine.high %v8226, %v8250
    %v8588 = vunpack.c.l.s4 1983009808
    %v8589 = vunpack.c.0.s8 %v8588
    %v8590 = vlaneseq
    %v8591 = vshrl.u32 %v8590, 7
    %v8592 = vsub.s32 %v8589, %v8591
    %v8593 = vrot.slane %v8585, %v8592
    %v8595 = vunpack.c.l.s4 1983009808
    %v8596 = vunpack.c.0.s8 %v8595
    %v8597 = vlaneseq
    %v8598 = vshrl.u32 %v8597, 7
    %v8599 = vsub.s32 %v8596, %v8598
    %v8600 = vrot.slane %v8586, %v8599
    %v8601 = vcombine.low %v477, %v8278
    %v8602 = vcombine.high %v477, %v8278
    %v8604 = vunpack.c.l.s4 1983009808
    %v8605 = vunpack.c.0.s8 %v8604
    %v8606 = vlaneseq
    %v8607 = vshrl.u32 %v8606, 7
    %v8608 = vsub.s32 %v8605, %v8607
    %v8609 = vrot.slane %v8601, %v8608
    %v8611 = vunpack.c.l.s4 1983009808
    %v8612 = vunpack.c.0.s8 %v8611
    %v8613 = vlaneseq
    %v8614 = vshrl.u32 %v8613, 7
    %v8615 = vsub.s32 %v8612, %v8614
    %v8616 = vrot.slane %v8602, %v8615
    %v8617 = vcombine.low %v8266, %v8290
    %v8618 = vcombine.high %v8266, %v8290
    %v8620 = vunpack.c.l.s4 1983009808
    %v8621 = vunpack.c.0.s8 %v8620
    %v8622 = vlaneseq
    %v8623 = vshrl.u32 %v8622, 7
    %v8624 = vsub.s32 %v8621, %v8623
    %v8625 = vrot.slane %v8617, %v8624
    %v8627 = vunpack.c.l.s4 1983009808
    %v8628 = vunpack.c.0.s8 %v8627
    %v8629 = vlaneseq
    %v8630 = vshrl.u32 %v8629, 7
    %v8631 = vsub.s32 %v8628, %v8630
    %v8632 = vrot.slane %v8618, %v8631
    %v8633 = vcombine.low %v8577, %v8593
    %v8634 = vcombine.high %v8577, %v8593
    %v8636 = vunpack.c.l.s4 1934713408
    %v8637 = vunpack.c.0.s8 %v8636
    %v8638 = vlaneseq
    %v8639 = vshrl.u32 %v8638, 7
    %v8640 = vsub.s32 %v8637, %v8639
    %v8641 = vrot.slane %v8633, %v8640
    %v8643 = vunpack.c.l.s4 1934713408
    %v8644 = vunpack.c.0.s8 %v8643
    %v8645 = vlaneseq
    %v8646 = vshrl.u32 %v8645, 7
    %v8647 = vsub.s32 %v8644, %v8646
    %v8648 = vrot.slane %v8634, %v8647
    %v8649 = vcombine.low %v8584, %v8600
    %v8650 = vcombine.high %v8584, %v8600
    %v8652 = vunpack.c.l.s4 1934713408
    %v8653 = vunpack.c.0.s8 %v8652
    %v8654 = vlaneseq
    %v8655 = vshrl.u32 %v8654, 7
    %v8656 = vsub.s32 %v8653, %v8655
    %v8657 = vrot.slane %v8649, %v8656
    %v8659 = vunpack.c.l.s4 1934713408
    %v8660 = vunpack.c.0.s8 %v8659
    %v8661 = vlaneseq
    %v8662 = vshrl.u32 %v8661, 7
    %v8663 = vsub.s32 %v8660, %v8662
    %v8664 = vrot.slane %v8650, %v8663
    %v8665 = vcombine.low %v8609, %v8625
    %v8666 = vcombine.high %v8609, %v8625
    %v8668 = vunpack.c.l.s4 1934713408
    %v8669 = vunpack.c.0.s8 %v8668
    %v8670 = vlaneseq
    %v8671 = vshrl.u32 %v8670, 7
    %v8672 = vsub.s32 %v8669, %v8671
    %v8673 = vrot.slane %v8665, %v8672
    %v8675 = vunpack.c.l.s4 1934713408
    %v8676 = vunpack.c.0.s8 %v8675
    %v8677 = vlaneseq
    %v8678 = vshrl.u32 %v8677, 7
    %v8679 = vsub.s32 %v8676, %v8678
    %v8680 = vrot.slane %v8666, %v8679
    %v8681 = vcombine.low %v8616, %v8632
    %v8682 = vcombine.high %v8616, %v8632
    %v8684 = vunpack.c.l.s4 1934713408
    %v8685 = vunpack.c.0.s8 %v8684
    %v8686 = vlaneseq
    %v8687 = vshrl.u32 %v8686, 7
    %v8688 = vsub.s32 %v8685, %v8687
    %v8689 = vrot.slane %v8681, %v8688
    %v8691 = vunpack.c.l.s4 1934713408
    %v8692 = vunpack.c.0.s8 %v8691
    %v8693 = vlaneseq
    %v8694 = vshrl.u32 %v8693, 7
    %v8695 = vsub.s32 %v8692, %v8694
    %v8696 = vrot.slane %v8682, %v8695
    %v8697 = vcombine.low %v8641, %v8673
    %v8698 = vcombine.high %v8641, %v8673
    %v8699 = vcombine.low %v8648, %v8680
    %v8700 = vcombine.high %v8648, %v8680
    %v8701 = vcombine.low %v8657, %v8689
    %v8702 = vcombine.high %v8657, %v8689
    %v8703 = vcombine.low %v8664, %v8696
    %v8704 = vcombine.high %v8664, %v8696
    %v8705 = vcombine.low %v479, %v8240
    %v8706 = vcombine.high %v479, %v8240
    %v8708 = vunpack.c.l.s4 1983009808
    %v8709 = vunpack.c.0.s8 %v8708
    %v8710 = vlaneseq
    %v8711 = vshrl.u32 %v8710, 7
    %v8712 = vsub.s32 %v8709, %v8711
    %v8713 = vrot.slane %v8705, %v8712
    %v8715 = vunpack.c.l.s4 1983009808
    %v8716 = vunpack.c.0.s8 %v8715
    %v8717 = vlaneseq
    %v8718 = vshrl.u32 %v8717, 7
    %v8719 = vsub.s32 %v8716, %v8718
    %v8720 = vrot.slane %v8706, %v8719
    %v8721 = vcombine.low %v8228, %v8252
    %v8722 = vcombine.high %v8228, %v8252
    %v8724 = vunpack.c.l.s4 1983009808
    %v8725 = vunpack.c.0.s8 %v8724
    %v8726 = vlaneseq
    %v8727 = vshrl.u32 %v8726, 7
    %v8728 = vsub.s32 %v8725, %v8727
    %v8729 = vrot.slane %v8721, %v8728
    %v8731 = vunpack.c.l.s4 1983009808
    %v8732 = vunpack.c.0.s8 %v8731
    %v8733 = vlaneseq
    %v8734 = vshrl.u32 %v8733, 7
    %v8735 = vsub.s32 %v8732, %v8734
    %v8736 = vrot.slane %v8722, %v8735
    %v8737 = vcombine.low %v481, %v8280
    %v8738 = vcombine.high %v481, %v8280
    %v8740 = vunpack.c.l.s4 1983009808
    %v8741 = vunpack.c.0.s8 %v8740
    %v8742 = vlaneseq
    %v8743 = vshrl.u32 %v8742, 7
    %v8744 = vsub.s32 %v8741, %v8743
    %v8745 = vrot.slane %v8737, %v8744
    %v8747 = vunpack.c.l.s4 1983009808
    %v8748 = vunpack.c.0.s8 %v8747
    %v8749 = vlaneseq
    %v8750 = vshrl.u32 %v8749, 7
    %v8751 = vsub.s32 %v8748, %v8750
    %v8752 = vrot.slane %v8738, %v8751
    %v8753 = vcombine.low %v8268, %v8292
    %v8754 = vcombine.high %v8268, %v8292
    %v8756 = vunpack.c.l.s4 1983009808
    %v8757 = vunpack.c.0.s8 %v8756
    %v8758 = vlaneseq
    %v8759 = vshrl.u32 %v8758, 7
    %v8760 = vsub.s32 %v8757, %v8759
    %v8761 = vrot.slane %v8753, %v8760
    %v8763 = vunpack.c.l.s4 1983009808
    %v8764 = vunpack.c.0.s8 %v8763
    %v8765 = vlaneseq
    %v8766 = vshrl.u32 %v8765, 7
    %v8767 = vsub.s32 %v8764, %v8766
    %v8768 = vrot.slane %v8754, %v8767
    %v8769 = vcombine.low %v8713, %v8729
    %v8770 = vcombine.high %v8713, %v8729
    %v8772 = vunpack.c.l.s4 1934713408
    %v8773 = vunpack.c.0.s8 %v8772
    %v8774 = vlaneseq
    %v8775 = vshrl.u32 %v8774, 7
    %v8776 = vsub.s32 %v8773, %v8775
    %v8777 = vrot.slane %v8769, %v8776
    %v8779 = vunpack.c.l.s4 1934713408
    %v8780 = vunpack.c.0.s8 %v8779
    %v8781 = vlaneseq
    %v8782 = vshrl.u32 %v8781, 7
    %v8783 = vsub.s32 %v8780, %v8782
    %v8784 = vrot.slane %v8770, %v8783
    %v8785 = vcombine.low %v8720, %v8736
    %v8786 = vcombine.high %v8720, %v8736
    %v8788 = vunpack.c.l.s4 1934713408
    %v8789 = vunpack.c.0.s8 %v8788
    %v8790 = vlaneseq
    %v8791 = vshrl.u32 %v8790, 7
    %v8792 = vsub.s32 %v8789, %v8791
    %v8793 = vrot.slane %v8785, %v8792
    %v8795 = vunpack.c.l.s4 1934713408
    %v8796 = vunpack.c.0.s8 %v8795
    %v8797 = vlaneseq
    %v8798 = vshrl.u32 %v8797, 7
    %v8799 = vsub.s32 %v8796, %v8798
    %v8800 = vrot.slane %v8786, %v8799
    %v8801 = vcombine.low %v8745, %v8761
    %v8802 = vcombine.high %v8745, %v8761
    %v8804 = vunpack.c.l.s4 1934713408
    %v8805 = vunpack.c.0.s8 %v8804
    %v8806 = vlaneseq
    %v8807 = vshrl.u32 %v8806, 7
    %v8808 = vsub.s32 %v8805, %v8807
    %v8809 = vrot.slane %v8801, %v8808
    %v8811 = vunpack.c.l.s4 1934713408
    %v8812 = vunpack.c.0.s8 %v8811
    %v8813 = vlaneseq
    %v8814 = vshrl.u32 %v8813, 7
    %v8815 = vsub.s32 %v8812, %v8814
    %v8816 = vrot.slane %v8802, %v8815
    %v8817 = vcombine.low %v8752, %v8768
    %v8818 = vcombine.high %v8752, %v8768
    %v8820 = vunpack.c.l.s4 1934713408
    %v8821 = vunpack.c.0.s8 %v8820
    %v8822 = vlaneseq
    %v8823 = vshrl.u32 %v8822, 7
    %v8824 = vsub.s32 %v8821, %v8823
    %v8825 = vrot.slane %v8817, %v8824
    %v8827 = vunpack.c.l.s4 1934713408
    %v8828 = vunpack.c.0.s8 %v8827
    %v8829 = vlaneseq
    %v8830 = vshrl.u32 %v8829, 7
    %v8831 = vsub.s32 %v8828, %v8830
    %v8832 = vrot.slane %v8818, %v8831
    %v8833 = vcombine.low %v8777, %v8809
    %v8834 = vcombine.high %v8777, %v8809
    %v8835 = vcombine.low %v8784, %v8816
    %v8836 = vcombine.high %v8784, %v8816
    %v8837 = vcombine.low %v8793, %v8825
    %v8838 = vcombine.high %v8793, %v8825
    %v8839 = vcombine.low %v8800, %v8832
    %v8840 = vcombine.high %v8800, %v8832
    %s8841 = scalar_lea.vmem %s16, 64
    %v8842 = vld [vmem:[%s8841] sm:$0xf]
    %v8843 = vld [vmem:[%s8841 + $0x4] sm:$0xf]
    %v8844 = vld [vmem:[%s8841 + $0x8] sm:$0xf]
    %v8845 = vld [vmem:[%s8841 + $0xc] sm:$0xf]
    %v8846 = vld [vmem:[%s8841 + $0x10] sm:$0xf]
    %v8847 = vld [vmem:[%s8841 + $0x14] sm:$0xf]
    %v8848 = vld [vmem:[%s8841 + $0x18] sm:$0xf]
    %v8849 = vld [vmem:[%s8841 + $0x1c] sm:$0xf]
    %v8850 = vld [vmem:[%s8841 + $0x20] sm:$0xf]
    %v8851 = vld [vmem:[%s8841 + $0x24] sm:$0xf]
    %v8852 = vld [vmem:[%s8841 + $0x28] sm:$0xf]
    %v8853 = vld [vmem:[%s8841 + $0x2c] sm:$0xf]
    %v8854 = vld [vmem:[%s8841 + $0x30] sm:$0xf]
    %v8855 = vld [vmem:[%s8841 + $0x34] sm:$0xf]
    %v8856 = vld [vmem:[%s8841 + $0x38] sm:$0xf]
    %v8857 = vld [vmem:[%s8841 + $0x3c] sm:$0xf]
    %v8858 = vpack.c.bf16 %v8121, %v8121
    %v8859 = vpack.c.bf16 %v8145, %v8145
    %v8860 = vpack.c.bf16 %v8128, %v8128
    %v8861 = vpack.c.bf16 %v8146, %v8146
    %v8862 = vpack.c.bf16 %v8137, %v8137
    %v8863 = vpack.c.bf16 %v8147, %v8147
    %v8864 = vpack.c.bf16 %v8144, %v8144
    %v8865 = vpack.c.bf16 %v8148, %v8148
    %v8866 = vpack.c.bf16 %v8189, %v8189
    %v8867 = vpack.c.bf16 %v8213, %v8213
    %v8868 = vpack.c.bf16 %v8196, %v8196
    %v8869 = vpack.c.bf16 %v8214, %v8214
    %v8870 = vpack.c.bf16 %v8205, %v8205
    %v8871 = vpack.c.bf16 %v8215, %v8215
    %v8872 = vpack.c.bf16 %v8212, %v8212
    %v8873 = vpack.c.bf16 %v8216, %v8216
    %v8874 = vpack.c.bf16 %v8425, %v8425
    %v8875 = vpack.c.bf16 %v8426, %v8426
    %v8876 = vpack.c.bf16 %v8427, %v8427
    %v8877 = vpack.c.bf16 %v8428, %v8428
    %v8878 = vpack.c.bf16 %v8429, %v8429
    %v8879 = vpack.c.bf16 %v8430, %v8430
    %v8880 = vpack.c.bf16 %v8431, %v8431
    %v8881 = vpack.c.bf16 %v8432, %v8432
    %v8882 = vpack.c.bf16 %v8561, %v8561
    %v8883 = vpack.c.bf16 %v8562, %v8562
    %v8884 = vpack.c.bf16 %v8563, %v8563
    %v8885 = vpack.c.bf16 %v8564, %v8564
    %v8886 = vpack.c.bf16 %v8565, %v8565
    %v8887 = vpack.c.bf16 %v8566, %v8566
    %v8888 = vpack.c.bf16 %v8567, %v8567
    %v8889 = vpack.c.bf16 %v8568, %v8568
    %v8890 = vpack.c.bf16 %v8697, %v8697
    %v8891 = vpack.c.bf16 %v8698, %v8698
    %v8892 = vpack.c.bf16 %v8699, %v8699
    %v8893 = vpack.c.bf16 %v8700, %v8700
    %v8894 = vpack.c.bf16 %v8701, %v8701
    %v8895 = vpack.c.bf16 %v8702, %v8702
    %v8896 = vpack.c.bf16 %v8703, %v8703
    %v8897 = vpack.c.bf16 %v8704, %v8704
    %v8898 = vpack.c.bf16 %v8833, %v8833
    %v8899 = vpack.c.bf16 %v8834, %v8834
    %v8900 = vpack.c.bf16 %v8835, %v8835
    %v8901 = vpack.c.bf16 %v8836, %v8836
    %v8902 = vpack.c.bf16 %v8837, %v8837
    %v8903 = vpack.c.bf16 %v8838, %v8838
    %v8904 = vpack.c.bf16 %v8839, %v8839
    %v8905 = vpack.c.bf16 %v8840, %v8840
    %v8914 = vunpack.c.l.b16 %v8858
    %v8915 = vunpack.c.l.b16 %v8859
    %v8916 = vunpack.c.l.b16 %v8860
    %v8917 = vunpack.c.l.b16 %v8861
    %v8918 = vunpack.c.l.b16 %v8862
    %v8919 = vunpack.c.l.b16 %v8863
    %v8920 = vunpack.c.l.b16 %v8864
    %v8921 = vunpack.c.l.b16 %v8865
    %v8922 = vrot.slane %v8915, 7
    %v8923 = vsel %vm1278, %v8922, %v8914
    %v8924 = vrot.slane %v8916, 6
    %v8925 = vsel %vm1281, %v8924, %v8923
    %v8926 = vrot.slane %v8917, 5
    %v8927 = vsel %vm1284, %v8926, %v8925
    %v8928 = vrot.slane %v8918, 4
    %v8929 = vsel %vm1287, %v8928, %v8927
    %v8930 = vrot.slane %v8919, 3
    %v8931 = vsel %vm1290, %v8930, %v8929
    %v8932 = vrot.slane %v8920, 2
    %v8933 = vsel %vm1293, %v8932, %v8931
    %v8934 = vrot.slane %v8921, 1
    %v8935 = vsel %vm1296, %v8934, %v8933
    %v8936 = vpack.c.b16 %v8935, %v8935
    %v8953 = vunpack.c.l.b16 %v8874
    %v8954 = vunpack.c.l.b16 %v8875
    %v8955 = vunpack.c.l.b16 %v8876
    %v8956 = vunpack.c.l.b16 %v8877
    %v8957 = vunpack.c.l.b16 %v8878
    %v8958 = vunpack.c.l.b16 %v8879
    %v8959 = vunpack.c.l.b16 %v8880
    %v8960 = vunpack.c.l.b16 %v8881
    %v8961 = vunpack.c.l.b16 %v8882
    %v8962 = vunpack.c.l.b16 %v8883
    %v8963 = vunpack.c.l.b16 %v8884
    %v8964 = vunpack.c.l.b16 %v8885
    %v8965 = vunpack.c.l.b16 %v8886
    %v8966 = vunpack.c.l.b16 %v8887
    %v8967 = vunpack.c.l.b16 %v8888
    %v8968 = vunpack.c.l.b16 %v8889
    %v8969 = vrot.slane %v8954, 7
    %v8970 = vsel %vm1278, %v8969, %v8953
    %v8971 = vrot.slane %v8955, 6
    %v8972 = vsel %vm1281, %v8971, %v8970
    %v8973 = vrot.slane %v8956, 5
    %v8974 = vsel %vm1284, %v8973, %v8972
    %v8975 = vrot.slane %v8957, 4
    %v8976 = vsel %vm1287, %v8975, %v8974
    %v8977 = vrot.slane %v8958, 3
    %v8978 = vsel %vm1290, %v8977, %v8976
    %v8979 = vrot.slane %v8959, 2
    %v8980 = vsel %vm1293, %v8979, %v8978
    %v8981 = vrot.slane %v8960, 1
    %v8982 = vsel %vm1296, %v8981, %v8980
    %v8983 = vrot.slane %v8962, 7
    %v8984 = vsel %vm1278, %v8983, %v8961
    %v8985 = vrot.slane %v8963, 6
    %v8986 = vsel %vm1281, %v8985, %v8984
    %v8987 = vrot.slane %v8964, 5
    %v8988 = vsel %vm1284, %v8987, %v8986
    %v8989 = vrot.slane %v8965, 4
    %v8990 = vsel %vm1287, %v8989, %v8988
    %v8991 = vrot.slane %v8966, 3
    %v8992 = vsel %vm1290, %v8991, %v8990
    %v8993 = vrot.slane %v8967, 2
    %v8994 = vsel %vm1293, %v8993, %v8992
    %v8995 = vrot.slane %v8968, 1
    %v8996 = vsel %vm1296, %v8995, %v8994
    %v8997 = vpack.c.b16 %v8996, %v8982
    %v8999 = vsel %vm1314, %v8936, 0
    %v9002 = vsel %vm1314, %v8997, 0
    %9004 = vmatprep.subr.bf16.mxu0 0
    %9005 = vmatpush1.bf16.xpose.msra.mxu0 %v9002
    %9006 = vmatprep.subr.bf16.mxu0 0
    %9007 = vmatpush1.bf16.xpose.msra.mxu0 0
    %9008 = vmatprep.subr.bf16.mxu0 0
    %9009 = vmatpush1.bf16.xpose.msra.mxu0 0
    %9010 = vmatprep.subr.bf16.mxu0 0
    %9011 = vmatpush1.bf16.xpose.msra.mxu0 0
    %9012 = vmatprep.subr.bf16.mxu0 0
    %9013 = vmatpush1.bf16.xpose.msra.mxu0 0
    %9014 = vmatprep.subr.bf16.mxu0 0
    %9015 = vmatpush1.bf16.xpose.msra.mxu0 0
    %9016 = vmatprep.subr.bf16.mxu0 0
    %9017 = vmatpush1.bf16.xpose.msra.mxu0 0
    %9018 = vmatprep.subr.bf16.mxu0 0
    %9019 = vmatpush1.bf16.xpose.msra.mxu0 0
    %9020 = vmatprep.subr.bf16.mxu0 0
    %9021 = vmatpush1.bf16.xpose.msra.mxu0 0
    %9022 = vmatprep.subr.bf16.mxu0 0
    %9023 = vmatpush1.bf16.xpose.msra.mxu0 0
    %9024 = vmatprep.subr.bf16.mxu0 0
    %9025 = vmatpush1.bf16.xpose.msra.mxu0 0
    %9026 = vmatprep.subr.bf16.mxu0 0
    %9027 = vmatpush1.bf16.xpose.msra.mxu0 0
    %9028 = vmatprep.subr.bf16.mxu0 0
    %9029 = vmatpush1.bf16.xpose.msra.mxu0 0
    %9030 = vmatprep.subr.bf16.mxu0 0
    %9031 = vmatpush1.bf16.xpose.msra.mxu0 0
    %9032 = vmatprep.subr.bf16.mxu0 0
    %9033 = vmatpush1.bf16.xpose.msra.mxu0 0
    %9034 = vmatprep.subr.bf16.mxu0 0
    %9035 = vmatpush1.bf16.xpose.msra.mxu0 0
    %9036 = vmatprep.mubr.bf16.mxu0 0
    %9037 = vmatmul.mubr.bf16.gmra.mrb[0].mxu0 %v8999
    %v9038 = vpop.f32.mrb[0].mxu0
    %v9039 = vadd.f32 0.0, %v9038
    %v9040 = vpop.f32.mrb[0].mxu0
    %v9041 = vpop.f32.mrb[0].mxu0
    %v9042 = vpop.f32.mrb[0].mxu0
    %9043 = vdwg.mxu0
    %v9052 = vunpack.c.l.b16 %v8866
    %v9053 = vunpack.c.l.b16 %v8867
    %v9054 = vunpack.c.l.b16 %v8868
    %v9055 = vunpack.c.l.b16 %v8869
    %v9056 = vunpack.c.l.b16 %v8870
    %v9057 = vunpack.c.l.b16 %v8871
    %v9058 = vunpack.c.l.b16 %v8872
    %v9059 = vunpack.c.l.b16 %v8873
    %v9060 = vrot.slane %v9053, 7
    %v9061 = vsel %vm1278, %v9060, %v9052
    %v9062 = vrot.slane %v9054, 6
    %v9063 = vsel %vm1281, %v9062, %v9061
    %v9064 = vrot.slane %v9055, 5
    %v9065 = vsel %vm1284, %v9064, %v9063
    %v9066 = vrot.slane %v9056, 4
    %v9067 = vsel %vm1287, %v9066, %v9065
    %v9068 = vrot.slane %v9057, 3
    %v9069 = vsel %vm1290, %v9068, %v9067
    %v9070 = vrot.slane %v9058, 2
    %v9071 = vsel %vm1293, %v9070, %v9069
    %v9072 = vrot.slane %v9059, 1
    %v9073 = vsel %vm1296, %v9072, %v9071
    %v9074 = vpack.c.b16 %v9073, %v9073
    %v9091 = vunpack.c.l.b16 %v8890
    %v9092 = vunpack.c.l.b16 %v8891
    %v9093 = vunpack.c.l.b16 %v8892
    %v9094 = vunpack.c.l.b16 %v8893
    %v9095 = vunpack.c.l.b16 %v8894
    %v9096 = vunpack.c.l.b16 %v8895
    %v9097 = vunpack.c.l.b16 %v8896
    %v9098 = vunpack.c.l.b16 %v8897
    %v9099 = vunpack.c.l.b16 %v8898
    %v9100 = vunpack.c.l.b16 %v8899
    %v9101 = vunpack.c.l.b16 %v8900
    %v9102 = vunpack.c.l.b16 %v8901
    %v9103 = vunpack.c.l.b16 %v8902
    %v9104 = vunpack.c.l.b16 %v8903
    %v9105 = vunpack.c.l.b16 %v8904
    %v9106 = vunpack.c.l.b16 %v8905
    %v9107 = vrot.slane %v9092, 7
    %v9108 = vsel %vm1278, %v9107, %v9091
    %v9109 = vrot.slane %v9093, 6
    %v9110 = vsel %vm1281, %v9109, %v9108
    %v9111 = vrot.slane %v9094, 5
    %v9112 = vsel %vm1284, %v9111, %v9110
    %v9113 = vrot.slane %v9095, 4
    %v9114 = vsel %vm1287, %v9113, %v9112
    %v9115 = vrot.slane %v9096, 3
    %v9116 = vsel %vm1290, %v9115, %v9114
    %v9117 = vrot.slane %v9097, 2
    %v9118 = vsel %vm1293, %v9117, %v9116
    %v9119 = vrot.slane %v9098, 1
    %v9120 = vsel %vm1296, %v9119, %v9118
    %v9121 = vrot.slane %v9100, 7
    %v9122 = vsel %vm1278, %v9121, %v9099
    %v9123 = vrot.slane %v9101, 6
    %v9124 = vsel %vm1281, %v9123, %v9122
    %v9125 = vrot.slane %v9102, 5
    %v9126 = vsel %vm1284, %v9125, %v9124
    %v9127 = vrot.slane %v9103, 4
    %v9128 = vsel %vm1287, %v9127, %v9126
    %v9129 = vrot.slane %v9104, 3
    %v9130 = vsel %vm1290, %v9129, %v9128
    %v9131 = vrot.slane %v9105, 2
    %v9132 = vsel %vm1293, %v9131, %v9130
    %v9133 = vrot.slane %v9106, 1
    %v9134 = vsel %vm1296, %v9133, %v9132
    %v9135 = vpack.c.b16 %v9134, %v9120
    %v9137 = vsel %vm1314, %v9074, 0
    %v9140 = vsel %vm1314, %v9135, 0
    %9142 = vmatprep.subr.bf16.mxu0 0
    %9143 = vmatpush1.bf16.xpose.msra.mxu0 %v9140
    %9144 = vmatprep.subr.bf16.mxu0 0
    %9145 = vmatpush1.bf16.xpose.msra.mxu0 0
    %9146 = vmatprep.subr.bf16.mxu0 0
    %9147 = vmatpush1.bf16.xpose.msra.mxu0 0
    %9148 = vmatprep.subr.bf16.mxu0 0
    %9149 = vmatpush1.bf16.xpose.msra.mxu0 0
    %9150 = vmatprep.subr.bf16.mxu0 0
    %9151 = vmatpush1.bf16.xpose.msra.mxu0 0
    %9152 = vmatprep.subr.bf16.mxu0 0
    %9153 = vmatpush1.bf16.xpose.msra.mxu0 0
    %9154 = vmatprep.subr.bf16.mxu0 0
    %9155 = vmatpush1.bf16.xpose.msra.mxu0 0
    %9156 = vmatprep.subr.bf16.mxu0 0
    %9157 = vmatpush1.bf16.xpose.msra.mxu0 0
    %9158 = vmatprep.subr.bf16.mxu0 0
    %9159 = vmatpush1.bf16.xpose.msra.mxu0 0
    %9160 = vmatprep.subr.bf16.mxu0 0
    %9161 = vmatpush1.bf16.xpose.msra.mxu0 0
    %9162 = vmatprep.subr.bf16.mxu0 0
    %9163 = vmatpush1.bf16.xpose.msra.mxu0 0
    %9164 = vmatprep.subr.bf16.mxu0 0
    %9165 = vmatpush1.bf16.xpose.msra.mxu0 0
    %9166 = vmatprep.subr.bf16.mxu0 0
    %9167 = vmatpush1.bf16.xpose.msra.mxu0 0
    %9168 = vmatprep.subr.bf16.mxu0 0
    %9169 = vmatpush1.bf16.xpose.msra.mxu0 0
    %9170 = vmatprep.subr.bf16.mxu0 0
    %9171 = vmatpush1.bf16.xpose.msra.mxu0 0
    %9172 = vmatprep.subr.bf16.mxu0 0
    %9173 = vmatpush1.bf16.xpose.msra.mxu0 0
    %9174 = vmatprep.mubr.bf16.mxu0 0
    %9175 = vmatmul.mubr.bf16.gmra.mrb[0].mxu0 %v9137
    %v9176 = vpop.f32.mrb[0].mxu0
    %v9177 = vadd.f32 0.0, %v9176
    %v9178 = vpop.f32.mrb[0].mxu0
    %v9179 = vpop.f32.mrb[0].mxu0
    %v9180 = vpop.f32.mrb[0].mxu0
    %9181 = vdwg.mxu0
    %v9182 = vsel %vm3933, %v9039, -inf
    %9183 = vmax.xlane.f32.xlu0 %v9182
    %v9184 = vpop.xlane.xlu0 %9183
    %v9185 = vsel %vm3933, %v9177, -inf
    %9186 = vmax.xlane.f32.xlu0 %v9185
    %v9187 = vpop.xlane.xlu0 %9186
    %v9188 = vsub.f32 %v9039, %v9184
    %v9189 = vsub.f32 %v9177, %v9187
    %v9190 = vmul.f32 %v9188, 1.442695
    %v9191 = vpow.pop %v9190
    %v9192 = vmul.f32 %v9189, 1.442695
    %v9193 = vpow.pop %v9192
    %v9194 = vsel %vm3933, %v9191, 0.0
    %9195 = vadd.xlane.f32.xlu0 %v9194
    %v9196 = vpop.xlane.xlu0 %9195
    %v9197 = vsel %vm3933, %v9193, 0.0
    %9198 = vadd.xlane.f32.xlu0 %v9197
    %v9199 = vpop.xlane.xlu0 %9198
    %v9200 = vrcp.pop %v9196
    %v9201 = vrcp.pop %v9199
    %v9202 = vmul.f32 %v9191, %v9200
    %v9203 = vmul.f32 %v9193, %v9201
    %v9204 = vpack.c.bf16 %v9202, %v9202
    %v9205 = vpack.c.bf16 %v9203, %v9203
    %v9206 = vrot.slane %v8953, 4
    %v9207 = vrot.slane %v8954, 3
    %v9208 = vsel %vm1278, %v9207, %v9206
    %v9209 = vrot.slane %v8955, 2
    %v9210 = vsel %vm1281, %v9209, %v9208
    %v9211 = vrot.slane %v8956, 1
    %v9212 = vsel %vm1284, %v9211, %v9210
    %v9213 = vsel %vm1287, %v8957, %v9212
    %v9214 = vrot.slane %v8958, 7
    %v9215 = vsel %vm1290, %v9214, %v9213
    %v9216 = vrot.slane %v8959, 6
    %v9217 = vsel %vm1293, %v9216, %v9215
    %v9218 = vrot.slane %v8960, 5
    %v9219 = vsel %vm1296, %v9218, %v9217
    %v9220 = vrot.slane %v8961, 4
    %v9221 = vrot.slane %v8962, 3
    %v9222 = vsel %vm1278, %v9221, %v9220
    %v9223 = vrot.slane %v8963, 2
    %v9224 = vsel %vm1281, %v9223, %v9222
    %v9225 = vrot.slane %v8964, 1
    %v9226 = vsel %vm1284, %v9225, %v9224
    %v9227 = vsel %vm1287, %v8965, %v9226
    %v9228 = vrot.slane %v8966, 7
    %v9229 = vsel %vm1290, %v9228, %v9227
    %v9230 = vrot.slane %v8967, 6
    %v9231 = vsel %vm1293, %v9230, %v9229
    %v9232 = vrot.slane %v8968, 5
    %v9233 = vsel %vm1296, %v9232, %v9231
    %v9234 = vpack.c.b16 %v9233, %v9219
    %v9237 = vsel %vm3933, %v9204, 0
    %9239 = vmatprep.subr.bf16.mxu0 0
    %9240 = vmatpush1.bf16.msra.mxu0 %v9234
    %9241 = vmatprep.subr.bf16.mxu0 0
    %9242 = vmatpush1.bf16.msra.mxu0 0
    %9243 = vmatprep.subr.bf16.mxu0 0
    %9244 = vmatpush1.bf16.msra.mxu0 0
    %9245 = vmatprep.subr.bf16.mxu0 0
    %9246 = vmatpush1.bf16.msra.mxu0 0
    %9247 = vmatprep.subr.bf16.mxu0 0
    %9248 = vmatpush1.bf16.msra.mxu0 0
    %9249 = vmatprep.subr.bf16.mxu0 0
    %9250 = vmatpush1.bf16.msra.mxu0 0
    %9251 = vmatprep.subr.bf16.mxu0 0
    %9252 = vmatpush1.bf16.msra.mxu0 0
    %9253 = vmatprep.subr.bf16.mxu0 0
    %9254 = vmatpush1.bf16.msra.mxu0 0
    %9255 = vmatprep.subr.bf16.mxu0 0
    %9256 = vmatpush1.bf16.msra.mxu0 0
    %9257 = vmatprep.subr.bf16.mxu0 0
    %9258 = vmatpush1.bf16.msra.mxu0 0
    %9259 = vmatprep.subr.bf16.mxu0 0
    %9260 = vmatpush1.bf16.msra.mxu0 0
    %9261 = vmatprep.subr.bf16.mxu0 0
    %9262 = vmatpush1.bf16.msra.mxu0 0
    %9263 = vmatprep.subr.bf16.mxu0 0
    %9264 = vmatpush1.bf16.msra.mxu0 0
    %9265 = vmatprep.subr.bf16.mxu0 0
    %9266 = vmatpush1.bf16.msra.mxu0 0
    %9267 = vmatprep.subr.bf16.mxu0 0
    %9268 = vmatpush1.bf16.msra.mxu0 0
    %9269 = vmatprep.subr.bf16.mxu0 0
    %9270 = vmatpush1.bf16.msra.mxu0 0
    %9271 = vmatprep.mubr.bf16.mxu0 0
    %9272 = vmatmul.mubr.bf16.gmra.mrb[0].mxu0 %v9237
    %v9273 = vpop.f32.mrb[0].mxu0
    %v9274 = vadd.f32 0.0, %v9273
    %v9275 = vpop.f32.mrb[0].mxu0
    %v9276 = vpop.f32.mrb[0].mxu0
    %v9277 = vpop.f32.mrb[0].mxu0
    %9278 = vdwg.mxu0
    %v9279 = vrot.slane %v9091, 4
    %v9280 = vrot.slane %v9092, 3
    %v9281 = vsel %vm1278, %v9280, %v9279
    %v9282 = vrot.slane %v9093, 2
    %v9283 = vsel %vm1281, %v9282, %v9281
    %v9284 = vrot.slane %v9094, 1
    %v9285 = vsel %vm1284, %v9284, %v9283
    %v9286 = vsel %vm1287, %v9095, %v9285
    %v9287 = vrot.slane %v9096, 7
    %v9288 = vsel %vm1290, %v9287, %v9286
    %v9289 = vrot.slane %v9097, 6
    %v9290 = vsel %vm1293, %v9289, %v9288
    %v9291 = vrot.slane %v9098, 5
    %v9292 = vsel %vm1296, %v9291, %v9290
    %v9293 = vrot.slane %v9099, 4
    %v9294 = vrot.slane %v9100, 3
    %v9295 = vsel %vm1278, %v9294, %v9293
    %v9296 = vrot.slane %v9101, 2
    %v9297 = vsel %vm1281, %v9296, %v9295
    %v9298 = vrot.slane %v9102, 1
    %v9299 = vsel %vm1284, %v9298, %v9297
    %v9300 = vsel %vm1287, %v9103, %v9299
    %v9301 = vrot.slane %v9104, 7
    %v9302 = vsel %vm1290, %v9301, %v9300
    %v9303 = vrot.slane %v9105, 6
    %v9304 = vsel %vm1293, %v9303, %v9302
    %v9305 = vrot.slane %v9106, 5
    %v9306 = vsel %vm1296, %v9305, %v9304
    %v9307 = vpack.c.b16 %v9306, %v9292
    %v9310 = vsel %vm3933, %v9205, 0
    %9312 = vmatprep.subr.bf16.mxu0 0
    %9313 = vmatpush1.bf16.msra.mxu0 %v9307
    %9314 = vmatprep.subr.bf16.mxu0 0
    %9315 = vmatpush1.bf16.msra.mxu0 0
    %9316 = vmatprep.subr.bf16.mxu0 0
    %9317 = vmatpush1.bf16.msra.mxu0 0
    %9318 = vmatprep.subr.bf16.mxu0 0
    %9319 = vmatpush1.bf16.msra.mxu0 0
    %9320 = vmatprep.subr.bf16.mxu0 0
    %9321 = vmatpush1.bf16.msra.mxu0 0
    %9322 = vmatprep.subr.bf16.mxu0 0
    %9323 = vmatpush1.bf16.msra.mxu0 0
    %9324 = vmatprep.subr.bf16.mxu0 0
    %9325 = vmatpush1.bf16.msra.mxu0 0
    %9326 = vmatprep.subr.bf16.mxu0 0
    %9327 = vmatpush1.bf16.msra.mxu0 0
    %9328 = vmatprep.subr.bf16.mxu0 0
    %9329 = vmatpush1.bf16.msra.mxu0 0
    %9330 = vmatprep.subr.bf16.mxu0 0
    %9331 = vmatpush1.bf16.msra.mxu0 0
    %9332 = vmatprep.subr.bf16.mxu0 0
    %9333 = vmatpush1.bf16.msra.mxu0 0
    %9334 = vmatprep.subr.bf16.mxu0 0
    %9335 = vmatpush1.bf16.msra.mxu0 0
    %9336 = vmatprep.subr.bf16.mxu0 0
    %9337 = vmatpush1.bf16.msra.mxu0 0
    %9338 = vmatprep.subr.bf16.mxu0 0
    %9339 = vmatpush1.bf16.msra.mxu0 0
    %9340 = vmatprep.subr.bf16.mxu0 0
    %9341 = vmatpush1.bf16.msra.mxu0 0
    %9342 = vmatprep.subr.bf16.mxu0 0
    %9343 = vmatpush1.bf16.msra.mxu0 0
    %9344 = vmatprep.mubr.bf16.mxu0 0
    %9345 = vmatmul.mubr.bf16.gmra.mrb[0].mxu0 %v9310
    %v9346 = vpop.f32.mrb[0].mxu0
    %v9347 = vadd.f32 0.0, %v9346
    %v9348 = vpop.f32.mrb[0].mxu0
    %v9349 = vpop.f32.mrb[0].mxu0
    %v9350 = vpop.f32.mrb[0].mxu0
    %9351 = vdwg.mxu0
    %v9352 = vrot.slane %v8914, 1
    %v9353 = vsel %vm1278, %v8915, %v9352
    %v9354 = vrot.slane %v8916, 7
    %v9355 = vsel %vm1281, %v9354, %v9353
    %v9356 = vrot.slane %v8917, 6
    %v9357 = vsel %vm1284, %v9356, %v9355
    %v9358 = vrot.slane %v8918, 5
    %v9359 = vsel %vm1287, %v9358, %v9357
    %v9360 = vrot.slane %v8919, 4
    %v9361 = vsel %vm1290, %v9360, %v9359
    %v9362 = vrot.slane %v8920, 3
    %v9363 = vsel %vm1293, %v9362, %v9361
    %v9364 = vrot.slane %v8921, 2
    %v9365 = vsel %vm1296, %v9364, %v9363
    %v9366 = vpack.c.b16 %v9365, %v9365
    %v9367 = vrot.slane %v8953, 1
    %v9368 = vsel %vm1278, %v8954, %v9367
    %v9369 = vrot.slane %v8955, 7
    %v9370 = vsel %vm1281, %v9369, %v9368
    %v9371 = vrot.slane %v8956, 6
    %v9372 = vsel %vm1284, %v9371, %v9370
    %v9373 = vrot.slane %v8957, 5
    %v9374 = vsel %vm1287, %v9373, %v9372
    %v9375 = vrot.slane %v8958, 4
    %v9376 = vsel %vm1290, %v9375, %v9374
    %v9377 = vrot.slane %v8959, 3
    %v9378 = vsel %vm1293, %v9377, %v9376
    %v9379 = vrot.slane %v8960, 2
    %v9380 = vsel %vm1296, %v9379, %v9378
    %v9381 = vrot.slane %v8961, 1
    %v9382 = vsel %vm1278, %v8962, %v9381
    %v9383 = vrot.slane %v8963, 7
    %v9384 = vsel %vm1281, %v9383, %v9382
    %v9385 = vrot.slane %v8964, 6
    %v9386 = vsel %vm1284, %v9385, %v9384
    %v9387 = vrot.slane %v8965, 5
    %v9388 = vsel %vm1287, %v9387, %v9386
    %v9389 = vrot.slane %v8966, 4
    %v9390 = vsel %vm1290, %v9389, %v9388
    %v9391 = vrot.slane %v8967, 3
    %v9392 = vsel %vm1293, %v9391, %v9390
    %v9393 = vrot.slane %v8968, 2
    %v9394 = vsel %vm1296, %v9393, %v9392
    %v9395 = vpack.c.b16 %v9394, %v9380
    %v9397 = vsel %vm1314, %v9366, 0
    %v9400 = vsel %vm1314, %v9395, 0
    %9402 = vmatprep.subr.bf16.mxu0 0
    %9403 = vmatpush1.bf16.xpose.msra.mxu0 %v9400
    %9404 = vmatprep.subr.bf16.mxu0 0
    %9405 = vmatpush1.bf16.xpose.msra.mxu0 0
    %9406 = vmatprep.subr.bf16.mxu0 0
    %9407 = vmatpush1.bf16.xpose.msra.mxu0 0
    %9408 = vmatprep.subr.bf16.mxu0 0
    %9409 = vmatpush1.bf16.xpose.msra.mxu0 0
    %9410 = vmatprep.subr.bf16.mxu0 0
    %9411 = vmatpush1.bf16.xpose.msra.mxu0 0
    %9412 = vmatprep.subr.bf16.mxu0 0
    %9413 = vmatpush1.bf16.xpose.msra.mxu0 0
    %9414 = vmatprep.subr.bf16.mxu0 0
    %9415 = vmatpush1.bf16.xpose.msra.mxu0 0
    %9416 = vmatprep.subr.bf16.mxu0 0
    %9417 = vmatpush1.bf16.xpose.msra.mxu0 0
    %9418 = vmatprep.subr.bf16.mxu0 0
    %9419 = vmatpush1.bf16.xpose.msra.mxu0 0
    %9420 = vmatprep.subr.bf16.mxu0 0
    %9421 = vmatpush1.bf16.xpose.msra.mxu0 0
    %9422 = vmatprep.subr.bf16.mxu0 0
    %9423 = vmatpush1.bf16.xpose.msra.mxu0 0
    %9424 = vmatprep.subr.bf16.mxu0 0
    %9425 = vmatpush1.bf16.xpose.msra.mxu0 0
    %9426 = vmatprep.subr.bf16.mxu0 0
    %9427 = vmatpush1.bf16.xpose.msra.mxu0 0
    %9428 = vmatprep.subr.bf16.mxu0 0
    %9429 = vmatpush1.bf16.xpose.msra.mxu0 0
    %9430 = vmatprep.subr.bf16.mxu0 0
    %9431 = vmatpush1.bf16.xpose.msra.mxu0 0
    %9432 = vmatprep.subr.bf16.mxu0 0
    %9433 = vmatpush1.bf16.xpose.msra.mxu0 0
    %9434 = vmatprep.mubr.bf16.mxu0 0
    %9435 = vmatmul.mubr.bf16.gmra.mrb[0].mxu0 %v9397
    %v9436 = vpop.f32.mrb[0].mxu0
    %v9437 = vadd.f32 0.0, %v9436
    %v9438 = vpop.f32.mrb[0].mxu0
    %v9439 = vpop.f32.mrb[0].mxu0
    %v9440 = vpop.f32.mrb[0].mxu0
    %9441 = vdwg.mxu0
    %v9442 = vrot.slane %v9052, 1
    %v9443 = vsel %vm1278, %v9053, %v9442
    %v9444 = vrot.slane %v9054, 7
    %v9445 = vsel %vm1281, %v9444, %v9443
    %v9446 = vrot.slane %v9055, 6
    %v9447 = vsel %vm1284, %v9446, %v9445
    %v9448 = vrot.slane %v9056, 5
    %v9449 = vsel %vm1287, %v9448, %v9447
    %v9450 = vrot.slane %v9057, 4
    %v9451 = vsel %vm1290, %v9450, %v9449
    %v9452 = vrot.slane %v9058, 3
    %v9453 = vsel %vm1293, %v9452, %v9451
    %v9454 = vrot.slane %v9059, 2
    %v9455 = vsel %vm1296, %v9454, %v9453
    %v9456 = vpack.c.b16 %v9455, %v9455
    %v9457 = vrot.slane %v9091, 1
    %v9458 = vsel %vm1278, %v9092, %v9457
    %v9459 = vrot.slane %v9093, 7
    %v9460 = vsel %vm1281, %v9459, %v9458
    %v9461 = vrot.slane %v9094, 6
    %v9462 = vsel %vm1284, %v9461, %v9460
    %v9463 = vrot.slane %v9095, 5
    %v9464 = vsel %vm1287, %v9463, %v9462
    %v9465 = vrot.slane %v9096, 4
    %v9466 = vsel %vm1290, %v9465, %v9464
    %v9467 = vrot.slane %v9097, 3
    %v9468 = vsel %vm1293, %v9467, %v9466
    %v9469 = vrot.slane %v9098, 2
    %v9470 = vsel %vm1296, %v9469, %v9468
    %v9471 = vrot.slane %v9099, 1
    %v9472 = vsel %vm1278, %v9100, %v9471
    %v9473 = vrot.slane %v9101, 7
    %v9474 = vsel %vm1281, %v9473, %v9472
    %v9475 = vrot.slane %v9102, 6
    %v9476 = vsel %vm1284, %v9475, %v9474
    %v9477 = vrot.slane %v9103, 5
    %v9478 = vsel %vm1287, %v9477, %v9476
    %v9479 = vrot.slane %v9104, 4
    %v9480 = vsel %vm1290, %v9479, %v9478
    %v9481 = vrot.slane %v9105, 3
    %v9482 = vsel %vm1293, %v9481, %v9480
    %v9483 = vrot.slane %v9106, 2
    %v9484 = vsel %vm1296, %v9483, %v9482
    %v9485 = vpack.c.b16 %v9484, %v9470
    %v9487 = vsel %vm1314, %v9456, 0
    %v9490 = vsel %vm1314, %v9485, 0
    %9492 = vmatprep.subr.bf16.mxu0 0
    %9493 = vmatpush1.bf16.xpose.msra.mxu0 %v9490
    %9494 = vmatprep.subr.bf16.mxu0 0
    %9495 = vmatpush1.bf16.xpose.msra.mxu0 0
    %9496 = vmatprep.subr.bf16.mxu0 0
    %9497 = vmatpush1.bf16.xpose.msra.mxu0 0
    %9498 = vmatprep.subr.bf16.mxu0 0
    %9499 = vmatpush1.bf16.xpose.msra.mxu0 0
    %9500 = vmatprep.subr.bf16.mxu0 0
    %9501 = vmatpush1.bf16.xpose.msra.mxu0 0
    %9502 = vmatprep.subr.bf16.mxu0 0
    %9503 = vmatpush1.bf16.xpose.msra.mxu0 0
    %9504 = vmatprep.subr.bf16.mxu0 0
    %9505 = vmatpush1.bf16.xpose.msra.mxu0 0
    %9506 = vmatprep.subr.bf16.mxu0 0
    %9507 = vmatpush1.bf16.xpose.msra.mxu0 0
    %9508 = vmatprep.subr.bf16.mxu0 0
    %9509 = vmatpush1.bf16.xpose.msra.mxu0 0
    %9510 = vmatprep.subr.bf16.mxu0 0
    %9511 = vmatpush1.bf16.xpose.msra.mxu0 0
    %9512 = vmatprep.subr.bf16.mxu0 0
    %9513 = vmatpush1.bf16.xpose.msra.mxu0 0
    %9514 = vmatprep.subr.bf16.mxu0 0
    %9515 = vmatpush1.bf16.xpose.msra.mxu0 0
    %9516 = vmatprep.subr.bf16.mxu0 0
    %9517 = vmatpush1.bf16.xpose.msra.mxu0 0
    %9518 = vmatprep.subr.bf16.mxu0 0
    %9519 = vmatpush1.bf16.xpose.msra.mxu0 0
    %9520 = vmatprep.subr.bf16.mxu0 0
    %9521 = vmatpush1.bf16.xpose.msra.mxu0 0
    %9522 = vmatprep.subr.bf16.mxu0 0
    %9523 = vmatpush1.bf16.xpose.msra.mxu0 0
    %9524 = vmatprep.mubr.bf16.mxu0 0
    %9525 = vmatmul.mubr.bf16.gmra.mrb[0].mxu0 %v9487
    %v9526 = vpop.f32.mrb[0].mxu0
    %v9527 = vadd.f32 0.0, %v9526
    %v9528 = vpop.f32.mrb[0].mxu0
    %v9529 = vpop.f32.mrb[0].mxu0
    %v9530 = vpop.f32.mrb[0].mxu0
    %9531 = vdwg.mxu0
    %v9532 = vsel %vm3933, %v9437, -inf
    %9533 = vmax.xlane.f32.xlu0 %v9532
    %v9534 = vpop.xlane.xlu0 %9533
    %v9535 = vsel %vm3933, %v9527, -inf
    %9536 = vmax.xlane.f32.xlu0 %v9535
    %v9537 = vpop.xlane.xlu0 %9536
    %v9538 = vsub.f32 %v9437, %v9534
    %v9539 = vsub.f32 %v9527, %v9537
    %v9540 = vmul.f32 %v9538, 1.442695
    %v9541 = vpow.pop %v9540
    %v9542 = vmul.f32 %v9539, 1.442695
    %v9543 = vpow.pop %v9542
    %v9544 = vsel %vm3933, %v9541, 0.0
    %9545 = vadd.xlane.f32.xlu0 %v9544
    %v9546 = vpop.xlane.xlu0 %9545
    %v9547 = vsel %vm3933, %v9543, 0.0
    %9548 = vadd.xlane.f32.xlu0 %v9547
    %v9549 = vpop.xlane.xlu0 %9548
    %v9550 = vrcp.pop %v9546
    %v9551 = vrcp.pop %v9549
    %v9552 = vmul.f32 %v9541, %v9550
    %v9553 = vmul.f32 %v9543, %v9551
    %v9554 = vpack.c.bf16 %v9552, %v9552
    %v9555 = vpack.c.bf16 %v9553, %v9553
    %v9556 = vrot.slane %v8953, 5
    %v9557 = vrot.slane %v8954, 4
    %v9558 = vsel %vm1278, %v9557, %v9556
    %v9559 = vrot.slane %v8955, 3
    %v9560 = vsel %vm1281, %v9559, %v9558
    %v9561 = vrot.slane %v8956, 2
    %v9562 = vsel %vm1284, %v9561, %v9560
    %v9563 = vrot.slane %v8957, 1
    %v9564 = vsel %vm1287, %v9563, %v9562
    %v9565 = vsel %vm1290, %v8958, %v9564
    %v9566 = vrot.slane %v8959, 7
    %v9567 = vsel %vm1293, %v9566, %v9565
    %v9568 = vrot.slane %v8960, 6
    %v9569 = vsel %vm1296, %v9568, %v9567
    %v9570 = vrot.slane %v8961, 5
    %v9571 = vrot.slane %v8962, 4
    %v9572 = vsel %vm1278, %v9571, %v9570
    %v9573 = vrot.slane %v8963, 3
    %v9574 = vsel %vm1281, %v9573, %v9572
    %v9575 = vrot.slane %v8964, 2
    %v9576 = vsel %vm1284, %v9575, %v9574
    %v9577 = vrot.slane %v8965, 1
    %v9578 = vsel %vm1287, %v9577, %v9576
    %v9579 = vsel %vm1290, %v8966, %v9578
    %v9580 = vrot.slane %v8967, 7
    %v9581 = vsel %vm1293, %v9580, %v9579
    %v9582 = vrot.slane %v8968, 6
    %v9583 = vsel %vm1296, %v9582, %v9581
    %v9584 = vpack.c.b16 %v9583, %v9569
    %v9587 = vsel %vm3933, %v9554, 0
    %9589 = vmatprep.subr.bf16.mxu0 0
    %9590 = vmatpush1.bf16.msra.mxu0 %v9584
    %9591 = vmatprep.subr.bf16.mxu0 0
    %9592 = vmatpush1.bf16.msra.mxu0 0
    %9593 = vmatprep.subr.bf16.mxu0 0
    %9594 = vmatpush1.bf16.msra.mxu0 0
    %9595 = vmatprep.subr.bf16.mxu0 0
    %9596 = vmatpush1.bf16.msra.mxu0 0
    %9597 = vmatprep.subr.bf16.mxu0 0
    %9598 = vmatpush1.bf16.msra.mxu0 0
    %9599 = vmatprep.subr.bf16.mxu0 0
    %9600 = vmatpush1.bf16.msra.mxu0 0
    %9601 = vmatprep.subr.bf16.mxu0 0
    %9602 = vmatpush1.bf16.msra.mxu0 0
    %9603 = vmatprep.subr.bf16.mxu0 0
    %9604 = vmatpush1.bf16.msra.mxu0 0
    %9605 = vmatprep.subr.bf16.mxu0 0
    %9606 = vmatpush1.bf16.msra.mxu0 0
    %9607 = vmatprep.subr.bf16.mxu0 0
    %9608 = vmatpush1.bf16.msra.mxu0 0
    %9609 = vmatprep.subr.bf16.mxu0 0
    %9610 = vmatpush1.bf16.msra.mxu0 0
    %9611 = vmatprep.subr.bf16.mxu0 0
    %9612 = vmatpush1.bf16.msra.mxu0 0
    %9613 = vmatprep.subr.bf16.mxu0 0
    %9614 = vmatpush1.bf16.msra.mxu0 0
    %9615 = vmatprep.subr.bf16.mxu0 0
    %9616 = vmatpush1.bf16.msra.mxu0 0
    %9617 = vmatprep.subr.bf16.mxu0 0
    %9618 = vmatpush1.bf16.msra.mxu0 0
    %9619 = vmatprep.subr.bf16.mxu0 0
    %9620 = vmatpush1.bf16.msra.mxu0 0
    %9621 = vmatprep.mubr.bf16.mxu0 0
    %9622 = vmatmul.mubr.bf16.gmra.mrb[0].mxu0 %v9587
    %v9623 = vpop.f32.mrb[0].mxu0
    %v9624 = vadd.f32 0.0, %v9623
    %v9625 = vpop.f32.mrb[0].mxu0
    %v9626 = vpop.f32.mrb[0].mxu0
    %v9627 = vpop.f32.mrb[0].mxu0
    %9628 = vdwg.mxu0
    %v9629 = vrot.slane %v9091, 5
    %v9630 = vrot.slane %v9092, 4
    %v9631 = vsel %vm1278, %v9630, %v9629
    %v9632 = vrot.slane %v9093, 3
    %v9633 = vsel %vm1281, %v9632, %v9631
    %v9634 = vrot.slane %v9094, 2
    %v9635 = vsel %vm1284, %v9634, %v9633
    %v9636 = vrot.slane %v9095, 1
    %v9637 = vsel %vm1287, %v9636, %v9635
    %v9638 = vsel %vm1290, %v9096, %v9637
    %v9639 = vrot.slane %v9097, 7
    %v9640 = vsel %vm1293, %v9639, %v9638
    %v9641 = vrot.slane %v9098, 6
    %v9642 = vsel %vm1296, %v9641, %v9640
    %v9643 = vrot.slane %v9099, 5
    %v9644 = vrot.slane %v9100, 4
    %v9645 = vsel %vm1278, %v9644, %v9643
    %v9646 = vrot.slane %v9101, 3
    %v9647 = vsel %vm1281, %v9646, %v9645
    %v9648 = vrot.slane %v9102, 2
    %v9649 = vsel %vm1284, %v9648, %v9647
    %v9650 = vrot.slane %v9103, 1
    %v9651 = vsel %vm1287, %v9650, %v9649
    %v9652 = vsel %vm1290, %v9104, %v9651
    %v9653 = vrot.slane %v9105, 7
    %v9654 = vsel %vm1293, %v9653, %v9652
    %v9655 = vrot.slane %v9106, 6
    %v9656 = vsel %vm1296, %v9655, %v9654
    %v9657 = vpack.c.b16 %v9656, %v9642
    %v9660 = vsel %vm3933, %v9555, 0
    %9662 = vmatprep.subr.bf16.mxu0 0
    %9663 = vmatpush1.bf16.msra.mxu0 %v9657
    %9664 = vmatprep.subr.bf16.mxu0 0
    %9665 = vmatpush1.bf16.msra.mxu0 0
    %9666 = vmatprep.subr.bf16.mxu0 0
    %9667 = vmatpush1.bf16.msra.mxu0 0
    %9668 = vmatprep.subr.bf16.mxu0 0
    %9669 = vmatpush1.bf16.msra.mxu0 0
    %9670 = vmatprep.subr.bf16.mxu0 0
    %9671 = vmatpush1.bf16.msra.mxu0 0
    %9672 = vmatprep.subr.bf16.mxu0 0
    %9673 = vmatpush1.bf16.msra.mxu0 0
    %9674 = vmatprep.subr.bf16.mxu0 0
    %9675 = vmatpush1.bf16.msra.mxu0 0
    %9676 = vmatprep.subr.bf16.mxu0 0
    %9677 = vmatpush1.bf16.msra.mxu0 0
    %9678 = vmatprep.subr.bf16.mxu0 0
    %9679 = vmatpush1.bf16.msra.mxu0 0
    %9680 = vmatprep.subr.bf16.mxu0 0
    %9681 = vmatpush1.bf16.msra.mxu0 0
    %9682 = vmatprep.subr.bf16.mxu0 0
    %9683 = vmatpush1.bf16.msra.mxu0 0
    %9684 = vmatprep.subr.bf16.mxu0 0
    %9685 = vmatpush1.bf16.msra.mxu0 0
    %9686 = vmatprep.subr.bf16.mxu0 0
    %9687 = vmatpush1.bf16.msra.mxu0 0
    %9688 = vmatprep.subr.bf16.mxu0 0
    %9689 = vmatpush1.bf16.msra.mxu0 0
    %9690 = vmatprep.subr.bf16.mxu0 0
    %9691 = vmatpush1.bf16.msra.mxu0 0
    %9692 = vmatprep.subr.bf16.mxu0 0
    %9693 = vmatpush1.bf16.msra.mxu0 0
    %9694 = vmatprep.mubr.bf16.mxu0 0
    %9695 = vmatmul.mubr.bf16.gmra.mrb[0].mxu0 %v9660
    %v9696 = vpop.f32.mrb[0].mxu0
    %v9697 = vadd.f32 0.0, %v9696
    %v9698 = vpop.f32.mrb[0].mxu0
    %v9699 = vpop.f32.mrb[0].mxu0
    %v9700 = vpop.f32.mrb[0].mxu0
    %9701 = vdwg.mxu0
    %v9702 = vrot.slane %v8914, 2
    %v9703 = vrot.slane %v8915, 1
    %v9704 = vsel %vm1278, %v9703, %v9702
    %v9705 = vsel %vm1281, %v8916, %v9704
    %v9706 = vrot.slane %v8917, 7
    %v9707 = vsel %vm1284, %v9706, %v9705
    %v9708 = vrot.slane %v8918, 6
    %v9709 = vsel %vm1287, %v9708, %v9707
    %v9710 = vrot.slane %v8919, 5
    %v9711 = vsel %vm1290, %v9710, %v9709
    %v9712 = vrot.slane %v8920, 4
    %v9713 = vsel %vm1293, %v9712, %v9711
    %v9714 = vrot.slane %v8921, 3
    %v9715 = vsel %vm1296, %v9714, %v9713
    %v9716 = vpack.c.b16 %v9715, %v9715
    %v9717 = vrot.slane %v8953, 2
    %v9718 = vrot.slane %v8954, 1
    %v9719 = vsel %vm1278, %v9718, %v9717
    %v9720 = vsel %vm1281, %v8955, %v9719
    %v9721 = vrot.slane %v8956, 7
    %v9722 = vsel %vm1284, %v9721, %v9720
    %v9723 = vrot.slane %v8957, 6
    %v9724 = vsel %vm1287, %v9723, %v9722
    %v9725 = vrot.slane %v8958, 5
    %v9726 = vsel %vm1290, %v9725, %v9724
    %v9727 = vrot.slane %v8959, 4
    %v9728 = vsel %vm1293, %v9727, %v9726
    %v9729 = vrot.slane %v8960, 3
    %v9730 = vsel %vm1296, %v9729, %v9728
    %v9731 = vrot.slane %v8961, 2
    %v9732 = vrot.slane %v8962, 1
    %v9733 = vsel %vm1278, %v9732, %v9731
    %v9734 = vsel %vm1281, %v8963, %v9733
    %v9735 = vrot.slane %v8964, 7
    %v9736 = vsel %vm1284, %v9735, %v9734
    %v9737 = vrot.slane %v8965, 6
    %v9738 = vsel %vm1287, %v9737, %v9736
    %v9739 = vrot.slane %v8966, 5
    %v9740 = vsel %vm1290, %v9739, %v9738
    %v9741 = vrot.slane %v8967, 4
    %v9742 = vsel %vm1293, %v9741, %v9740
    %v9743 = vrot.slane %v8968, 3
    %v9744 = vsel %vm1296, %v9743, %v9742
    %v9745 = vpack.c.b16 %v9744, %v9730
    %v9747 = vsel %vm1314, %v9716, 0
    %v9750 = vsel %vm1314, %v9745, 0
    %9752 = vmatprep.subr.bf16.mxu0 0
    %9753 = vmatpush1.bf16.xpose.msra.mxu0 %v9750
    %9754 = vmatprep.subr.bf16.mxu0 0
    %9755 = vmatpush1.bf16.xpose.msra.mxu0 0
    %9756 = vmatprep.subr.bf16.mxu0 0
    %9757 = vmatpush1.bf16.xpose.msra.mxu0 0
    %9758 = vmatprep.subr.bf16.mxu0 0
    %9759 = vmatpush1.bf16.xpose.msra.mxu0 0
    %9760 = vmatprep.subr.bf16.mxu0 0
    %9761 = vmatpush1.bf16.xpose.msra.mxu0 0
    %9762 = vmatprep.subr.bf16.mxu0 0
    %9763 = vmatpush1.bf16.xpose.msra.mxu0 0
    %9764 = vmatprep.subr.bf16.mxu0 0
    %9765 = vmatpush1.bf16.xpose.msra.mxu0 0
    %9766 = vmatprep.subr.bf16.mxu0 0
    %9767 = vmatpush1.bf16.xpose.msra.mxu0 0
    %9768 = vmatprep.subr.bf16.mxu0 0
    %9769 = vmatpush1.bf16.xpose.msra.mxu0 0
    %9770 = vmatprep.subr.bf16.mxu0 0
    %9771 = vmatpush1.bf16.xpose.msra.mxu0 0
    %9772 = vmatprep.subr.bf16.mxu0 0
    %9773 = vmatpush1.bf16.xpose.msra.mxu0 0
    %9774 = vmatprep.subr.bf16.mxu0 0
    %9775 = vmatpush1.bf16.xpose.msra.mxu0 0
    %9776 = vmatprep.subr.bf16.mxu0 0
    %9777 = vmatpush1.bf16.xpose.msra.mxu0 0
    %9778 = vmatprep.subr.bf16.mxu0 0
    %9779 = vmatpush1.bf16.xpose.msra.mxu0 0
    %9780 = vmatprep.subr.bf16.mxu0 0
    %9781 = vmatpush1.bf16.xpose.msra.mxu0 0
    %9782 = vmatprep.subr.bf16.mxu0 0
    %9783 = vmatpush1.bf16.xpose.msra.mxu0 0
    %9784 = vmatprep.mubr.bf16.mxu0 0
    %9785 = vmatmul.mubr.bf16.gmra.mrb[0].mxu0 %v9747
    %v9786 = vpop.f32.mrb[0].mxu0
    %v9787 = vadd.f32 0.0, %v9786
    %v9788 = vpop.f32.mrb[0].mxu0
    %v9789 = vpop.f32.mrb[0].mxu0
    %v9790 = vpop.f32.mrb[0].mxu0
    %9791 = vdwg.mxu0
    %v9792 = vrot.slane %v9052, 2
    %v9793 = vrot.slane %v9053, 1
    %v9794 = vsel %vm1278, %v9793, %v9792
    %v9795 = vsel %vm1281, %v9054, %v9794
    %v9796 = vrot.slane %v9055, 7
    %v9797 = vsel %vm1284, %v9796, %v9795
    %v9798 = vrot.slane %v9056, 6
    %v9799 = vsel %vm1287, %v9798, %v9797
    %v9800 = vrot.slane %v9057, 5
    %v9801 = vsel %vm1290, %v9800, %v9799
    %v9802 = vrot.slane %v9058, 4
    %v9803 = vsel %vm1293, %v9802, %v9801
    %v9804 = vrot.slane %v9059, 3
    %v9805 = vsel %vm1296, %v9804, %v9803
    %v9806 = vpack.c.b16 %v9805, %v9805
    %v9807 = vrot.slane %v9091, 2
    %v9808 = vrot.slane %v9092, 1
    %v9809 = vsel %vm1278, %v9808, %v9807
    %v9810 = vsel %vm1281, %v9093, %v9809
    %v9811 = vrot.slane %v9094, 7
    %v9812 = vsel %vm1284, %v9811, %v9810
    %v9813 = vrot.slane %v9095, 6
    %v9814 = vsel %vm1287, %v9813, %v9812
    %v9815 = vrot.slane %v9096, 5
    %v9816 = vsel %vm1290, %v9815, %v9814
    %v9817 = vrot.slane %v9097, 4
    %v9818 = vsel %vm1293, %v9817, %v9816
    %v9819 = vrot.slane %v9098, 3
    %v9820 = vsel %vm1296, %v9819, %v9818
    %v9821 = vrot.slane %v9099, 2
    %v9822 = vrot.slane %v9100, 1
    %v9823 = vsel %vm1278, %v9822, %v9821
    %v9824 = vsel %vm1281, %v9101, %v9823
    %v9825 = vrot.slane %v9102, 7
    %v9826 = vsel %vm1284, %v9825, %v9824
    %v9827 = vrot.slane %v9103, 6
    %v9828 = vsel %vm1287, %v9827, %v9826
    %v9829 = vrot.slane %v9104, 5
    %v9830 = vsel %vm1290, %v9829, %v9828
    %v9831 = vrot.slane %v9105, 4
    %v9832 = vsel %vm1293, %v9831, %v9830
    %v9833 = vrot.slane %v9106, 3
    %v9834 = vsel %vm1296, %v9833, %v9832
    %v9835 = vpack.c.b16 %v9834, %v9820
    %v9837 = vsel %vm1314, %v9806, 0
    %v9840 = vsel %vm1314, %v9835, 0
    %9842 = vmatprep.subr.bf16.mxu0 0
    %9843 = vmatpush1.bf16.xpose.msra.mxu0 %v9840
    %9844 = vmatprep.subr.bf16.mxu0 0
    %9845 = vmatpush1.bf16.xpose.msra.mxu0 0
    %9846 = vmatprep.subr.bf16.mxu0 0
    %9847 = vmatpush1.bf16.xpose.msra.mxu0 0
    %9848 = vmatprep.subr.bf16.mxu0 0
    %9849 = vmatpush1.bf16.xpose.msra.mxu0 0
    %9850 = vmatprep.subr.bf16.mxu0 0
    %9851 = vmatpush1.bf16.xpose.msra.mxu0 0
    %9852 = vmatprep.subr.bf16.mxu0 0
    %9853 = vmatpush1.bf16.xpose.msra.mxu0 0
    %9854 = vmatprep.subr.bf16.mxu0 0
    %9855 = vmatpush1.bf16.xpose.msra.mxu0 0
    %9856 = vmatprep.subr.bf16.mxu0 0
    %9857 = vmatpush1.bf16.xpose.msra.mxu0 0
    %9858 = vmatprep.subr.bf16.mxu0 0
    %9859 = vmatpush1.bf16.xpose.msra.mxu0 0
    %9860 = vmatprep.subr.bf16.mxu0 0
    %9861 = vmatpush1.bf16.xpose.msra.mxu0 0
    %9862 = vmatprep.subr.bf16.mxu0 0
    %9863 = vmatpush1.bf16.xpose.msra.mxu0 0
    %9864 = vmatprep.subr.bf16.mxu0 0
    %9865 = vmatpush1.bf16.xpose.msra.mxu0 0
    %9866 = vmatprep.subr.bf16.mxu0 0
    %9867 = vmatpush1.bf16.xpose.msra.mxu0 0
    %9868 = vmatprep.subr.bf16.mxu0 0
    %9869 = vmatpush1.bf16.xpose.msra.mxu0 0
    %9870 = vmatprep.subr.bf16.mxu0 0
    %9871 = vmatpush1.bf16.xpose.msra.mxu0 0
    %9872 = vmatprep.subr.bf16.mxu0 0
    %9873 = vmatpush1.bf16.xpose.msra.mxu0 0
    %9874 = vmatprep.mubr.bf16.mxu0 0
    %9875 = vmatmul.mubr.bf16.gmra.mrb[0].mxu0 %v9837
    %v9876 = vpop.f32.mrb[0].mxu0
    %v9877 = vadd.f32 0.0, %v9876
    %v9878 = vpop.f32.mrb[0].mxu0
    %v9879 = vpop.f32.mrb[0].mxu0
    %v9880 = vpop.f32.mrb[0].mxu0
    %9881 = vdwg.mxu0
    %v9882 = vsel %vm3933, %v9787, -inf
    %9883 = vmax.xlane.f32.xlu0 %v9882
    %v9884 = vpop.xlane.xlu0 %9883
    %v9885 = vsel %vm3933, %v9877, -inf
    %9886 = vmax.xlane.f32.xlu0 %v9885
    %v9887 = vpop.xlane.xlu0 %9886
    %v9888 = vsub.f32 %v9787, %v9884
    %v9889 = vsub.f32 %v9877, %v9887
    %v9890 = vmul.f32 %v9888, 1.442695
    %v9891 = vpow.pop %v9890
    %v9892 = vmul.f32 %v9889, 1.442695
    %v9893 = vpow.pop %v9892
    %v9894 = vsel %vm3933, %v9891, 0.0
    %9895 = vadd.xlane.f32.xlu0 %v9894
    %v9896 = vpop.xlane.xlu0 %9895
    %v9897 = vsel %vm3933, %v9893, 0.0
    %9898 = vadd.xlane.f32.xlu0 %v9897
    %v9899 = vpop.xlane.xlu0 %9898
    %v9900 = vrcp.pop %v9896
    %v9901 = vrcp.pop %v9899
    %v9902 = vmul.f32 %v9891, %v9900
    %v9903 = vmul.f32 %v9893, %v9901
    %v9904 = vpack.c.bf16 %v9902, %v9902
    %v9905 = vpack.c.bf16 %v9903, %v9903
    %v9906 = vrot.slane %v8953, 6
    %v9907 = vrot.slane %v8954, 5
    %v9908 = vsel %vm1278, %v9907, %v9906
    %v9909 = vrot.slane %v8955, 4
    %v9910 = vsel %vm1281, %v9909, %v9908
    %v9911 = vrot.slane %v8956, 3
    %v9912 = vsel %vm1284, %v9911, %v9910
    %v9913 = vrot.slane %v8957, 2
    %v9914 = vsel %vm1287, %v9913, %v9912
    %v9915 = vrot.slane %v8958, 1
    %v9916 = vsel %vm1290, %v9915, %v9914
    %v9917 = vsel %vm1293, %v8959, %v9916
    %v9918 = vrot.slane %v8960, 7
    %v9919 = vsel %vm1296, %v9918, %v9917
    %v9920 = vrot.slane %v8961, 6
    %v9921 = vrot.slane %v8962, 5
    %v9922 = vsel %vm1278, %v9921, %v9920
    %v9923 = vrot.slane %v8963, 4
    %v9924 = vsel %vm1281, %v9923, %v9922
    %v9925 = vrot.slane %v8964, 3
    %v9926 = vsel %vm1284, %v9925, %v9924
    %v9927 = vrot.slane %v8965, 2
    %v9928 = vsel %vm1287, %v9927, %v9926
    %v9929 = vrot.slane %v8966, 1
    %v9930 = vsel %vm1290, %v9929, %v9928
    %v9931 = vsel %vm1293, %v8967, %v9930
    %v9932 = vrot.slane %v8968, 7
    %v9933 = vsel %vm1296, %v9932, %v9931
    %v9934 = vpack.c.b16 %v9933, %v9919
    %v9937 = vsel %vm3933, %v9904, 0
    %9939 = vmatprep.subr.bf16.mxu0 0
    %9940 = vmatpush1.bf16.msra.mxu0 %v9934
    %9941 = vmatprep.subr.bf16.mxu0 0
    %9942 = vmatpush1.bf16.msra.mxu0 0
    %9943 = vmatprep.subr.bf16.mxu0 0
    %9944 = vmatpush1.bf16.msra.mxu0 0
    %9945 = vmatprep.subr.bf16.mxu0 0
    %9946 = vmatpush1.bf16.msra.mxu0 0
    %9947 = vmatprep.subr.bf16.mxu0 0
    %9948 = vmatpush1.bf16.msra.mxu0 0
    %9949 = vmatprep.subr.bf16.mxu0 0
    %9950 = vmatpush1.bf16.msra.mxu0 0
    %9951 = vmatprep.subr.bf16.mxu0 0
    %9952 = vmatpush1.bf16.msra.mxu0 0
    %9953 = vmatprep.subr.bf16.mxu0 0
    %9954 = vmatpush1.bf16.msra.mxu0 0
    %9955 = vmatprep.subr.bf16.mxu0 0
    %9956 = vmatpush1.bf16.msra.mxu0 0
    %9957 = vmatprep.subr.bf16.mxu0 0
    %9958 = vmatpush1.bf16.msra.mxu0 0
    %9959 = vmatprep.subr.bf16.mxu0 0
    %9960 = vmatpush1.bf16.msra.mxu0 0
    %9961 = vmatprep.subr.bf16.mxu0 0
    %9962 = vmatpush1.bf16.msra.mxu0 0
    %9963 = vmatprep.subr.bf16.mxu0 0
    %9964 = vmatpush1.bf16.msra.mxu0 0
    %9965 = vmatprep.subr.bf16.mxu0 0
    %9966 = vmatpush1.bf16.msra.mxu0 0
    %9967 = vmatprep.subr.bf16.mxu0 0
    %9968 = vmatpush1.bf16.msra.mxu0 0
    %9969 = vmatprep.subr.bf16.mxu0 0
    %9970 = vmatpush1.bf16.msra.mxu0 0
    %9971 = vmatprep.mubr.bf16.mxu0 0
    %9972 = vmatmul.mubr.bf16.gmra.mrb[0].mxu0 %v9937
    %v9973 = vpop.f32.mrb[0].mxu0
    %v9974 = vadd.f32 0.0, %v9973
    %v9975 = vpop.f32.mrb[0].mxu0
    %v9976 = vpop.f32.mrb[0].mxu0
    %v9977 = vpop.f32.mrb[0].mxu0
    %9978 = vdwg.mxu0
    %v9979 = vrot.slane %v9091, 6
    %v9980 = vrot.slane %v9092, 5
    %v9981 = vsel %vm1278, %v9980, %v9979
    %v9982 = vrot.slane %v9093, 4
    %v9983 = vsel %vm1281, %v9982, %v9981
    %v9984 = vrot.slane %v9094, 3
    %v9985 = vsel %vm1284, %v9984, %v9983
    %v9986 = vrot.slane %v9095, 2
    %v9987 = vsel %vm1287, %v9986, %v9985
    %v9988 = vrot.slane %v9096, 1
    %v9989 = vsel %vm1290, %v9988, %v9987
    %v9990 = vsel %vm1293, %v9097, %v9989
    %v9991 = vrot.slane %v9098, 7
    %v9992 = vsel %vm1296, %v9991, %v9990
    %v9993 = vrot.slane %v9099, 6
    %v9994 = vrot.slane %v9100, 5
    %v9995 = vsel %vm1278, %v9994, %v9993
    %v9996 = vrot.slane %v9101, 4
    %v9997 = vsel %vm1281, %v9996, %v9995
    %v9998 = vrot.slane %v9102, 3
    %v9999 = vsel %vm1284, %v9998, %v9997
    %v10000 = vrot.slane %v9103, 2
    %v10001 = vsel %vm1287, %v10000, %v9999
    %v10002 = vrot.slane %v9104, 1
    %v10003 = vsel %vm1290, %v10002, %v10001
    %v10004 = vsel %vm1293, %v9105, %v10003
    %v10005 = vrot.slane %v9106, 7
    %v10006 = vsel %vm1296, %v10005, %v10004
    %v10007 = vpack.c.b16 %v10006, %v9992
    %v10010 = vsel %vm3933, %v9905, 0
    %10012 = vmatprep.subr.bf16.mxu0 0
    %10013 = vmatpush1.bf16.msra.mxu0 %v10007
    %10014 = vmatprep.subr.bf16.mxu0 0
    %10015 = vmatpush1.bf16.msra.mxu0 0
    %10016 = vmatprep.subr.bf16.mxu0 0
    %10017 = vmatpush1.bf16.msra.mxu0 0
    %10018 = vmatprep.subr.bf16.mxu0 0
    %10019 = vmatpush1.bf16.msra.mxu0 0
    %10020 = vmatprep.subr.bf16.mxu0 0
    %10021 = vmatpush1.bf16.msra.mxu0 0
    %10022 = vmatprep.subr.bf16.mxu0 0
    %10023 = vmatpush1.bf16.msra.mxu0 0
    %10024 = vmatprep.subr.bf16.mxu0 0
    %10025 = vmatpush1.bf16.msra.mxu0 0
    %10026 = vmatprep.subr.bf16.mxu0 0
    %10027 = vmatpush1.bf16.msra.mxu0 0
    %10028 = vmatprep.subr.bf16.mxu0 0
    %10029 = vmatpush1.bf16.msra.mxu0 0
    %10030 = vmatprep.subr.bf16.mxu0 0
    %10031 = vmatpush1.bf16.msra.mxu0 0
    %10032 = vmatprep.subr.bf16.mxu0 0
    %10033 = vmatpush1.bf16.msra.mxu0 0
    %10034 = vmatprep.subr.bf16.mxu0 0
    %10035 = vmatpush1.bf16.msra.mxu0 0
    %10036 = vmatprep.subr.bf16.mxu0 0
    %10037 = vmatpush1.bf16.msra.mxu0 0
    %10038 = vmatprep.subr.bf16.mxu0 0
    %10039 = vmatpush1.bf16.msra.mxu0 0
    %10040 = vmatprep.subr.bf16.mxu0 0
    %10041 = vmatpush1.bf16.msra.mxu0 0
    %10042 = vmatprep.subr.bf16.mxu0 0
    %10043 = vmatpush1.bf16.msra.mxu0 0
    %10044 = vmatprep.mubr.bf16.mxu0 0
    %10045 = vmatmul.mubr.bf16.gmra.mrb[0].mxu0 %v10010
    %v10046 = vpop.f32.mrb[0].mxu0
    %v10047 = vadd.f32 0.0, %v10046
    %v10048 = vpop.f32.mrb[0].mxu0
    %v10049 = vpop.f32.mrb[0].mxu0
    %v10050 = vpop.f32.mrb[0].mxu0
    %10051 = vdwg.mxu0
    %v10052 = vrot.slane %v8914, 3
    %v10053 = vrot.slane %v8915, 2
    %v10054 = vsel %vm1278, %v10053, %v10052
    %v10055 = vrot.slane %v8916, 1
    %v10056 = vsel %vm1281, %v10055, %v10054
    %v10057 = vsel %vm1284, %v8917, %v10056
    %v10058 = vrot.slane %v8918, 7
    %v10059 = vsel %vm1287, %v10058, %v10057
    %v10060 = vrot.slane %v8919, 6
    %v10061 = vsel %vm1290, %v10060, %v10059
    %v10062 = vrot.slane %v8920, 5
    %v10063 = vsel %vm1293, %v10062, %v10061
    %v10064 = vrot.slane %v8921, 4
    %v10065 = vsel %vm1296, %v10064, %v10063
    %v10066 = vpack.c.b16 %v10065, %v10065
    %v10067 = vrot.slane %v8953, 3
    %v10068 = vrot.slane %v8954, 2
    %v10069 = vsel %vm1278, %v10068, %v10067
    %v10070 = vrot.slane %v8955, 1
    %v10071 = vsel %vm1281, %v10070, %v10069
    %v10072 = vsel %vm1284, %v8956, %v10071
    %v10073 = vrot.slane %v8957, 7
    %v10074 = vsel %vm1287, %v10073, %v10072
    %v10075 = vrot.slane %v8958, 6
    %v10076 = vsel %vm1290, %v10075, %v10074
    %v10077 = vrot.slane %v8959, 5
    %v10078 = vsel %vm1293, %v10077, %v10076
    %v10079 = vrot.slane %v8960, 4
    %v10080 = vsel %vm1296, %v10079, %v10078
    %v10081 = vrot.slane %v8961, 3
    %v10082 = vrot.slane %v8962, 2
    %v10083 = vsel %vm1278, %v10082, %v10081
    %v10084 = vrot.slane %v8963, 1
    %v10085 = vsel %vm1281, %v10084, %v10083
    %v10086 = vsel %vm1284, %v8964, %v10085
    %v10087 = vrot.slane %v8965, 7
    %v10088 = vsel %vm1287, %v10087, %v10086
    %v10089 = vrot.slane %v8966, 6
    %v10090 = vsel %vm1290, %v10089, %v10088
    %v10091 = vrot.slane %v8967, 5
    %v10092 = vsel %vm1293, %v10091, %v10090
    %v10093 = vrot.slane %v8968, 4
    %v10094 = vsel %vm1296, %v10093, %v10092
    %v10095 = vpack.c.b16 %v10094, %v10080
    %v10097 = vsel %vm1314, %v10066, 0
    %v10100 = vsel %vm1314, %v10095, 0
    %10102 = vmatprep.subr.bf16.mxu0 0
    %10103 = vmatpush1.bf16.xpose.msra.mxu0 %v10100
    %10104 = vmatprep.subr.bf16.mxu0 0
    %10105 = vmatpush1.bf16.xpose.msra.mxu0 0
    %10106 = vmatprep.subr.bf16.mxu0 0
    %10107 = vmatpush1.bf16.xpose.msra.mxu0 0
    %10108 = vmatprep.subr.bf16.mxu0 0
    %10109 = vmatpush1.bf16.xpose.msra.mxu0 0
    %10110 = vmatprep.subr.bf16.mxu0 0
    %10111 = vmatpush1.bf16.xpose.msra.mxu0 0
    %10112 = vmatprep.subr.bf16.mxu0 0
    %10113 = vmatpush1.bf16.xpose.msra.mxu0 0
    %10114 = vmatprep.subr.bf16.mxu0 0
    %10115 = vmatpush1.bf16.xpose.msra.mxu0 0
    %10116 = vmatprep.subr.bf16.mxu0 0
    %10117 = vmatpush1.bf16.xpose.msra.mxu0 0
    %10118 = vmatprep.subr.bf16.mxu0 0
    %10119 = vmatpush1.bf16.xpose.msra.mxu0 0
    %10120 = vmatprep.subr.bf16.mxu0 0
    %10121 = vmatpush1.bf16.xpose.msra.mxu0 0
    %10122 = vmatprep.subr.bf16.mxu0 0
    %10123 = vmatpush1.bf16.xpose.msra.mxu0 0
    %10124 = vmatprep.subr.bf16.mxu0 0
    %10125 = vmatpush1.bf16.xpose.msra.mxu0 0
    %10126 = vmatprep.subr.bf16.mxu0 0
    %10127 = vmatpush1.bf16.xpose.msra.mxu0 0
    %10128 = vmatprep.subr.bf16.mxu0 0
    %10129 = vmatpush1.bf16.xpose.msra.mxu0 0
    %10130 = vmatprep.subr.bf16.mxu0 0
    %10131 = vmatpush1.bf16.xpose.msra.mxu0 0
    %10132 = vmatprep.subr.bf16.mxu0 0
    %10133 = vmatpush1.bf16.xpose.msra.mxu0 0
    %10134 = vmatprep.mubr.bf16.mxu0 0
    %10135 = vmatmul.mubr.bf16.gmra.mrb[0].mxu0 %v10097
    %v10136 = vpop.f32.mrb[0].mxu0
    %v10137 = vadd.f32 0.0, %v10136
    %v10138 = vpop.f32.mrb[0].mxu0
    %v10139 = vpop.f32.mrb[0].mxu0
    %v10140 = vpop.f32.mrb[0].mxu0
    %10141 = vdwg.mxu0
    %v10142 = vrot.slane %v9052, 3
    %v10143 = vrot.slane %v9053, 2
    %v10144 = vsel %vm1278, %v10143, %v10142
    %v10145 = vrot.slane %v9054, 1
    %v10146 = vsel %vm1281, %v10145, %v10144
    %v10147 = vsel %vm1284, %v9055, %v10146
    %v10148 = vrot.slane %v9056, 7
    %v10149 = vsel %vm1287, %v10148, %v10147
    %v10150 = vrot.slane %v9057, 6
    %v10151 = vsel %vm1290, %v10150, %v10149
    %v10152 = vrot.slane %v9058, 5
    %v10153 = vsel %vm1293, %v10152, %v10151
    %v10154 = vrot.slane %v9059, 4
    %v10155 = vsel %vm1296, %v10154, %v10153
    %v10156 = vpack.c.b16 %v10155, %v10155
    %v10157 = vrot.slane %v9091, 3
    %v10158 = vrot.slane %v9092, 2
    %v10159 = vsel %vm1278, %v10158, %v10157
    %v10160 = vrot.slane %v9093, 1
    %v10161 = vsel %vm1281, %v10160, %v10159
    %v10162 = vsel %vm1284, %v9094, %v10161
    %v10163 = vrot.slane %v9095, 7
    %v10164 = vsel %vm1287, %v10163, %v10162
    %v10165 = vrot.slane %v9096, 6
    %v10166 = vsel %vm1290, %v10165, %v10164
    %v10167 = vrot.slane %v9097, 5
    %v10168 = vsel %vm1293, %v10167, %v10166
    %v10169 = vrot.slane %v9098, 4
    %v10170 = vsel %vm1296, %v10169, %v10168
    %v10171 = vrot.slane %v9099, 3
    %v10172 = vrot.slane %v9100, 2
    %v10173 = vsel %vm1278, %v10172, %v10171
    %v10174 = vrot.slane %v9101, 1
    %v10175 = vsel %vm1281, %v10174, %v10173
    %v10176 = vsel %vm1284, %v9102, %v10175
    %v10177 = vrot.slane %v9103, 7
    %v10178 = vsel %vm1287, %v10177, %v10176
    %v10179 = vrot.slane %v9104, 6
    %v10180 = vsel %vm1290, %v10179, %v10178
    %v10181 = vrot.slane %v9105, 5
    %v10182 = vsel %vm1293, %v10181, %v10180
    %v10183 = vrot.slane %v9106, 4
    %v10184 = vsel %vm1296, %v10183, %v10182
    %v10185 = vpack.c.b16 %v10184, %v10170
    %v10187 = vsel %vm1314, %v10156, 0
    %v10190 = vsel %vm1314, %v10185, 0
    %10192 = vmatprep.subr.bf16.mxu0 0
    %10193 = vmatpush1.bf16.xpose.msra.mxu0 %v10190
    %10194 = vmatprep.subr.bf16.mxu0 0
    %10195 = vmatpush1.bf16.xpose.msra.mxu0 0
    %10196 = vmatprep.subr.bf16.mxu0 0
    %10197 = vmatpush1.bf16.xpose.msra.mxu0 0
    %10198 = vmatprep.subr.bf16.mxu0 0
    %10199 = vmatpush1.bf16.xpose.msra.mxu0 0
    %10200 = vmatprep.subr.bf16.mxu0 0
    %10201 = vmatpush1.bf16.xpose.msra.mxu0 0
    %10202 = vmatprep.subr.bf16.mxu0 0
    %10203 = vmatpush1.bf16.xpose.msra.mxu0 0
    %10204 = vmatprep.subr.bf16.mxu0 0
    %10205 = vmatpush1.bf16.xpose.msra.mxu0 0
    %10206 = vmatprep.subr.bf16.mxu0 0
    %10207 = vmatpush1.bf16.xpose.msra.mxu0 0
    %10208 = vmatprep.subr.bf16.mxu0 0
    %10209 = vmatpush1.bf16.xpose.msra.mxu0 0
    %10210 = vmatprep.subr.bf16.mxu0 0
    %10211 = vmatpush1.bf16.xpose.msra.mxu0 0
    %10212 = vmatprep.subr.bf16.mxu0 0
    %10213 = vmatpush1.bf16.xpose.msra.mxu0 0
    %10214 = vmatprep.subr.bf16.mxu0 0
    %10215 = vmatpush1.bf16.xpose.msra.mxu0 0
    %10216 = vmatprep.subr.bf16.mxu0 0
    %10217 = vmatpush1.bf16.xpose.msra.mxu0 0
    %10218 = vmatprep.subr.bf16.mxu0 0
    %10219 = vmatpush1.bf16.xpose.msra.mxu0 0
    %10220 = vmatprep.subr.bf16.mxu0 0
    %10221 = vmatpush1.bf16.xpose.msra.mxu0 0
    %10222 = vmatprep.subr.bf16.mxu0 0
    %10223 = vmatpush1.bf16.xpose.msra.mxu0 0
    %10224 = vmatprep.mubr.bf16.mxu0 0
    %10225 = vmatmul.mubr.bf16.gmra.mrb[0].mxu0 %v10187
    %v10226 = vpop.f32.mrb[0].mxu0
    %v10227 = vadd.f32 0.0, %v10226
    %v10228 = vpop.f32.mrb[0].mxu0
    %v10229 = vpop.f32.mrb[0].mxu0
    %v10230 = vpop.f32.mrb[0].mxu0
    %10231 = vdwg.mxu0
    %v10232 = vsel %vm3933, %v10137, -inf
    %10233 = vmax.xlane.f32.xlu0 %v10232
    %v10234 = vpop.xlane.xlu0 %10233
    %v10235 = vsel %vm3933, %v10227, -inf
    %10236 = vmax.xlane.f32.xlu0 %v10235
    %v10237 = vpop.xlane.xlu0 %10236
    %v10238 = vsub.f32 %v10137, %v10234
    %v10239 = vsub.f32 %v10227, %v10237
    %v10240 = vmul.f32 %v10238, 1.442695
    %v10241 = vpow.pop %v10240
    %v10242 = vmul.f32 %v10239, 1.442695
    %v10243 = vpow.pop %v10242
    %v10244 = vsel %vm3933, %v10241, 0.0
    %10245 = vadd.xlane.f32.xlu0 %v10244
    %v10246 = vpop.xlane.xlu0 %10245
    %v10247 = vsel %vm3933, %v10243, 0.0
    %10248 = vadd.xlane.f32.xlu0 %v10247
    %v10249 = vpop.xlane.xlu0 %10248
    %v10250 = vrcp.pop %v10246
    %v10251 = vrcp.pop %v10249
    %v10252 = vmul.f32 %v10241, %v10250
    %v10253 = vmul.f32 %v10243, %v10251
    %v10254 = vpack.c.bf16 %v10252, %v10252
    %v10255 = vpack.c.bf16 %v10253, %v10253
    %v10256 = vrot.slane %v8953, 7
    %v10257 = vrot.slane %v8954, 6
    %v10258 = vsel %vm1278, %v10257, %v10256
    %v10259 = vrot.slane %v8955, 5
    %v10260 = vsel %vm1281, %v10259, %v10258
    %v10261 = vrot.slane %v8956, 4
    %v10262 = vsel %vm1284, %v10261, %v10260
    %v10263 = vrot.slane %v8957, 3
    %v10264 = vsel %vm1287, %v10263, %v10262
    %v10265 = vrot.slane %v8958, 2
    %v10266 = vsel %vm1290, %v10265, %v10264
    %v10267 = vrot.slane %v8959, 1
    %v10268 = vsel %vm1293, %v10267, %v10266
    %v10269 = vsel %vm1296, %v8960, %v10268
    %v10270 = vrot.slane %v8961, 7
    %v10271 = vrot.slane %v8962, 6
    %v10272 = vsel %vm1278, %v10271, %v10270
    %v10273 = vrot.slane %v8963, 5
    %v10274 = vsel %vm1281, %v10273, %v10272
    %v10275 = vrot.slane %v8964, 4
    %v10276 = vsel %vm1284, %v10275, %v10274
    %v10277 = vrot.slane %v8965, 3
    %v10278 = vsel %vm1287, %v10277, %v10276
    %v10279 = vrot.slane %v8966, 2
    %v10280 = vsel %vm1290, %v10279, %v10278
    %v10281 = vrot.slane %v8967, 1
    %v10282 = vsel %vm1293, %v10281, %v10280
    %v10283 = vsel %vm1296, %v8968, %v10282
    %v10284 = vpack.c.b16 %v10283, %v10269
    %v10287 = vsel %vm3933, %v10254, 0
    %10289 = vmatprep.subr.bf16.mxu0 0
    %10290 = vmatpush1.bf16.msra.mxu0 %v10284
    %10291 = vmatprep.subr.bf16.mxu0 0
    %10292 = vmatpush1.bf16.msra.mxu0 0
    %10293 = vmatprep.subr.bf16.mxu0 0
    %10294 = vmatpush1.bf16.msra.mxu0 0
    %10295 = vmatprep.subr.bf16.mxu0 0
    %10296 = vmatpush1.bf16.msra.mxu0 0
    %10297 = vmatprep.subr.bf16.mxu0 0
    %10298 = vmatpush1.bf16.msra.mxu0 0
    %10299 = vmatprep.subr.bf16.mxu0 0
    %10300 = vmatpush1.bf16.msra.mxu0 0
    %10301 = vmatprep.subr.bf16.mxu0 0
    %10302 = vmatpush1.bf16.msra.mxu0 0
    %10303 = vmatprep.subr.bf16.mxu0 0
    %10304 = vmatpush1.bf16.msra.mxu0 0
    %10305 = vmatprep.subr.bf16.mxu0 0
    %10306 = vmatpush1.bf16.msra.mxu0 0
    %10307 = vmatprep.subr.bf16.mxu0 0
    %10308 = vmatpush1.bf16.msra.mxu0 0
    %10309 = vmatprep.subr.bf16.mxu0 0
    %10310 = vmatpush1.bf16.msra.mxu0 0
    %10311 = vmatprep.subr.bf16.mxu0 0
    %10312 = vmatpush1.bf16.msra.mxu0 0
    %10313 = vmatprep.subr.bf16.mxu0 0
    %10314 = vmatpush1.bf16.msra.mxu0 0
    %10315 = vmatprep.subr.bf16.mxu0 0
    %10316 = vmatpush1.bf16.msra.mxu0 0
    %10317 = vmatprep.subr.bf16.mxu0 0
    %10318 = vmatpush1.bf16.msra.mxu0 0
    %10319 = vmatprep.subr.bf16.mxu0 0
    %10320 = vmatpush1.bf16.msra.mxu0 0
    %10321 = vmatprep.mubr.bf16.mxu0 0
    %10322 = vmatmul.mubr.bf16.gmra.mrb[0].mxu0 %v10287
    %v10323 = vpop.f32.mrb[0].mxu0
    %v10324 = vadd.f32 0.0, %v10323
    %v10325 = vpop.f32.mrb[0].mxu0
    %v10326 = vpop.f32.mrb[0].mxu0
    %v10327 = vpop.f32.mrb[0].mxu0
    %10328 = vdwg.mxu0
    %v10329 = vrot.slane %v9091, 7
    %v10330 = vrot.slane %v9092, 6
    %v10331 = vsel %vm1278, %v10330, %v10329
    %v10332 = vrot.slane %v9093, 5
    %v10333 = vsel %vm1281, %v10332, %v10331
    %v10334 = vrot.slane %v9094, 4
    %v10335 = vsel %vm1284, %v10334, %v10333
    %v10336 = vrot.slane %v9095, 3
    %v10337 = vsel %vm1287, %v10336, %v10335
    %v10338 = vrot.slane %v9096, 2
    %v10339 = vsel %vm1290, %v10338, %v10337
    %v10340 = vrot.slane %v9097, 1
    %v10341 = vsel %vm1293, %v10340, %v10339
    %v10342 = vsel %vm1296, %v9098, %v10341
    %v10343 = vrot.slane %v9099, 7
    %v10344 = vrot.slane %v9100, 6
    %v10345 = vsel %vm1278, %v10344, %v10343
    %v10346 = vrot.slane %v9101, 5
    %v10347 = vsel %vm1281, %v10346, %v10345
    %v10348 = vrot.slane %v9102, 4
    %v10349 = vsel %vm1284, %v10348, %v10347
    %v10350 = vrot.slane %v9103, 3
    %v10351 = vsel %vm1287, %v10350, %v10349
    %v10352 = vrot.slane %v9104, 2
    %v10353 = vsel %vm1290, %v10352, %v10351
    %v10354 = vrot.slane %v9105, 1
    %v10355 = vsel %vm1293, %v10354, %v10353
    %v10356 = vsel %vm1296, %v9106, %v10355
    %v10357 = vpack.c.b16 %v10356, %v10342
    %v10360 = vsel %vm3933, %v10255, 0
    %10362 = vmatprep.subr.bf16.mxu0 0
    %10363 = vmatpush1.bf16.msra.mxu0 %v10357
    %10364 = vmatprep.subr.bf16.mxu0 0
    %10365 = vmatpush1.bf16.msra.mxu0 0
    %10366 = vmatprep.subr.bf16.mxu0 0
    %10367 = vmatpush1.bf16.msra.mxu0 0
    %10368 = vmatprep.subr.bf16.mxu0 0
    %10369 = vmatpush1.bf16.msra.mxu0 0
    %10370 = vmatprep.subr.bf16.mxu0 0
    %10371 = vmatpush1.bf16.msra.mxu0 0
    %10372 = vmatprep.subr.bf16.mxu0 0
    %10373 = vmatpush1.bf16.msra.mxu0 0
    %10374 = vmatprep.subr.bf16.mxu0 0
    %10375 = vmatpush1.bf16.msra.mxu0 0
    %10376 = vmatprep.subr.bf16.mxu0 0
    %10377 = vmatpush1.bf16.msra.mxu0 0
    %10378 = vmatprep.subr.bf16.mxu0 0
    %10379 = vmatpush1.bf16.msra.mxu0 0
    %10380 = vmatprep.subr.bf16.mxu0 0
    %10381 = vmatpush1.bf16.msra.mxu0 0
    %10382 = vmatprep.subr.bf16.mxu0 0
    %10383 = vmatpush1.bf16.msra.mxu0 0
    %10384 = vmatprep.subr.bf16.mxu0 0
    %10385 = vmatpush1.bf16.msra.mxu0 0
    %10386 = vmatprep.subr.bf16.mxu0 0
    %10387 = vmatpush1.bf16.msra.mxu0 0
    %10388 = vmatprep.subr.bf16.mxu0 0
    %10389 = vmatpush1.bf16.msra.mxu0 0
    %10390 = vmatprep.subr.bf16.mxu0 0
    %10391 = vmatpush1.bf16.msra.mxu0 0
    %10392 = vmatprep.subr.bf16.mxu0 0
    %10393 = vmatpush1.bf16.msra.mxu0 0
    %10394 = vmatprep.mubr.bf16.mxu0 0
    %10395 = vmatmul.mubr.bf16.gmra.mrb[0].mxu0 %v10360
    %v10396 = vpop.f32.mrb[0].mxu0
    %v10397 = vadd.f32 0.0, %v10396
    %v10398 = vpop.f32.mrb[0].mxu0
    %v10399 = vpop.f32.mrb[0].mxu0
    %v10400 = vpop.f32.mrb[0].mxu0
    %10401 = vdwg.mxu0
    %10404 = vrot.lane.b32.xlu0 %v9624, 32
    %v10405 = vpop.permute.xlu0 %10404
    %10406 = vrot.lane.b32.xlu0 %v9697, 32
    %v10407 = vpop.permute.xlu0 %10406
    %10412 = vrot.lane.b32.xlu0 %v9974, 64
    %v10413 = vpop.permute.xlu0 %10412
    %10414 = vrot.lane.b32.xlu0 %v10047, 64
    %v10415 = vpop.permute.xlu0 %10414
    %10420 = vrot.lane.b32.xlu0 %v10324, 96
    %v10421 = vpop.permute.xlu0 %10420
    %10422 = vrot.lane.b32.xlu0 %v10397, 96
    %v10423 = vpop.permute.xlu0 %10422
    %v10426 = vsel %vm1314, %v9274, %v10405
    %v10427 = vsel %vm1314, %v9347, %v10407
    %v10428 = vsel %vm2553, %v10426, %v10413
    %v10429 = vsel %vm2553, %v10427, %v10415
    %v10430 = vsel %vm2556, %v10428, %v10421
    %v10431 = vsel %vm2556, %v10429, %v10423
    %v10432 = vpack.c.bf16 %v10431, %v10430
    %s10433 = scalar_lea.vmem %s17, 1
    %v10434 = vld [vmem:[%s10433] sm:$0x1]
    %v10436 = vlaneseq
    %v10437 = vshrl.u32 %v10436, 7
    %v10438 = vsub.s32 0, %v10437
    %v10439 = vrot.slane %v10434, %v10438
    %v10457 = vunpack.c.l.b16 %v8842
    %v10458 = vunpack.c.l.b16 %v8843
    %v10459 = vunpack.c.l.b16 %v8844
    %v10460 = vunpack.c.l.b16 %v8845
    %v10461 = vunpack.c.l.b16 %v8846
    %v10462 = vunpack.c.l.b16 %v8847
    %v10463 = vunpack.c.l.b16 %v8848
    %v10464 = vunpack.c.l.b16 %v8849
    %v10465 = vunpack.c.l.b16 %v8850
    %v10466 = vunpack.c.l.b16 %v8851
    %v10467 = vunpack.c.l.b16 %v8852
    %v10468 = vunpack.c.l.b16 %v8853
    %v10469 = vunpack.c.l.b16 %v8854
    %v10470 = vunpack.c.l.b16 %v8855
    %v10471 = vunpack.c.l.b16 %v8856
    %v10472 = vunpack.c.l.b16 %v8857
    %v10473 = vpack.c.b16 %v10458, %v10457
    %v10474 = vpack.c.b16 %v10460, %v10459
    %v10475 = vpack.c.b16 %v10462, %v10461
    %v10476 = vpack.c.b16 %v10464, %v10463
    %v10477 = vpack.c.b16 %v10466, %v10465
    %v10478 = vpack.c.b16 %v10468, %v10467
    %v10479 = vpack.c.b16 %v10470, %v10469
    %v10480 = vpack.c.b16 %v10472, %v10471
    %10489 = vmatprep.subr.bf16.mxu0 0
    %10490 = vmatpush1.bf16.msra.mxu0 %v10473
    %10491 = vmatprep.subr.bf16.mxu0 0
    %10492 = vmatpush1.bf16.msra.mxu0 %v10474
    %10493 = vmatprep.subr.bf16.mxu0 0
    %10494 = vmatpush1.bf16.msra.mxu0 %v10475
    %10495 = vmatprep.subr.bf16.mxu0 0
    %10496 = vmatpush1.bf16.msra.mxu0 %v10476
    %10497 = vmatprep.subr.bf16.mxu0 0
    %10498 = vmatpush1.bf16.msra.mxu0 %v10477
    %10499 = vmatprep.subr.bf16.mxu0 0
    %10500 = vmatpush1.bf16.msra.mxu0 %v10478
    %10501 = vmatprep.subr.bf16.mxu0 0
    %10502 = vmatpush1.bf16.msra.mxu0 %v10479
    %10503 = vmatprep.subr.bf16.mxu0 0
    %10504 = vmatpush1.bf16.msra.mxu0 %v10480
    %10505 = vmatprep.subr.bf16.mxu0 0
    %10506 = vmatpush1.bf16.msra.mxu0 0
    %10507 = vmatprep.subr.bf16.mxu0 0
    %10508 = vmatpush1.bf16.msra.mxu0 0
    %10509 = vmatprep.subr.bf16.mxu0 0
    %10510 = vmatpush1.bf16.msra.mxu0 0
    %10511 = vmatprep.subr.bf16.mxu0 0
    %10512 = vmatpush1.bf16.msra.mxu0 0
    %10513 = vmatprep.subr.bf16.mxu0 0
    %10514 = vmatpush1.bf16.msra.mxu0 0
    %10515 = vmatprep.subr.bf16.mxu0 0
    %10516 = vmatpush1.bf16.msra.mxu0 0
    %10517 = vmatprep.subr.bf16.mxu0 0
    %10518 = vmatpush1.bf16.msra.mxu0 0
    %10519 = vmatprep.subr.bf16.mxu0 0
    %10520 = vmatpush1.bf16.msra.mxu0 0
    %10521 = vmatprep.mubr.bf16.mxu0 0
    %10522 = vmatmul.mubr.bf16.gmra.mrb[0].mxu0 %v10432
    %v10523 = vpop.f32.mrb[0].mxu0
    %v10524 = vadd.f32 %v10439, %v10523
    %v10525 = vpop.f32.mrb[0].mxu0
    %v10526 = vpop.f32.mrb[0].mxu0
    %v10527 = vadd.f32 %v10439, %v10526
    %v10528 = vpop.f32.mrb[0].mxu0
    %10529 = vdwg.mxu0
    %v10530 = vadd.f32 %v10524, %v7944
    %v10531 = vadd.f32 %v10527, %v7945
    %s10532 = scalar_lea.vmem %s18, 1
    %v10533 = vld [vmem:[%s10532] sm:$0x1]
    %s10534 = scalar_lea.vmem %s19, 1
    %v10535 = vld [vmem:[%s10534] sm:$0x1]
    %10536 = vadd.xlane.f32.xlu0 %v10530
    %v10537 = vpop.xlane.xlu0 %10536
    %10538 = vadd.xlane.f32.xlu0 %v10531
    %v10539 = vpop.xlane.xlu0 %10538
    %v10540 = vmul.f32 %v10537, %v114
    %v10541 = vmul.f32 %v10539, %v114
    %v10542 = vsub.f32 %v10530, %v10540
    %v10543 = vsub.f32 %v10531, %v10541
    %v10544 = vmul.f32 %v10542, %v10542
    %v10545 = vmul.f32 %v10543, %v10543
    %10546 = vadd.xlane.f32.xlu0 %v10544
    %v10547 = vpop.xlane.xlu0 %10546
    %10548 = vadd.xlane.f32.xlu0 %v10545
    %v10549 = vpop.xlane.xlu0 %10548
    %v10550 = vmul.f32 %v10547, %v114
    %v10551 = vmul.f32 %v10549, %v114
    %v10552 = vadd.f32 %v10550, 1e-12
    %v10553 = vadd.f32 %v10551, 1e-12
    %v10554 = vrsqrt.pop %v10552
    %v10555 = vrsqrt.pop %v10553
    %v10556 = vmul.f32 %v10542, %v10554
    %v10557 = vmul.f32 %v10543, %v10555
    %v10559 = vlaneseq
    %v10560 = vshrl.u32 %v10559, 7
    %v10561 = vsub.s32 0, %v10560
    %v10562 = vrot.slane %v10533, %v10561
    %v10564 = vmul.f32 %v10556, %v10562
    %v10565 = vmul.f32 %v10557, %v10562
    %v10567 = vlaneseq
    %v10568 = vshrl.u32 %v10567, 7
    %v10569 = vsub.s32 0, %v10568
    %v10570 = vrot.slane %v10535, %v10569
    %v10572 = vadd.f32 %v10564, %v10570
    %v10573 = vadd.f32 %v10565, %v10570
    %v10574 = vmul.f32 %v10572, %v93
    %v10575 = vmul.f32 %v10573, %v98
    %v10576 = vpack.c.bf16 %v10575, %v10574
    %s10577 = scalar_lea.vmem %s20, 128
    %v10578 = vld [vmem:[%s10577] sm:$0xff]
    %v10579 = vld [vmem:[%s10577 + $0x8] sm:$0xff]
    %v10580 = vld [vmem:[%s10577 + $0x10] sm:$0xff]
    %v10581 = vld [vmem:[%s10577 + $0x18] sm:$0xff]
    %v10582 = vld [vmem:[%s10577 + $0x20] sm:$0xff]
    %v10583 = vld [vmem:[%s10577 + $0x28] sm:$0xff]
    %v10584 = vld [vmem:[%s10577 + $0x30] sm:$0xff]
    %v10585 = vld [vmem:[%s10577 + $0x38] sm:$0xff]
    %v10586 = vld [vmem:[%s10577 + $0x40] sm:$0xff]
    %v10587 = vld [vmem:[%s10577 + $0x48] sm:$0xff]
    %v10588 = vld [vmem:[%s10577 + $0x50] sm:$0xff]
    %v10589 = vld [vmem:[%s10577 + $0x58] sm:$0xff]
    %v10590 = vld [vmem:[%s10577 + $0x60] sm:$0xff]
    %v10591 = vld [vmem:[%s10577 + $0x68] sm:$0xff]
    %v10592 = vld [vmem:[%s10577 + $0x70] sm:$0xff]
    %v10593 = vld [vmem:[%s10577 + $0x78] sm:$0xff]
    %s10594 = scalar_lea.vmem %s21, 2
    %v10595 = vld [vmem:[%s10594] sm:$0x3]
    %v10597 = vlaneseq
    %v10598 = vshrl.u32 %v10597, 7
    %v10599 = vsub.s32 0, %v10598
    %v10600 = vrot.slane %v10595, %v10599
    %v10601 = vlaneseq
    %v10602 = vshrl.u32 %v10601, 7
    %v10603 = vsub.s32 1, %v10602
    %v10604 = vrot.slane %v10595, %v10603
    %v10623 = vunpack.c.l.b16 %v10578
    %v10624 = vunpack.c.h.b16 %v10578
    %v10625 = vunpack.c.l.b16 %v10579
    %v10626 = vunpack.c.h.b16 %v10579
    %v10627 = vunpack.c.l.b16 %v10580
    %v10628 = vunpack.c.h.b16 %v10580
    %v10629 = vunpack.c.l.b16 %v10581
    %v10630 = vunpack.c.h.b16 %v10581
    %v10631 = vunpack.c.l.b16 %v10582
    %v10632 = vunpack.c.h.b16 %v10582
    %v10633 = vunpack.c.l.b16 %v10583
    %v10634 = vunpack.c.h.b16 %v10583
    %v10635 = vunpack.c.l.b16 %v10584
    %v10636 = vunpack.c.h.b16 %v10584
    %v10637 = vunpack.c.l.b16 %v10585
    %v10638 = vunpack.c.h.b16 %v10585
    %v10639 = vunpack.c.l.b16 %v10586
    %v10640 = vunpack.c.h.b16 %v10586
    %v10641 = vunpack.c.l.b16 %v10587
    %v10642 = vunpack.c.h.b16 %v10587
    %v10643 = vunpack.c.l.b16 %v10588
    %v10644 = vunpack.c.h.b16 %v10588
    %v10645 = vunpack.c.l.b16 %v10589
    %v10646 = vunpack.c.h.b16 %v10589
    %v10647 = vunpack.c.l.b16 %v10590
    %v10648 = vunpack.c.h.b16 %v10590
    %v10649 = vunpack.c.l.b16 %v10591
    %v10650 = vunpack.c.h.b16 %v10591
    %v10651 = vunpack.c.l.b16 %v10592
    %v10652 = vunpack.c.h.b16 %v10592
    %v10653 = vunpack.c.l.b16 %v10593
    %v10654 = vunpack.c.h.b16 %v10593
    %v10655 = vpack.c.b16 %v10625, %v10623
    %v10656 = vpack.c.b16 %v10626, %v10624
    %v10657 = vpack.c.b16 %v10629, %v10627
    %v10658 = vpack.c.b16 %v10630, %v10628
    %v10659 = vpack.c.b16 %v10633, %v10631
    %v10660 = vpack.c.b16 %v10634, %v10632
    %v10661 = vpack.c.b16 %v10637, %v10635
    %v10662 = vpack.c.b16 %v10638, %v10636
    %v10663 = vpack.c.b16 %v10641, %v10639
    %v10664 = vpack.c.b16 %v10642, %v10640
    %v10665 = vpack.c.b16 %v10645, %v10643
    %v10666 = vpack.c.b16 %v10646, %v10644
    %v10667 = vpack.c.b16 %v10649, %v10647
    %v10668 = vpack.c.b16 %v10650, %v10648
    %v10669 = vpack.c.b16 %v10653, %v10651
    %v10670 = vpack.c.b16 %v10654, %v10652
    %10687 = vmatprep.subr.bf16.mxu0 %v10656
    %10688 = vmatpush1.bf16.msra.mxu0 %v10655
    %10689 = vmatprep.subr.bf16.mxu0 %v10658
    %10690 = vmatpush1.bf16.msra.mxu0 %v10657
    %10691 = vmatprep.subr.bf16.mxu0 %v10660
    %10692 = vmatpush1.bf16.msra.mxu0 %v10659
    %10693 = vmatprep.subr.bf16.mxu0 %v10662
    %10694 = vmatpush1.bf16.msra.mxu0 %v10661
    %10695 = vmatprep.subr.bf16.mxu0 %v10664
    %10696 = vmatpush1.bf16.msra.mxu0 %v10663
    %10697 = vmatprep.subr.bf16.mxu0 %v10666
    %10698 = vmatpush1.bf16.msra.mxu0 %v10665
    %10699 = vmatprep.subr.bf16.mxu0 %v10668
    %10700 = vmatpush1.bf16.msra.mxu0 %v10667
    %10701 = vmatprep.subr.bf16.mxu0 %v10670
    %10702 = vmatpush1.bf16.msra.mxu0 %v10669
    %10703 = vmatprep.subr.bf16.mxu0 0
    %10704 = vmatpush1.bf16.msra.mxu0 0
    %10705 = vmatprep.subr.bf16.mxu0 0
    %10706 = vmatpush1.bf16.msra.mxu0 0
    %10707 = vmatprep.subr.bf16.mxu0 0
    %10708 = vmatpush1.bf16.msra.mxu0 0
    %10709 = vmatprep.subr.bf16.mxu0 0
    %10710 = vmatpush1.bf16.msra.mxu0 0
    %10711 = vmatprep.subr.bf16.mxu0 0
    %10712 = vmatpush1.bf16.msra.mxu0 0
    %10713 = vmatprep.subr.bf16.mxu0 0
    %10714 = vmatpush1.bf16.msra.mxu0 0
    %10715 = vmatprep.subr.bf16.mxu0 0
    %10716 = vmatpush1.bf16.msra.mxu0 0
    %10717 = vmatprep.subr.bf16.mxu0 0
    %10718 = vmatpush1.bf16.msra.mxu0 0
    %10719 = vmatprep.mubr.bf16.mxu0 0
    %10720 = vmatmul.mubr.bf16.gmra.mrb[0].mxu0 %v10576
    %v10721 = vpop.f32.mrb[0].mxu0
    %v10722 = vadd.f32 %v10600, %v10721
    %v10723 = vpop.f32.mrb[0].mxu0
    %v10724 = vadd.f32 %v10604, %v10723
    %v10725 = vpop.f32.mrb[0].mxu0
    %v10726 = vadd.f32 %v10600, %v10725
    %v10727 = vpop.f32.mrb[0].mxu0
    %v10728 = vadd.f32 %v10604, %v10727
    %10729 = vdwg.mxu0
    %v10730 = vmul.f32 %v10722, %v10722
    %v10731 = vmul.f32 %v10724, %v10724
    %v10732 = vmul.f32 %v10726, %v10726
    %v10733 = vmul.f32 %v10728, %v10728
    %v10734 = vmul.f32 %v10722, %v10730
    %v10735 = vmul.f32 %v10724, %v10731
    %v10736 = vmul.f32 %v10726, %v10732
    %v10737 = vmul.f32 %v10728, %v10733
    %v10738 = vmul.f32 %v10734, 0.044715
    %v10739 = vmul.f32 %v10735, 0.044715
    %v10740 = vmul.f32 %v10736, 0.044715
    %v10741 = vmul.f32 %v10737, 0.044715
    %v10742 = vadd.f32 %v10722, %v10738
    %v10743 = vadd.f32 %v10724, %v10739
    %v10744 = vadd.f32 %v10726, %v10740
    %v10745 = vadd.f32 %v10728, %v10741
    %v10746 = vmul.f32 %v10742, 0.7978846
    %v10747 = vmul.f32 %v10743, 0.7978846
    %v10748 = vmul.f32 %v10744, 0.7978846
    %v10749 = vmul.f32 %v10745, 0.7978846
    %v10750 = vtanh.pop %v10746
    %v10751 = vtanh.pop %v10747
    %v10752 = vtanh.pop %v10748
    %v10753 = vtanh.pop %v10749
    %v10754 = vadd.f32 %v10750, 1.0
    %v10755 = vadd.f32 %v10751, 1.0
    %v10756 = vadd.f32 %v10752, 1.0
    %v10757 = vadd.f32 %v10753, 1.0
    %v10758 = vmul.f32 %v10754, 0.5
    %v10759 = vmul.f32 %v10755, 0.5
    %v10760 = vmul.f32 %v10756, 0.5
    %v10761 = vmul.f32 %v10757, 0.5
    %v10762 = vmul.f32 %v10722, %v10758
    %v10763 = vmul.f32 %v10724, %v10759
    %v10764 = vmul.f32 %v10726, %v10760
    %v10765 = vmul.f32 %v10728, %v10761
    %v10766 = vpack.c.bf16 %v10764, %v10762
    %v10767 = vpack.c.bf16 %v10765, %v10763
    %s10768 = scalar_lea.vmem %s22, 128
    %v10769 = vld [vmem:[%s10768] sm:$0xf]
    %v10770 = vld [vmem:[%s10768 + $0x4] sm:$0xf]
    %v10771 = vld [vmem:[%s10768 + $0x8] sm:$0xf]
    %v10772 = vld [vmem:[%s10768 + $0xc] sm:$0xf]
    %v10773 = vld [vmem:[%s10768 + $0x10] sm:$0xf]
    %v10774 = vld [vmem:[%s10768 + $0x14] sm:$0xf]
    %v10775 = vld [vmem:[%s10768 + $0x18] sm:$0xf]
    %v10776 = vld [vmem:[%s10768 + $0x1c] sm:$0xf]
    %v10777 = vld [vmem:[%s10768 + $0x20] sm:$0xf]
    %v10778 = vld [vmem:[%s10768 + $0x24] sm:$0xf]
    %v10779 = vld [vmem:[%s10768 + $0x28] sm:$0xf]
    %v10780 = vld [vmem:[%s10768 + $0x2c] sm:$0xf]
    %v10781 = vld [vmem:[%s10768 + $0x30] sm:$0xf]
    %v10782 = vld [vmem:[%s10768 + $0x34] sm:$0xf]
    %v10783 = vld [vmem:[%s10768 + $0x38] sm:$0xf]
    %v10784 = vld [vmem:[%s10768 + $0x3c] sm:$0xf]
    %v10785 = vld [vmem:[%s10768 + $0x40] sm:$0xf]
    %v10786 = vld [vmem:[%s10768 + $0x44] sm:$0xf]
    %v10787 = vld [vmem:[%s10768 + $0x48] sm:$0xf]
    %v10788 = vld [vmem:[%s10768 + $0x4c] sm:$0xf]
    %v10789 = vld [vmem:[%s10768 + $0x50] sm:$0xf]
    %v10790 = vld [vmem:[%s10768 + $0x54] sm:$0xf]
    %v10791 = vld [vmem:[%s10768 + $0x58] sm:$0xf]
    %v10792 = vld [vmem:[%s10768 + $0x5c] sm:$0xf]
    %v10793 = vld [vmem:[%s10768 + $0x60] sm:$0xf]
    %v10794 = vld [vmem:[%s10768 + $0x64] sm:$0xf]
    %v10795 = vld [vmem:[%s10768 + $0x68] sm:$0xf]
    %v10796 = vld [vmem:[%s10768 + $0x6c] sm:$0xf]
    %v10797 = vld [vmem:[%s10768 + $0x70] sm:$0xf]
    %v10798 = vld [vmem:[%s10768 + $0x74] sm:$0xf]
    %v10799 = vld [vmem:[%s10768 + $0x78] sm:$0xf]
    %v10800 = vld [vmem:[%s10768 + $0x7c] sm:$0xf]
    %s10801 = scalar_lea.vmem %s23, 1
    %v10802 = vld [vmem:[%s10801] sm:$0x1]
    %v10804 = vlaneseq
    %v10805 = vshrl.u32 %v10804, 7
    %v10806 = vsub.s32 0, %v10805
    %v10807 = vrot.slane %v10802, %v10806
    %v10841 = vunpack.c.l.b16 %v10769
    %v10842 = vunpack.c.l.b16 %v10770
    %v10843 = vunpack.c.l.b16 %v10771
    %v10844 = vunpack.c.l.b16 %v10772
    %v10845 = vunpack.c.l.b16 %v10773
    %v10846 = vunpack.c.l.b16 %v10774
    %v10847 = vunpack.c.l.b16 %v10775
    %v10848 = vunpack.c.l.b16 %v10776
    %v10849 = vunpack.c.l.b16 %v10777
    %v10850 = vunpack.c.l.b16 %v10778
    %v10851 = vunpack.c.l.b16 %v10779
    %v10852 = vunpack.c.l.b16 %v10780
    %v10853 = vunpack.c.l.b16 %v10781
    %v10854 = vunpack.c.l.b16 %v10782
    %v10855 = vunpack.c.l.b16 %v10783
    %v10856 = vunpack.c.l.b16 %v10784
    %v10857 = vunpack.c.l.b16 %v10785
    %v10858 = vunpack.c.l.b16 %v10786
    %v10859 = vunpack.c.l.b16 %v10787
    %v10860 = vunpack.c.l.b16 %v10788
    %v10861 = vunpack.c.l.b16 %v10789
    %v10862 = vunpack.c.l.b16 %v10790
    %v10863 = vunpack.c.l.b16 %v10791
    %v10864 = vunpack.c.l.b16 %v10792
    %v10865 = vunpack.c.l.b16 %v10793
    %v10866 = vunpack.c.l.b16 %v10794
    %v10867 = vunpack.c.l.b16 %v10795
    %v10868 = vunpack.c.l.b16 %v10796
    %v10869 = vunpack.c.l.b16 %v10797
    %v10870 = vunpack.c.l.b16 %v10798
    %v10871 = vunpack.c.l.b16 %v10799
    %v10872 = vunpack.c.l.b16 %v10800
    %v10873 = vpack.c.b16 %v10842, %v10841
    %v10874 = vpack.c.b16 %v10844, %v10843
    %v10875 = vpack.c.b16 %v10846, %v10845
    %v10876 = vpack.c.b16 %v10848, %v10847
    %v10877 = vpack.c.b16 %v10850, %v10849
    %v10878 = vpack.c.b16 %v10852, %v10851
    %v10879 = vpack.c.b16 %v10854, %v10853
    %v10880 = vpack.c.b16 %v10856, %v10855
    %v10881 = vpack.c.b16 %v10858, %v10857
    %v10882 = vpack.c.b16 %v10860, %v10859
    %v10883 = vpack.c.b16 %v10862, %v10861
    %v10884 = vpack.c.b16 %v10864, %v10863
    %v10885 = vpack.c.b16 %v10866, %v10865
    %v10886 = vpack.c.b16 %v10868, %v10867
    %v10887 = vpack.c.b16 %v10870, %v10869
    %v10888 = vpack.c.b16 %v10872, %v10871
    %10905 = vmatprep.subr.bf16.mxu0 0
    %10906 = vmatpush1.bf16.msra.mxu0 %v10873
    %10907 = vmatprep.subr.bf16.mxu0 0
    %10908 = vmatpush1.bf16.msra.mxu0 %v10874
    %10909 = vmatprep.subr.bf16.mxu0 0
    %10910 = vmatpush1.bf16.msra.mxu0 %v10875
    %10911 = vmatprep.subr.bf16.mxu0 0
    %10912 = vmatpush1.bf16.msra.mxu0 %v10876
    %10913 = vmatprep.subr.bf16.mxu0 0
    %10914 = vmatpush1.bf16.msra.mxu0 %v10877
    %10915 = vmatprep.subr.bf16.mxu0 0
    %10916 = vmatpush1.bf16.msra.mxu0 %v10878
    %10917 = vmatprep.subr.bf16.mxu0 0
    %10918 = vmatpush1.bf16.msra.mxu0 %v10879
    %10919 = vmatprep.subr.bf16.mxu0 0
    %10920 = vmatpush1.bf16.msra.mxu0 %v10880
    %10921 = vmatprep.subr.bf16.mxu0 0
    %10922 = vmatpush1.bf16.msra.mxu0 %v10881
    %10923 = vmatprep.subr.bf16.mxu0 0
    %10924 = vmatpush1.bf16.msra.mxu0 %v10882
    %10925 = vmatprep.subr.bf16.mxu0 0
    %10926 = vmatpush1.bf16.msra.mxu0 %v10883
    %10927 = vmatprep.subr.bf16.mxu0 0
    %10928 = vmatpush1.bf16.msra.mxu0 %v10884
    %10929 = vmatprep.subr.bf16.mxu0 0
    %10930 = vmatpush1.bf16.msra.mxu0 %v10885
    %10931 = vmatprep.subr.bf16.mxu0 0
    %10932 = vmatpush1.bf16.msra.mxu0 %v10886
    %10933 = vmatprep.subr.bf16.mxu0 0
    %10934 = vmatpush1.bf16.msra.mxu0 %v10887
    %10935 = vmatprep.subr.bf16.mxu0 0
    %10936 = vmatpush1.bf16.msra.mxu0 %v10888
    %10937 = vmatprep.mubr.bf16.mxu0 %v10767
    %10938 = vmatmul.mubr.bf16.gmra.mrb[0].mxu0 %v10766
    %v10939 = vpop.f32.mrb[0].mxu0
    %v10940 = vadd.f32 %v10807, %v10939
    %v10941 = vpop.f32.mrb[0].mxu0
    %v10942 = vpop.f32.mrb[0].mxu0
    %v10943 = vadd.f32 %v10807, %v10942
    %v10944 = vpop.f32.mrb[0].mxu0
    %10945 = vdwg.mxu0
    %v10946 = vadd.f32 %v10940, %v10574
    %v10947 = vadd.f32 %v10943, %v10575
    %s10948 = scalar_lea.vmem %s24, 1
    %v10949 = vld [vmem:[%s10948] sm:$0x1]
    %s10950 = scalar_lea.vmem %s25, 1
    %v10951 = vld [vmem:[%s10950] sm:$0x1]
    %10952 = vadd.xlane.f32.xlu0 %v10946
    %v10953 = vpop.xlane.xlu0 %10952
    %10954 = vadd.xlane.f32.xlu0 %v10947
    %v10955 = vpop.xlane.xlu0 %10954
    %v10956 = vmul.f32 %v10953, %v114
    %v10957 = vmul.f32 %v10955, %v114
    %v10958 = vsub.f32 %v10946, %v10956
    %v10959 = vsub.f32 %v10947, %v10957
    %v10960 = vmul.f32 %v10958, %v10958
    %v10961 = vmul.f32 %v10959, %v10959
    %10962 = vadd.xlane.f32.xlu0 %v10960
    %v10963 = vpop.xlane.xlu0 %10962
    %10964 = vadd.xlane.f32.xlu0 %v10961
    %v10965 = vpop.xlane.xlu0 %10964
    %v10966 = vmul.f32 %v10963, %v114
    %v10967 = vmul.f32 %v10965, %v114
    %v10968 = vadd.f32 %v10966, 1e-12
    %v10969 = vadd.f32 %v10967, 1e-12
    %v10970 = vrsqrt.pop %v10968
    %v10971 = vrsqrt.pop %v10969
    %v10972 = vmul.f32 %v10958, %v10970
    %v10973 = vmul.f32 %v10959, %v10971
    %v10975 = vlaneseq
    %v10976 = vshrl.u32 %v10975, 7
    %v10977 = vsub.s32 0, %v10976
    %v10978 = vrot.slane %v10949, %v10977
    %v10980 = vmul.f32 %v10972, %v10978
    %v10981 = vmul.f32 %v10973, %v10978
    %v10983 = vlaneseq
    %v10984 = vshrl.u32 %v10983, 7
    %v10985 = vsub.s32 0, %v10984
    %v10986 = vrot.slane %v10951, %v10985
    %v10988 = vadd.f32 %v10980, %v10986
    %v10989 = vadd.f32 %v10981, %v10986
    %v10990 = vmul.f32 %v10988, %v93
    %v10991 = vmul.f32 %v10989, %v98
    %10992 = vst [vmem:[#allocation2] sm:$0xff] %v10990
    %10993 = vst [vmem:[#allocation2 + $0x8] sm:$0xff] %v10991
    // Predicated region
    $region106: #{bert_decoder_forward.1} parent=1 // pred_check
      _
    $region107: #{bert_decoder_forward.1} parent=1 // pred_check_branch
      %10995 = sbr.rel (0) target = $region109
    $region108: #{bert_decoder_forward.1} parent=1 // pred_region
      %s10997 = ssub.s32 256, 256
      %10998 = vsyncadd [#allocation3], %s10997
      %s10999 = sshll.u32 [#allocation2], 4
      %s11000 = int_to_ptr.vmem [resolvable:$true] %s10999
      %11005 = dma.vmem_to_hbm [thread:$0]  %s11000, 256, %s26, [#allocation3], 128, 128, 8
    $region109: #{bert_decoder_forward.1} parent=1 // pred_fallthru
      _
    // Predicated region
    $region110: #{bert_decoder_forward.1} parent=1 // pred_check
      _
    $region111: #{bert_decoder_forward.1} parent=1 // pred_check_branch
      %11007 = sbr.rel (0) target = $region113
    $region112: #{bert_decoder_forward.1} parent=1 // pred_region
      %s11009 = ssub.s32 256, 256
      %11010 = vsyncadd [#allocation5], %s11009
      %s11011 = sshll.u32 [#allocation4], 4
      %s11012 = int_to_ptr.vmem [resolvable:$true] %s11011
      %11017 = dma.vmem_to_hbm [thread:$0]  %s11012, 256, %s27, [#allocation5], 128, 128, 8
    $region113: #{bert_decoder_forward.1} parent=1 // pred_fallthru
      _
    // Predicated region
    $region114: #{bert_decoder_forward.1} parent=1 // pred_check
      _
    $region115: #{bert_decoder_forward.1} parent=1 // pred_check_branch
      %11019 = sbr.rel (0) target = $region117
    $region116: #{bert_decoder_forward.1} parent=1 // pred_region
      %11020 = dma.done [#allocation3], 256
    $region117: #{bert_decoder_forward.1} parent=1 // pred_fallthru
      _
    // Predicated region
    $region118: #{bert_decoder_forward.1} parent=1 // pred_check
      _
    $region119: #{bert_decoder_forward.1} parent=1 // pred_check_branch
      %11022 = sbr.rel (0) target = $region121
    $region120: #{bert_decoder_forward.1} parent=1 // pred_region
      %11023 = dma.done [#allocation5], 256
    $region121: #{bert_decoder_forward.1} parent=1 // pred_fallthru
      _
    %11024 = vsyncpa [#allocation3], 1
    %11025 = vsyncpa [#allocation5], 1

</llo_original>
